<compile_context>
chip_gen: v7x
topology: tpu7x:2x2x1
jax: 0.10.0
libtpu: 0.0.40
codegen_flags: <defaults>
</compile_context>

<pallas_src>
import math
from functools import partial

import jax
import jax.numpy as jnp
import numpy as np
from jax.experimental import pallas as pl
from jax.experimental.pallas import tpu as pltpu


# ----------------------------------------------------------------------------
# Basis-table construction (parameter / buffer init — plain JAX/numpy "glue")
# ----------------------------------------------------------------------------
def _fourier_basis(x: np.ndarray, num_functions: int) -> np.ndarray:
    D = len(x)
    basis = np.zeros((num_functions, D), dtype=np.float32)
    for n in range(num_functions):
        freq = n // 2 + 1
        if n % 2 == 0:
            basis[n] = np.cos(2 * math.pi * freq * x)
        else:
            basis[n] = np.sin(2 * math.pi * freq * x)
    return basis / math.sqrt(D)


def _chebyshev_basis(x: np.ndarray, num_functions: int) -> np.ndarray:
    D = len(x)
    t = 2 * x - 1
    basis = np.zeros((num_functions, D), dtype=np.float32)
    if num_functions > 0:
        basis[0] = np.ones_like(t)
    if num_functions > 1:
        basis[1] = t
    for n in range(2, num_functions):
        basis[n] = 2 * t * basis[n - 1] - basis[n - 2]
    return basis / math.sqrt(D)


def _rbf_basis(x: np.ndarray, num_functions: int) -> np.ndarray:
    D = len(x)
    basis = np.zeros((num_functions, D), dtype=np.float32)
    for n in range(num_functions):
        center = n / max(1, num_functions - 1)
        width = 0.1 + 0.05 * n
        basis[n] = np.exp(-(x - center) ** 2 / (2 * width ** 2))
    return basis / math.sqrt(D)


_BASIS_FNS = {
    "fourier": _fourier_basis,
    "chebyshev": _chebyshev_basis,
    "rbf": _rbf_basis,
}
# TODO(synk): remaining basis families (legendre/hermite/laguerre/wavelet/sinc/bessel)
# follow the same table-build path; only the three above are instantiated here.


def build_basis_values(basis_types, num_functions: int, domain_size: int,
                       key: jax.Array) -> jnp.ndarray:
    """Replicates __init__: compute raw bases, add tiny noise, QR-orthonormalize.
    Returns array of shape (num_basis, num_functions, domain_size), float32."""
    x = np.linspace(0.0, 1.0, domain_size, dtype=np.float32)
    raw = np.stack([_BASIS_FNS[bt](x, num_functions) for bt in basis_types], axis=0)
    raw = jnp.asarray(raw, dtype=jnp.float32)

    # deterministic stand-in for the 1e-8 * randn perturbation before QR
    noise = 1e-8 * jax.random.normal(key, raw.shape, dtype=jnp.float32)
    raw = raw + noise

    outs = []
    for i in range(raw.shape[0]):
        q, _ = jnp.linalg.qr(raw[i].T)          # (domain_size, num_functions)
        outs.append(q.T[:num_functions])        # (num_functions, domain_size)
    return jnp.stack(outs, axis=0)


def prepare_basis_tables(basis_values: jnp.ndarray):
    """Hoisted (call-invariant) table prep — do this ONCE and reuse per forward.

    Returns:
      table:  (domain_size, K) f32 — basis values, K = num_basis*num_functions
      slopes: (domain_size, K) f32 — forward differences table[i+1]-table[i]
              (row D-1 is never selected since distances are clipped < 1).
    """
    num_basis, num_functions, domain_size = basis_values.shape
    k = num_basis * num_functions
    table = jnp.transpose(basis_values, (2, 0, 1)).reshape(domain_size, k)
    table = table.astype(jnp.float32)
    slopes = jnp.concatenate(
        [table[1:] - table[:-1], jnp.zeros((1, k), jnp.float32)], axis=0)
    return table, slopes


# ----------------------------------------------------------------------------
# Pallas kernel: one-hot gather via MXU + lane-dense interpolation epilogue
# ----------------------------------------------------------------------------
def _interp_kernel(d_ref, t0_ref, t1_ref, o_ref, *, domain_size: int):
    d = jnp.clip(d_ref[...], 0.0, 1.0 - 1e-6)             # (tm, 1) f32
    idx_f = d * (domain_size - 1)                          # (tm, 1)
    idx0_f = jnp.floor(idx_f)                              # exact integer in f32
    alpha = idx_f - idx0_f                                 # (tm, 1) in [0, 1)
    idx0 = idx0_f.astype(jnp.int32)                        # (tm, 1)

    tm = d.shape[0]
    lane = jax.lax.broadcasted_iota(jnp.int32, (tm, domain_size), 1)
    # One-hot row-gather matrix: W[n, idx0[n]] = 1, else 0 (exact even in bf16).
    w = jnp.where(lane == idx0, 1.0, 0.0)                  # (tm, D) f32

    v0 = jnp.dot(w, t0_ref[...],                           # gathered values
                 precision=jax.lax.Precision.HIGHEST,
                 preferred_element_type=jnp.float32)       # (tm, K)
    dv = jnp.dot(w, t1_ref[...],                           # gathered slopes
                 precision=jax.lax.Precision.HIGHEST,
                 preferred_element_type=jnp.float32)       # (tm, K)

    # Linear interpolation: val0*(1-a) + val1*a == val0 + a*(val1 - val0).
    o_ref[...] = (v0 + alpha * dv).astype(o_ref.dtype)


def orthonormal_basis_bank_forward(distances: jnp.ndarray,
                                   table: jnp.ndarray,
                                   slopes: jnp.ndarray,
                                   num_basis: int,
                                   num_functions: int,
                                   *,
                                   tile_rows: int = 2048,
                                   out_dtype=None) -> jnp.ndarray:
    """distances: arbitrary-shaped float32 in [0, 1].
    table/slopes: (domain_size, num_basis*num_functions) from prepare_basis_tables.
    Returns (*distances.shape, num_basis, num_functions)."""
    domain_size, k = table.shape
    assert k == num_basis * num_functions
    assert slopes.shape == table.shape
    if out_dtype is None:
        out_dtype = jnp.float32   # bf16 is an opt-in precision/perf trade (v5e)

    orig_shape = distances.shape
    flat = distances.reshape(-1).astype(jnp.float32)
    n = flat.shape[0]

    # Big tiles amortize per-step overhead; shrink for small inputs so the grid
    # still spans >= 4 steps (>= 2 per TensorCore on v7x megacore).
    tr = tile_rows
    while tr > 128 and pl.cdiv(n, tr) < 4:
        tr //= 2

    grid = (pl.cdiv(n, tr),)
    n_in = grid[0] * tr
    if n_in != n:
        # Pad only the cheap 4 B/row input so the kernel never reads garbage;
        # the ragged last OUTPUT block is handled by Pallas' masked writes
        # (no out[:n] slice -> no extra full-output HBM copy).
        flat = jnp.pad(flat, (0, n_in - n))
    flat = flat.reshape(n_in, 1)

    out = pl.pallas_call(
        partial(_interp_kernel, domain_size=domain_size),
        out_shape=jax.ShapeDtypeStruct((n, k), out_dtype),
        grid_spec=pltpu.PrefetchScalarGridSpec(
            num_scalar_prefetch=0,
            grid=grid,
            in_specs=[
                pl.BlockSpec((tr, 1), lambda i: (i, 0)),
                pl.BlockSpec((domain_size, k), lambda i: (0, 0)),
                pl.BlockSpec((domain_size, k), lambda i: (0, 0)),
            ],
            out_specs=pl.BlockSpec((tr, k), lambda i: (i, 0)),
        ),
        compiler_params=pltpu.CompilerParams(
            dimension_semantics=("parallel",)),
    )(flat, table, slopes)

    return out.reshape(*orig_shape, num_basis, num_functions)


# ----------------------------------------------------------------------------
# Pure-JAX reference (gather-based, mirrors the PyTorch forward) for sanity check
# ----------------------------------------------------------------------------
def reference_forward(distances, basis_values):
    num_basis, num_functions, domain_size = basis_values.shape
    orig_shape = distances.shape
    d = jnp.clip(distances.reshape(-1), 0.0, 1.0 - 1e-6)
    idx_f = d * (domain_size - 1)
    idx0 = jnp.floor(idx_f).astype(jnp.int32)
    idx1 = jnp.minimum(idx0 + 1, domain_size - 1)
    alpha = idx_f - idx0.astype(jnp.float32)
    v0 = jnp.take(basis_values, idx0, axis=2)      # (B, F, N)
    v1 = jnp.take(basis_values, idx1, axis=2)
    interp = v0 * (1 - alpha)[None, None, :] + v1 * alpha[None, None, :]
    out = jnp.transpose(interp, (2, 0, 1))         # (N, B, F)
    return out.reshape(*orig_shape, num_basis, num_functions)


if __name__ == "__main__":
    key = jax.random.PRNGKey(0)
    k_noise, k_dist, k_dist2 = jax.random.split(key, 3)

    basis_types = ["fourier", "chebyshev", "rbf"]
    num_functions = 8
    domain_size = 256

    basis_values = build_basis_values(basis_types, num_functions, domain_size, k_noise)
    # Hoisted, call-invariant table prep (done once, reused every forward).
    table, slopes = prepare_basis_tables(basis_values)

    # distances in [0, 1), arbitrary shape
    distances = jax.random.uniform(k_dist, (2, 4, 16, 16), dtype=jnp.float32)

    out = orthonormal_basis_bank_forward(
        distances, table, slopes, len(basis_types), num_functions)
    out = jax.block_until_ready(out)

    ref = reference_forward(distances, basis_values)
    assert out.shape == (2, 4, 16, 16, len(basis_types), num_functions), out.shape
    np.testing.assert_allclose(np.asarray(out), np.asarray(ref), rtol=1e-5, atol=1e-5)

    # Ragged N (not a multiple of the row tile): exercises the masked last
    # output block + input-only padding path.
    d2 = jax.random.uniform(k_dist2, (3, 70), dtype=jnp.float32)
    out2 = jax.block_until_ready(
        orthonormal_basis_bank_forward(d2, table, slopes, len(basis_types), num_functions))
    ref2 = reference_forward(d2, basis_values)
    assert out2.shape == (3, 70, len(basis_types), num_functions), out2.shape
    np.testing.assert_allclose(np.asarray(out2), np.asarray(ref2), rtol=1e-5, atol=1e-5)

    print("KERNEL_OK")
</pallas_src>

<mosaic_0001>
module attributes {stable_mosaic.version = 11 : i64} {
  func.func @_interp_kernel(%arg0: i32, %arg1: memref<512x1xf32, #tpu.memory_space<vmem>>, %arg2: memref<256x24xf32, #tpu.memory_space<vmem>>, %arg3: memref<256x24xf32, #tpu.memory_space<vmem>>, %arg4: memref<512x24xf32, #tpu.memory_space<vmem>>) attributes {dimension_semantics = [#tpu.dimension_semantics<parallel>], iteration_bounds = array<i64: 4>, scalar_prefetch = 0 : i64, scratch_operands = 0 : i64, tpu.core_type = #tpu.core_type<tc>, window_params = [{transform_indices = @transform_0, window_bounds = array<i64: 512, 1>}, {pipeline_mode = #tpu.pipeline_mode<synchronous>, transform_indices = @transform_1, window_bounds = array<i64: 256, 24>}, {pipeline_mode = #tpu.pipeline_mode<synchronous>, transform_indices = @transform_2, window_bounds = array<i64: 256, 24>}, {transform_indices = @transform_3, window_bounds = array<i64: 512, 24>}]} {
    %c0 = arith.constant 0 : index
    %c0_0 = arith.constant 0 : index
    %0 = vector.load %arg1[%c0, %c0_0] : memref<512x1xf32, #tpu.memory_space<vmem>>, vector<512x1xf32>
    %cst = arith.constant 0.000000e+00 : f32
    %cst_1 = arith.constant 0.999998986 : f32
    %1 = vector.broadcast %cst : f32 to vector<512x1xf32>
    %2 = arith.maximumf %1, %0 : vector<512x1xf32>
    %3 = vector.broadcast %cst_1 : f32 to vector<512x1xf32>
    %4 = arith.minimumf %3, %2 : vector<512x1xf32>
    %cst_2 = arith.constant 2.550000e+02 : f32
    %5 = vector.broadcast %cst_2 : f32 to vector<512x1xf32>
    %6 = arith.mulf %4, %5 : vector<512x1xf32>
    %7 = math.floor %6 : vector<512x1xf32>
    %8 = arith.subf %6, %7 : vector<512x1xf32>
    %9 = arith.fptosi %7 : vector<512x1xf32> to vector<512x1xi32>
    %10 = tpu.iota {dimensions = array<i32: 1>} : vector<512x256xi32>
    %11 = vector.broadcast %9 : vector<512x1xi32> to vector<512x256xi32>
    %12 = arith.cmpi eq, %10, %11 : vector<512x256xi32>
    %cst_3 = arith.constant 1.000000e+00 : f32
    %cst_4 = arith.constant 0.000000e+00 : f32
    %13 = vector.broadcast %cst_3 : f32 to vector<512x256xf32>
    %14 = vector.broadcast %cst_4 : f32 to vector<512x256xf32>
    %15 = arith.select %12, %13, %14 : vector<512x256xi1>, vector<512x256xf32>
    %c0_5 = arith.constant 0 : index
    %c0_6 = arith.constant 0 : index
    %16 = vector.load %arg2[%c0_5, %c0_6] : memref<256x24xf32, #tpu.memory_space<vmem>>, vector<256x24xf32>
    %cst_7 = arith.constant dense<0.000000e+00> : vector<512x24xf32>
    %17 = tpu.matmul %15, %16, %cst_7 {dimension_numbers = #tpu.dot_dimension_numbers<[1], [0], [0], [1], [0, 0, 1, 1], [], []>, precision = #tpu.contract_precision<fp32>} : vector<512x256xf32>, vector<256x24xf32>, vector<512x24xf32> -> vector<512x24xf32>
    %c0_8 = arith.constant 0 : index
    %c0_9 = arith.constant 0 : index
    %18 = vector.load %arg3[%c0_8, %c0_9] : memref<256x24xf32, #tpu.memory_space<vmem>>, vector<256x24xf32>
    %cst_10 = arith.constant dense<0.000000e+00> : vector<512x24xf32>
    %19 = tpu.matmul %15, %18, %cst_10 {dimension_numbers = #tpu.dot_dimension_numbers<[1], [0], [0], [1], [0, 0, 1, 1], [], []>, precision = #tpu.contract_precision<fp32>} : vector<512x256xf32>, vector<256x24xf32>, vector<512x24xf32> -> vector<512x24xf32>
    %20 = vector.broadcast %8 : vector<512x1xf32> to vector<512x24xf32>
    %21 = arith.mulf %20, %19 : vector<512x24xf32>
    %22 = arith.addf %17, %21 : vector<512x24xf32>
    %c0_11 = arith.constant 0 : index
    %c0_12 = arith.constant 0 : index
    %23 = vector.load %arg4[%c0_11, %c0_12] : memref<512x24xf32, #tpu.memory_space<vmem>>, vector<512x24xf32>
    tpu.vector_store %arg4[%c0_11, %c0_12], %22 {strides = array<i32>} : memref<512x24xf32, #tpu.memory_space<vmem>>, vector<512x24xf32>,
    return
  }
  func.func @transform_0(%arg0: i32) -> (i32, i32) {
    %c0_i32 = arith.constant 0 : i32
    %c0_i32_0 = arith.constant 0 : i32
    return %arg0, %c0_i32 : i32, i32
  }
  func.func @transform_1(%arg0: i32) -> (i32, i32) {
    %c0_i32 = arith.constant 0 : i32
    %c0_i32_0 = arith.constant 0 : i32
    %c0_i32_1 = arith.constant 0 : i32
    return %c0_i32, %c0_i32_0 : i32, i32
  }
  func.func @transform_2(%arg0: i32) -> (i32, i32) {
    %c0_i32 = arith.constant 0 : i32
    %c0_i32_0 = arith.constant 0 : i32
    %c0_i32_1 = arith.constant 0 : i32
    return %c0_i32, %c0_i32_0 : i32, i32
  }
  func.func @transform_3(%arg0: i32) -> (i32, i32) {
    %c0_i32 = arith.constant 0 : i32
    %c0_i32_0 = arith.constant 0 : i32
    return %arg0, %c0_i32 : i32, i32
  }
}

</mosaic_0001>

<llo_original>
// kernel: tpu_custom_call.1
$region0: #{tpu_custom_call.1}
  #allocation0 [shape = 'u32[]', space=smem, size = 0x4, offset = 0x4, fixed_abs, tag = 'smem constant byte address 0x4 - core index']
  #allocation1 [shape = 'u32[144,128]{1,0:T(1,128)}', space=vmem, size = 0x12000, scoped, tag = 'internal scratch']
  %s0 = inlined_call_operand.vmem [shape: f32[2048,1], index: 0, kind: input, shape index: {}]
  %s1 = inlined_call_operand.vmem [shape: f32[256,24], index: 1, kind: input, shape index: {}]
  %s2 = inlined_call_operand.vmem [shape: f32[256,24], index: 2, kind: input, shape index: {}]
  %s3 = inlined_call_operand.vmem [shape: f32[2048,24], index: 3, kind: output, shape index: {}]
  %s4 = sld [smem:[#allocation0]]
  $region45: #{tpu_custom_call.1} parent=0
    _
  %s6 = ssub.s32 1, %s4
  %s7 = scalar_select 0, %s6, %s4
  loop: start=0, step=1, limit=6
  $region2: #{tpu_custom_call.1} parent=0 // loop_pre_header
    _
  $region3: #{tpu_custom_call.1} parent=0 // loop_header
    %s9 = sphi 0, %s13
    %p10 = scmp.ge.s32.totalorder %s9, 6
    %s19 = sphi 0, %s21
    %s22 = sphi 0, %s19
    %s23 = sphi 0, %s22
    %s39 = sphi 0, %s23
    %s43 = sphi 0, %s43
    %s45 = sphi 0, %s43
    %s46 = sphi 0, %s45
    %s60 = sphi 0, %s46
    %s64 = sphi 0, %s64
    %s66 = sphi 0, %s64
    %s67 = sphi 0, %s66
    %s81 = sphi 0, %s67
    %s87 = sphi 0, %s89
    %s90 = sphi 0, %s87
    %s91 = sphi 0, %s90
    %s107 = sphi 0, %s91
  $region4: #{tpu_custom_call.1} parent=0 // loop_header_branch
    %12 = sbr.rel (%p10) target = $region8
  $region5: #{tpu_custom_call.1} parent=0 // loop_body
    %s14 = ssub.s32 %s9, 1
    %s15 = ssub.s32 %s9, 2
    %s16 = sadd.s32 %s9, 1
    %s17 = ssub.s32 %s9, %s16
    %p18 = scmp.eq.s32.totalorder %s17, 0
    %s20 = sadd.s32 %s19, 1
    %s21 = scalar_select %p18, %s19, %s20
    %p24 = pneg %p18
    %p25 = scmp.eq.s32.totalorder %s9, 3
    %p26 = por %p24, %p25
    %p27 = scmp.ne.s32.totalorder %s19, %s22
    %p28 = scmp.eq.s32.totalorder %s9, 0
    %p29 = por %p27, %p28
    %p30 = scmp.ne.s32.totalorder %s19, %s22
    %p31 = scmp.eq.s32.totalorder %s14, 3
    %p32 = por %p30, %p31
    %p33 = scmp.ne.s32.totalorder %s22, %s23
    %p34 = scmp.eq.s32.totalorder %s14, 0
    %p35 = por %p33, %p34
    %p36 = scmp.ne.s32.totalorder %s22, %s23
    %p37 = scmp.eq.s32.totalorder %s15, 3
    %p38 = por %p36, %p37
    %p40 = scmp.ne.s32.totalorder %s23, %s39
    %p41 = scmp.eq.s32.totalorder %s15, 0
    %p42 = por %p40, %p41
    %s44 = sadd.s32 %s43, 1
    %p47 = scmp.eq.s32.totalorder %s9, 3
    %p48 = scmp.ne.s32.totalorder %s43, %s45
    %p49 = scmp.eq.s32.totalorder %s9, 0
    %p50 = por %p48, %p49
    %p51 = scmp.ne.s32.totalorder %s43, %s45
    %p52 = scmp.eq.s32.totalorder %s14, 3
    %p53 = por %p51, %p52
    %p54 = scmp.ne.s32.totalorder %s45, %s46
    %p55 = scmp.eq.s32.totalorder %s14, 0
    %p56 = por %p54, %p55
    %p57 = scmp.ne.s32.totalorder %s45, %s46
    %p58 = scmp.eq.s32.totalorder %s15, 3
    %p59 = por %p57, %p58
    %p61 = scmp.ne.s32.totalorder %s46, %s60
    %p62 = scmp.eq.s32.totalorder %s15, 0
    %p63 = por %p61, %p62
    %s65 = sadd.s32 %s64, 1
    %p68 = scmp.eq.s32.totalorder %s9, 3
    %p69 = scmp.ne.s32.totalorder %s64, %s66
    %p70 = scmp.eq.s32.totalorder %s9, 0
    %p71 = por %p69, %p70
    %p72 = scmp.ne.s32.totalorder %s64, %s66
    %p73 = scmp.eq.s32.totalorder %s14, 3
    %p74 = por %p72, %p73
    %p75 = scmp.ne.s32.totalorder %s66, %s67
    %p76 = scmp.eq.s32.totalorder %s14, 0
    %p77 = por %p75, %p76
    %p78 = scmp.ne.s32.totalorder %s66, %s67
    %p79 = scmp.eq.s32.totalorder %s15, 3
    %p80 = por %p78, %p79
    %p82 = scmp.ne.s32.totalorder %s67, %s81
    %p83 = scmp.eq.s32.totalorder %s15, 0
    %p84 = por %p82, %p83
    %s85 = ssub.s32 %s9, %s16
    %p86 = scmp.eq.s32.totalorder %s85, 0
    %s88 = sadd.s32 %s87, 1
    %s89 = scalar_select %p86, %s87, %s88
    %p92 = pneg %p86
    %p93 = scmp.eq.s32.totalorder %s9, 3
    %p94 = por %p92, %p93
    %p95 = scmp.ne.s32.totalorder %s87, %s90
    %p96 = scmp.eq.s32.totalorder %s9, 0
    %p97 = por %p95, %p96
    %p98 = scmp.ne.s32.totalorder %s87, %s90
    %p99 = scmp.eq.s32.totalorder %s14, 3
    %p100 = por %p98, %p99
    %p101 = scmp.ne.s32.totalorder %s90, %s91
    %p102 = scmp.eq.s32.totalorder %s14, 0
    %p103 = por %p101, %p102
    %p104 = scmp.ne.s32.totalorder %s90, %s91
    %p105 = scmp.eq.s32.totalorder %s15, 3
    %p106 = por %p104, %p105
    %p108 = scmp.ne.s32.totalorder %s91, %s107
    %p109 = scmp.eq.s32.totalorder %s15, 0
    %p110 = por %p108, %p109
    %p111 = scmp.le.s32.totalorder 1, %s9
    %p112 = scmp.lt.s32.totalorder %s9, 5
    %p113 = pnand %p111, %p112
    %p114 = pneg %p113
    // Predicated region
    $region9: #{tpu_custom_call.1} parent=5 // pred_check
      _
    $region10: #{tpu_custom_call.1} parent=5 // pred_check_branch
      %116 = sbr.rel (%p113) target = $region12
    $region11: #{tpu_custom_call.1} parent=5 // pred_region
      %s117 = ssub.s32 %s9, 1
      // Predicated region
      $region13: #{tpu_custom_call.1} parent=11 // pred_check
        %p118 = pneg %p56
      $region14: #{tpu_custom_call.1} parent=11 // pred_check_branch
        %120 = sbr.rel (%p118) target = $region16
      $region15: #{tpu_custom_call.1} parent=11 // pred_region
        _
      $region16: #{tpu_custom_call.1} parent=11 // pred_fallthru
        _
      // Predicated region
      $region17: #{tpu_custom_call.1} parent=11 // pred_check
        %p121 = pneg %p77
      $region18: #{tpu_custom_call.1} parent=11 // pred_check_branch
        %123 = sbr.rel (%p121) target = $region20
      $region19: #{tpu_custom_call.1} parent=11 // pred_region
        _
      $region20: #{tpu_custom_call.1} parent=11 // pred_fallthru
        _
    $region12: #{tpu_custom_call.1} parent=5 // pred_fallthru
      _
    %p124 = scmp.lt.s32.totalorder %s9, 4
    // Predicated region
    $region21: #{tpu_custom_call.1} parent=5 // pred_check
      %p125 = pneg %p124
    $region22: #{tpu_custom_call.1} parent=5 // pred_check_branch
      %127 = sbr.rel (%p125) target = $region24
    $region23: #{tpu_custom_call.1} parent=5 // pred_region
      // Predicated region
      $region25: #{tpu_custom_call.1} parent=23 // pred_check
        %p128 = pneg %p29
      $region26: #{tpu_custom_call.1} parent=23 // pred_check_branch
        %130 = sbr.rel (%p128) target = $region28
      $region27: #{tpu_custom_call.1} parent=23 // pred_region
        %s131 = smul.u32 64, %s9
        %p132 = scmp.lt.s32.totalorder %s131, 255
        %s133 = scalar_select %p132, %s131, 255
        %s134 = smul.addr %s133, 8
        %s135 = scalar_lea.vmem %s0, %s134
        %s136 = smul.u32 64, %s9
      $region28: #{tpu_custom_call.1} parent=23 // pred_fallthru
        _
    $region24: #{tpu_custom_call.1} parent=5 // pred_fallthru
      _
    %p137 = scmp.le.s32.totalorder 1, %s9
    %p138 = scmp.lt.s32.totalorder %s9, 5
    %p139 = pnand %p137, %p138
    %p140 = pneg %p139
    // Predicated region
    $region29: #{tpu_custom_call.1} parent=5 // pred_check
      _
    $region30: #{tpu_custom_call.1} parent=5 // pred_check_branch
      %142 = sbr.rel (%p139) target = $region32
    $region31: #{tpu_custom_call.1} parent=5 // pred_region
      %s143 = ssub.s32 %s9, 1
      %s144 = smul.u32 64, %s14
      %p145 = scmp.lt.s32.totalorder %s144, 255
      %s146 = scalar_select %p145, %s144, 255
      %s147 = smul.addr %s146, 8
      %s148 = scalar_lea.vmem %s0, %s147
      %p149 = pneg %p35
      %p150 = pneg %p32
      %p151 = pneg %p56
      %p152 = pneg %p53
      %p153 = pneg %p77
      %p154 = pneg %p74
      %p155 = pneg %p103
      %p156 = pneg %p100
      %s157 = smul.u32 64, %s14
      %p158 = scmp.lt.s32.totalorder %s157, 255
      %s159 = scalar_select %p158, %s157, 255
      %s160 = smul.addr %s159, 8
      %s161 = scalar_lea.vmem %s3, %s160
      %s162 = smul.u32 64, %s14
      %p163 = scmp.lt.s32.totalorder %s162, 255
      %s164 = scalar_select %p163, %s162, 255
      %s165 = smul.addr %s164, 8
      %s166 = scalar_lea.vmem %s0, %s165
      %s167 = smul.u32 64, %s14
      %s168 = smul.u32 64, %s14
      %p169 = scmp.lt.s32.totalorder %s168, 255
      %s170 = scalar_select %p169, %s168, 255
      %s171 = smul.addr %s170, 8
      %s172 = scalar_lea.vmem %s3, %s171
      %s173 = smul.u32 64, %s14
      %v174 = vld [vmem:[%s166] sm:$0xff]
      %v175 = vld [vmem:[%s166 + $0x8] sm:$0xff]
      %v176 = vld [vmem:[%s166 + $0x10] sm:$0xff]
      %v177 = vld [vmem:[%s166 + $0x18] sm:$0xff]
      %v178 = vld [vmem:[%s166 + $0x20] sm:$0xff]
      %v179 = vld [vmem:[%s166 + $0x28] sm:$0xff]
      %v180 = vld [vmem:[%s166 + $0x30] sm:$0xff]
      %v181 = vld [vmem:[%s166 + $0x38] sm:$0xff]
      %v182 = vld [vmem:[%s166 + $0x40] sm:$0xff]
      %v183 = vld [vmem:[%s166 + $0x48] sm:$0xff]
      %v184 = vld [vmem:[%s166 + $0x50] sm:$0xff]
      %v185 = vld [vmem:[%s166 + $0x58] sm:$0xff]
      %v186 = vld [vmem:[%s166 + $0x60] sm:$0xff]
      %v187 = vld [vmem:[%s166 + $0x68] sm:$0xff]
      %v188 = vld [vmem:[%s166 + $0x70] sm:$0xff]
      %v189 = vld [vmem:[%s166 + $0x78] sm:$0xff]
      %v190 = vld [vmem:[%s166 + $0x80] sm:$0xff]
      %v191 = vld [vmem:[%s166 + $0x88] sm:$0xff]
      %v192 = vld [vmem:[%s166 + $0x90] sm:$0xff]
      %v193 = vld [vmem:[%s166 + $0x98] sm:$0xff]
      %v194 = vld [vmem:[%s166 + $0xa0] sm:$0xff]
      %v195 = vld [vmem:[%s166 + $0xa8] sm:$0xff]
      %v196 = vld [vmem:[%s166 + $0xb0] sm:$0xff]
      %v197 = vld [vmem:[%s166 + $0xb8] sm:$0xff]
      %v198 = vld [vmem:[%s166 + $0xc0] sm:$0xff]
      %v199 = vld [vmem:[%s166 + $0xc8] sm:$0xff]
      %v200 = vld [vmem:[%s166 + $0xd0] sm:$0xff]
      %v201 = vld [vmem:[%s166 + $0xd8] sm:$0xff]
      %v202 = vld [vmem:[%s166 + $0xe0] sm:$0xff]
      %v203 = vld [vmem:[%s166 + $0xe8] sm:$0xff]
      %v204 = vld [vmem:[%s166 + $0xf0] sm:$0xff]
      %v205 = vld [vmem:[%s166 + $0xf8] sm:$0xff]
      %v206 = vld [vmem:[%s166 + $0x100] sm:$0xff]
      %v207 = vld [vmem:[%s166 + $0x108] sm:$0xff]
      %v208 = vld [vmem:[%s166 + $0x110] sm:$0xff]
      %v209 = vld [vmem:[%s166 + $0x118] sm:$0xff]
      %v210 = vld [vmem:[%s166 + $0x120] sm:$0xff]
      %v211 = vld [vmem:[%s166 + $0x128] sm:$0xff]
      %v212 = vld [vmem:[%s166 + $0x130] sm:$0xff]
      %v213 = vld [vmem:[%s166 + $0x138] sm:$0xff]
      %v214 = vld [vmem:[%s166 + $0x140] sm:$0xff]
      %v215 = vld [vmem:[%s166 + $0x148] sm:$0xff]
      %v216 = vld [vmem:[%s166 + $0x150] sm:$0xff]
      %v217 = vld [vmem:[%s166 + $0x158] sm:$0xff]
      %v218 = vld [vmem:[%s166 + $0x160] sm:$0xff]
      %v219 = vld [vmem:[%s166 + $0x168] sm:$0xff]
      %v220 = vld [vmem:[%s166 + $0x170] sm:$0xff]
      %v221 = vld [vmem:[%s166 + $0x178] sm:$0xff]
      %v222 = vld [vmem:[%s166 + $0x180] sm:$0xff]
      %v223 = vld [vmem:[%s166 + $0x188] sm:$0xff]
      %v224 = vld [vmem:[%s166 + $0x190] sm:$0xff]
      %v225 = vld [vmem:[%s166 + $0x198] sm:$0xff]
      %v226 = vld [vmem:[%s166 + $0x1a0] sm:$0xff]
      %v227 = vld [vmem:[%s166 + $0x1a8] sm:$0xff]
      %v228 = vld [vmem:[%s166 + $0x1b0] sm:$0xff]
      %v229 = vld [vmem:[%s166 + $0x1b8] sm:$0xff]
      %v230 = vld [vmem:[%s166 + $0x1c0] sm:$0xff]
      %v231 = vld [vmem:[%s166 + $0x1c8] sm:$0xff]
      %v232 = vld [vmem:[%s166 + $0x1d0] sm:$0xff]
      %v233 = vld [vmem:[%s166 + $0x1d8] sm:$0xff]
      %v234 = vld [vmem:[%s166 + $0x1e0] sm:$0xff]
      %v235 = vld [vmem:[%s166 + $0x1e8] sm:$0xff]
      %v236 = vld [vmem:[%s166 + $0x1f0] sm:$0xff]
      %v237 = vld [vmem:[%s166 + $0x1f8] sm:$0xff]
      %v238 = vmax.f32 %v174, 0.0
      %v239 = vmax.f32 %v175, 0.0
      %v240 = vmax.f32 %v176, 0.0
      %v241 = vmax.f32 %v177, 0.0
      %v242 = vmax.f32 %v178, 0.0
      %v243 = vmax.f32 %v179, 0.0
      %v244 = vmax.f32 %v180, 0.0
      %v245 = vmax.f32 %v181, 0.0
      %v246 = vmax.f32 %v182, 0.0
      %v247 = vmax.f32 %v183, 0.0
      %v248 = vmax.f32 %v184, 0.0
      %v249 = vmax.f32 %v185, 0.0
      %v250 = vmax.f32 %v186, 0.0
      %v251 = vmax.f32 %v187, 0.0
      %v252 = vmax.f32 %v188, 0.0
      %v253 = vmax.f32 %v189, 0.0
      %v254 = vmax.f32 %v190, 0.0
      %v255 = vmax.f32 %v191, 0.0
      %v256 = vmax.f32 %v192, 0.0
      %v257 = vmax.f32 %v193, 0.0
      %v258 = vmax.f32 %v194, 0.0
      %v259 = vmax.f32 %v195, 0.0
      %v260 = vmax.f32 %v196, 0.0
      %v261 = vmax.f32 %v197, 0.0
      %v262 = vmax.f32 %v198, 0.0
      %v263 = vmax.f32 %v199, 0.0
      %v264 = vmax.f32 %v200, 0.0
      %v265 = vmax.f32 %v201, 0.0
      %v266 = vmax.f32 %v202, 0.0
      %v267 = vmax.f32 %v203, 0.0
      %v268 = vmax.f32 %v204, 0.0
      %v269 = vmax.f32 %v205, 0.0
      %v270 = vmax.f32 %v206, 0.0
      %v271 = vmax.f32 %v207, 0.0
      %v272 = vmax.f32 %v208, 0.0
      %v273 = vmax.f32 %v209, 0.0
      %v274 = vmax.f32 %v210, 0.0
      %v275 = vmax.f32 %v211, 0.0
      %v276 = vmax.f32 %v212, 0.0
      %v277 = vmax.f32 %v213, 0.0
      %v278 = vmax.f32 %v214, 0.0
      %v279 = vmax.f32 %v215, 0.0
      %v280 = vmax.f32 %v216, 0.0
      %v281 = vmax.f32 %v217, 0.0
      %v282 = vmax.f32 %v218, 0.0
      %v283 = vmax.f32 %v219, 0.0
      %v284 = vmax.f32 %v220, 0.0
      %v285 = vmax.f32 %v221, 0.0
      %v286 = vmax.f32 %v222, 0.0
      %v287 = vmax.f32 %v223, 0.0
      %v288 = vmax.f32 %v224, 0.0
      %v289 = vmax.f32 %v225, 0.0
      %v290 = vmax.f32 %v226, 0.0
      %v291 = vmax.f32 %v227, 0.0
      %v292 = vmax.f32 %v228, 0.0
      %v293 = vmax.f32 %v229, 0.0
      %v294 = vmax.f32 %v230, 0.0
      %v295 = vmax.f32 %v231, 0.0
      %v296 = vmax.f32 %v232, 0.0
      %v297 = vmax.f32 %v233, 0.0
      %v298 = vmax.f32 %v234, 0.0
      %v299 = vmax.f32 %v235, 0.0
      %v300 = vmax.f32 %v236, 0.0
      %v301 = vmax.f32 %v237, 0.0
      %v302 = vmin.f32 %v238, 0.999999
      %v303 = vmin.f32 %v239, 0.999999
      %v304 = vmin.f32 %v240, 0.999999
      %v305 = vmin.f32 %v241, 0.999999
      %v306 = vmin.f32 %v242, 0.999999
      %v307 = vmin.f32 %v243, 0.999999
      %v308 = vmin.f32 %v244, 0.999999
      %v309 = vmin.f32 %v245, 0.999999
      %v310 = vmin.f32 %v246, 0.999999
      %v311 = vmin.f32 %v247, 0.999999
      %v312 = vmin.f32 %v248, 0.999999
      %v313 = vmin.f32 %v249, 0.999999
      %v314 = vmin.f32 %v250, 0.999999
      %v315 = vmin.f32 %v251, 0.999999
      %v316 = vmin.f32 %v252, 0.999999
      %v317 = vmin.f32 %v253, 0.999999
      %v318 = vmin.f32 %v254, 0.999999
      %v319 = vmin.f32 %v255, 0.999999
      %v320 = vmin.f32 %v256, 0.999999
      %v321 = vmin.f32 %v257, 0.999999
      %v322 = vmin.f32 %v258, 0.999999
      %v323 = vmin.f32 %v259, 0.999999
      %v324 = vmin.f32 %v260, 0.999999
      %v325 = vmin.f32 %v261, 0.999999
      %v326 = vmin.f32 %v262, 0.999999
      %v327 = vmin.f32 %v263, 0.999999
      %v328 = vmin.f32 %v264, 0.999999
      %v329 = vmin.f32 %v265, 0.999999
      %v330 = vmin.f32 %v266, 0.999999
      %v331 = vmin.f32 %v267, 0.999999
      %v332 = vmin.f32 %v268, 0.999999
      %v333 = vmin.f32 %v269, 0.999999
      %v334 = vmin.f32 %v270, 0.999999
      %v335 = vmin.f32 %v271, 0.999999
      %v336 = vmin.f32 %v272, 0.999999
      %v337 = vmin.f32 %v273, 0.999999
      %v338 = vmin.f32 %v274, 0.999999
      %v339 = vmin.f32 %v275, 0.999999
      %v340 = vmin.f32 %v276, 0.999999
      %v341 = vmin.f32 %v277, 0.999999
      %v342 = vmin.f32 %v278, 0.999999
      %v343 = vmin.f32 %v279, 0.999999
      %v344 = vmin.f32 %v280, 0.999999
      %v345 = vmin.f32 %v281, 0.999999
      %v346 = vmin.f32 %v282, 0.999999
      %v347 = vmin.f32 %v283, 0.999999
      %v348 = vmin.f32 %v284, 0.999999
      %v349 = vmin.f32 %v285, 0.999999
      %v350 = vmin.f32 %v286, 0.999999
      %v351 = vmin.f32 %v287, 0.999999
      %v352 = vmin.f32 %v288, 0.999999
      %v353 = vmin.f32 %v289, 0.999999
      %v354 = vmin.f32 %v290, 0.999999
      %v355 = vmin.f32 %v291, 0.999999
      %v356 = vmin.f32 %v292, 0.999999
      %v357 = vmin.f32 %v293, 0.999999
      %v358 = vmin.f32 %v294, 0.999999
      %v359 = vmin.f32 %v295, 0.999999
      %v360 = vmin.f32 %v296, 0.999999
      %v361 = vmin.f32 %v297, 0.999999
      %v362 = vmin.f32 %v298, 0.999999
      %v363 = vmin.f32 %v299, 0.999999
      %v364 = vmin.f32 %v300, 0.999999
      %v365 = vmin.f32 %v301, 0.999999
      %v366 = vmul.f32 %v302, 255.0
      %v367 = vmul.f32 %v303, 255.0
      %v368 = vmul.f32 %v304, 255.0
      %v369 = vmul.f32 %v305, 255.0
      %v370 = vmul.f32 %v306, 255.0
      %v371 = vmul.f32 %v307, 255.0
      %v372 = vmul.f32 %v308, 255.0
      %v373 = vmul.f32 %v309, 255.0
      %v374 = vmul.f32 %v310, 255.0
      %v375 = vmul.f32 %v311, 255.0
      %v376 = vmul.f32 %v312, 255.0
      %v377 = vmul.f32 %v313, 255.0
      %v378 = vmul.f32 %v314, 255.0
      %v379 = vmul.f32 %v315, 255.0
      %v380 = vmul.f32 %v316, 255.0
      %v381 = vmul.f32 %v317, 255.0
      %v382 = vmul.f32 %v318, 255.0
      %v383 = vmul.f32 %v319, 255.0
      %v384 = vmul.f32 %v320, 255.0
      %v385 = vmul.f32 %v321, 255.0
      %v386 = vmul.f32 %v322, 255.0
      %v387 = vmul.f32 %v323, 255.0
      %v388 = vmul.f32 %v324, 255.0
      %v389 = vmul.f32 %v325, 255.0
      %v390 = vmul.f32 %v326, 255.0
      %v391 = vmul.f32 %v327, 255.0
      %v392 = vmul.f32 %v328, 255.0
      %v393 = vmul.f32 %v329, 255.0
      %v394 = vmul.f32 %v330, 255.0
      %v395 = vmul.f32 %v331, 255.0
      %v396 = vmul.f32 %v332, 255.0
      %v397 = vmul.f32 %v333, 255.0
      %v398 = vmul.f32 %v334, 255.0
      %v399 = vmul.f32 %v335, 255.0
      %v400 = vmul.f32 %v336, 255.0
      %v401 = vmul.f32 %v337, 255.0
      %v402 = vmul.f32 %v338, 255.0
      %v403 = vmul.f32 %v339, 255.0
      %v404 = vmul.f32 %v340, 255.0
      %v405 = vmul.f32 %v341, 255.0
      %v406 = vmul.f32 %v342, 255.0
      %v407 = vmul.f32 %v343, 255.0
      %v408 = vmul.f32 %v344, 255.0
      %v409 = vmul.f32 %v345, 255.0
      %v410 = vmul.f32 %v346, 255.0
      %v411 = vmul.f32 %v347, 255.0
      %v412 = vmul.f32 %v348, 255.0
      %v413 = vmul.f32 %v349, 255.0
      %v414 = vmul.f32 %v350, 255.0
      %v415 = vmul.f32 %v351, 255.0
      %v416 = vmul.f32 %v352, 255.0
      %v417 = vmul.f32 %v353, 255.0
      %v418 = vmul.f32 %v354, 255.0
      %v419 = vmul.f32 %v355, 255.0
      %v420 = vmul.f32 %v356, 255.0
      %v421 = vmul.f32 %v357, 255.0
      %v422 = vmul.f32 %v358, 255.0
      %v423 = vmul.f32 %v359, 255.0
      %v424 = vmul.f32 %v360, 255.0
      %v425 = vmul.f32 %v361, 255.0
      %v426 = vmul.f32 %v362, 255.0
      %v427 = vmul.f32 %v363, 255.0
      %v428 = vmul.f32 %v364, 255.0
      %v429 = vmul.f32 %v365, 255.0
      %v430 = vfloor.f32 %v366
      %v431 = vfloor.f32 %v367
      %v432 = vfloor.f32 %v368
      %v433 = vfloor.f32 %v369
      %v434 = vfloor.f32 %v370
      %v435 = vfloor.f32 %v371
      %v436 = vfloor.f32 %v372
      %v437 = vfloor.f32 %v373
      %v438 = vfloor.f32 %v374
      %v439 = vfloor.f32 %v375
      %v440 = vfloor.f32 %v376
      %v441 = vfloor.f32 %v377
      %v442 = vfloor.f32 %v378
      %v443 = vfloor.f32 %v379
      %v444 = vfloor.f32 %v380
      %v445 = vfloor.f32 %v381
      %v446 = vfloor.f32 %v382
      %v447 = vfloor.f32 %v383
      %v448 = vfloor.f32 %v384
      %v449 = vfloor.f32 %v385
      %v450 = vfloor.f32 %v386
      %v451 = vfloor.f32 %v387
      %v452 = vfloor.f32 %v388
      %v453 = vfloor.f32 %v389
      %v454 = vfloor.f32 %v390
      %v455 = vfloor.f32 %v391
      %v456 = vfloor.f32 %v392
      %v457 = vfloor.f32 %v393
      %v458 = vfloor.f32 %v394
      %v459 = vfloor.f32 %v395
      %v460 = vfloor.f32 %v396
      %v461 = vfloor.f32 %v397
      %v462 = vfloor.f32 %v398
      %v463 = vfloor.f32 %v399
      %v464 = vfloor.f32 %v400
      %v465 = vfloor.f32 %v401
      %v466 = vfloor.f32 %v402
      %v467 = vfloor.f32 %v403
      %v468 = vfloor.f32 %v404
      %v469 = vfloor.f32 %v405
      %v470 = vfloor.f32 %v406
      %v471 = vfloor.f32 %v407
      %v472 = vfloor.f32 %v408
      %v473 = vfloor.f32 %v409
      %v474 = vfloor.f32 %v410
      %v475 = vfloor.f32 %v411
      %v476 = vfloor.f32 %v412
      %v477 = vfloor.f32 %v413
      %v478 = vfloor.f32 %v414
      %v479 = vfloor.f32 %v415
      %v480 = vfloor.f32 %v416
      %v481 = vfloor.f32 %v417
      %v482 = vfloor.f32 %v418
      %v483 = vfloor.f32 %v419
      %v484 = vfloor.f32 %v420
      %v485 = vfloor.f32 %v421
      %v486 = vfloor.f32 %v422
      %v487 = vfloor.f32 %v423
      %v488 = vfloor.f32 %v424
      %v489 = vfloor.f32 %v425
      %v490 = vfloor.f32 %v426
      %v491 = vfloor.f32 %v427
      %v492 = vfloor.f32 %v428
      %v493 = vfloor.f32 %v429
      %v494 = vsub.f32 %v366, %v430
      %v495 = vsub.f32 %v367, %v431
      %v496 = vsub.f32 %v368, %v432
      %v497 = vsub.f32 %v369, %v433
      %v498 = vsub.f32 %v370, %v434
      %v499 = vsub.f32 %v371, %v435
      %v500 = vsub.f32 %v372, %v436
      %v501 = vsub.f32 %v373, %v437
      %v502 = vsub.f32 %v374, %v438
      %v503 = vsub.f32 %v375, %v439
      %v504 = vsub.f32 %v376, %v440
      %v505 = vsub.f32 %v377, %v441
      %v506 = vsub.f32 %v378, %v442
      %v507 = vsub.f32 %v379, %v443
      %v508 = vsub.f32 %v380, %v444
      %v509 = vsub.f32 %v381, %v445
      %v510 = vsub.f32 %v382, %v446
      %v511 = vsub.f32 %v383, %v447
      %v512 = vsub.f32 %v384, %v448
      %v513 = vsub.f32 %v385, %v449
      %v514 = vsub.f32 %v386, %v450
      %v515 = vsub.f32 %v387, %v451
      %v516 = vsub.f32 %v388, %v452
      %v517 = vsub.f32 %v389, %v453
      %v518 = vsub.f32 %v390, %v454
      %v519 = vsub.f32 %v391, %v455
      %v520 = vsub.f32 %v392, %v456
      %v521 = vsub.f32 %v393, %v457
      %v522 = vsub.f32 %v394, %v458
      %v523 = vsub.f32 %v395, %v459
      %v524 = vsub.f32 %v396, %v460
      %v525 = vsub.f32 %v397, %v461
      %v526 = vsub.f32 %v398, %v462
      %v527 = vsub.f32 %v399, %v463
      %v528 = vsub.f32 %v400, %v464
      %v529 = vsub.f32 %v401, %v465
      %v530 = vsub.f32 %v402, %v466
      %v531 = vsub.f32 %v403, %v467
      %v532 = vsub.f32 %v404, %v468
      %v533 = vsub.f32 %v405, %v469
      %v534 = vsub.f32 %v406, %v470
      %v535 = vsub.f32 %v407, %v471
      %v536 = vsub.f32 %v408, %v472
      %v537 = vsub.f32 %v409, %v473
      %v538 = vsub.f32 %v410, %v474
      %v539 = vsub.f32 %v411, %v475
      %v540 = vsub.f32 %v412, %v476
      %v541 = vsub.f32 %v413, %v477
      %v542 = vsub.f32 %v414, %v478
      %v543 = vsub.f32 %v415, %v479
      %v544 = vsub.f32 %v416, %v480
      %v545 = vsub.f32 %v417, %v481
      %v546 = vsub.f32 %v418, %v482
      %v547 = vsub.f32 %v419, %v483
      %v548 = vsub.f32 %v420, %v484
      %v549 = vsub.f32 %v421, %v485
      %v550 = vsub.f32 %v422, %v486
      %v551 = vsub.f32 %v423, %v487
      %v552 = vsub.f32 %v424, %v488
      %v553 = vsub.f32 %v425, %v489
      %v554 = vsub.f32 %v426, %v490
      %v555 = vsub.f32 %v427, %v491
      %v556 = vsub.f32 %v428, %v492
      %v557 = vsub.f32 %v429, %v493
      %v558 = vcvt.f32.s32.to.zero.pseudo %v430
      %v559 = vcvt.f32.s32.to.zero.pseudo %v431
      %v560 = vcvt.f32.s32.to.zero.pseudo %v432
      %v561 = vcvt.f32.s32.to.zero.pseudo %v433
      %v562 = vcvt.f32.s32.to.zero.pseudo %v434
      %v563 = vcvt.f32.s32.to.zero.pseudo %v435
      %v564 = vcvt.f32.s32.to.zero.pseudo %v436
      %v565 = vcvt.f32.s32.to.zero.pseudo %v437
      %v566 = vcvt.f32.s32.to.zero.pseudo %v438
      %v567 = vcvt.f32.s32.to.zero.pseudo %v439
      %v568 = vcvt.f32.s32.to.zero.pseudo %v440
      %v569 = vcvt.f32.s32.to.zero.pseudo %v441
      %v570 = vcvt.f32.s32.to.zero.pseudo %v442
      %v571 = vcvt.f32.s32.to.zero.pseudo %v443
      %v572 = vcvt.f32.s32.to.zero.pseudo %v444
      %v573 = vcvt.f32.s32.to.zero.pseudo %v445
      %v574 = vcvt.f32.s32.to.zero.pseudo %v446
      %v575 = vcvt.f32.s32.to.zero.pseudo %v447
      %v576 = vcvt.f32.s32.to.zero.pseudo %v448
      %v577 = vcvt.f32.s32.to.zero.pseudo %v449
      %v578 = vcvt.f32.s32.to.zero.pseudo %v450
      %v579 = vcvt.f32.s32.to.zero.pseudo %v451
      %v580 = vcvt.f32.s32.to.zero.pseudo %v452
      %v581 = vcvt.f32.s32.to.zero.pseudo %v453
      %v582 = vcvt.f32.s32.to.zero.pseudo %v454
      %v583 = vcvt.f32.s32.to.zero.pseudo %v455
      %v584 = vcvt.f32.s32.to.zero.pseudo %v456
      %v585 = vcvt.f32.s32.to.zero.pseudo %v457
      %v586 = vcvt.f32.s32.to.zero.pseudo %v458
      %v587 = vcvt.f32.s32.to.zero.pseudo %v459
      %v588 = vcvt.f32.s32.to.zero.pseudo %v460
      %v589 = vcvt.f32.s32.to.zero.pseudo %v461
      %v590 = vcvt.f32.s32.to.zero.pseudo %v462
      %v591 = vcvt.f32.s32.to.zero.pseudo %v463
      %v592 = vcvt.f32.s32.to.zero.pseudo %v464
      %v593 = vcvt.f32.s32.to.zero.pseudo %v465
      %v594 = vcvt.f32.s32.to.zero.pseudo %v466
      %v595 = vcvt.f32.s32.to.zero.pseudo %v467
      %v596 = vcvt.f32.s32.to.zero.pseudo %v468
      %v597 = vcvt.f32.s32.to.zero.pseudo %v469
      %v598 = vcvt.f32.s32.to.zero.pseudo %v470
      %v599 = vcvt.f32.s32.to.zero.pseudo %v471
      %v600 = vcvt.f32.s32.to.zero.pseudo %v472
      %v601 = vcvt.f32.s32.to.zero.pseudo %v473
      %v602 = vcvt.f32.s32.to.zero.pseudo %v474
      %v603 = vcvt.f32.s32.to.zero.pseudo %v475
      %v604 = vcvt.f32.s32.to.zero.pseudo %v476
      %v605 = vcvt.f32.s32.to.zero.pseudo %v477
      %v606 = vcvt.f32.s32.to.zero.pseudo %v478
      %v607 = vcvt.f32.s32.to.zero.pseudo %v479
      %v608 = vcvt.f32.s32.to.zero.pseudo %v480
      %v609 = vcvt.f32.s32.to.zero.pseudo %v481
      %v610 = vcvt.f32.s32.to.zero.pseudo %v482
      %v611 = vcvt.f32.s32.to.zero.pseudo %v483
      %v612 = vcvt.f32.s32.to.zero.pseudo %v484
      %v613 = vcvt.f32.s32.to.zero.pseudo %v485
      %v614 = vcvt.f32.s32.to.zero.pseudo %v486
      %v615 = vcvt.f32.s32.to.zero.pseudo %v487
      %v616 = vcvt.f32.s32.to.zero.pseudo %v488
      %v617 = vcvt.f32.s32.to.zero.pseudo %v489
      %v618 = vcvt.f32.s32.to.zero.pseudo %v490
      %v619 = vcvt.f32.s32.to.zero.pseudo %v491
      %v620 = vcvt.f32.s32.to.zero.pseudo %v492
      %v621 = vcvt.f32.s32.to.zero.pseudo %v493
      %v622 = vlaneseq
      %v623 = vand.u32 %v622, 127
      %v624 = vadd.s32 %v623, 128
      %625 = vset.pattern.permute.xlu0 0
      %626 = vperm.xlu0 %625, %v558
      %v627 = vpop.permute.xlu0 %626
      %628 = vset.pattern.permute.xlu0 0
      %629 = vperm.xlu0 %628, %v559
      %v630 = vpop.permute.xlu0 %629
      %631 = vset.pattern.permute.xlu0 0
      %632 = vperm.xlu0 %631, %v560
      %v633 = vpop.permute.xlu0 %632
      %634 = vset.pattern.permute.xlu0 0
      %635 = vperm.xlu0 %634, %v561
      %v636 = vpop.permute.xlu0 %635
      %637 = vset.pattern.permute.xlu0 0
      %638 = vperm.xlu0 %637, %v562
      %v639 = vpop.permute.xlu0 %638
      %640 = vset.pattern.permute.xlu0 0
      %641 = vperm.xlu0 %640, %v563
      %v642 = vpop.permute.xlu0 %641
      %643 = vset.pattern.permute.xlu0 0
      %644 = vperm.xlu0 %643, %v564
      %v645 = vpop.permute.xlu0 %644
      %646 = vset.pattern.permute.xlu0 0
      %647 = vperm.xlu0 %646, %v565
      %v648 = vpop.permute.xlu0 %647
      %649 = vset.pattern.permute.xlu0 0
      %650 = vperm.xlu0 %649, %v566
      %v651 = vpop.permute.xlu0 %650
      %652 = vset.pattern.permute.xlu0 0
      %653 = vperm.xlu0 %652, %v567
      %v654 = vpop.permute.xlu0 %653
      %655 = vset.pattern.permute.xlu0 0
      %656 = vperm.xlu0 %655, %v568
      %v657 = vpop.permute.xlu0 %656
      %658 = vset.pattern.permute.xlu0 0
      %659 = vperm.xlu0 %658, %v569
      %v660 = vpop.permute.xlu0 %659
      %661 = vset.pattern.permute.xlu0 0
      %662 = vperm.xlu0 %661, %v570
      %v663 = vpop.permute.xlu0 %662
      %664 = vset.pattern.permute.xlu0 0
      %665 = vperm.xlu0 %664, %v571
      %v666 = vpop.permute.xlu0 %665
      %667 = vset.pattern.permute.xlu0 0
      %668 = vperm.xlu0 %667, %v572
      %v669 = vpop.permute.xlu0 %668
      %670 = vset.pattern.permute.xlu0 0
      %671 = vperm.xlu0 %670, %v573
      %v672 = vpop.permute.xlu0 %671
      %673 = vset.pattern.permute.xlu0 0
      %674 = vperm.xlu0 %673, %v574
      %v675 = vpop.permute.xlu0 %674
      %676 = vset.pattern.permute.xlu0 0
      %677 = vperm.xlu0 %676, %v575
      %v678 = vpop.permute.xlu0 %677
      %679 = vset.pattern.permute.xlu0 0
      %680 = vperm.xlu0 %679, %v576
      %v681 = vpop.permute.xlu0 %680
      %682 = vset.pattern.permute.xlu0 0
      %683 = vperm.xlu0 %682, %v577
      %v684 = vpop.permute.xlu0 %683
      %685 = vset.pattern.permute.xlu0 0
      %686 = vperm.xlu0 %685, %v578
      %v687 = vpop.permute.xlu0 %686
      %688 = vset.pattern.permute.xlu0 0
      %689 = vperm.xlu0 %688, %v579
      %v690 = vpop.permute.xlu0 %689
      %691 = vset.pattern.permute.xlu0 0
      %692 = vperm.xlu0 %691, %v580
      %v693 = vpop.permute.xlu0 %692
      %694 = vset.pattern.permute.xlu0 0
      %695 = vperm.xlu0 %694, %v581
      %v696 = vpop.permute.xlu0 %695
      %697 = vset.pattern.permute.xlu0 0
      %698 = vperm.xlu0 %697, %v582
      %v699 = vpop.permute.xlu0 %698
      %700 = vset.pattern.permute.xlu0 0
      %701 = vperm.xlu0 %700, %v583
      %v702 = vpop.permute.xlu0 %701
      %703 = vset.pattern.permute.xlu0 0
      %704 = vperm.xlu0 %703, %v584
      %v705 = vpop.permute.xlu0 %704
      %706 = vset.pattern.permute.xlu0 0
      %707 = vperm.xlu0 %706, %v585
      %v708 = vpop.permute.xlu0 %707
      %709 = vset.pattern.permute.xlu0 0
      %710 = vperm.xlu0 %709, %v586
      %v711 = vpop.permute.xlu0 %710
      %712 = vset.pattern.permute.xlu0 0
      %713 = vperm.xlu0 %712, %v587
      %v714 = vpop.permute.xlu0 %713
      %715 = vset.pattern.permute.xlu0 0
      %716 = vperm.xlu0 %715, %v588
      %v717 = vpop.permute.xlu0 %716
      %718 = vset.pattern.permute.xlu0 0
      %719 = vperm.xlu0 %718, %v589
      %v720 = vpop.permute.xlu0 %719
      %721 = vset.pattern.permute.xlu0 0
      %722 = vperm.xlu0 %721, %v590
      %v723 = vpop.permute.xlu0 %722
      %724 = vset.pattern.permute.xlu0 0
      %725 = vperm.xlu0 %724, %v591
      %v726 = vpop.permute.xlu0 %725
      %727 = vset.pattern.permute.xlu0 0
      %728 = vperm.xlu0 %727, %v592
      %v729 = vpop.permute.xlu0 %728
      %730 = vset.pattern.permute.xlu0 0
      %731 = vperm.xlu0 %730, %v593
      %v732 = vpop.permute.xlu0 %731
      %733 = vset.pattern.permute.xlu0 0
      %734 = vperm.xlu0 %733, %v594
      %v735 = vpop.permute.xlu0 %734
      %736 = vset.pattern.permute.xlu0 0
      %737 = vperm.xlu0 %736, %v595
      %v738 = vpop.permute.xlu0 %737
      %739 = vset.pattern.permute.xlu0 0
      %740 = vperm.xlu0 %739, %v596
      %v741 = vpop.permute.xlu0 %740
      %742 = vset.pattern.permute.xlu0 0
      %743 = vperm.xlu0 %742, %v597
      %v744 = vpop.permute.xlu0 %743
      %745 = vset.pattern.permute.xlu0 0
      %746 = vperm.xlu0 %745, %v598
      %v747 = vpop.permute.xlu0 %746
      %748 = vset.pattern.permute.xlu0 0
      %749 = vperm.xlu0 %748, %v599
      %v750 = vpop.permute.xlu0 %749
      %751 = vset.pattern.permute.xlu0 0
      %752 = vperm.xlu0 %751, %v600
      %v753 = vpop.permute.xlu0 %752
      %754 = vset.pattern.permute.xlu0 0
      %755 = vperm.xlu0 %754, %v601
      %v756 = vpop.permute.xlu0 %755
      %757 = vset.pattern.permute.xlu0 0
      %758 = vperm.xlu0 %757, %v602
      %v759 = vpop.permute.xlu0 %758
      %760 = vset.pattern.permute.xlu0 0
      %761 = vperm.xlu0 %760, %v603
      %v762 = vpop.permute.xlu0 %761
      %763 = vset.pattern.permute.xlu0 0
      %764 = vperm.xlu0 %763, %v604
      %v765 = vpop.permute.xlu0 %764
      %766 = vset.pattern.permute.xlu0 0
      %767 = vperm.xlu0 %766, %v605
      %v768 = vpop.permute.xlu0 %767
      %769 = vset.pattern.permute.xlu0 0
      %770 = vperm.xlu0 %769, %v606
      %v771 = vpop.permute.xlu0 %770
      %772 = vset.pattern.permute.xlu0 0
      %773 = vperm.xlu0 %772, %v607
      %v774 = vpop.permute.xlu0 %773
      %775 = vset.pattern.permute.xlu0 0
      %776 = vperm.xlu0 %775, %v608
      %v777 = vpop.permute.xlu0 %776
      %778 = vset.pattern.permute.xlu0 0
      %779 = vperm.xlu0 %778, %v609
      %v780 = vpop.permute.xlu0 %779
      %781 = vset.pattern.permute.xlu0 0
      %782 = vperm.xlu0 %781, %v610
      %v783 = vpop.permute.xlu0 %782
      %784 = vset.pattern.permute.xlu0 0
      %785 = vperm.xlu0 %784, %v611
      %v786 = vpop.permute.xlu0 %785
      %787 = vset.pattern.permute.xlu0 0
      %788 = vperm.xlu0 %787, %v612
      %v789 = vpop.permute.xlu0 %788
      %790 = vset.pattern.permute.xlu0 0
      %791 = vperm.xlu0 %790, %v613
      %v792 = vpop.permute.xlu0 %791
      %793 = vset.pattern.permute.xlu0 0
      %794 = vperm.xlu0 %793, %v614
      %v795 = vpop.permute.xlu0 %794
      %796 = vset.pattern.permute.xlu0 0
      %797 = vperm.xlu0 %796, %v615
      %v798 = vpop.permute.xlu0 %797
      %799 = vset.pattern.permute.xlu0 0
      %800 = vperm.xlu0 %799, %v616
      %v801 = vpop.permute.xlu0 %800
      %802 = vset.pattern.permute.xlu0 0
      %803 = vperm.xlu0 %802, %v617
      %v804 = vpop.permute.xlu0 %803
      %805 = vset.pattern.permute.xlu0 0
      %806 = vperm.xlu0 %805, %v618
      %v807 = vpop.permute.xlu0 %806
      %808 = vset.pattern.permute.xlu0 0
      %809 = vperm.xlu0 %808, %v619
      %v810 = vpop.permute.xlu0 %809
      %811 = vset.pattern.permute.xlu0 0
      %812 = vperm.xlu0 %811, %v620
      %v813 = vpop.permute.xlu0 %812
      %814 = vset.pattern.permute.xlu0 0
      %815 = vperm.xlu0 %814, %v621
      %v816 = vpop.permute.xlu0 %815
      %vm817 = vcmp.eq.s32.totalorder %v623, %v627
      %vm818 = vcmp.eq.s32.totalorder %v624, %v627
      %vm819 = vcmp.eq.s32.totalorder %v623, %v630
      %vm820 = vcmp.eq.s32.totalorder %v624, %v630
      %vm821 = vcmp.eq.s32.totalorder %v623, %v633
      %vm822 = vcmp.eq.s32.totalorder %v624, %v633
      %vm823 = vcmp.eq.s32.totalorder %v623, %v636
      %vm824 = vcmp.eq.s32.totalorder %v624, %v636
      %vm825 = vcmp.eq.s32.totalorder %v623, %v639
      %vm826 = vcmp.eq.s32.totalorder %v624, %v639
      %vm827 = vcmp.eq.s32.totalorder %v623, %v642
      %vm828 = vcmp.eq.s32.totalorder %v624, %v642
      %vm829 = vcmp.eq.s32.totalorder %v623, %v645
      %vm830 = vcmp.eq.s32.totalorder %v624, %v645
      %vm831 = vcmp.eq.s32.totalorder %v623, %v648
      %vm832 = vcmp.eq.s32.totalorder %v624, %v648
      %vm833 = vcmp.eq.s32.totalorder %v623, %v651
      %vm834 = vcmp.eq.s32.totalorder %v624, %v651
      %vm835 = vcmp.eq.s32.totalorder %v623, %v654
      %vm836 = vcmp.eq.s32.totalorder %v624, %v654
      %vm837 = vcmp.eq.s32.totalorder %v623, %v657
      %vm838 = vcmp.eq.s32.totalorder %v624, %v657
      %vm839 = vcmp.eq.s32.totalorder %v623, %v660
      %vm840 = vcmp.eq.s32.totalorder %v624, %v660
      %vm841 = vcmp.eq.s32.totalorder %v623, %v663
      %vm842 = vcmp.eq.s32.totalorder %v624, %v663
      %vm843 = vcmp.eq.s32.totalorder %v623, %v666
      %vm844 = vcmp.eq.s32.totalorder %v624, %v666
      %vm845 = vcmp.eq.s32.totalorder %v623, %v669
      %vm846 = vcmp.eq.s32.totalorder %v624, %v669
      %vm847 = vcmp.eq.s32.totalorder %v623, %v672
      %vm848 = vcmp.eq.s32.totalorder %v624, %v672
      %vm849 = vcmp.eq.s32.totalorder %v623, %v675
      %vm850 = vcmp.eq.s32.totalorder %v624, %v675
      %vm851 = vcmp.eq.s32.totalorder %v623, %v678
      %vm852 = vcmp.eq.s32.totalorder %v624, %v678
      %vm853 = vcmp.eq.s32.totalorder %v623, %v681
      %vm854 = vcmp.eq.s32.totalorder %v624, %v681
      %vm855 = vcmp.eq.s32.totalorder %v623, %v684
      %vm856 = vcmp.eq.s32.totalorder %v624, %v684
      %vm857 = vcmp.eq.s32.totalorder %v623, %v687
      %vm858 = vcmp.eq.s32.totalorder %v624, %v687
      %vm859 = vcmp.eq.s32.totalorder %v623, %v690
      %vm860 = vcmp.eq.s32.totalorder %v624, %v690
      %vm861 = vcmp.eq.s32.totalorder %v623, %v693
      %vm862 = vcmp.eq.s32.totalorder %v624, %v693
      %vm863 = vcmp.eq.s32.totalorder %v623, %v696
      %vm864 = vcmp.eq.s32.totalorder %v624, %v696
      %vm865 = vcmp.eq.s32.totalorder %v623, %v699
      %vm866 = vcmp.eq.s32.totalorder %v624, %v699
      %vm867 = vcmp.eq.s32.totalorder %v623, %v702
      %vm868 = vcmp.eq.s32.totalorder %v624, %v702
      %vm869 = vcmp.eq.s32.totalorder %v623, %v705
      %vm870 = vcmp.eq.s32.totalorder %v624, %v705
      %vm871 = vcmp.eq.s32.totalorder %v623, %v708
      %vm872 = vcmp.eq.s32.totalorder %v624, %v708
      %vm873 = vcmp.eq.s32.totalorder %v623, %v711
      %vm874 = vcmp.eq.s32.totalorder %v624, %v711
      %vm875 = vcmp.eq.s32.totalorder %v623, %v714
      %vm876 = vcmp.eq.s32.totalorder %v624, %v714
      %vm877 = vcmp.eq.s32.totalorder %v623, %v717
      %vm878 = vcmp.eq.s32.totalorder %v624, %v717
      %vm879 = vcmp.eq.s32.totalorder %v623, %v720
      %vm880 = vcmp.eq.s32.totalorder %v624, %v720
      %vm881 = vcmp.eq.s32.totalorder %v623, %v723
      %vm882 = vcmp.eq.s32.totalorder %v624, %v723
      %vm883 = vcmp.eq.s32.totalorder %v623, %v726
      %vm884 = vcmp.eq.s32.totalorder %v624, %v726
      %vm885 = vcmp.eq.s32.totalorder %v623, %v729
      %vm886 = vcmp.eq.s32.totalorder %v624, %v729
      %vm887 = vcmp.eq.s32.totalorder %v623, %v732
      %vm888 = vcmp.eq.s32.totalorder %v624, %v732
      %vm889 = vcmp.eq.s32.totalorder %v623, %v735
      %vm890 = vcmp.eq.s32.totalorder %v624, %v735
      %vm891 = vcmp.eq.s32.totalorder %v623, %v738
      %vm892 = vcmp.eq.s32.totalorder %v624, %v738
      %vm893 = vcmp.eq.s32.totalorder %v623, %v741
      %vm894 = vcmp.eq.s32.totalorder %v624, %v741
      %vm895 = vcmp.eq.s32.totalorder %v623, %v744
      %vm896 = vcmp.eq.s32.totalorder %v624, %v744
      %vm897 = vcmp.eq.s32.totalorder %v623, %v747
      %vm898 = vcmp.eq.s32.totalorder %v624, %v747
      %vm899 = vcmp.eq.s32.totalorder %v623, %v750
      %vm900 = vcmp.eq.s32.totalorder %v624, %v750
      %vm901 = vcmp.eq.s32.totalorder %v623, %v753
      %vm902 = vcmp.eq.s32.totalorder %v624, %v753
      %vm903 = vcmp.eq.s32.totalorder %v623, %v756
      %vm904 = vcmp.eq.s32.totalorder %v624, %v756
      %vm905 = vcmp.eq.s32.totalorder %v623, %v759
      %vm906 = vcmp.eq.s32.totalorder %v624, %v759
      %vm907 = vcmp.eq.s32.totalorder %v623, %v762
      %vm908 = vcmp.eq.s32.totalorder %v624, %v762
      %vm909 = vcmp.eq.s32.totalorder %v623, %v765
      %vm910 = vcmp.eq.s32.totalorder %v624, %v765
      %vm911 = vcmp.eq.s32.totalorder %v623, %v768
      %vm912 = vcmp.eq.s32.totalorder %v624, %v768
      %vm913 = vcmp.eq.s32.totalorder %v623, %v771
      %vm914 = vcmp.eq.s32.totalorder %v624, %v771
      %vm915 = vcmp.eq.s32.totalorder %v623, %v774
      %vm916 = vcmp.eq.s32.totalorder %v624, %v774
      %vm917 = vcmp.eq.s32.totalorder %v623, %v777
      %vm918 = vcmp.eq.s32.totalorder %v624, %v777
      %vm919 = vcmp.eq.s32.totalorder %v623, %v780
      %vm920 = vcmp.eq.s32.totalorder %v624, %v780
      %vm921 = vcmp.eq.s32.totalorder %v623, %v783
      %vm922 = vcmp.eq.s32.totalorder %v624, %v783
      %vm923 = vcmp.eq.s32.totalorder %v623, %v786
      %vm924 = vcmp.eq.s32.totalorder %v624, %v786
      %vm925 = vcmp.eq.s32.totalorder %v623, %v789
      %vm926 = vcmp.eq.s32.totalorder %v624, %v789
      %vm927 = vcmp.eq.s32.totalorder %v623, %v792
      %vm928 = vcmp.eq.s32.totalorder %v624, %v792
      %vm929 = vcmp.eq.s32.totalorder %v623, %v795
      %vm930 = vcmp.eq.s32.totalorder %v624, %v795
      %vm931 = vcmp.eq.s32.totalorder %v623, %v798
      %vm932 = vcmp.eq.s32.totalorder %v624, %v798
      %vm933 = vcmp.eq.s32.totalorder %v623, %v801
      %vm934 = vcmp.eq.s32.totalorder %v624, %v801
      %vm935 = vcmp.eq.s32.totalorder %v623, %v804
      %vm936 = vcmp.eq.s32.totalorder %v624, %v804
      %vm937 = vcmp.eq.s32.totalorder %v623, %v807
      %vm938 = vcmp.eq.s32.totalorder %v624, %v807
      %vm939 = vcmp.eq.s32.totalorder %v623, %v810
      %vm940 = vcmp.eq.s32.totalorder %v624, %v810
      %vm941 = vcmp.eq.s32.totalorder %v623, %v813
      %vm942 = vcmp.eq.s32.totalorder %v624, %v813
      %vm943 = vcmp.eq.s32.totalorder %v623, %v816
      %vm944 = vcmp.eq.s32.totalorder %v624, %v816
      %v945 = vsel %vm817, 1.0, 0.0
      %v946 = vsel %vm818, 1.0, 0.0
      %v947 = vsel %vm819, 1.0, 0.0
      %v948 = vsel %vm820, 1.0, 0.0
      %v949 = vsel %vm821, 1.0, 0.0
      %v950 = vsel %vm822, 1.0, 0.0
      %v951 = vsel %vm823, 1.0, 0.0
      %v952 = vsel %vm824, 1.0, 0.0
      %v953 = vsel %vm825, 1.0, 0.0
      %v954 = vsel %vm826, 1.0, 0.0
      %v955 = vsel %vm827, 1.0, 0.0
      %v956 = vsel %vm828, 1.0, 0.0
      %v957 = vsel %vm829, 1.0, 0.0
      %v958 = vsel %vm830, 1.0, 0.0
      %v959 = vsel %vm831, 1.0, 0.0
      %v960 = vsel %vm832, 1.0, 0.0
      %v961 = vsel %vm833, 1.0, 0.0
      %v962 = vsel %vm834, 1.0, 0.0
      %v963 = vsel %vm835, 1.0, 0.0
      %v964 = vsel %vm836, 1.0, 0.0
      %v965 = vsel %vm837, 1.0, 0.0
      %v966 = vsel %vm838, 1.0, 0.0
      %v967 = vsel %vm839, 1.0, 0.0
      %v968 = vsel %vm840, 1.0, 0.0
      %v969 = vsel %vm841, 1.0, 0.0
      %v970 = vsel %vm842, 1.0, 0.0
      %v971 = vsel %vm843, 1.0, 0.0
      %v972 = vsel %vm844, 1.0, 0.0
      %v973 = vsel %vm845, 1.0, 0.0
      %v974 = vsel %vm846, 1.0, 0.0
      %v975 = vsel %vm847, 1.0, 0.0
      %v976 = vsel %vm848, 1.0, 0.0
      %v977 = vsel %vm849, 1.0, 0.0
      %v978 = vsel %vm850, 1.0, 0.0
      %v979 = vsel %vm851, 1.0, 0.0
      %v980 = vsel %vm852, 1.0, 0.0
      %v981 = vsel %vm853, 1.0, 0.0
      %v982 = vsel %vm854, 1.0, 0.0
      %v983 = vsel %vm855, 1.0, 0.0
      %v984 = vsel %vm856, 1.0, 0.0
      %v985 = vsel %vm857, 1.0, 0.0
      %v986 = vsel %vm858, 1.0, 0.0
      %v987 = vsel %vm859, 1.0, 0.0
      %v988 = vsel %vm860, 1.0, 0.0
      %v989 = vsel %vm861, 1.0, 0.0
      %v990 = vsel %vm862, 1.0, 0.0
      %v991 = vsel %vm863, 1.0, 0.0
      %v992 = vsel %vm864, 1.0, 0.0
      %v993 = vsel %vm865, 1.0, 0.0
      %v994 = vsel %vm866, 1.0, 0.0
      %v995 = vsel %vm867, 1.0, 0.0
      %v996 = vsel %vm868, 1.0, 0.0
      %v997 = vsel %vm869, 1.0, 0.0
      %v998 = vsel %vm870, 1.0, 0.0
      %v999 = vsel %vm871, 1.0, 0.0
      %v1000 = vsel %vm872, 1.0, 0.0
      %v1001 = vsel %vm873, 1.0, 0.0
      %v1002 = vsel %vm874, 1.0, 0.0
      %v1003 = vsel %vm875, 1.0, 0.0
      %v1004 = vsel %vm876, 1.0, 0.0
      %v1005 = vsel %vm877, 1.0, 0.0
      %v1006 = vsel %vm878, 1.0, 0.0
      %v1007 = vsel %vm879, 1.0, 0.0
      %v1008 = vsel %vm880, 1.0, 0.0
      %v1009 = vsel %vm881, 1.0, 0.0
      %v1010 = vsel %vm882, 1.0, 0.0
      %v1011 = vsel %vm883, 1.0, 0.0
      %v1012 = vsel %vm884, 1.0, 0.0
      %v1013 = vsel %vm885, 1.0, 0.0
      %v1014 = vsel %vm886, 1.0, 0.0
      %v1015 = vsel %vm887, 1.0, 0.0
      %v1016 = vsel %vm888, 1.0, 0.0
      %v1017 = vsel %vm889, 1.0, 0.0
      %v1018 = vsel %vm890, 1.0, 0.0
      %v1019 = vsel %vm891, 1.0, 0.0
      %v1020 = vsel %vm892, 1.0, 0.0
      %v1021 = vsel %vm893, 1.0, 0.0
      %v1022 = vsel %vm894, 1.0, 0.0
      %v1023 = vsel %vm895, 1.0, 0.0
      %v1024 = vsel %vm896, 1.0, 0.0
      %v1025 = vsel %vm897, 1.0, 0.0
      %v1026 = vsel %vm898, 1.0, 0.0
      %v1027 = vsel %vm899, 1.0, 0.0
      %v1028 = vsel %vm900, 1.0, 0.0
      %v1029 = vsel %vm901, 1.0, 0.0
      %v1030 = vsel %vm902, 1.0, 0.0
      %v1031 = vsel %vm903, 1.0, 0.0
      %v1032 = vsel %vm904, 1.0, 0.0
      %v1033 = vsel %vm905, 1.0, 0.0
      %v1034 = vsel %vm906, 1.0, 0.0
      %v1035 = vsel %vm907, 1.0, 0.0
      %v1036 = vsel %vm908, 1.0, 0.0
      %v1037 = vsel %vm909, 1.0, 0.0
      %v1038 = vsel %vm910, 1.0, 0.0
      %v1039 = vsel %vm911, 1.0, 0.0
      %v1040 = vsel %vm912, 1.0, 0.0
      %v1041 = vsel %vm913, 1.0, 0.0
      %v1042 = vsel %vm914, 1.0, 0.0
      %v1043 = vsel %vm915, 1.0, 0.0
      %v1044 = vsel %vm916, 1.0, 0.0
      %v1045 = vsel %vm917, 1.0, 0.0
      %v1046 = vsel %vm918, 1.0, 0.0
      %v1047 = vsel %vm919, 1.0, 0.0
      %v1048 = vsel %vm920, 1.0, 0.0
      %v1049 = vsel %vm921, 1.0, 0.0
      %v1050 = vsel %vm922, 1.0, 0.0
      %v1051 = vsel %vm923, 1.0, 0.0
      %v1052 = vsel %vm924, 1.0, 0.0
      %v1053 = vsel %vm925, 1.0, 0.0
      %v1054 = vsel %vm926, 1.0, 0.0
      %v1055 = vsel %vm927, 1.0, 0.0
      %v1056 = vsel %vm928, 1.0, 0.0
      %v1057 = vsel %vm929, 1.0, 0.0
      %v1058 = vsel %vm930, 1.0, 0.0
      %v1059 = vsel %vm931, 1.0, 0.0
      %v1060 = vsel %vm932, 1.0, 0.0
      %v1061 = vsel %vm933, 1.0, 0.0
      %v1062 = vsel %vm934, 1.0, 0.0
      %v1063 = vsel %vm935, 1.0, 0.0
      %v1064 = vsel %vm936, 1.0, 0.0
      %v1065 = vsel %vm937, 1.0, 0.0
      %v1066 = vsel %vm938, 1.0, 0.0
      %v1067 = vsel %vm939, 1.0, 0.0
      %v1068 = vsel %vm940, 1.0, 0.0
      %v1069 = vsel %vm941, 1.0, 0.0
      %v1070 = vsel %vm942, 1.0, 0.0
      %v1071 = vsel %vm943, 1.0, 0.0
      %v1072 = vsel %vm944, 1.0, 0.0
      %v1073 = vld [vmem:[%s1] sm:$0xff]
      %v1074 = vld [vmem:[%s1 + $0x8] sm:$0xff]
      %v1075 = vld [vmem:[%s1 + $0x10] sm:$0xff]
      %v1076 = vld [vmem:[%s1 + $0x18] sm:$0xff]
      %v1077 = vld [vmem:[%s1 + $0x20] sm:$0xff]
      %v1078 = vld [vmem:[%s1 + $0x28] sm:$0xff]
      %v1079 = vld [vmem:[%s1 + $0x30] sm:$0xff]
      %v1080 = vld [vmem:[%s1 + $0x38] sm:$0xff]
      %v1081 = vld [vmem:[%s1 + $0x40] sm:$0xff]
      %v1082 = vld [vmem:[%s1 + $0x48] sm:$0xff]
      %v1083 = vld [vmem:[%s1 + $0x50] sm:$0xff]
      %v1084 = vld [vmem:[%s1 + $0x58] sm:$0xff]
      %v1085 = vld [vmem:[%s1 + $0x60] sm:$0xff]
      %v1086 = vld [vmem:[%s1 + $0x68] sm:$0xff]
      %v1087 = vld [vmem:[%s1 + $0x70] sm:$0xff]
      %v1088 = vld [vmem:[%s1 + $0x78] sm:$0xff]
      %v1089 = vld [vmem:[%s1 + $0x80] sm:$0xff]
      %v1090 = vld [vmem:[%s1 + $0x88] sm:$0xff]
      %v1091 = vld [vmem:[%s1 + $0x90] sm:$0xff]
      %v1092 = vld [vmem:[%s1 + $0x98] sm:$0xff]
      %v1093 = vld [vmem:[%s1 + $0xa0] sm:$0xff]
      %v1094 = vld [vmem:[%s1 + $0xa8] sm:$0xff]
      %v1095 = vld [vmem:[%s1 + $0xb0] sm:$0xff]
      %v1096 = vld [vmem:[%s1 + $0xb8] sm:$0xff]
      %v1097 = vld [vmem:[%s1 + $0xc0] sm:$0xff]
      %v1098 = vld [vmem:[%s1 + $0xc8] sm:$0xff]
      %v1099 = vld [vmem:[%s1 + $0xd0] sm:$0xff]
      %v1100 = vld [vmem:[%s1 + $0xd8] sm:$0xff]
      %v1101 = vld [vmem:[%s1 + $0xe0] sm:$0xff]
      %v1102 = vld [vmem:[%s1 + $0xe8] sm:$0xff]
      %v1103 = vld [vmem:[%s1 + $0xf0] sm:$0xff]
      %v1104 = vld [vmem:[%s1 + $0xf8] sm:$0xff]
      %v1105 = vld [vmem:[%s2] sm:$0xff]
      %v1106 = vld [vmem:[%s2 + $0x8] sm:$0xff]
      %v1107 = vld [vmem:[%s2 + $0x10] sm:$0xff]
      %v1108 = vld [vmem:[%s2 + $0x18] sm:$0xff]
      %v1109 = vld [vmem:[%s2 + $0x20] sm:$0xff]
      %v1110 = vld [vmem:[%s2 + $0x28] sm:$0xff]
      %v1111 = vld [vmem:[%s2 + $0x30] sm:$0xff]
      %v1112 = vld [vmem:[%s2 + $0x38] sm:$0xff]
      %v1113 = vld [vmem:[%s2 + $0x40] sm:$0xff]
      %v1114 = vld [vmem:[%s2 + $0x48] sm:$0xff]
      %v1115 = vld [vmem:[%s2 + $0x50] sm:$0xff]
      %v1116 = vld [vmem:[%s2 + $0x58] sm:$0xff]
      %v1117 = vld [vmem:[%s2 + $0x60] sm:$0xff]
      %v1118 = vld [vmem:[%s2 + $0x68] sm:$0xff]
      %v1119 = vld [vmem:[%s2 + $0x70] sm:$0xff]
      %v1120 = vld [vmem:[%s2 + $0x78] sm:$0xff]
      %v1121 = vld [vmem:[%s2 + $0x80] sm:$0xff]
      %v1122 = vld [vmem:[%s2 + $0x88] sm:$0xff]
      %v1123 = vld [vmem:[%s2 + $0x90] sm:$0xff]
      %v1124 = vld [vmem:[%s2 + $0x98] sm:$0xff]
      %v1125 = vld [vmem:[%s2 + $0xa0] sm:$0xff]
      %v1126 = vld [vmem:[%s2 + $0xa8] sm:$0xff]
      %v1127 = vld [vmem:[%s2 + $0xb0] sm:$0xff]
      %v1128 = vld [vmem:[%s2 + $0xb8] sm:$0xff]
      %v1129 = vld [vmem:[%s2 + $0xc0] sm:$0xff]
      %v1130 = vld [vmem:[%s2 + $0xc8] sm:$0xff]
      %v1131 = vld [vmem:[%s2 + $0xd0] sm:$0xff]
      %v1132 = vld [vmem:[%s2 + $0xd8] sm:$0xff]
      %v1133 = vld [vmem:[%s2 + $0xe0] sm:$0xff]
      %v1134 = vld [vmem:[%s2 + $0xe8] sm:$0xff]
      %v1135 = vld [vmem:[%s2 + $0xf0] sm:$0xff]
      %v1136 = vld [vmem:[%s2 + $0xf8] sm:$0xff]
      %1137 = vmatprep.subr.mxu0 0.0
      %v1138 = vand.u32 %v1105, 4294901760
      %1139 = vmatpush1.msra.mxu0 %v1138
      %1140 = vmatprep.subr.mxu0 0.0
      %v1141 = vand.u32 %v1106, 4294901760
      %1142 = vmatpush1.msra.mxu0 %v1141
      %1143 = vmatprep.subr.mxu0 0.0
      %v1144 = vand.u32 %v1107, 4294901760
      %1145 = vmatpush1.msra.mxu0 %v1144
      %1146 = vmatprep.subr.mxu0 0.0
      %v1147 = vand.u32 %v1108, 4294901760
      %1148 = vmatpush1.msra.mxu0 %v1147
      %1149 = vmatprep.subr.mxu0 0.0
      %v1150 = vand.u32 %v1109, 4294901760
      %1151 = vmatpush1.msra.mxu0 %v1150
      %1152 = vmatprep.subr.mxu0 0.0
      %v1153 = vand.u32 %v1110, 4294901760
      %1154 = vmatpush1.msra.mxu0 %v1153
      %1155 = vmatprep.subr.mxu0 0.0
      %v1156 = vand.u32 %v1111, 4294901760
      %1157 = vmatpush1.msra.mxu0 %v1156
      %1158 = vmatprep.subr.mxu0 0.0
      %v1159 = vand.u32 %v1112, 4294901760
      %1160 = vmatpush1.msra.mxu0 %v1159
      %1161 = vmatprep.subr.mxu0 0.0
      %v1162 = vand.u32 %v1113, 4294901760
      %1163 = vmatpush1.msra.mxu0 %v1162
      %1164 = vmatprep.subr.mxu0 0.0
      %v1165 = vand.u32 %v1114, 4294901760
      %1166 = vmatpush1.msra.mxu0 %v1165
      %1167 = vmatprep.subr.mxu0 0.0
      %v1168 = vand.u32 %v1115, 4294901760
      %1169 = vmatpush1.msra.mxu0 %v1168
      %1170 = vmatprep.subr.mxu0 0.0
      %v1171 = vand.u32 %v1116, 4294901760
      %1172 = vmatpush1.msra.mxu0 %v1171
      %1173 = vmatprep.subr.mxu0 0.0
      %v1174 = vand.u32 %v1117, 4294901760
      %1175 = vmatpush1.msra.mxu0 %v1174
      %1176 = vmatprep.subr.mxu0 0.0
      %v1177 = vand.u32 %v1118, 4294901760
      %1178 = vmatpush1.msra.mxu0 %v1177
      %1179 = vmatprep.subr.mxu0 0.0
      %v1180 = vand.u32 %v1119, 4294901760
      %1181 = vmatpush1.msra.mxu0 %v1180
      %1182 = vmatprep.subr.mxu0 0.0
      %v1183 = vand.u32 %v1120, 4294901760
      %1184 = vmatpush1.msra.mxu0 %v1183
      %1185 = vmatprep.subr.mxu0 0.0
      %v1186 = vand.u32 %v1121, 4294901760
      %1187 = vmatpush1.msra.mxu0 %v1186
      %1188 = vmatprep.subr.mxu0 0.0
      %v1189 = vand.u32 %v1122, 4294901760
      %1190 = vmatpush1.msra.mxu0 %v1189
      %1191 = vmatprep.subr.mxu0 0.0
      %v1192 = vand.u32 %v1123, 4294901760
      %1193 = vmatpush1.msra.mxu0 %v1192
      %1194 = vmatprep.subr.mxu0 0.0
      %v1195 = vand.u32 %v1124, 4294901760
      %1196 = vmatpush1.msra.mxu0 %v1195
      %1197 = vmatprep.subr.mxu0 0.0
      %v1198 = vand.u32 %v1125, 4294901760
      %1199 = vmatpush1.msra.mxu0 %v1198
      %1200 = vmatprep.subr.mxu0 0.0
      %v1201 = vand.u32 %v1126, 4294901760
      %1202 = vmatpush1.msra.mxu0 %v1201
      %1203 = vmatprep.subr.mxu0 0.0
      %v1204 = vand.u32 %v1127, 4294901760
      %1205 = vmatpush1.msra.mxu0 %v1204
      %1206 = vmatprep.subr.mxu0 0.0
      %v1207 = vand.u32 %v1128, 4294901760
      %1208 = vmatpush1.msra.mxu0 %v1207
      %1209 = vmatprep.subr.mxu0 0.0
      %v1210 = vand.u32 %v1129, 4294901760
      %1211 = vmatpush1.msra.mxu0 %v1210
      %1212 = vmatprep.subr.mxu0 0.0
      %v1213 = vand.u32 %v1130, 4294901760
      %1214 = vmatpush1.msra.mxu0 %v1213
      %1215 = vmatprep.subr.mxu0 0.0
      %v1216 = vand.u32 %v1131, 4294901760
      %1217 = vmatpush1.msra.mxu0 %v1216
      %1218 = vmatprep.subr.mxu0 0.0
      %v1219 = vand.u32 %v1132, 4294901760
      %1220 = vmatpush1.msra.mxu0 %v1219
      %1221 = vmatprep.subr.mxu0 0.0
      %v1222 = vand.u32 %v1133, 4294901760
      %1223 = vmatpush1.msra.mxu0 %v1222
      %1224 = vmatprep.subr.mxu0 0.0
      %v1225 = vand.u32 %v1134, 4294901760
      %1226 = vmatpush1.msra.mxu0 %v1225
      %1227 = vmatprep.subr.mxu0 0.0
      %v1228 = vand.u32 %v1135, 4294901760
      %1229 = vmatpush1.msra.mxu0 %v1228
      %1230 = vmatprep.subr.mxu0 0.0
      %v1231 = vand.u32 %v1136, 4294901760
      %1232 = vmatpush1.msra.mxu0 %v1231
      %v1233 = vsub.f32 %v946, %v946
      %v1234 = vand.u32 %v1233, 4294901760
      %v1235 = vsub.f32 %v1233, %v1234
      %v1236 = vand.u32 %v1235, 4294901760
      %1237 = vmatprep.mubr.f32.mxu0 %v1236
      %v1238 = vsub.f32 %v945, %v945
      %v1239 = vand.u32 %v1238, 4294901760
      %v1240 = vsub.f32 %v1238, %v1239
      %v1241 = vand.u32 %v1240, 4294901760
      %1242 = vmatmul.mubr.f32.gmra.mrb[0].mxu0 %v1241
      %v1243 = vpop.f32.mrb[0].mxu0
      %v1244 = vadd.f32 0.0, %v1243
      %v1245 = vpop.f32.mrb[0].mxu0
      %v1246 = vsub.f32 %v948, %v948
      %v1247 = vand.u32 %v1246, 4294901760
      %v1248 = vsub.f32 %v1246, %v1247
      %v1249 = vand.u32 %v1248, 4294901760
      %1250 = vmatprep.mubr.f32.mxu0 %v1249
      %v1251 = vsub.f32 %v947, %v947
      %v1252 = vand.u32 %v1251, 4294901760
      %v1253 = vsub.f32 %v1251, %v1252
      %v1254 = vand.u32 %v1253, 4294901760
      %1255 = vmatmul.mubr.f32.gmra.mrb[0].mxu0 %v1254
      %v1256 = vpop.f32.mrb[0].mxu0
      %v1257 = vadd.f32 0.0, %v1256
      %v1258 = vpop.f32.mrb[0].mxu0
      %v1259 = vsub.f32 %v950, %v950
      %v1260 = vand.u32 %v1259, 4294901760
      %v1261 = vsub.f32 %v1259, %v1260
      %v1262 = vand.u32 %v1261, 4294901760
      %1263 = vmatprep.mubr.f32.mxu0 %v1262
      %v1264 = vsub.f32 %v949, %v949
      %v1265 = vand.u32 %v1264, 4294901760
      %v1266 = vsub.f32 %v1264, %v1265
      %v1267 = vand.u32 %v1266, 4294901760
      %1268 = vmatmul.mubr.f32.gmra.mrb[0].mxu0 %v1267
      %v1269 = vpop.f32.mrb[0].mxu0
      %v1270 = vadd.f32 0.0, %v1269
      %v1271 = vpop.f32.mrb[0].mxu0
      %v1272 = vsub.f32 %v952, %v952
      %v1273 = vand.u32 %v1272, 4294901760
      %v1274 = vsub.f32 %v1272, %v1273
      %v1275 = vand.u32 %v1274, 4294901760
      %1276 = vmatprep.mubr.f32.mxu0 %v1275
      %v1277 = vsub.f32 %v951, %v951
      %v1278 = vand.u32 %v1277, 4294901760
      %v1279 = vsub.f32 %v1277, %v1278
      %v1280 = vand.u32 %v1279, 4294901760
      %1281 = vmatmul.mubr.f32.gmra.mrb[0].mxu0 %v1280
      %v1282 = vpop.f32.mrb[0].mxu0
      %v1283 = vadd.f32 0.0, %v1282
      %v1284 = vpop.f32.mrb[0].mxu0
      %v1285 = vsub.f32 %v954, %v954
      %v1286 = vand.u32 %v1285, 4294901760
      %v1287 = vsub.f32 %v1285, %v1286
      %v1288 = vand.u32 %v1287, 4294901760
      %1289 = vmatprep.mubr.f32.mxu0 %v1288
      %v1290 = vsub.f32 %v953, %v953
      %v1291 = vand.u32 %v1290, 4294901760
      %v1292 = vsub.f32 %v1290, %v1291
      %v1293 = vand.u32 %v1292, 4294901760
      %1294 = vmatmul.mubr.f32.gmra.mrb[0].mxu0 %v1293
      %v1295 = vpop.f32.mrb[0].mxu0
      %v1296 = vadd.f32 0.0, %v1295
      %v1297 = vpop.f32.mrb[0].mxu0
      %v1298 = vsub.f32 %v956, %v956
      %v1299 = vand.u32 %v1298, 4294901760
      %v1300 = vsub.f32 %v1298, %v1299
      %v1301 = vand.u32 %v1300, 4294901760
      %1302 = vmatprep.mubr.f32.mxu0 %v1301
      %v1303 = vsub.f32 %v955, %v955
      %v1304 = vand.u32 %v1303, 4294901760
      %v1305 = vsub.f32 %v1303, %v1304
      %v1306 = vand.u32 %v1305, 4294901760
      %1307 = vmatmul.mubr.f32.gmra.mrb[0].mxu0 %v1306
      %v1308 = vpop.f32.mrb[0].mxu0
      %v1309 = vadd.f32 0.0, %v1308
      %v1310 = vpop.f32.mrb[0].mxu0
      %v1311 = vsub.f32 %v958, %v958
      %v1312 = vand.u32 %v1311, 4294901760
      %v1313 = vsub.f32 %v1311, %v1312
      %v1314 = vand.u32 %v1313, 4294901760
      %1315 = vmatprep.mubr.f32.mxu0 %v1314
      %v1316 = vsub.f32 %v957, %v957
      %v1317 = vand.u32 %v1316, 4294901760
      %v1318 = vsub.f32 %v1316, %v1317
      %v1319 = vand.u32 %v1318, 4294901760
      %1320 = vmatmul.mubr.f32.gmra.mrb[0].mxu0 %v1319
      %v1321 = vpop.f32.mrb[0].mxu0
      %v1322 = vadd.f32 0.0, %v1321
      %v1323 = vpop.f32.mrb[0].mxu0
      %v1324 = vsub.f32 %v960, %v960
      %v1325 = vand.u32 %v1324, 4294901760
      %v1326 = vsub.f32 %v1324, %v1325
      %v1327 = vand.u32 %v1326, 4294901760
      %1328 = vmatprep.mubr.f32.mxu0 %v1327
      %v1329 = vsub.f32 %v959, %v959
      %v1330 = vand.u32 %v1329, 4294901760
      %v1331 = vsub.f32 %v1329, %v1330
      %v1332 = vand.u32 %v1331, 4294901760
      %1333 = vmatmul.mubr.f32.gmra.mrb[0].mxu0 %v1332
      %v1334 = vpop.f32.mrb[0].mxu0
      %v1335 = vadd.f32 0.0, %v1334
      %v1336 = vpop.f32.mrb[0].mxu0
      %v1337 = vsub.f32 %v962, %v962
      %v1338 = vand.u32 %v1337, 4294901760
      %v1339 = vsub.f32 %v1337, %v1338
      %v1340 = vand.u32 %v1339, 4294901760
      %1341 = vmatprep.mubr.f32.mxu0 %v1340
      %v1342 = vsub.f32 %v961, %v961
      %v1343 = vand.u32 %v1342, 4294901760
      %v1344 = vsub.f32 %v1342, %v1343
      %v1345 = vand.u32 %v1344, 4294901760
      %1346 = vmatmul.mubr.f32.gmra.mrb[0].mxu0 %v1345
      %v1347 = vpop.f32.mrb[0].mxu0
      %v1348 = vadd.f32 0.0, %v1347
      %v1349 = vpop.f32.mrb[0].mxu0
      %v1350 = vsub.f32 %v964, %v964
      %v1351 = vand.u32 %v1350, 4294901760
      %v1352 = vsub.f32 %v1350, %v1351
      %v1353 = vand.u32 %v1352, 4294901760
      %1354 = vmatprep.mubr.f32.mxu0 %v1353
      %v1355 = vsub.f32 %v963, %v963
      %v1356 = vand.u32 %v1355, 4294901760
      %v1357 = vsub.f32 %v1355, %v1356
      %v1358 = vand.u32 %v1357, 4294901760
      %1359 = vmatmul.mubr.f32.gmra.mrb[0].mxu0 %v1358
      %v1360 = vpop.f32.mrb[0].mxu0
      %v1361 = vadd.f32 0.0, %v1360
      %v1362 = vpop.f32.mrb[0].mxu0
      %v1363 = vsub.f32 %v966, %v966
      %v1364 = vand.u32 %v1363, 4294901760
      %v1365 = vsub.f32 %v1363, %v1364
      %v1366 = vand.u32 %v1365, 4294901760
      %1367 = vmatprep.mubr.f32.mxu0 %v1366
      %v1368 = vsub.f32 %v965, %v965
      %v1369 = vand.u32 %v1368, 4294901760
      %v1370 = vsub.f32 %v1368, %v1369
      %v1371 = vand.u32 %v1370, 4294901760
      %1372 = vmatmul.mubr.f32.gmra.mrb[0].mxu0 %v1371
      %v1373 = vpop.f32.mrb[0].mxu0
      %v1374 = vadd.f32 0.0, %v1373
      %v1375 = vpop.f32.mrb[0].mxu0
      %v1376 = vsub.f32 %v968, %v968
      %v1377 = vand.u32 %v1376, 4294901760
      %v1378 = vsub.f32 %v1376, %v1377
      %v1379 = vand.u32 %v1378, 4294901760
      %1380 = vmatprep.mubr.f32.mxu0 %v1379
      %v1381 = vsub.f32 %v967, %v967
      %v1382 = vand.u32 %v1381, 4294901760
      %v1383 = vsub.f32 %v1381, %v1382
      %v1384 = vand.u32 %v1383, 4294901760
      %1385 = vmatmul.mubr.f32.gmra.mrb[0].mxu0 %v1384
      %v1386 = vpop.f32.mrb[0].mxu0
      %v1387 = vadd.f32 0.0, %v1386
      %v1388 = vpop.f32.mrb[0].mxu0
      %v1389 = vsub.f32 %v970, %v970
      %v1390 = vand.u32 %v1389, 4294901760
      %v1391 = vsub.f32 %v1389, %v1390
      %v1392 = vand.u32 %v1391, 4294901760
      %1393 = vmatprep.mubr.f32.mxu0 %v1392
      %v1394 = vsub.f32 %v969, %v969
      %v1395 = vand.u32 %v1394, 4294901760
      %v1396 = vsub.f32 %v1394, %v1395
      %v1397 = vand.u32 %v1396, 4294901760
      %1398 = vmatmul.mubr.f32.gmra.mrb[0].mxu0 %v1397
      %v1399 = vpop.f32.mrb[0].mxu0
      %v1400 = vadd.f32 0.0, %v1399
      %v1401 = vpop.f32.mrb[0].mxu0
      %v1402 = vsub.f32 %v972, %v972
      %v1403 = vand.u32 %v1402, 4294901760
      %v1404 = vsub.f32 %v1402, %v1403
      %v1405 = vand.u32 %v1404, 4294901760
      %1406 = vmatprep.mubr.f32.mxu0 %v1405
      %v1407 = vsub.f32 %v971, %v971
      %v1408 = vand.u32 %v1407, 4294901760
      %v1409 = vsub.f32 %v1407, %v1408
      %v1410 = vand.u32 %v1409, 4294901760
      %1411 = vmatmul.mubr.f32.gmra.mrb[0].mxu0 %v1410
      %v1412 = vpop.f32.mrb[0].mxu0
      %v1413 = vadd.f32 0.0, %v1412
      %v1414 = vpop.f32.mrb[0].mxu0
      %v1415 = vsub.f32 %v974, %v974
      %v1416 = vand.u32 %v1415, 4294901760
      %v1417 = vsub.f32 %v1415, %v1416
      %v1418 = vand.u32 %v1417, 4294901760
      %1419 = vmatprep.mubr.f32.mxu0 %v1418
      %v1420 = vsub.f32 %v973, %v973
      %v1421 = vand.u32 %v1420, 4294901760
      %v1422 = vsub.f32 %v1420, %v1421
      %v1423 = vand.u32 %v1422, 4294901760
      %1424 = vmatmul.mubr.f32.gmra.mrb[0].mxu0 %v1423
      %v1425 = vpop.f32.mrb[0].mxu0
      %v1426 = vadd.f32 0.0, %v1425
      %v1427 = vpop.f32.mrb[0].mxu0
      %v1428 = vsub.f32 %v976, %v976
      %v1429 = vand.u32 %v1428, 4294901760
      %v1430 = vsub.f32 %v1428, %v1429
      %v1431 = vand.u32 %v1430, 4294901760
      %1432 = vmatprep.mubr.f32.mxu0 %v1431
      %v1433 = vsub.f32 %v975, %v975
      %v1434 = vand.u32 %v1433, 4294901760
      %v1435 = vsub.f32 %v1433, %v1434
      %v1436 = vand.u32 %v1435, 4294901760
      %1437 = vmatmul.mubr.f32.gmra.mrb[0].mxu0 %v1436
      %v1438 = vpop.f32.mrb[0].mxu0
      %v1439 = vadd.f32 0.0, %v1438
      %v1440 = vpop.f32.mrb[0].mxu0
      %v1441 = vsub.f32 %v978, %v978
      %v1442 = vand.u32 %v1441, 4294901760
      %v1443 = vsub.f32 %v1441, %v1442
      %v1444 = vand.u32 %v1443, 4294901760
      %1445 = vmatprep.mubr.f32.mxu0 %v1444
      %v1446 = vsub.f32 %v977, %v977
      %v1447 = vand.u32 %v1446, 4294901760
      %v1448 = vsub.f32 %v1446, %v1447
      %v1449 = vand.u32 %v1448, 4294901760
      %1450 = vmatmul.mubr.f32.gmra.mrb[0].mxu0 %v1449
      %v1451 = vpop.f32.mrb[0].mxu0
      %v1452 = vadd.f32 0.0, %v1451
      %v1453 = vpop.f32.mrb[0].mxu0
      %v1454 = vsub.f32 %v980, %v980
      %v1455 = vand.u32 %v1454, 4294901760
      %v1456 = vsub.f32 %v1454, %v1455
      %v1457 = vand.u32 %v1456, 4294901760
      %1458 = vmatprep.mubr.f32.mxu0 %v1457
      %v1459 = vsub.f32 %v979, %v979
      %v1460 = vand.u32 %v1459, 4294901760
      %v1461 = vsub.f32 %v1459, %v1460
      %v1462 = vand.u32 %v1461, 4294901760
      %1463 = vmatmul.mubr.f32.gmra.mrb[0].mxu0 %v1462
      %v1464 = vpop.f32.mrb[0].mxu0
      %v1465 = vadd.f32 0.0, %v1464
      %v1466 = vpop.f32.mrb[0].mxu0
      %v1467 = vsub.f32 %v982, %v982
      %v1468 = vand.u32 %v1467, 4294901760
      %v1469 = vsub.f32 %v1467, %v1468
      %v1470 = vand.u32 %v1469, 4294901760
      %1471 = vmatprep.mubr.f32.mxu0 %v1470
      %v1472 = vsub.f32 %v981, %v981
      %v1473 = vand.u32 %v1472, 4294901760
      %v1474 = vsub.f32 %v1472, %v1473
      %v1475 = vand.u32 %v1474, 4294901760
      %1476 = vmatmul.mubr.f32.gmra.mrb[0].mxu0 %v1475
      %v1477 = vpop.f32.mrb[0].mxu0
      %v1478 = vadd.f32 0.0, %v1477
      %v1479 = vpop.f32.mrb[0].mxu0
      %v1480 = vsub.f32 %v984, %v984
      %v1481 = vand.u32 %v1480, 4294901760
      %v1482 = vsub.f32 %v1480, %v1481
      %v1483 = vand.u32 %v1482, 4294901760
      %1484 = vmatprep.mubr.f32.mxu0 %v1483
      %v1485 = vsub.f32 %v983, %v983
      %v1486 = vand.u32 %v1485, 4294901760
      %v1487 = vsub.f32 %v1485, %v1486
      %v1488 = vand.u32 %v1487, 4294901760
      %1489 = vmatmul.mubr.f32.gmra.mrb[0].mxu0 %v1488
      %v1490 = vpop.f32.mrb[0].mxu0
      %v1491 = vadd.f32 0.0, %v1490
      %v1492 = vpop.f32.mrb[0].mxu0
      %v1493 = vsub.f32 %v986, %v986
      %v1494 = vand.u32 %v1493, 4294901760
      %v1495 = vsub.f32 %v1493, %v1494
      %v1496 = vand.u32 %v1495, 4294901760
      %1497 = vmatprep.mubr.f32.mxu0 %v1496
      %v1498 = vsub.f32 %v985, %v985
      %v1499 = vand.u32 %v1498, 4294901760
      %v1500 = vsub.f32 %v1498, %v1499
      %v1501 = vand.u32 %v1500, 4294901760
      %1502 = vmatmul.mubr.f32.gmra.mrb[0].mxu0 %v1501
      %v1503 = vpop.f32.mrb[0].mxu0
      %v1504 = vadd.f32 0.0, %v1503
      %v1505 = vpop.f32.mrb[0].mxu0
      %v1506 = vsub.f32 %v988, %v988
      %v1507 = vand.u32 %v1506, 4294901760
      %v1508 = vsub.f32 %v1506, %v1507
      %v1509 = vand.u32 %v1508, 4294901760
      %1510 = vmatprep.mubr.f32.mxu0 %v1509
      %v1511 = vsub.f32 %v987, %v987
      %v1512 = vand.u32 %v1511, 4294901760
      %v1513 = vsub.f32 %v1511, %v1512
      %v1514 = vand.u32 %v1513, 4294901760
      %1515 = vmatmul.mubr.f32.gmra.mrb[0].mxu0 %v1514
      %v1516 = vpop.f32.mrb[0].mxu0
      %v1517 = vadd.f32 0.0, %v1516
      %v1518 = vpop.f32.mrb[0].mxu0
      %v1519 = vsub.f32 %v990, %v990
      %v1520 = vand.u32 %v1519, 4294901760
      %v1521 = vsub.f32 %v1519, %v1520
      %v1522 = vand.u32 %v1521, 4294901760
      %1523 = vmatprep.mubr.f32.mxu0 %v1522
      %v1524 = vsub.f32 %v989, %v989
      %v1525 = vand.u32 %v1524, 4294901760
      %v1526 = vsub.f32 %v1524, %v1525
      %v1527 = vand.u32 %v1526, 4294901760
      %1528 = vmatmul.mubr.f32.gmra.mrb[0].mxu0 %v1527
      %v1529 = vpop.f32.mrb[0].mxu0
      %v1530 = vadd.f32 0.0, %v1529
      %v1531 = vpop.f32.mrb[0].mxu0
      %v1532 = vsub.f32 %v992, %v992
      %v1533 = vand.u32 %v1532, 4294901760
      %v1534 = vsub.f32 %v1532, %v1533
      %v1535 = vand.u32 %v1534, 4294901760
      %1536 = vmatprep.mubr.f32.mxu0 %v1535
      %v1537 = vsub.f32 %v991, %v991
      %v1538 = vand.u32 %v1537, 4294901760
      %v1539 = vsub.f32 %v1537, %v1538
      %v1540 = vand.u32 %v1539, 4294901760
      %1541 = vmatmul.mubr.f32.gmra.mrb[0].mxu0 %v1540
      %v1542 = vpop.f32.mrb[0].mxu0
      %v1543 = vadd.f32 0.0, %v1542
      %v1544 = vpop.f32.mrb[0].mxu0
      %v1545 = vsub.f32 %v994, %v994
      %v1546 = vand.u32 %v1545, 4294901760
      %v1547 = vsub.f32 %v1545, %v1546
      %v1548 = vand.u32 %v1547, 4294901760
      %1549 = vmatprep.mubr.f32.mxu0 %v1548
      %v1550 = vsub.f32 %v993, %v993
      %v1551 = vand.u32 %v1550, 4294901760
      %v1552 = vsub.f32 %v1550, %v1551
      %v1553 = vand.u32 %v1552, 4294901760
      %1554 = vmatmul.mubr.f32.gmra.mrb[0].mxu0 %v1553
      %v1555 = vpop.f32.mrb[0].mxu0
      %v1556 = vadd.f32 0.0, %v1555
      %v1557 = vpop.f32.mrb[0].mxu0
      %v1558 = vsub.f32 %v996, %v996
      %v1559 = vand.u32 %v1558, 4294901760
      %v1560 = vsub.f32 %v1558, %v1559
      %v1561 = vand.u32 %v1560, 4294901760
      %1562 = vmatprep.mubr.f32.mxu0 %v1561
      %v1563 = vsub.f32 %v995, %v995
      %v1564 = vand.u32 %v1563, 4294901760
      %v1565 = vsub.f32 %v1563, %v1564
      %v1566 = vand.u32 %v1565, 4294901760
      %1567 = vmatmul.mubr.f32.gmra.mrb[0].mxu0 %v1566
      %v1568 = vpop.f32.mrb[0].mxu0
      %v1569 = vadd.f32 0.0, %v1568
      %v1570 = vpop.f32.mrb[0].mxu0
      %v1571 = vsub.f32 %v998, %v998
      %v1572 = vand.u32 %v1571, 4294901760
      %v1573 = vsub.f32 %v1571, %v1572
      %v1574 = vand.u32 %v1573, 4294901760
      %1575 = vmatprep.mubr.f32.mxu0 %v1574
      %v1576 = vsub.f32 %v997, %v997
      %v1577 = vand.u32 %v1576, 4294901760
      %v1578 = vsub.f32 %v1576, %v1577
      %v1579 = vand.u32 %v1578, 4294901760
      %1580 = vmatmul.mubr.f32.gmra.mrb[0].mxu0 %v1579
      %v1581 = vpop.f32.mrb[0].mxu0
      %v1582 = vadd.f32 0.0, %v1581
      %v1583 = vpop.f32.mrb[0].mxu0
      %v1584 = vsub.f32 %v1000, %v1000
      %v1585 = vand.u32 %v1584, 4294901760
      %v1586 = vsub.f32 %v1584, %v1585
      %v1587 = vand.u32 %v1586, 4294901760
      %1588 = vmatprep.mubr.f32.mxu0 %v1587
      %v1589 = vsub.f32 %v999, %v999
      %v1590 = vand.u32 %v1589, 4294901760
      %v1591 = vsub.f32 %v1589, %v1590
      %v1592 = vand.u32 %v1591, 4294901760
      %1593 = vmatmul.mubr.f32.gmra.mrb[0].mxu0 %v1592
      %v1594 = vpop.f32.mrb[0].mxu0
      %v1595 = vadd.f32 0.0, %v1594
      %v1596 = vpop.f32.mrb[0].mxu0
      %v1597 = vsub.f32 %v1002, %v1002
      %v1598 = vand.u32 %v1597, 4294901760
      %v1599 = vsub.f32 %v1597, %v1598
      %v1600 = vand.u32 %v1599, 4294901760
      %1601 = vmatprep.mubr.f32.mxu0 %v1600
      %v1602 = vsub.f32 %v1001, %v1001
      %v1603 = vand.u32 %v1602, 4294901760
      %v1604 = vsub.f32 %v1602, %v1603
      %v1605 = vand.u32 %v1604, 4294901760
      %1606 = vmatmul.mubr.f32.gmra.mrb[0].mxu0 %v1605
      %v1607 = vpop.f32.mrb[0].mxu0
      %v1608 = vadd.f32 0.0, %v1607
      %v1609 = vpop.f32.mrb[0].mxu0
      %v1610 = vsub.f32 %v1004, %v1004
      %v1611 = vand.u32 %v1610, 4294901760
      %v1612 = vsub.f32 %v1610, %v1611
      %v1613 = vand.u32 %v1612, 4294901760
      %1614 = vmatprep.mubr.f32.mxu0 %v1613
      %v1615 = vsub.f32 %v1003, %v1003
      %v1616 = vand.u32 %v1615, 4294901760
      %v1617 = vsub.f32 %v1615, %v1616
      %v1618 = vand.u32 %v1617, 4294901760
      %1619 = vmatmul.mubr.f32.gmra.mrb[0].mxu0 %v1618
      %v1620 = vpop.f32.mrb[0].mxu0
      %v1621 = vadd.f32 0.0, %v1620
      %v1622 = vpop.f32.mrb[0].mxu0
      %v1623 = vsub.f32 %v1006, %v1006
      %v1624 = vand.u32 %v1623, 4294901760
      %v1625 = vsub.f32 %v1623, %v1624
      %v1626 = vand.u32 %v1625, 4294901760
      %1627 = vmatprep.mubr.f32.mxu0 %v1626
      %v1628 = vsub.f32 %v1005, %v1005
      %v1629 = vand.u32 %v1628, 4294901760
      %v1630 = vsub.f32 %v1628, %v1629
      %v1631 = vand.u32 %v1630, 4294901760
      %1632 = vmatmul.mubr.f32.gmra.mrb[0].mxu0 %v1631
      %v1633 = vpop.f32.mrb[0].mxu0
      %v1634 = vadd.f32 0.0, %v1633
      %v1635 = vpop.f32.mrb[0].mxu0
      %v1636 = vsub.f32 %v1008, %v1008
      %v1637 = vand.u32 %v1636, 4294901760
      %v1638 = vsub.f32 %v1636, %v1637
      %v1639 = vand.u32 %v1638, 4294901760
      %1640 = vmatprep.mubr.f32.mxu0 %v1639
      %v1641 = vsub.f32 %v1007, %v1007
      %v1642 = vand.u32 %v1641, 4294901760
      %v1643 = vsub.f32 %v1641, %v1642
      %v1644 = vand.u32 %v1643, 4294901760
      %1645 = vmatmul.mubr.f32.gmra.mrb[0].mxu0 %v1644
      %v1646 = vpop.f32.mrb[0].mxu0
      %v1647 = vadd.f32 0.0, %v1646
      %v1648 = vpop.f32.mrb[0].mxu0
      %v1649 = vsub.f32 %v1010, %v1010
      %v1650 = vand.u32 %v1649, 4294901760
      %v1651 = vsub.f32 %v1649, %v1650
      %v1652 = vand.u32 %v1651, 4294901760
      %1653 = vmatprep.mubr.f32.mxu0 %v1652
      %v1654 = vsub.f32 %v1009, %v1009
      %v1655 = vand.u32 %v1654, 4294901760
      %v1656 = vsub.f32 %v1654, %v1655
      %v1657 = vand.u32 %v1656, 4294901760
      %1658 = vmatmul.mubr.f32.gmra.mrb[0].mxu0 %v1657
      %v1659 = vpop.f32.mrb[0].mxu0
      %v1660 = vadd.f32 0.0, %v1659
      %v1661 = vpop.f32.mrb[0].mxu0
      %v1662 = vsub.f32 %v1012, %v1012
      %v1663 = vand.u32 %v1662, 4294901760
      %v1664 = vsub.f32 %v1662, %v1663
      %v1665 = vand.u32 %v1664, 4294901760
      %1666 = vmatprep.mubr.f32.mxu0 %v1665
      %v1667 = vsub.f32 %v1011, %v1011
      %v1668 = vand.u32 %v1667, 4294901760
      %v1669 = vsub.f32 %v1667, %v1668
      %v1670 = vand.u32 %v1669, 4294901760
      %1671 = vmatmul.mubr.f32.gmra.mrb[0].mxu0 %v1670
      %v1672 = vpop.f32.mrb[0].mxu0
      %v1673 = vadd.f32 0.0, %v1672
      %v1674 = vpop.f32.mrb[0].mxu0
      %v1675 = vsub.f32 %v1014, %v1014
      %v1676 = vand.u32 %v1675, 4294901760
      %v1677 = vsub.f32 %v1675, %v1676
      %v1678 = vand.u32 %v1677, 4294901760
      %1679 = vmatprep.mubr.f32.mxu0 %v1678
      %v1680 = vsub.f32 %v1013, %v1013
      %v1681 = vand.u32 %v1680, 4294901760
      %v1682 = vsub.f32 %v1680, %v1681
      %v1683 = vand.u32 %v1682, 4294901760
      %1684 = vmatmul.mubr.f32.gmra.mrb[0].mxu0 %v1683
      %v1685 = vpop.f32.mrb[0].mxu0
      %v1686 = vadd.f32 0.0, %v1685
      %v1687 = vpop.f32.mrb[0].mxu0
      %v1688 = vsub.f32 %v1016, %v1016
      %v1689 = vand.u32 %v1688, 4294901760
      %v1690 = vsub.f32 %v1688, %v1689
      %v1691 = vand.u32 %v1690, 4294901760
      %1692 = vmatprep.mubr.f32.mxu0 %v1691
      %v1693 = vsub.f32 %v1015, %v1015
      %v1694 = vand.u32 %v1693, 4294901760
      %v1695 = vsub.f32 %v1693, %v1694
      %v1696 = vand.u32 %v1695, 4294901760
      %1697 = vmatmul.mubr.f32.gmra.mrb[0].mxu0 %v1696
      %v1698 = vpop.f32.mrb[0].mxu0
      %v1699 = vadd.f32 0.0, %v1698
      %v1700 = vpop.f32.mrb[0].mxu0
      %v1701 = vsub.f32 %v1018, %v1018
      %v1702 = vand.u32 %v1701, 4294901760
      %v1703 = vsub.f32 %v1701, %v1702
      %v1704 = vand.u32 %v1703, 4294901760
      %1705 = vmatprep.mubr.f32.mxu0 %v1704
      %v1706 = vsub.f32 %v1017, %v1017
      %v1707 = vand.u32 %v1706, 4294901760
      %v1708 = vsub.f32 %v1706, %v1707
      %v1709 = vand.u32 %v1708, 4294901760
      %1710 = vmatmul.mubr.f32.gmra.mrb[0].mxu0 %v1709
      %v1711 = vpop.f32.mrb[0].mxu0
      %v1712 = vadd.f32 0.0, %v1711
      %v1713 = vpop.f32.mrb[0].mxu0
      %v1714 = vsub.f32 %v1020, %v1020
      %v1715 = vand.u32 %v1714, 4294901760
      %v1716 = vsub.f32 %v1714, %v1715
      %v1717 = vand.u32 %v1716, 4294901760
      %1718 = vmatprep.mubr.f32.mxu0 %v1717
      %v1719 = vsub.f32 %v1019, %v1019
      %v1720 = vand.u32 %v1719, 4294901760
      %v1721 = vsub.f32 %v1719, %v1720
      %v1722 = vand.u32 %v1721, 4294901760
      %1723 = vmatmul.mubr.f32.gmra.mrb[0].mxu0 %v1722
      %v1724 = vpop.f32.mrb[0].mxu0
      %v1725 = vadd.f32 0.0, %v1724
      %v1726 = vpop.f32.mrb[0].mxu0
      %v1727 = vsub.f32 %v1022, %v1022
      %v1728 = vand.u32 %v1727, 4294901760
      %v1729 = vsub.f32 %v1727, %v1728
      %v1730 = vand.u32 %v1729, 4294901760
      %1731 = vmatprep.mubr.f32.mxu0 %v1730
      %v1732 = vsub.f32 %v1021, %v1021
      %v1733 = vand.u32 %v1732, 4294901760
      %v1734 = vsub.f32 %v1732, %v1733
      %v1735 = vand.u32 %v1734, 4294901760
      %1736 = vmatmul.mubr.f32.gmra.mrb[0].mxu0 %v1735
      %v1737 = vpop.f32.mrb[0].mxu0
      %v1738 = vadd.f32 0.0, %v1737
      %v1739 = vpop.f32.mrb[0].mxu0
      %v1740 = vsub.f32 %v1024, %v1024
      %v1741 = vand.u32 %v1740, 4294901760
      %v1742 = vsub.f32 %v1740, %v1741
      %v1743 = vand.u32 %v1742, 4294901760
      %1744 = vmatprep.mubr.f32.mxu0 %v1743
      %v1745 = vsub.f32 %v1023, %v1023
      %v1746 = vand.u32 %v1745, 4294901760
      %v1747 = vsub.f32 %v1745, %v1746
      %v1748 = vand.u32 %v1747, 4294901760
      %1749 = vmatmul.mubr.f32.gmra.mrb[0].mxu0 %v1748
      %v1750 = vpop.f32.mrb[0].mxu0
      %v1751 = vadd.f32 0.0, %v1750
      %v1752 = vpop.f32.mrb[0].mxu0
      %v1753 = vsub.f32 %v1026, %v1026
      %v1754 = vand.u32 %v1753, 4294901760
      %v1755 = vsub.f32 %v1753, %v1754
      %v1756 = vand.u32 %v1755, 4294901760
      %1757 = vmatprep.mubr.f32.mxu0 %v1756
      %v1758 = vsub.f32 %v1025, %v1025
      %v1759 = vand.u32 %v1758, 4294901760
      %v1760 = vsub.f32 %v1758, %v1759
      %v1761 = vand.u32 %v1760, 4294901760
      %1762 = vmatmul.mubr.f32.gmra.mrb[0].mxu0 %v1761
      %v1763 = vpop.f32.mrb[0].mxu0
      %v1764 = vadd.f32 0.0, %v1763
      %v1765 = vpop.f32.mrb[0].mxu0
      %v1766 = vsub.f32 %v1028, %v1028
      %v1767 = vand.u32 %v1766, 4294901760
      %v1768 = vsub.f32 %v1766, %v1767
      %v1769 = vand.u32 %v1768, 4294901760
      %1770 = vmatprep.mubr.f32.mxu0 %v1769
      %v1771 = vsub.f32 %v1027, %v1027
      %v1772 = vand.u32 %v1771, 4294901760
      %v1773 = vsub.f32 %v1771, %v1772
      %v1774 = vand.u32 %v1773, 4294901760
      %1775 = vmatmul.mubr.f32.gmra.mrb[0].mxu0 %v1774
      %v1776 = vpop.f32.mrb[0].mxu0
      %v1777 = vadd.f32 0.0, %v1776
      %v1778 = vpop.f32.mrb[0].mxu0
      %v1779 = vsub.f32 %v1030, %v1030
      %v1780 = vand.u32 %v1779, 4294901760
      %v1781 = vsub.f32 %v1779, %v1780
      %v1782 = vand.u32 %v1781, 4294901760
      %1783 = vmatprep.mubr.f32.mxu0 %v1782
      %v1784 = vsub.f32 %v1029, %v1029
      %v1785 = vand.u32 %v1784, 4294901760
      %v1786 = vsub.f32 %v1784, %v1785
      %v1787 = vand.u32 %v1786, 4294901760
      %1788 = vmatmul.mubr.f32.gmra.mrb[0].mxu0 %v1787
      %v1789 = vpop.f32.mrb[0].mxu0
      %v1790 = vadd.f32 0.0, %v1789
      %v1791 = vpop.f32.mrb[0].mxu0
      %v1792 = vsub.f32 %v1032, %v1032
      %v1793 = vand.u32 %v1792, 4294901760
      %v1794 = vsub.f32 %v1792, %v1793
      %v1795 = vand.u32 %v1794, 4294901760
      %1796 = vmatprep.mubr.f32.mxu0 %v1795
      %v1797 = vsub.f32 %v1031, %v1031
      %v1798 = vand.u32 %v1797, 4294901760
      %v1799 = vsub.f32 %v1797, %v1798
      %v1800 = vand.u32 %v1799, 4294901760
      %1801 = vmatmul.mubr.f32.gmra.mrb[0].mxu0 %v1800
      %v1802 = vpop.f32.mrb[0].mxu0
      %v1803 = vadd.f32 0.0, %v1802
      %v1804 = vpop.f32.mrb[0].mxu0
      %v1805 = vsub.f32 %v1034, %v1034
      %v1806 = vand.u32 %v1805, 4294901760
      %v1807 = vsub.f32 %v1805, %v1806
      %v1808 = vand.u32 %v1807, 4294901760
      %1809 = vmatprep.mubr.f32.mxu0 %v1808
      %v1810 = vsub.f32 %v1033, %v1033
      %v1811 = vand.u32 %v1810, 4294901760
      %v1812 = vsub.f32 %v1810, %v1811
      %v1813 = vand.u32 %v1812, 4294901760
      %1814 = vmatmul.mubr.f32.gmra.mrb[0].mxu0 %v1813
      %v1815 = vpop.f32.mrb[0].mxu0
      %v1816 = vadd.f32 0.0, %v1815
      %v1817 = vpop.f32.mrb[0].mxu0
      %v1818 = vsub.f32 %v1036, %v1036
      %v1819 = vand.u32 %v1818, 4294901760
      %v1820 = vsub.f32 %v1818, %v1819
      %v1821 = vand.u32 %v1820, 4294901760
      %1822 = vmatprep.mubr.f32.mxu0 %v1821
      %v1823 = vsub.f32 %v1035, %v1035
      %v1824 = vand.u32 %v1823, 4294901760
      %v1825 = vsub.f32 %v1823, %v1824
      %v1826 = vand.u32 %v1825, 4294901760
      %1827 = vmatmul.mubr.f32.gmra.mrb[0].mxu0 %v1826
      %v1828 = vpop.f32.mrb[0].mxu0
      %v1829 = vadd.f32 0.0, %v1828
      %v1830 = vpop.f32.mrb[0].mxu0
      %v1831 = vsub.f32 %v1038, %v1038
      %v1832 = vand.u32 %v1831, 4294901760
      %v1833 = vsub.f32 %v1831, %v1832
      %v1834 = vand.u32 %v1833, 4294901760
      %1835 = vmatprep.mubr.f32.mxu0 %v1834
      %v1836 = vsub.f32 %v1037, %v1037
      %v1837 = vand.u32 %v1836, 4294901760
      %v1838 = vsub.f32 %v1836, %v1837
      %v1839 = vand.u32 %v1838, 4294901760
      %1840 = vmatmul.mubr.f32.gmra.mrb[0].mxu0 %v1839
      %v1841 = vpop.f32.mrb[0].mxu0
      %v1842 = vadd.f32 0.0, %v1841
      %v1843 = vpop.f32.mrb[0].mxu0
      %v1844 = vsub.f32 %v1040, %v1040
      %v1845 = vand.u32 %v1844, 4294901760
      %v1846 = vsub.f32 %v1844, %v1845
      %v1847 = vand.u32 %v1846, 4294901760
      %1848 = vmatprep.mubr.f32.mxu0 %v1847
      %v1849 = vsub.f32 %v1039, %v1039
      %v1850 = vand.u32 %v1849, 4294901760
      %v1851 = vsub.f32 %v1849, %v1850
      %v1852 = vand.u32 %v1851, 4294901760
      %1853 = vmatmul.mubr.f32.gmra.mrb[0].mxu0 %v1852
      %v1854 = vpop.f32.mrb[0].mxu0
      %v1855 = vadd.f32 0.0, %v1854
      %v1856 = vpop.f32.mrb[0].mxu0
      %v1857 = vsub.f32 %v1042, %v1042
      %v1858 = vand.u32 %v1857, 4294901760
      %v1859 = vsub.f32 %v1857, %v1858
      %v1860 = vand.u32 %v1859, 4294901760
      %1861 = vmatprep.mubr.f32.mxu0 %v1860
      %v1862 = vsub.f32 %v1041, %v1041
      %v1863 = vand.u32 %v1862, 4294901760
      %v1864 = vsub.f32 %v1862, %v1863
      %v1865 = vand.u32 %v1864, 4294901760
      %1866 = vmatmul.mubr.f32.gmra.mrb[0].mxu0 %v1865
      %v1867 = vpop.f32.mrb[0].mxu0
      %v1868 = vadd.f32 0.0, %v1867
      %v1869 = vpop.f32.mrb[0].mxu0
      %v1870 = vsub.f32 %v1044, %v1044
      %v1871 = vand.u32 %v1870, 4294901760
      %v1872 = vsub.f32 %v1870, %v1871
      %v1873 = vand.u32 %v1872, 4294901760
      %1874 = vmatprep.mubr.f32.mxu0 %v1873
      %v1875 = vsub.f32 %v1043, %v1043
      %v1876 = vand.u32 %v1875, 4294901760
      %v1877 = vsub.f32 %v1875, %v1876
      %v1878 = vand.u32 %v1877, 4294901760
      %1879 = vmatmul.mubr.f32.gmra.mrb[0].mxu0 %v1878
      %v1880 = vpop.f32.mrb[0].mxu0
      %v1881 = vadd.f32 0.0, %v1880
      %v1882 = vpop.f32.mrb[0].mxu0
      %v1883 = vsub.f32 %v1046, %v1046
      %v1884 = vand.u32 %v1883, 4294901760
      %v1885 = vsub.f32 %v1883, %v1884
      %v1886 = vand.u32 %v1885, 4294901760
      %1887 = vmatprep.mubr.f32.mxu0 %v1886
      %v1888 = vsub.f32 %v1045, %v1045
      %v1889 = vand.u32 %v1888, 4294901760
      %v1890 = vsub.f32 %v1888, %v1889
      %v1891 = vand.u32 %v1890, 4294901760
      %1892 = vmatmul.mubr.f32.gmra.mrb[0].mxu0 %v1891
      %v1893 = vpop.f32.mrb[0].mxu0
      %v1894 = vadd.f32 0.0, %v1893
      %v1895 = vpop.f32.mrb[0].mxu0
      %v1896 = vsub.f32 %v1048, %v1048
      %v1897 = vand.u32 %v1896, 4294901760
      %v1898 = vsub.f32 %v1896, %v1897
      %v1899 = vand.u32 %v1898, 4294901760
      %1900 = vmatprep.mubr.f32.mxu0 %v1899
      %v1901 = vsub.f32 %v1047, %v1047
      %v1902 = vand.u32 %v1901, 4294901760
      %v1903 = vsub.f32 %v1901, %v1902
      %v1904 = vand.u32 %v1903, 4294901760
      %1905 = vmatmul.mubr.f32.gmra.mrb[0].mxu0 %v1904
      %v1906 = vpop.f32.mrb[0].mxu0
      %v1907 = vadd.f32 0.0, %v1906
      %v1908 = vpop.f32.mrb[0].mxu0
      %v1909 = vsub.f32 %v1050, %v1050
      %v1910 = vand.u32 %v1909, 4294901760
      %v1911 = vsub.f32 %v1909, %v1910
      %v1912 = vand.u32 %v1911, 4294901760
      %1913 = vmatprep.mubr.f32.mxu0 %v1912
      %v1914 = vsub.f32 %v1049, %v1049
      %v1915 = vand.u32 %v1914, 4294901760
      %v1916 = vsub.f32 %v1914, %v1915
      %v1917 = vand.u32 %v1916, 4294901760
      %1918 = vmatmul.mubr.f32.gmra.mrb[0].mxu0 %v1917
      %v1919 = vpop.f32.mrb[0].mxu0
      %v1920 = vadd.f32 0.0, %v1919
      %v1921 = vpop.f32.mrb[0].mxu0
      %v1922 = vsub.f32 %v1052, %v1052
      %v1923 = vand.u32 %v1922, 4294901760
      %v1924 = vsub.f32 %v1922, %v1923
      %v1925 = vand.u32 %v1924, 4294901760
      %1926 = vmatprep.mubr.f32.mxu0 %v1925
      %v1927 = vsub.f32 %v1051, %v1051
      %v1928 = vand.u32 %v1927, 4294901760
      %v1929 = vsub.f32 %v1927, %v1928
      %v1930 = vand.u32 %v1929, 4294901760
      %1931 = vmatmul.mubr.f32.gmra.mrb[0].mxu0 %v1930
      %v1932 = vpop.f32.mrb[0].mxu0
      %v1933 = vadd.f32 0.0, %v1932
      %v1934 = vpop.f32.mrb[0].mxu0
      %v1935 = vsub.f32 %v1054, %v1054
      %v1936 = vand.u32 %v1935, 4294901760
      %v1937 = vsub.f32 %v1935, %v1936
      %v1938 = vand.u32 %v1937, 4294901760
      %1939 = vmatprep.mubr.f32.mxu0 %v1938
      %v1940 = vsub.f32 %v1053, %v1053
      %v1941 = vand.u32 %v1940, 4294901760
      %v1942 = vsub.f32 %v1940, %v1941
      %v1943 = vand.u32 %v1942, 4294901760
      %1944 = vmatmul.mubr.f32.gmra.mrb[0].mxu0 %v1943
      %v1945 = vpop.f32.mrb[0].mxu0
      %v1946 = vadd.f32 0.0, %v1945
      %v1947 = vpop.f32.mrb[0].mxu0
      %v1948 = vsub.f32 %v1056, %v1056
      %v1949 = vand.u32 %v1948, 4294901760
      %v1950 = vsub.f32 %v1948, %v1949
      %v1951 = vand.u32 %v1950, 4294901760
      %1952 = vmatprep.mubr.f32.mxu0 %v1951
      %v1953 = vsub.f32 %v1055, %v1055
      %v1954 = vand.u32 %v1953, 4294901760
      %v1955 = vsub.f32 %v1953, %v1954
      %v1956 = vand.u32 %v1955, 4294901760
      %1957 = vmatmul.mubr.f32.gmra.mrb[0].mxu0 %v1956
      %v1958 = vpop.f32.mrb[0].mxu0
      %v1959 = vadd.f32 0.0, %v1958
      %v1960 = vpop.f32.mrb[0].mxu0
      %v1961 = vsub.f32 %v1058, %v1058
      %v1962 = vand.u32 %v1961, 4294901760
      %v1963 = vsub.f32 %v1961, %v1962
      %v1964 = vand.u32 %v1963, 4294901760
      %1965 = vmatprep.mubr.f32.mxu0 %v1964
      %v1966 = vsub.f32 %v1057, %v1057
      %v1967 = vand.u32 %v1966, 4294901760
      %v1968 = vsub.f32 %v1966, %v1967
      %v1969 = vand.u32 %v1968, 4294901760
      %1970 = vmatmul.mubr.f32.gmra.mrb[0].mxu0 %v1969
      %v1971 = vpop.f32.mrb[0].mxu0
      %v1972 = vadd.f32 0.0, %v1971
      %v1973 = vpop.f32.mrb[0].mxu0
      %v1974 = vsub.f32 %v1060, %v1060
      %v1975 = vand.u32 %v1974, 4294901760
      %v1976 = vsub.f32 %v1974, %v1975
      %v1977 = vand.u32 %v1976, 4294901760
      %1978 = vmatprep.mubr.f32.mxu0 %v1977
      %v1979 = vsub.f32 %v1059, %v1059
      %v1980 = vand.u32 %v1979, 4294901760
      %v1981 = vsub.f32 %v1979, %v1980
      %v1982 = vand.u32 %v1981, 4294901760
      %1983 = vmatmul.mubr.f32.gmra.mrb[0].mxu0 %v1982
      %v1984 = vpop.f32.mrb[0].mxu0
      %v1985 = vadd.f32 0.0, %v1984
      %v1986 = vpop.f32.mrb[0].mxu0
      %v1987 = vsub.f32 %v1062, %v1062
      %v1988 = vand.u32 %v1987, 4294901760
      %v1989 = vsub.f32 %v1987, %v1988
      %v1990 = vand.u32 %v1989, 4294901760
      %1991 = vmatprep.mubr.f32.mxu0 %v1990
      %v1992 = vsub.f32 %v1061, %v1061
      %v1993 = vand.u32 %v1992, 4294901760
      %v1994 = vsub.f32 %v1992, %v1993
      %v1995 = vand.u32 %v1994, 4294901760
      %1996 = vmatmul.mubr.f32.gmra.mrb[0].mxu0 %v1995
      %v1997 = vpop.f32.mrb[0].mxu0
      %v1998 = vadd.f32 0.0, %v1997
      %v1999 = vpop.f32.mrb[0].mxu0
      %v2000 = vsub.f32 %v1064, %v1064
      %v2001 = vand.u32 %v2000, 4294901760
      %v2002 = vsub.f32 %v2000, %v2001
      %v2003 = vand.u32 %v2002, 4294901760
      %2004 = vmatprep.mubr.f32.mxu0 %v2003
      %v2005 = vsub.f32 %v1063, %v1063
      %v2006 = vand.u32 %v2005, 4294901760
      %v2007 = vsub.f32 %v2005, %v2006
      %v2008 = vand.u32 %v2007, 4294901760
      %2009 = vmatmul.mubr.f32.gmra.mrb[0].mxu0 %v2008
      %v2010 = vpop.f32.mrb[0].mxu0
      %v2011 = vadd.f32 0.0, %v2010
      %v2012 = vpop.f32.mrb[0].mxu0
      %v2013 = vsub.f32 %v1066, %v1066
      %v2014 = vand.u32 %v2013, 4294901760
      %v2015 = vsub.f32 %v2013, %v2014
      %v2016 = vand.u32 %v2015, 4294901760
      %2017 = vmatprep.mubr.f32.mxu0 %v2016
      %v2018 = vsub.f32 %v1065, %v1065
      %v2019 = vand.u32 %v2018, 4294901760
      %v2020 = vsub.f32 %v2018, %v2019
      %v2021 = vand.u32 %v2020, 4294901760
      %2022 = vmatmul.mubr.f32.gmra.mrb[0].mxu0 %v2021
      %v2023 = vpop.f32.mrb[0].mxu0
      %v2024 = vadd.f32 0.0, %v2023
      %v2025 = vpop.f32.mrb[0].mxu0
      %v2026 = vsub.f32 %v1068, %v1068
      %v2027 = vand.u32 %v2026, 4294901760
      %v2028 = vsub.f32 %v2026, %v2027
      %v2029 = vand.u32 %v2028, 4294901760
      %2030 = vmatprep.mubr.f32.mxu0 %v2029
      %v2031 = vsub.f32 %v1067, %v1067
      %v2032 = vand.u32 %v2031, 4294901760
      %v2033 = vsub.f32 %v2031, %v2032
      %v2034 = vand.u32 %v2033, 4294901760
      %2035 = vmatmul.mubr.f32.gmra.mrb[0].mxu0 %v2034
      %v2036 = vpop.f32.mrb[0].mxu0
      %v2037 = vadd.f32 0.0, %v2036
      %v2038 = vpop.f32.mrb[0].mxu0
      %v2039 = vsub.f32 %v1070, %v1070
      %v2040 = vand.u32 %v2039, 4294901760
      %v2041 = vsub.f32 %v2039, %v2040
      %v2042 = vand.u32 %v2041, 4294901760
      %2043 = vmatprep.mubr.f32.mxu0 %v2042
      %v2044 = vsub.f32 %v1069, %v1069
      %v2045 = vand.u32 %v2044, 4294901760
      %v2046 = vsub.f32 %v2044, %v2045
      %v2047 = vand.u32 %v2046, 4294901760
      %2048 = vmatmul.mubr.f32.gmra.mrb[0].mxu0 %v2047
      %v2049 = vpop.f32.mrb[0].mxu0
      %v2050 = vadd.f32 0.0, %v2049
      %v2051 = vpop.f32.mrb[0].mxu0
      %v2052 = vsub.f32 %v1072, %v1072
      %v2053 = vand.u32 %v2052, 4294901760
      %v2054 = vsub.f32 %v2052, %v2053
      %v2055 = vand.u32 %v2054, 4294901760
      %2056 = vmatprep.mubr.f32.mxu0 %v2055
      %v2057 = vsub.f32 %v1071, %v1071
      %v2058 = vand.u32 %v2057, 4294901760
      %v2059 = vsub.f32 %v2057, %v2058
      %v2060 = vand.u32 %v2059, 4294901760
      %2061 = vmatmul.mubr.f32.gmra.mrb[0].mxu0 %v2060
      %v2062 = vpop.f32.mrb[0].mxu0
      %v2063 = vadd.f32 0.0, %v2062
      %v2064 = vpop.f32.mrb[0].mxu0
      %2065 = vdwg.mxu0
      %2066 = vmatprep.subr.mxu0 0.0
      %v2067 = vand.u32 %v1105, 4294901760
      %v2068 = vsub.f32 %v1105, %v2067
      %v2069 = vand.u32 %v2068, 4294901760
      %v2070 = vsub.f32 %v2068, %v2069
      %v2071 = vand.u32 %v2070, 4294901760
      %2072 = vmatpush1.msra.mxu0 %v2071
      %2073 = vmatprep.subr.mxu0 0.0
      %v2074 = vand.u32 %v1106, 4294901760
      %v2075 = vsub.f32 %v1106, %v2074
      %v2076 = vand.u32 %v2075, 4294901760
      %v2077 = vsub.f32 %v2075, %v2076
      %v2078 = vand.u32 %v2077, 4294901760
      %2079 = vmatpush1.msra.mxu0 %v2078
      %2080 = vmatprep.subr.mxu0 0.0
      %v2081 = vand.u32 %v1107, 4294901760
      %v2082 = vsub.f32 %v1107, %v2081
      %v2083 = vand.u32 %v2082, 4294901760
      %v2084 = vsub.f32 %v2082, %v2083
      %v2085 = vand.u32 %v2084, 4294901760
      %2086 = vmatpush1.msra.mxu0 %v2085
      %2087 = vmatprep.subr.mxu0 0.0
      %v2088 = vand.u32 %v1108, 4294901760
      %v2089 = vsub.f32 %v1108, %v2088
      %v2090 = vand.u32 %v2089, 4294901760
      %v2091 = vsub.f32 %v2089, %v2090
      %v2092 = vand.u32 %v2091, 4294901760
      %2093 = vmatpush1.msra.mxu0 %v2092
      %2094 = vmatprep.subr.mxu0 0.0
      %v2095 = vand.u32 %v1109, 4294901760
      %v2096 = vsub.f32 %v1109, %v2095
      %v2097 = vand.u32 %v2096, 4294901760
      %v2098 = vsub.f32 %v2096, %v2097
      %v2099 = vand.u32 %v2098, 4294901760
      %2100 = vmatpush1.msra.mxu0 %v2099
      %2101 = vmatprep.subr.mxu0 0.0
      %v2102 = vand.u32 %v1110, 4294901760
      %v2103 = vsub.f32 %v1110, %v2102
      %v2104 = vand.u32 %v2103, 4294901760
      %v2105 = vsub.f32 %v2103, %v2104
      %v2106 = vand.u32 %v2105, 4294901760
      %2107 = vmatpush1.msra.mxu0 %v2106
      %2108 = vmatprep.subr.mxu0 0.0
      %v2109 = vand.u32 %v1111, 4294901760
      %v2110 = vsub.f32 %v1111, %v2109
      %v2111 = vand.u32 %v2110, 4294901760
      %v2112 = vsub.f32 %v2110, %v2111
      %v2113 = vand.u32 %v2112, 4294901760
      %2114 = vmatpush1.msra.mxu0 %v2113
      %2115 = vmatprep.subr.mxu0 0.0
      %v2116 = vand.u32 %v1112, 4294901760
      %v2117 = vsub.f32 %v1112, %v2116
      %v2118 = vand.u32 %v2117, 4294901760
      %v2119 = vsub.f32 %v2117, %v2118
      %v2120 = vand.u32 %v2119, 4294901760
      %2121 = vmatpush1.msra.mxu0 %v2120
      %2122 = vmatprep.subr.mxu0 0.0
      %v2123 = vand.u32 %v1113, 4294901760
      %v2124 = vsub.f32 %v1113, %v2123
      %v2125 = vand.u32 %v2124, 4294901760
      %v2126 = vsub.f32 %v2124, %v2125
      %v2127 = vand.u32 %v2126, 4294901760
      %2128 = vmatpush1.msra.mxu0 %v2127
      %2129 = vmatprep.subr.mxu0 0.0
      %v2130 = vand.u32 %v1114, 4294901760
      %v2131 = vsub.f32 %v1114, %v2130
      %v2132 = vand.u32 %v2131, 4294901760
      %v2133 = vsub.f32 %v2131, %v2132
      %v2134 = vand.u32 %v2133, 4294901760
      %2135 = vmatpush1.msra.mxu0 %v2134
      %2136 = vmatprep.subr.mxu0 0.0
      %v2137 = vand.u32 %v1115, 4294901760
      %v2138 = vsub.f32 %v1115, %v2137
      %v2139 = vand.u32 %v2138, 4294901760
      %v2140 = vsub.f32 %v2138, %v2139
      %v2141 = vand.u32 %v2140, 4294901760
      %2142 = vmatpush1.msra.mxu0 %v2141
      %2143 = vmatprep.subr.mxu0 0.0
      %v2144 = vand.u32 %v1116, 4294901760
      %v2145 = vsub.f32 %v1116, %v2144
      %v2146 = vand.u32 %v2145, 4294901760
      %v2147 = vsub.f32 %v2145, %v2146
      %v2148 = vand.u32 %v2147, 4294901760
      %2149 = vmatpush1.msra.mxu0 %v2148
      %2150 = vmatprep.subr.mxu0 0.0
      %v2151 = vand.u32 %v1117, 4294901760
      %v2152 = vsub.f32 %v1117, %v2151
      %v2153 = vand.u32 %v2152, 4294901760
      %v2154 = vsub.f32 %v2152, %v2153
      %v2155 = vand.u32 %v2154, 4294901760
      %2156 = vmatpush1.msra.mxu0 %v2155
      %2157 = vmatprep.subr.mxu0 0.0
      %v2158 = vand.u32 %v1118, 4294901760
      %v2159 = vsub.f32 %v1118, %v2158
      %v2160 = vand.u32 %v2159, 4294901760
      %v2161 = vsub.f32 %v2159, %v2160
      %v2162 = vand.u32 %v2161, 4294901760
      %2163 = vmatpush1.msra.mxu0 %v2162
      %2164 = vmatprep.subr.mxu0 0.0
      %v2165 = vand.u32 %v1119, 4294901760
      %v2166 = vsub.f32 %v1119, %v2165
      %v2167 = vand.u32 %v2166, 4294901760
      %v2168 = vsub.f32 %v2166, %v2167
      %v2169 = vand.u32 %v2168, 4294901760
      %2170 = vmatpush1.msra.mxu0 %v2169
      %2171 = vmatprep.subr.mxu0 0.0
      %v2172 = vand.u32 %v1120, 4294901760
      %v2173 = vsub.f32 %v1120, %v2172
      %v2174 = vand.u32 %v2173, 4294901760
      %v2175 = vsub.f32 %v2173, %v2174
      %v2176 = vand.u32 %v2175, 4294901760
      %2177 = vmatpush1.msra.mxu0 %v2176
      %2178 = vmatprep.subr.mxu0 0.0
      %v2179 = vand.u32 %v1121, 4294901760
      %v2180 = vsub.f32 %v1121, %v2179
      %v2181 = vand.u32 %v2180, 4294901760
      %v2182 = vsub.f32 %v2180, %v2181
      %v2183 = vand.u32 %v2182, 4294901760
      %2184 = vmatpush1.msra.mxu0 %v2183
      %2185 = vmatprep.subr.mxu0 0.0
      %v2186 = vand.u32 %v1122, 4294901760
      %v2187 = vsub.f32 %v1122, %v2186
      %v2188 = vand.u32 %v2187, 4294901760
      %v2189 = vsub.f32 %v2187, %v2188
      %v2190 = vand.u32 %v2189, 4294901760
      %2191 = vmatpush1.msra.mxu0 %v2190
      %2192 = vmatprep.subr.mxu0 0.0
      %v2193 = vand.u32 %v1123, 4294901760
      %v2194 = vsub.f32 %v1123, %v2193
      %v2195 = vand.u32 %v2194, 4294901760
      %v2196 = vsub.f32 %v2194, %v2195
      %v2197 = vand.u32 %v2196, 4294901760
      %2198 = vmatpush1.msra.mxu0 %v2197
      %2199 = vmatprep.subr.mxu0 0.0
      %v2200 = vand.u32 %v1124, 4294901760
      %v2201 = vsub.f32 %v1124, %v2200
      %v2202 = vand.u32 %v2201, 4294901760
      %v2203 = vsub.f32 %v2201, %v2202
      %v2204 = vand.u32 %v2203, 4294901760
      %2205 = vmatpush1.msra.mxu0 %v2204
      %2206 = vmatprep.subr.mxu0 0.0
      %v2207 = vand.u32 %v1125, 4294901760
      %v2208 = vsub.f32 %v1125, %v2207
      %v2209 = vand.u32 %v2208, 4294901760
      %v2210 = vsub.f32 %v2208, %v2209
      %v2211 = vand.u32 %v2210, 4294901760
      %2212 = vmatpush1.msra.mxu0 %v2211
      %2213 = vmatprep.subr.mxu0 0.0
      %v2214 = vand.u32 %v1126, 4294901760
      %v2215 = vsub.f32 %v1126, %v2214
      %v2216 = vand.u32 %v2215, 4294901760
      %v2217 = vsub.f32 %v2215, %v2216
      %v2218 = vand.u32 %v2217, 4294901760
      %2219 = vmatpush1.msra.mxu0 %v2218
      %2220 = vmatprep.subr.mxu0 0.0
      %v2221 = vand.u32 %v1127, 4294901760
      %v2222 = vsub.f32 %v1127, %v2221
      %v2223 = vand.u32 %v2222, 4294901760
      %v2224 = vsub.f32 %v2222, %v2223
      %v2225 = vand.u32 %v2224, 4294901760
      %2226 = vmatpush1.msra.mxu0 %v2225
      %2227 = vmatprep.subr.mxu0 0.0
      %v2228 = vand.u32 %v1128, 4294901760
      %v2229 = vsub.f32 %v1128, %v2228
      %v2230 = vand.u32 %v2229, 4294901760
      %v2231 = vsub.f32 %v2229, %v2230
      %v2232 = vand.u32 %v2231, 4294901760
      %2233 = vmatpush1.msra.mxu0 %v2232
      %2234 = vmatprep.subr.mxu0 0.0
      %v2235 = vand.u32 %v1129, 4294901760
      %v2236 = vsub.f32 %v1129, %v2235
      %v2237 = vand.u32 %v2236, 4294901760
      %v2238 = vsub.f32 %v2236, %v2237
      %v2239 = vand.u32 %v2238, 4294901760
      %2240 = vmatpush1.msra.mxu0 %v2239
      %2241 = vmatprep.subr.mxu0 0.0
      %v2242 = vand.u32 %v1130, 4294901760
      %v2243 = vsub.f32 %v1130, %v2242
      %v2244 = vand.u32 %v2243, 4294901760
      %v2245 = vsub.f32 %v2243, %v2244
      %v2246 = vand.u32 %v2245, 4294901760
      %2247 = vmatpush1.msra.mxu0 %v2246
      %2248 = vmatprep.subr.mxu0 0.0
      %v2249 = vand.u32 %v1131, 4294901760
      %v2250 = vsub.f32 %v1131, %v2249
      %v2251 = vand.u32 %v2250, 4294901760
      %v2252 = vsub.f32 %v2250, %v2251
      %v2253 = vand.u32 %v2252, 4294901760
      %2254 = vmatpush1.msra.mxu0 %v2253
      %2255 = vmatprep.subr.mxu0 0.0
      %v2256 = vand.u32 %v1132, 4294901760
      %v2257 = vsub.f32 %v1132, %v2256
      %v2258 = vand.u32 %v2257, 4294901760
      %v2259 = vsub.f32 %v2257, %v2258
      %v2260 = vand.u32 %v2259, 4294901760
      %2261 = vmatpush1.msra.mxu0 %v2260
      %2262 = vmatprep.subr.mxu0 0.0
      %v2263 = vand.u32 %v1133, 4294901760
      %v2264 = vsub.f32 %v1133, %v2263
      %v2265 = vand.u32 %v2264, 4294901760
      %v2266 = vsub.f32 %v2264, %v2265
      %v2267 = vand.u32 %v2266, 4294901760
      %2268 = vmatpush1.msra.mxu0 %v2267
      %2269 = vmatprep.subr.mxu0 0.0
      %v2270 = vand.u32 %v1134, 4294901760
      %v2271 = vsub.f32 %v1134, %v2270
      %v2272 = vand.u32 %v2271, 4294901760
      %v2273 = vsub.f32 %v2271, %v2272
      %v2274 = vand.u32 %v2273, 4294901760
      %2275 = vmatpush1.msra.mxu0 %v2274
      %2276 = vmatprep.subr.mxu0 0.0
      %v2277 = vand.u32 %v1135, 4294901760
      %v2278 = vsub.f32 %v1135, %v2277
      %v2279 = vand.u32 %v2278, 4294901760
      %v2280 = vsub.f32 %v2278, %v2279
      %v2281 = vand.u32 %v2280, 4294901760
      %2282 = vmatpush1.msra.mxu0 %v2281
      %2283 = vmatprep.subr.mxu0 0.0
      %v2284 = vand.u32 %v1136, 4294901760
      %v2285 = vsub.f32 %v1136, %v2284
      %v2286 = vand.u32 %v2285, 4294901760
      %v2287 = vsub.f32 %v2285, %v2286
      %v2288 = vand.u32 %v2287, 4294901760
      %2289 = vmatpush1.msra.mxu0 %v2288
      %2290 = vmatprep.mubr.f32.mxu0 %v946
      %2291 = vmatmul.mubr.f32.gmra.mrb[0].mxu0 %v945
      %v2292 = vpop.f32.mrb[0].mxu0
      %v2293 = vadd.f32 %v1244, %v2292
      %v2294 = vpop.f32.mrb[0].mxu0
      %2295 = vmatprep.mubr.f32.mxu0 %v948
      %2296 = vmatmul.mubr.f32.gmra.mrb[0].mxu0 %v947
      %v2297 = vpop.f32.mrb[0].mxu0
      %v2298 = vadd.f32 %v1257, %v2297
      %v2299 = vpop.f32.mrb[0].mxu0
      %2300 = vmatprep.mubr.f32.mxu0 %v950
      %2301 = vmatmul.mubr.f32.gmra.mrb[0].mxu0 %v949
      %v2302 = vpop.f32.mrb[0].mxu0
      %v2303 = vadd.f32 %v1270, %v2302
      %v2304 = vpop.f32.mrb[0].mxu0
      %2305 = vmatprep.mubr.f32.mxu0 %v952
      %2306 = vmatmul.mubr.f32.gmra.mrb[0].mxu0 %v951
      %v2307 = vpop.f32.mrb[0].mxu0
      %v2308 = vadd.f32 %v1283, %v2307
      %v2309 = vpop.f32.mrb[0].mxu0
      %2310 = vmatprep.mubr.f32.mxu0 %v954
      %2311 = vmatmul.mubr.f32.gmra.mrb[0].mxu0 %v953
      %v2312 = vpop.f32.mrb[0].mxu0
      %v2313 = vadd.f32 %v1296, %v2312
      %v2314 = vpop.f32.mrb[0].mxu0
      %2315 = vmatprep.mubr.f32.mxu0 %v956
      %2316 = vmatmul.mubr.f32.gmra.mrb[0].mxu0 %v955
      %v2317 = vpop.f32.mrb[0].mxu0
      %v2318 = vadd.f32 %v1309, %v2317
      %v2319 = vpop.f32.mrb[0].mxu0
      %2320 = vmatprep.mubr.f32.mxu0 %v958
      %2321 = vmatmul.mubr.f32.gmra.mrb[0].mxu0 %v957
      %v2322 = vpop.f32.mrb[0].mxu0
      %v2323 = vadd.f32 %v1322, %v2322
      %v2324 = vpop.f32.mrb[0].mxu0
      %2325 = vmatprep.mubr.f32.mxu0 %v960
      %2326 = vmatmul.mubr.f32.gmra.mrb[0].mxu0 %v959
      %v2327 = vpop.f32.mrb[0].mxu0
      %v2328 = vadd.f32 %v1335, %v2327
      %v2329 = vpop.f32.mrb[0].mxu0
      %2330 = vmatprep.mubr.f32.mxu0 %v962
      %2331 = vmatmul.mubr.f32.gmra.mrb[0].mxu0 %v961
      %v2332 = vpop.f32.mrb[0].mxu0
      %v2333 = vadd.f32 %v1348, %v2332
      %v2334 = vpop.f32.mrb[0].mxu0
      %2335 = vmatprep.mubr.f32.mxu0 %v964
      %2336 = vmatmul.mubr.f32.gmra.mrb[0].mxu0 %v963
      %v2337 = vpop.f32.mrb[0].mxu0
      %v2338 = vadd.f32 %v1361, %v2337
      %v2339 = vpop.f32.mrb[0].mxu0
      %2340 = vmatprep.mubr.f32.mxu0 %v966
      %2341 = vmatmul.mubr.f32.gmra.mrb[0].mxu0 %v965
      %v2342 = vpop.f32.mrb[0].mxu0
      %v2343 = vadd.f32 %v1374, %v2342
      %v2344 = vpop.f32.mrb[0].mxu0
      %2345 = vmatprep.mubr.f32.mxu0 %v968
      %2346 = vmatmul.mubr.f32.gmra.mrb[0].mxu0 %v967
      %v2347 = vpop.f32.mrb[0].mxu0
      %v2348 = vadd.f32 %v1387, %v2347
      %v2349 = vpop.f32.mrb[0].mxu0
      %2350 = vmatprep.mubr.f32.mxu0 %v970
      %2351 = vmatmul.mubr.f32.gmra.mrb[0].mxu0 %v969
      %v2352 = vpop.f32.mrb[0].mxu0
      %v2353 = vadd.f32 %v1400, %v2352
      %v2354 = vpop.f32.mrb[0].mxu0
      %2355 = vmatprep.mubr.f32.mxu0 %v972
      %2356 = vmatmul.mubr.f32.gmra.mrb[0].mxu0 %v971
      %v2357 = vpop.f32.mrb[0].mxu0
      %v2358 = vadd.f32 %v1413, %v2357
      %v2359 = vpop.f32.mrb[0].mxu0
      %2360 = vmatprep.mubr.f32.mxu0 %v974
      %2361 = vmatmul.mubr.f32.gmra.mrb[0].mxu0 %v973
      %v2362 = vpop.f32.mrb[0].mxu0
      %v2363 = vadd.f32 %v1426, %v2362
      %v2364 = vpop.f32.mrb[0].mxu0
      %2365 = vmatprep.mubr.f32.mxu0 %v976
      %2366 = vmatmul.mubr.f32.gmra.mrb[0].mxu0 %v975
      %v2367 = vpop.f32.mrb[0].mxu0
      %v2368 = vadd.f32 %v1439, %v2367
      %v2369 = vpop.f32.mrb[0].mxu0
      %2370 = vmatprep.mubr.f32.mxu0 %v978
      %2371 = vmatmul.mubr.f32.gmra.mrb[0].mxu0 %v977
      %v2372 = vpop.f32.mrb[0].mxu0
      %v2373 = vadd.f32 %v1452, %v2372
      %v2374 = vpop.f32.mrb[0].mxu0
      %2375 = vmatprep.mubr.f32.mxu0 %v980
      %2376 = vmatmul.mubr.f32.gmra.mrb[0].mxu0 %v979
      %v2377 = vpop.f32.mrb[0].mxu0
      %v2378 = vadd.f32 %v1465, %v2377
      %v2379 = vpop.f32.mrb[0].mxu0
      %2380 = vmatprep.mubr.f32.mxu0 %v982
      %2381 = vmatmul.mubr.f32.gmra.mrb[0].mxu0 %v981
      %v2382 = vpop.f32.mrb[0].mxu0
      %v2383 = vadd.f32 %v1478, %v2382
      %v2384 = vpop.f32.mrb[0].mxu0
      %2385 = vmatprep.mubr.f32.mxu0 %v984
      %2386 = vmatmul.mubr.f32.gmra.mrb[0].mxu0 %v983
      %v2387 = vpop.f32.mrb[0].mxu0
      %v2388 = vadd.f32 %v1491, %v2387
      %v2389 = vpop.f32.mrb[0].mxu0
      %2390 = vmatprep.mubr.f32.mxu0 %v986
      %2391 = vmatmul.mubr.f32.gmra.mrb[0].mxu0 %v985
      %v2392 = vpop.f32.mrb[0].mxu0
      %v2393 = vadd.f32 %v1504, %v2392
      %v2394 = vpop.f32.mrb[0].mxu0
      %2395 = vmatprep.mubr.f32.mxu0 %v988
      %2396 = vmatmul.mubr.f32.gmra.mrb[0].mxu0 %v987
      %v2397 = vpop.f32.mrb[0].mxu0
      %v2398 = vadd.f32 %v1517, %v2397
      %v2399 = vpop.f32.mrb[0].mxu0
      %2400 = vmatprep.mubr.f32.mxu0 %v990
      %2401 = vmatmul.mubr.f32.gmra.mrb[0].mxu0 %v989
      %v2402 = vpop.f32.mrb[0].mxu0
      %v2403 = vadd.f32 %v1530, %v2402
      %v2404 = vpop.f32.mrb[0].mxu0
      %2405 = vmatprep.mubr.f32.mxu0 %v992
      %2406 = vmatmul.mubr.f32.gmra.mrb[0].mxu0 %v991
      %v2407 = vpop.f32.mrb[0].mxu0
      %v2408 = vadd.f32 %v1543, %v2407
      %v2409 = vpop.f32.mrb[0].mxu0
      %2410 = vmatprep.mubr.f32.mxu0 %v994
      %2411 = vmatmul.mubr.f32.gmra.mrb[0].mxu0 %v993
      %v2412 = vpop.f32.mrb[0].mxu0
      %v2413 = vadd.f32 %v1556, %v2412
      %v2414 = vpop.f32.mrb[0].mxu0
      %2415 = vmatprep.mubr.f32.mxu0 %v996
      %2416 = vmatmul.mubr.f32.gmra.mrb[0].mxu0 %v995
      %v2417 = vpop.f32.mrb[0].mxu0
      %v2418 = vadd.f32 %v1569, %v2417
      %v2419 = vpop.f32.mrb[0].mxu0
      %2420 = vmatprep.mubr.f32.mxu0 %v998
      %2421 = vmatmul.mubr.f32.gmra.mrb[0].mxu0 %v997
      %v2422 = vpop.f32.mrb[0].mxu0
      %v2423 = vadd.f32 %v1582, %v2422
      %v2424 = vpop.f32.mrb[0].mxu0
      %2425 = vmatprep.mubr.f32.mxu0 %v1000
      %2426 = vmatmul.mubr.f32.gmra.mrb[0].mxu0 %v999
      %v2427 = vpop.f32.mrb[0].mxu0
      %v2428 = vadd.f32 %v1595, %v2427
      %v2429 = vpop.f32.mrb[0].mxu0
      %2430 = vmatprep.mubr.f32.mxu0 %v1002
      %2431 = vmatmul.mubr.f32.gmra.mrb[0].mxu0 %v1001
      %v2432 = vpop.f32.mrb[0].mxu0
      %v2433 = vadd.f32 %v1608, %v2432
      %v2434 = vpop.f32.mrb[0].mxu0
      %2435 = vmatprep.mubr.f32.mxu0 %v1004
      %2436 = vmatmul.mubr.f32.gmra.mrb[0].mxu0 %v1003
      %v2437 = vpop.f32.mrb[0].mxu0
      %v2438 = vadd.f32 %v1621, %v2437
      %v2439 = vpop.f32.mrb[0].mxu0
      %2440 = vmatprep.mubr.f32.mxu0 %v1006
      %2441 = vmatmul.mubr.f32.gmra.mrb[0].mxu0 %v1005
      %v2442 = vpop.f32.mrb[0].mxu0
      %v2443 = vadd.f32 %v1634, %v2442
      %v2444 = vpop.f32.mrb[0].mxu0
      %2445 = vmatprep.mubr.f32.mxu0 %v1008
      %2446 = vmatmul.mubr.f32.gmra.mrb[0].mxu0 %v1007
      %v2447 = vpop.f32.mrb[0].mxu0
      %v2448 = vadd.f32 %v1647, %v2447
      %v2449 = vpop.f32.mrb[0].mxu0
      %2450 = vmatprep.mubr.f32.mxu0 %v1010
      %2451 = vmatmul.mubr.f32.gmra.mrb[0].mxu0 %v1009
      %v2452 = vpop.f32.mrb[0].mxu0
      %v2453 = vadd.f32 %v1660, %v2452
      %v2454 = vpop.f32.mrb[0].mxu0
      %2455 = vmatprep.mubr.f32.mxu0 %v1012
      %2456 = vmatmul.mubr.f32.gmra.mrb[0].mxu0 %v1011
      %v2457 = vpop.f32.mrb[0].mxu0
      %v2458 = vadd.f32 %v1673, %v2457
      %v2459 = vpop.f32.mrb[0].mxu0
      %2460 = vmatprep.mubr.f32.mxu0 %v1014
      %2461 = vmatmul.mubr.f32.gmra.mrb[0].mxu0 %v1013
      %v2462 = vpop.f32.mrb[0].mxu0
      %v2463 = vadd.f32 %v1686, %v2462
      %v2464 = vpop.f32.mrb[0].mxu0
      %2465 = vmatprep.mubr.f32.mxu0 %v1016
      %2466 = vmatmul.mubr.f32.gmra.mrb[0].mxu0 %v1015
      %v2467 = vpop.f32.mrb[0].mxu0
      %v2468 = vadd.f32 %v1699, %v2467
      %v2469 = vpop.f32.mrb[0].mxu0
      %2470 = vmatprep.mubr.f32.mxu0 %v1018
      %2471 = vmatmul.mubr.f32.gmra.mrb[0].mxu0 %v1017
      %v2472 = vpop.f32.mrb[0].mxu0
      %v2473 = vadd.f32 %v1712, %v2472
      %v2474 = vpop.f32.mrb[0].mxu0
      %2475 = vmatprep.mubr.f32.mxu0 %v1020
      %2476 = vmatmul.mubr.f32.gmra.mrb[0].mxu0 %v1019
      %v2477 = vpop.f32.mrb[0].mxu0
      %v2478 = vadd.f32 %v1725, %v2477
      %v2479 = vpop.f32.mrb[0].mxu0
      %2480 = vmatprep.mubr.f32.mxu0 %v1022
      %2481 = vmatmul.mubr.f32.gmra.mrb[0].mxu0 %v1021
      %v2482 = vpop.f32.mrb[0].mxu0
      %v2483 = vadd.f32 %v1738, %v2482
      %v2484 = vpop.f32.mrb[0].mxu0
      %2485 = vmatprep.mubr.f32.mxu0 %v1024
      %2486 = vmatmul.mubr.f32.gmra.mrb[0].mxu0 %v1023
      %v2487 = vpop.f32.mrb[0].mxu0
      %v2488 = vadd.f32 %v1751, %v2487
      %v2489 = vpop.f32.mrb[0].mxu0
      %2490 = vmatprep.mubr.f32.mxu0 %v1026
      %2491 = vmatmul.mubr.f32.gmra.mrb[0].mxu0 %v1025
      %v2492 = vpop.f32.mrb[0].mxu0
      %v2493 = vadd.f32 %v1764, %v2492
      %v2494 = vpop.f32.mrb[0].mxu0
      %2495 = vmatprep.mubr.f32.mxu0 %v1028
      %2496 = vmatmul.mubr.f32.gmra.mrb[0].mxu0 %v1027
      %v2497 = vpop.f32.mrb[0].mxu0
      %v2498 = vadd.f32 %v1777, %v2497
      %v2499 = vpop.f32.mrb[0].mxu0
      %2500 = vmatprep.mubr.f32.mxu0 %v1030
      %2501 = vmatmul.mubr.f32.gmra.mrb[0].mxu0 %v1029
      %v2502 = vpop.f32.mrb[0].mxu0
      %v2503 = vadd.f32 %v1790, %v2502
      %v2504 = vpop.f32.mrb[0].mxu0
      %2505 = vmatprep.mubr.f32.mxu0 %v1032
      %2506 = vmatmul.mubr.f32.gmra.mrb[0].mxu0 %v1031
      %v2507 = vpop.f32.mrb[0].mxu0
      %v2508 = vadd.f32 %v1803, %v2507
      %v2509 = vpop.f32.mrb[0].mxu0
      %2510 = vmatprep.mubr.f32.mxu0 %v1034
      %2511 = vmatmul.mubr.f32.gmra.mrb[0].mxu0 %v1033
      %v2512 = vpop.f32.mrb[0].mxu0
      %v2513 = vadd.f32 %v1816, %v2512
      %v2514 = vpop.f32.mrb[0].mxu0
      %2515 = vmatprep.mubr.f32.mxu0 %v1036
      %2516 = vmatmul.mubr.f32.gmra.mrb[0].mxu0 %v1035
      %v2517 = vpop.f32.mrb[0].mxu0
      %v2518 = vadd.f32 %v1829, %v2517
      %v2519 = vpop.f32.mrb[0].mxu0
      %2520 = vmatprep.mubr.f32.mxu0 %v1038
      %2521 = vmatmul.mubr.f32.gmra.mrb[0].mxu0 %v1037
      %v2522 = vpop.f32.mrb[0].mxu0
      %v2523 = vadd.f32 %v1842, %v2522
      %v2524 = vpop.f32.mrb[0].mxu0
      %2525 = vmatprep.mubr.f32.mxu0 %v1040
      %2526 = vmatmul.mubr.f32.gmra.mrb[0].mxu0 %v1039
      %v2527 = vpop.f32.mrb[0].mxu0
      %v2528 = vadd.f32 %v1855, %v2527
      %v2529 = vpop.f32.mrb[0].mxu0
      %2530 = vmatprep.mubr.f32.mxu0 %v1042
      %2531 = vmatmul.mubr.f32.gmra.mrb[0].mxu0 %v1041
      %v2532 = vpop.f32.mrb[0].mxu0
      %v2533 = vadd.f32 %v1868, %v2532
      %v2534 = vpop.f32.mrb[0].mxu0
      %2535 = vmatprep.mubr.f32.mxu0 %v1044
      %2536 = vmatmul.mubr.f32.gmra.mrb[0].mxu0 %v1043
      %v2537 = vpop.f32.mrb[0].mxu0
      %v2538 = vadd.f32 %v1881, %v2537
      %v2539 = vpop.f32.mrb[0].mxu0
      %2540 = vmatprep.mubr.f32.mxu0 %v1046
      %2541 = vmatmul.mubr.f32.gmra.mrb[0].mxu0 %v1045
      %v2542 = vpop.f32.mrb[0].mxu0
      %v2543 = vadd.f32 %v1894, %v2542
      %v2544 = vpop.f32.mrb[0].mxu0
      %2545 = vmatprep.mubr.f32.mxu0 %v1048
      %2546 = vmatmul.mubr.f32.gmra.mrb[0].mxu0 %v1047
      %v2547 = vpop.f32.mrb[0].mxu0
      %v2548 = vadd.f32 %v1907, %v2547
      %v2549 = vpop.f32.mrb[0].mxu0
      %2550 = vmatprep.mubr.f32.mxu0 %v1050
      %2551 = vmatmul.mubr.f32.gmra.mrb[0].mxu0 %v1049
      %v2552 = vpop.f32.mrb[0].mxu0
      %v2553 = vadd.f32 %v1920, %v2552
      %v2554 = vpop.f32.mrb[0].mxu0
      %2555 = vmatprep.mubr.f32.mxu0 %v1052
      %2556 = vmatmul.mubr.f32.gmra.mrb[0].mxu0 %v1051
      %v2557 = vpop.f32.mrb[0].mxu0
      %v2558 = vadd.f32 %v1933, %v2557
      %v2559 = vpop.f32.mrb[0].mxu0
      %2560 = vmatprep.mubr.f32.mxu0 %v1054
      %2561 = vmatmul.mubr.f32.gmra.mrb[0].mxu0 %v1053
      %v2562 = vpop.f32.mrb[0].mxu0
      %v2563 = vadd.f32 %v1946, %v2562
      %v2564 = vpop.f32.mrb[0].mxu0
      %2565 = vmatprep.mubr.f32.mxu0 %v1056
      %2566 = vmatmul.mubr.f32.gmra.mrb[0].mxu0 %v1055
      %v2567 = vpop.f32.mrb[0].mxu0
      %v2568 = vadd.f32 %v1959, %v2567
      %v2569 = vpop.f32.mrb[0].mxu0
      %2570 = vmatprep.mubr.f32.mxu0 %v1058
      %2571 = vmatmul.mubr.f32.gmra.mrb[0].mxu0 %v1057
      %v2572 = vpop.f32.mrb[0].mxu0
      %v2573 = vadd.f32 %v1972, %v2572
      %v2574 = vpop.f32.mrb[0].mxu0
      %2575 = vmatprep.mubr.f32.mxu0 %v1060
      %2576 = vmatmul.mubr.f32.gmra.mrb[0].mxu0 %v1059
      %v2577 = vpop.f32.mrb[0].mxu0
      %v2578 = vadd.f32 %v1985, %v2577
      %v2579 = vpop.f32.mrb[0].mxu0
      %2580 = vmatprep.mubr.f32.mxu0 %v1062
      %2581 = vmatmul.mubr.f32.gmra.mrb[0].mxu0 %v1061
      %v2582 = vpop.f32.mrb[0].mxu0
      %v2583 = vadd.f32 %v1998, %v2582
      %v2584 = vpop.f32.mrb[0].mxu0
      %2585 = vmatprep.mubr.f32.mxu0 %v1064
      %2586 = vmatmul.mubr.f32.gmra.mrb[0].mxu0 %v1063
      %v2587 = vpop.f32.mrb[0].mxu0
      %v2588 = vadd.f32 %v2011, %v2587
      %v2589 = vpop.f32.mrb[0].mxu0
      %2590 = vmatprep.mubr.f32.mxu0 %v1066
      %2591 = vmatmul.mubr.f32.gmra.mrb[0].mxu0 %v1065
      %v2592 = vpop.f32.mrb[0].mxu0
      %v2593 = vadd.f32 %v2024, %v2592
      %v2594 = vpop.f32.mrb[0].mxu0
      %2595 = vmatprep.mubr.f32.mxu0 %v1068
      %2596 = vmatmul.mubr.f32.gmra.mrb[0].mxu0 %v1067
      %v2597 = vpop.f32.mrb[0].mxu0
      %v2598 = vadd.f32 %v2037, %v2597
      %v2599 = vpop.f32.mrb[0].mxu0
      %2600 = vmatprep.mubr.f32.mxu0 %v1070
      %2601 = vmatmul.mubr.f32.gmra.mrb[0].mxu0 %v1069
      %v2602 = vpop.f32.mrb[0].mxu0
      %v2603 = vadd.f32 %v2050, %v2602
      %v2604 = vpop.f32.mrb[0].mxu0
      %2605 = vmatprep.mubr.f32.mxu0 %v1072
      %2606 = vmatmul.mubr.f32.gmra.mrb[0].mxu0 %v1071
      %v2607 = vpop.f32.mrb[0].mxu0
      %v2608 = vadd.f32 %v2063, %v2607
      %v2609 = vpop.f32.mrb[0].mxu0
      %2610 = vdwg.mxu0
      %2611 = vmatprep.subr.mxu0 0.0
      %v2612 = vand.u32 %v1105, 4294901760
      %v2613 = vsub.f32 %v1105, %v2612
      %2614 = vmatpush1.msra.mxu0 %v2613
      %2615 = vmatprep.subr.mxu0 0.0
      %v2616 = vand.u32 %v1106, 4294901760
      %v2617 = vsub.f32 %v1106, %v2616
      %2618 = vmatpush1.msra.mxu0 %v2617
      %2619 = vmatprep.subr.mxu0 0.0
      %v2620 = vand.u32 %v1107, 4294901760
      %v2621 = vsub.f32 %v1107, %v2620
      %2622 = vmatpush1.msra.mxu0 %v2621
      %2623 = vmatprep.subr.mxu0 0.0
      %v2624 = vand.u32 %v1108, 4294901760
      %v2625 = vsub.f32 %v1108, %v2624
      %2626 = vmatpush1.msra.mxu0 %v2625
      %2627 = vmatprep.subr.mxu0 0.0
      %v2628 = vand.u32 %v1109, 4294901760
      %v2629 = vsub.f32 %v1109, %v2628
      %2630 = vmatpush1.msra.mxu0 %v2629
      %2631 = vmatprep.subr.mxu0 0.0
      %v2632 = vand.u32 %v1110, 4294901760
      %v2633 = vsub.f32 %v1110, %v2632
      %2634 = vmatpush1.msra.mxu0 %v2633
      %2635 = vmatprep.subr.mxu0 0.0
      %v2636 = vand.u32 %v1111, 4294901760
      %v2637 = vsub.f32 %v1111, %v2636
      %2638 = vmatpush1.msra.mxu0 %v2637
      %2639 = vmatprep.subr.mxu0 0.0
      %v2640 = vand.u32 %v1112, 4294901760
      %v2641 = vsub.f32 %v1112, %v2640
      %2642 = vmatpush1.msra.mxu0 %v2641
      %2643 = vmatprep.subr.mxu0 0.0
      %v2644 = vand.u32 %v1113, 4294901760
      %v2645 = vsub.f32 %v1113, %v2644
      %2646 = vmatpush1.msra.mxu0 %v2645
      %2647 = vmatprep.subr.mxu0 0.0
      %v2648 = vand.u32 %v1114, 4294901760
      %v2649 = vsub.f32 %v1114, %v2648
      %2650 = vmatpush1.msra.mxu0 %v2649
      %2651 = vmatprep.subr.mxu0 0.0
      %v2652 = vand.u32 %v1115, 4294901760
      %v2653 = vsub.f32 %v1115, %v2652
      %2654 = vmatpush1.msra.mxu0 %v2653
      %2655 = vmatprep.subr.mxu0 0.0
      %v2656 = vand.u32 %v1116, 4294901760
      %v2657 = vsub.f32 %v1116, %v2656
      %2658 = vmatpush1.msra.mxu0 %v2657
      %2659 = vmatprep.subr.mxu0 0.0
      %v2660 = vand.u32 %v1117, 4294901760
      %v2661 = vsub.f32 %v1117, %v2660
      %2662 = vmatpush1.msra.mxu0 %v2661
      %2663 = vmatprep.subr.mxu0 0.0
      %v2664 = vand.u32 %v1118, 4294901760
      %v2665 = vsub.f32 %v1118, %v2664
      %2666 = vmatpush1.msra.mxu0 %v2665
      %2667 = vmatprep.subr.mxu0 0.0
      %v2668 = vand.u32 %v1119, 4294901760
      %v2669 = vsub.f32 %v1119, %v2668
      %2670 = vmatpush1.msra.mxu0 %v2669
      %2671 = vmatprep.subr.mxu0 0.0
      %v2672 = vand.u32 %v1120, 4294901760
      %v2673 = vsub.f32 %v1120, %v2672
      %2674 = vmatpush1.msra.mxu0 %v2673
      %2675 = vmatprep.subr.mxu0 0.0
      %v2676 = vand.u32 %v1121, 4294901760
      %v2677 = vsub.f32 %v1121, %v2676
      %2678 = vmatpush1.msra.mxu0 %v2677
      %2679 = vmatprep.subr.mxu0 0.0
      %v2680 = vand.u32 %v1122, 4294901760
      %v2681 = vsub.f32 %v1122, %v2680
      %2682 = vmatpush1.msra.mxu0 %v2681
      %2683 = vmatprep.subr.mxu0 0.0
      %v2684 = vand.u32 %v1123, 4294901760
      %v2685 = vsub.f32 %v1123, %v2684
      %2686 = vmatpush1.msra.mxu0 %v2685
      %2687 = vmatprep.subr.mxu0 0.0
      %v2688 = vand.u32 %v1124, 4294901760
      %v2689 = vsub.f32 %v1124, %v2688
      %2690 = vmatpush1.msra.mxu0 %v2689
      %2691 = vmatprep.subr.mxu0 0.0
      %v2692 = vand.u32 %v1125, 4294901760
      %v2693 = vsub.f32 %v1125, %v2692
      %2694 = vmatpush1.msra.mxu0 %v2693
      %2695 = vmatprep.subr.mxu0 0.0
      %v2696 = vand.u32 %v1126, 4294901760
      %v2697 = vsub.f32 %v1126, %v2696
      %2698 = vmatpush1.msra.mxu0 %v2697
      %2699 = vmatprep.subr.mxu0 0.0
      %v2700 = vand.u32 %v1127, 4294901760
      %v2701 = vsub.f32 %v1127, %v2700
      %2702 = vmatpush1.msra.mxu0 %v2701
      %2703 = vmatprep.subr.mxu0 0.0
      %v2704 = vand.u32 %v1128, 4294901760
      %v2705 = vsub.f32 %v1128, %v2704
      %2706 = vmatpush1.msra.mxu0 %v2705
      %2707 = vmatprep.subr.mxu0 0.0
      %v2708 = vand.u32 %v1129, 4294901760
      %v2709 = vsub.f32 %v1129, %v2708
      %2710 = vmatpush1.msra.mxu0 %v2709
      %2711 = vmatprep.subr.mxu0 0.0
      %v2712 = vand.u32 %v1130, 4294901760
      %v2713 = vsub.f32 %v1130, %v2712
      %2714 = vmatpush1.msra.mxu0 %v2713
      %2715 = vmatprep.subr.mxu0 0.0
      %v2716 = vand.u32 %v1131, 4294901760
      %v2717 = vsub.f32 %v1131, %v2716
      %2718 = vmatpush1.msra.mxu0 %v2717
      %2719 = vmatprep.subr.mxu0 0.0
      %v2720 = vand.u32 %v1132, 4294901760
      %v2721 = vsub.f32 %v1132, %v2720
      %2722 = vmatpush1.msra.mxu0 %v2721
      %2723 = vmatprep.subr.mxu0 0.0
      %v2724 = vand.u32 %v1133, 4294901760
      %v2725 = vsub.f32 %v1133, %v2724
      %2726 = vmatpush1.msra.mxu0 %v2725
      %2727 = vmatprep.subr.mxu0 0.0
      %v2728 = vand.u32 %v1134, 4294901760
      %v2729 = vsub.f32 %v1134, %v2728
      %2730 = vmatpush1.msra.mxu0 %v2729
      %2731 = vmatprep.subr.mxu0 0.0
      %v2732 = vand.u32 %v1135, 4294901760
      %v2733 = vsub.f32 %v1135, %v2732
      %2734 = vmatpush1.msra.mxu0 %v2733
      %2735 = vmatprep.subr.mxu0 0.0
      %v2736 = vand.u32 %v1136, 4294901760
      %v2737 = vsub.f32 %v1136, %v2736
      %2738 = vmatpush1.msra.mxu0 %v2737
      %v2739 = vsub.f32 %v946, %v946
      %2740 = vmatprep.mubr.f32.mxu0 %v2739
      %v2741 = vsub.f32 %v945, %v945
      %2742 = vmatmul.mubr.f32.gmra.mrb[0].mxu0 %v2741
      %v2743 = vpop.f32.mrb[0].mxu0
      %v2744 = vadd.f32 %v2293, %v2743
      %v2745 = vpop.f32.mrb[0].mxu0
      %v2746 = vsub.f32 %v948, %v948
      %2747 = vmatprep.mubr.f32.mxu0 %v2746
      %v2748 = vsub.f32 %v947, %v947
      %2749 = vmatmul.mubr.f32.gmra.mrb[0].mxu0 %v2748
      %v2750 = vpop.f32.mrb[0].mxu0
      %v2751 = vadd.f32 %v2298, %v2750
      %v2752 = vpop.f32.mrb[0].mxu0
      %v2753 = vsub.f32 %v950, %v950
      %2754 = vmatprep.mubr.f32.mxu0 %v2753
      %v2755 = vsub.f32 %v949, %v949
      %2756 = vmatmul.mubr.f32.gmra.mrb[0].mxu0 %v2755
      %v2757 = vpop.f32.mrb[0].mxu0
      %v2758 = vadd.f32 %v2303, %v2757
      %v2759 = vpop.f32.mrb[0].mxu0
      %v2760 = vsub.f32 %v952, %v952
      %2761 = vmatprep.mubr.f32.mxu0 %v2760
      %v2762 = vsub.f32 %v951, %v951
      %2763 = vmatmul.mubr.f32.gmra.mrb[0].mxu0 %v2762
      %v2764 = vpop.f32.mrb[0].mxu0
      %v2765 = vadd.f32 %v2308, %v2764
      %v2766 = vpop.f32.mrb[0].mxu0
      %v2767 = vsub.f32 %v954, %v954
      %2768 = vmatprep.mubr.f32.mxu0 %v2767
      %v2769 = vsub.f32 %v953, %v953
      %2770 = vmatmul.mubr.f32.gmra.mrb[0].mxu0 %v2769
      %v2771 = vpop.f32.mrb[0].mxu0
      %v2772 = vadd.f32 %v2313, %v2771
      %v2773 = vpop.f32.mrb[0].mxu0
      %v2774 = vsub.f32 %v956, %v956
      %2775 = vmatprep.mubr.f32.mxu0 %v2774
      %v2776 = vsub.f32 %v955, %v955
      %2777 = vmatmul.mubr.f32.gmra.mrb[0].mxu0 %v2776
      %v2778 = vpop.f32.mrb[0].mxu0
      %v2779 = vadd.f32 %v2318, %v2778
      %v2780 = vpop.f32.mrb[0].mxu0
      %v2781 = vsub.f32 %v958, %v958
      %2782 = vmatprep.mubr.f32.mxu0 %v2781
      %v2783 = vsub.f32 %v957, %v957
      %2784 = vmatmul.mubr.f32.gmra.mrb[0].mxu0 %v2783
      %v2785 = vpop.f32.mrb[0].mxu0
      %v2786 = vadd.f32 %v2323, %v2785
      %v2787 = vpop.f32.mrb[0].mxu0
      %v2788 = vsub.f32 %v960, %v960
      %2789 = vmatprep.mubr.f32.mxu0 %v2788
      %v2790 = vsub.f32 %v959, %v959
      %2791 = vmatmul.mubr.f32.gmra.mrb[0].mxu0 %v2790
      %v2792 = vpop.f32.mrb[0].mxu0
      %v2793 = vadd.f32 %v2328, %v2792
      %v2794 = vpop.f32.mrb[0].mxu0
      %v2795 = vsub.f32 %v962, %v962
      %2796 = vmatprep.mubr.f32.mxu0 %v2795
      %v2797 = vsub.f32 %v961, %v961
      %2798 = vmatmul.mubr.f32.gmra.mrb[0].mxu0 %v2797
      %v2799 = vpop.f32.mrb[0].mxu0
      %v2800 = vadd.f32 %v2333, %v2799
      %v2801 = vpop.f32.mrb[0].mxu0
      %v2802 = vsub.f32 %v964, %v964
      %2803 = vmatprep.mubr.f32.mxu0 %v2802
      %v2804 = vsub.f32 %v963, %v963
      %2805 = vmatmul.mubr.f32.gmra.mrb[0].mxu0 %v2804
      %v2806 = vpop.f32.mrb[0].mxu0
      %v2807 = vadd.f32 %v2338, %v2806
      %v2808 = vpop.f32.mrb[0].mxu0
      %v2809 = vsub.f32 %v966, %v966
      %2810 = vmatprep.mubr.f32.mxu0 %v2809
      %v2811 = vsub.f32 %v965, %v965
      %2812 = vmatmul.mubr.f32.gmra.mrb[0].mxu0 %v2811
      %v2813 = vpop.f32.mrb[0].mxu0
      %v2814 = vadd.f32 %v2343, %v2813
      %v2815 = vpop.f32.mrb[0].mxu0
      %v2816 = vsub.f32 %v968, %v968
      %2817 = vmatprep.mubr.f32.mxu0 %v2816
      %v2818 = vsub.f32 %v967, %v967
      %2819 = vmatmul.mubr.f32.gmra.mrb[0].mxu0 %v2818
      %v2820 = vpop.f32.mrb[0].mxu0
      %v2821 = vadd.f32 %v2348, %v2820
      %v2822 = vpop.f32.mrb[0].mxu0
      %v2823 = vsub.f32 %v970, %v970
      %2824 = vmatprep.mubr.f32.mxu0 %v2823
      %v2825 = vsub.f32 %v969, %v969
      %2826 = vmatmul.mubr.f32.gmra.mrb[0].mxu0 %v2825
      %v2827 = vpop.f32.mrb[0].mxu0
      %v2828 = vadd.f32 %v2353, %v2827
      %v2829 = vpop.f32.mrb[0].mxu0
      %v2830 = vsub.f32 %v972, %v972
      %2831 = vmatprep.mubr.f32.mxu0 %v2830
      %v2832 = vsub.f32 %v971, %v971
      %2833 = vmatmul.mubr.f32.gmra.mrb[0].mxu0 %v2832
      %v2834 = vpop.f32.mrb[0].mxu0
      %v2835 = vadd.f32 %v2358, %v2834
      %v2836 = vpop.f32.mrb[0].mxu0
      %v2837 = vsub.f32 %v974, %v974
      %2838 = vmatprep.mubr.f32.mxu0 %v2837
      %v2839 = vsub.f32 %v973, %v973
      %2840 = vmatmul.mubr.f32.gmra.mrb[0].mxu0 %v2839
      %v2841 = vpop.f32.mrb[0].mxu0
      %v2842 = vadd.f32 %v2363, %v2841
      %v2843 = vpop.f32.mrb[0].mxu0
      %v2844 = vsub.f32 %v976, %v976
      %2845 = vmatprep.mubr.f32.mxu0 %v2844
      %v2846 = vsub.f32 %v975, %v975
      %2847 = vmatmul.mubr.f32.gmra.mrb[0].mxu0 %v2846
      %v2848 = vpop.f32.mrb[0].mxu0
      %v2849 = vadd.f32 %v2368, %v2848
      %v2850 = vpop.f32.mrb[0].mxu0
      %v2851 = vsub.f32 %v978, %v978
      %2852 = vmatprep.mubr.f32.mxu0 %v2851
      %v2853 = vsub.f32 %v977, %v977
      %2854 = vmatmul.mubr.f32.gmra.mrb[0].mxu0 %v2853
      %v2855 = vpop.f32.mrb[0].mxu0
      %v2856 = vadd.f32 %v2373, %v2855
      %v2857 = vpop.f32.mrb[0].mxu0
      %v2858 = vsub.f32 %v980, %v980
      %2859 = vmatprep.mubr.f32.mxu0 %v2858
      %v2860 = vsub.f32 %v979, %v979
      %2861 = vmatmul.mubr.f32.gmra.mrb[0].mxu0 %v2860
      %v2862 = vpop.f32.mrb[0].mxu0
      %v2863 = vadd.f32 %v2378, %v2862
      %v2864 = vpop.f32.mrb[0].mxu0
      %v2865 = vsub.f32 %v982, %v982
      %2866 = vmatprep.mubr.f32.mxu0 %v2865
      %v2867 = vsub.f32 %v981, %v981
      %2868 = vmatmul.mubr.f32.gmra.mrb[0].mxu0 %v2867
      %v2869 = vpop.f32.mrb[0].mxu0
      %v2870 = vadd.f32 %v2383, %v2869
      %v2871 = vpop.f32.mrb[0].mxu0
      %v2872 = vsub.f32 %v984, %v984
      %2873 = vmatprep.mubr.f32.mxu0 %v2872
      %v2874 = vsub.f32 %v983, %v983
      %2875 = vmatmul.mubr.f32.gmra.mrb[0].mxu0 %v2874
      %v2876 = vpop.f32.mrb[0].mxu0
      %v2877 = vadd.f32 %v2388, %v2876
      %v2878 = vpop.f32.mrb[0].mxu0
      %v2879 = vsub.f32 %v986, %v986
      %2880 = vmatprep.mubr.f32.mxu0 %v2879
      %v2881 = vsub.f32 %v985, %v985
      %2882 = vmatmul.mubr.f32.gmra.mrb[0].mxu0 %v2881
      %v2883 = vpop.f32.mrb[0].mxu0
      %v2884 = vadd.f32 %v2393, %v2883
      %v2885 = vpop.f32.mrb[0].mxu0
      %v2886 = vsub.f32 %v988, %v988
      %2887 = vmatprep.mubr.f32.mxu0 %v2886
      %v2888 = vsub.f32 %v987, %v987
      %2889 = vmatmul.mubr.f32.gmra.mrb[0].mxu0 %v2888
      %v2890 = vpop.f32.mrb[0].mxu0
      %v2891 = vadd.f32 %v2398, %v2890
      %v2892 = vpop.f32.mrb[0].mxu0
      %v2893 = vsub.f32 %v990, %v990
      %2894 = vmatprep.mubr.f32.mxu0 %v2893
      %v2895 = vsub.f32 %v989, %v989
      %2896 = vmatmul.mubr.f32.gmra.mrb[0].mxu0 %v2895
      %v2897 = vpop.f32.mrb[0].mxu0
      %v2898 = vadd.f32 %v2403, %v2897
      %v2899 = vpop.f32.mrb[0].mxu0
      %v2900 = vsub.f32 %v992, %v992
      %2901 = vmatprep.mubr.f32.mxu0 %v2900
      %v2902 = vsub.f32 %v991, %v991
      %2903 = vmatmul.mubr.f32.gmra.mrb[0].mxu0 %v2902
      %v2904 = vpop.f32.mrb[0].mxu0
      %v2905 = vadd.f32 %v2408, %v2904
      %v2906 = vpop.f32.mrb[0].mxu0
      %v2907 = vsub.f32 %v994, %v994
      %2908 = vmatprep.mubr.f32.mxu0 %v2907
      %v2909 = vsub.f32 %v993, %v993
      %2910 = vmatmul.mubr.f32.gmra.mrb[0].mxu0 %v2909
      %v2911 = vpop.f32.mrb[0].mxu0
      %v2912 = vadd.f32 %v2413, %v2911
      %v2913 = vpop.f32.mrb[0].mxu0
      %v2914 = vsub.f32 %v996, %v996
      %2915 = vmatprep.mubr.f32.mxu0 %v2914
      %v2916 = vsub.f32 %v995, %v995
      %2917 = vmatmul.mubr.f32.gmra.mrb[0].mxu0 %v2916
      %v2918 = vpop.f32.mrb[0].mxu0
      %v2919 = vadd.f32 %v2418, %v2918
      %v2920 = vpop.f32.mrb[0].mxu0
      %v2921 = vsub.f32 %v998, %v998
      %2922 = vmatprep.mubr.f32.mxu0 %v2921
      %v2923 = vsub.f32 %v997, %v997
      %2924 = vmatmul.mubr.f32.gmra.mrb[0].mxu0 %v2923
      %v2925 = vpop.f32.mrb[0].mxu0
      %v2926 = vadd.f32 %v2423, %v2925
      %v2927 = vpop.f32.mrb[0].mxu0
      %v2928 = vsub.f32 %v1000, %v1000
      %2929 = vmatprep.mubr.f32.mxu0 %v2928
      %v2930 = vsub.f32 %v999, %v999
      %2931 = vmatmul.mubr.f32.gmra.mrb[0].mxu0 %v2930
      %v2932 = vpop.f32.mrb[0].mxu0
      %v2933 = vadd.f32 %v2428, %v2932
      %v2934 = vpop.f32.mrb[0].mxu0
      %v2935 = vsub.f32 %v1002, %v1002
      %2936 = vmatprep.mubr.f32.mxu0 %v2935
      %v2937 = vsub.f32 %v1001, %v1001
      %2938 = vmatmul.mubr.f32.gmra.mrb[0].mxu0 %v2937
      %v2939 = vpop.f32.mrb[0].mxu0
      %v2940 = vadd.f32 %v2433, %v2939
      %v2941 = vpop.f32.mrb[0].mxu0
      %v2942 = vsub.f32 %v1004, %v1004
      %2943 = vmatprep.mubr.f32.mxu0 %v2942
      %v2944 = vsub.f32 %v1003, %v1003
      %2945 = vmatmul.mubr.f32.gmra.mrb[0].mxu0 %v2944
      %v2946 = vpop.f32.mrb[0].mxu0
      %v2947 = vadd.f32 %v2438, %v2946
      %v2948 = vpop.f32.mrb[0].mxu0
      %v2949 = vsub.f32 %v1006, %v1006
      %2950 = vmatprep.mubr.f32.mxu0 %v2949
      %v2951 = vsub.f32 %v1005, %v1005
      %2952 = vmatmul.mubr.f32.gmra.mrb[0].mxu0 %v2951
      %v2953 = vpop.f32.mrb[0].mxu0
      %v2954 = vadd.f32 %v2443, %v2953
      %v2955 = vpop.f32.mrb[0].mxu0
      %v2956 = vsub.f32 %v1008, %v1008
      %2957 = vmatprep.mubr.f32.mxu0 %v2956
      %v2958 = vsub.f32 %v1007, %v1007
      %2959 = vmatmul.mubr.f32.gmra.mrb[0].mxu0 %v2958
      %v2960 = vpop.f32.mrb[0].mxu0
      %v2961 = vadd.f32 %v2448, %v2960
      %v2962 = vpop.f32.mrb[0].mxu0
      %v2963 = vsub.f32 %v1010, %v1010
      %2964 = vmatprep.mubr.f32.mxu0 %v2963
      %v2965 = vsub.f32 %v1009, %v1009
      %2966 = vmatmul.mubr.f32.gmra.mrb[0].mxu0 %v2965
      %v2967 = vpop.f32.mrb[0].mxu0
      %v2968 = vadd.f32 %v2453, %v2967
      %v2969 = vpop.f32.mrb[0].mxu0
      %v2970 = vsub.f32 %v1012, %v1012
      %2971 = vmatprep.mubr.f32.mxu0 %v2970
      %v2972 = vsub.f32 %v1011, %v1011
      %2973 = vmatmul.mubr.f32.gmra.mrb[0].mxu0 %v2972
      %v2974 = vpop.f32.mrb[0].mxu0
      %v2975 = vadd.f32 %v2458, %v2974
      %v2976 = vpop.f32.mrb[0].mxu0
      %v2977 = vsub.f32 %v1014, %v1014
      %2978 = vmatprep.mubr.f32.mxu0 %v2977
      %v2979 = vsub.f32 %v1013, %v1013
      %2980 = vmatmul.mubr.f32.gmra.mrb[0].mxu0 %v2979
      %v2981 = vpop.f32.mrb[0].mxu0
      %v2982 = vadd.f32 %v2463, %v2981
      %v2983 = vpop.f32.mrb[0].mxu0
      %v2984 = vsub.f32 %v1016, %v1016
      %2985 = vmatprep.mubr.f32.mxu0 %v2984
      %v2986 = vsub.f32 %v1015, %v1015
      %2987 = vmatmul.mubr.f32.gmra.mrb[0].mxu0 %v2986
      %v2988 = vpop.f32.mrb[0].mxu0
      %v2989 = vadd.f32 %v2468, %v2988
      %v2990 = vpop.f32.mrb[0].mxu0
      %v2991 = vsub.f32 %v1018, %v1018
      %2992 = vmatprep.mubr.f32.mxu0 %v2991
      %v2993 = vsub.f32 %v1017, %v1017
      %2994 = vmatmul.mubr.f32.gmra.mrb[0].mxu0 %v2993
      %v2995 = vpop.f32.mrb[0].mxu0
      %v2996 = vadd.f32 %v2473, %v2995
      %v2997 = vpop.f32.mrb[0].mxu0
      %v2998 = vsub.f32 %v1020, %v1020
      %2999 = vmatprep.mubr.f32.mxu0 %v2998
      %v3000 = vsub.f32 %v1019, %v1019
      %3001 = vmatmul.mubr.f32.gmra.mrb[0].mxu0 %v3000
      %v3002 = vpop.f32.mrb[0].mxu0
      %v3003 = vadd.f32 %v2478, %v3002
      %v3004 = vpop.f32.mrb[0].mxu0
      %v3005 = vsub.f32 %v1022, %v1022
      %3006 = vmatprep.mubr.f32.mxu0 %v3005
      %v3007 = vsub.f32 %v1021, %v1021
      %3008 = vmatmul.mubr.f32.gmra.mrb[0].mxu0 %v3007
      %v3009 = vpop.f32.mrb[0].mxu0
      %v3010 = vadd.f32 %v2483, %v3009
      %v3011 = vpop.f32.mrb[0].mxu0
      %v3012 = vsub.f32 %v1024, %v1024
      %3013 = vmatprep.mubr.f32.mxu0 %v3012
      %v3014 = vsub.f32 %v1023, %v1023
      %3015 = vmatmul.mubr.f32.gmra.mrb[0].mxu0 %v3014
      %v3016 = vpop.f32.mrb[0].mxu0
      %v3017 = vadd.f32 %v2488, %v3016
      %v3018 = vpop.f32.mrb[0].mxu0
      %v3019 = vsub.f32 %v1026, %v1026
      %3020 = vmatprep.mubr.f32.mxu0 %v3019
      %v3021 = vsub.f32 %v1025, %v1025
      %3022 = vmatmul.mubr.f32.gmra.mrb[0].mxu0 %v3021
      %v3023 = vpop.f32.mrb[0].mxu0
      %v3024 = vadd.f32 %v2493, %v3023
      %v3025 = vpop.f32.mrb[0].mxu0
      %v3026 = vsub.f32 %v1028, %v1028
      %3027 = vmatprep.mubr.f32.mxu0 %v3026
      %v3028 = vsub.f32 %v1027, %v1027
      %3029 = vmatmul.mubr.f32.gmra.mrb[0].mxu0 %v3028
      %v3030 = vpop.f32.mrb[0].mxu0
      %v3031 = vadd.f32 %v2498, %v3030
      %v3032 = vpop.f32.mrb[0].mxu0
      %v3033 = vsub.f32 %v1030, %v1030
      %3034 = vmatprep.mubr.f32.mxu0 %v3033
      %v3035 = vsub.f32 %v1029, %v1029
      %3036 = vmatmul.mubr.f32.gmra.mrb[0].mxu0 %v3035
      %v3037 = vpop.f32.mrb[0].mxu0
      %v3038 = vadd.f32 %v2503, %v3037
      %v3039 = vpop.f32.mrb[0].mxu0
      %v3040 = vsub.f32 %v1032, %v1032
      %3041 = vmatprep.mubr.f32.mxu0 %v3040
      %v3042 = vsub.f32 %v1031, %v1031
      %3043 = vmatmul.mubr.f32.gmra.mrb[0].mxu0 %v3042
      %v3044 = vpop.f32.mrb[0].mxu0
      %v3045 = vadd.f32 %v2508, %v3044
      %v3046 = vpop.f32.mrb[0].mxu0
      %v3047 = vsub.f32 %v1034, %v1034
      %3048 = vmatprep.mubr.f32.mxu0 %v3047
      %v3049 = vsub.f32 %v1033, %v1033
      %3050 = vmatmul.mubr.f32.gmra.mrb[0].mxu0 %v3049
      %v3051 = vpop.f32.mrb[0].mxu0
      %v3052 = vadd.f32 %v2513, %v3051
      %v3053 = vpop.f32.mrb[0].mxu0
      %v3054 = vsub.f32 %v1036, %v1036
      %3055 = vmatprep.mubr.f32.mxu0 %v3054
      %v3056 = vsub.f32 %v1035, %v1035
      %3057 = vmatmul.mubr.f32.gmra.mrb[0].mxu0 %v3056
      %v3058 = vpop.f32.mrb[0].mxu0
      %v3059 = vadd.f32 %v2518, %v3058
      %v3060 = vpop.f32.mrb[0].mxu0
      %v3061 = vsub.f32 %v1038, %v1038
      %3062 = vmatprep.mubr.f32.mxu0 %v3061
      %v3063 = vsub.f32 %v1037, %v1037
      %3064 = vmatmul.mubr.f32.gmra.mrb[0].mxu0 %v3063
      %v3065 = vpop.f32.mrb[0].mxu0
      %v3066 = vadd.f32 %v2523, %v3065
      %v3067 = vpop.f32.mrb[0].mxu0
      %v3068 = vsub.f32 %v1040, %v1040
      %3069 = vmatprep.mubr.f32.mxu0 %v3068
      %v3070 = vsub.f32 %v1039, %v1039
      %3071 = vmatmul.mubr.f32.gmra.mrb[0].mxu0 %v3070
      %v3072 = vpop.f32.mrb[0].mxu0
      %v3073 = vadd.f32 %v2528, %v3072
      %v3074 = vpop.f32.mrb[0].mxu0
      %v3075 = vsub.f32 %v1042, %v1042
      %3076 = vmatprep.mubr.f32.mxu0 %v3075
      %v3077 = vsub.f32 %v1041, %v1041
      %3078 = vmatmul.mubr.f32.gmra.mrb[0].mxu0 %v3077
      %v3079 = vpop.f32.mrb[0].mxu0
      %v3080 = vadd.f32 %v2533, %v3079
      %v3081 = vpop.f32.mrb[0].mxu0
      %v3082 = vsub.f32 %v1044, %v1044
      %3083 = vmatprep.mubr.f32.mxu0 %v3082
      %v3084 = vsub.f32 %v1043, %v1043
      %3085 = vmatmul.mubr.f32.gmra.mrb[0].mxu0 %v3084
      %v3086 = vpop.f32.mrb[0].mxu0
      %v3087 = vadd.f32 %v2538, %v3086
      %v3088 = vpop.f32.mrb[0].mxu0
      %v3089 = vsub.f32 %v1046, %v1046
      %3090 = vmatprep.mubr.f32.mxu0 %v3089
      %v3091 = vsub.f32 %v1045, %v1045
      %3092 = vmatmul.mubr.f32.gmra.mrb[0].mxu0 %v3091
      %v3093 = vpop.f32.mrb[0].mxu0
      %v3094 = vadd.f32 %v2543, %v3093
      %v3095 = vpop.f32.mrb[0].mxu0
      %v3096 = vsub.f32 %v1048, %v1048
      %3097 = vmatprep.mubr.f32.mxu0 %v3096
      %v3098 = vsub.f32 %v1047, %v1047
      %3099 = vmatmul.mubr.f32.gmra.mrb[0].mxu0 %v3098
      %v3100 = vpop.f32.mrb[0].mxu0
      %v3101 = vadd.f32 %v2548, %v3100
      %v3102 = vpop.f32.mrb[0].mxu0
      %v3103 = vsub.f32 %v1050, %v1050
      %3104 = vmatprep.mubr.f32.mxu0 %v3103
      %v3105 = vsub.f32 %v1049, %v1049
      %3106 = vmatmul.mubr.f32.gmra.mrb[0].mxu0 %v3105
      %v3107 = vpop.f32.mrb[0].mxu0
      %v3108 = vadd.f32 %v2553, %v3107
      %v3109 = vpop.f32.mrb[0].mxu0
      %v3110 = vsub.f32 %v1052, %v1052
      %3111 = vmatprep.mubr.f32.mxu0 %v3110
      %v3112 = vsub.f32 %v1051, %v1051
      %3113 = vmatmul.mubr.f32.gmra.mrb[0].mxu0 %v3112
      %v3114 = vpop.f32.mrb[0].mxu0
      %v3115 = vadd.f32 %v2558, %v3114
      %v3116 = vpop.f32.mrb[0].mxu0
      %v3117 = vsub.f32 %v1054, %v1054
      %3118 = vmatprep.mubr.f32.mxu0 %v3117
      %v3119 = vsub.f32 %v1053, %v1053
      %3120 = vmatmul.mubr.f32.gmra.mrb[0].mxu0 %v3119
      %v3121 = vpop.f32.mrb[0].mxu0
      %v3122 = vadd.f32 %v2563, %v3121
      %v3123 = vpop.f32.mrb[0].mxu0
      %v3124 = vsub.f32 %v1056, %v1056
      %3125 = vmatprep.mubr.f32.mxu0 %v3124
      %v3126 = vsub.f32 %v1055, %v1055
      %3127 = vmatmul.mubr.f32.gmra.mrb[0].mxu0 %v3126
      %v3128 = vpop.f32.mrb[0].mxu0
      %v3129 = vadd.f32 %v2568, %v3128
      %v3130 = vpop.f32.mrb[0].mxu0
      %v3131 = vsub.f32 %v1058, %v1058
      %3132 = vmatprep.mubr.f32.mxu0 %v3131
      %v3133 = vsub.f32 %v1057, %v1057
      %3134 = vmatmul.mubr.f32.gmra.mrb[0].mxu0 %v3133
      %v3135 = vpop.f32.mrb[0].mxu0
      %v3136 = vadd.f32 %v2573, %v3135
      %v3137 = vpop.f32.mrb[0].mxu0
      %v3138 = vsub.f32 %v1060, %v1060
      %3139 = vmatprep.mubr.f32.mxu0 %v3138
      %v3140 = vsub.f32 %v1059, %v1059
      %3141 = vmatmul.mubr.f32.gmra.mrb[0].mxu0 %v3140
      %v3142 = vpop.f32.mrb[0].mxu0
      %v3143 = vadd.f32 %v2578, %v3142
      %v3144 = vpop.f32.mrb[0].mxu0
      %v3145 = vsub.f32 %v1062, %v1062
      %3146 = vmatprep.mubr.f32.mxu0 %v3145
      %v3147 = vsub.f32 %v1061, %v1061
      %3148 = vmatmul.mubr.f32.gmra.mrb[0].mxu0 %v3147
      %v3149 = vpop.f32.mrb[0].mxu0
      %v3150 = vadd.f32 %v2583, %v3149
      %v3151 = vpop.f32.mrb[0].mxu0
      %v3152 = vsub.f32 %v1064, %v1064
      %3153 = vmatprep.mubr.f32.mxu0 %v3152
      %v3154 = vsub.f32 %v1063, %v1063
      %3155 = vmatmul.mubr.f32.gmra.mrb[0].mxu0 %v3154
      %v3156 = vpop.f32.mrb[0].mxu0
      %v3157 = vadd.f32 %v2588, %v3156
      %v3158 = vpop.f32.mrb[0].mxu0
      %v3159 = vsub.f32 %v1066, %v1066
      %3160 = vmatprep.mubr.f32.mxu0 %v3159
      %v3161 = vsub.f32 %v1065, %v1065
      %3162 = vmatmul.mubr.f32.gmra.mrb[0].mxu0 %v3161
      %v3163 = vpop.f32.mrb[0].mxu0
      %v3164 = vadd.f32 %v2593, %v3163
      %v3165 = vpop.f32.mrb[0].mxu0
      %v3166 = vsub.f32 %v1068, %v1068
      %3167 = vmatprep.mubr.f32.mxu0 %v3166
      %v3168 = vsub.f32 %v1067, %v1067
      %3169 = vmatmul.mubr.f32.gmra.mrb[0].mxu0 %v3168
      %v3170 = vpop.f32.mrb[0].mxu0
      %v3171 = vadd.f32 %v2598, %v3170
      %v3172 = vpop.f32.mrb[0].mxu0
      %v3173 = vsub.f32 %v1070, %v1070
      %3174 = vmatprep.mubr.f32.mxu0 %v3173
      %v3175 = vsub.f32 %v1069, %v1069
      %3176 = vmatmul.mubr.f32.gmra.mrb[0].mxu0 %v3175
      %v3177 = vpop.f32.mrb[0].mxu0
      %v3178 = vadd.f32 %v2603, %v3177
      %v3179 = vpop.f32.mrb[0].mxu0
      %v3180 = vsub.f32 %v1072, %v1072
      %3181 = vmatprep.mubr.f32.mxu0 %v3180
      %v3182 = vsub.f32 %v1071, %v1071
      %3183 = vmatmul.mubr.f32.gmra.mrb[0].mxu0 %v3182
      %v3184 = vpop.f32.mrb[0].mxu0
      %v3185 = vadd.f32 %v2608, %v3184
      %v3186 = vpop.f32.mrb[0].mxu0
      %3187 = vdwg.mxu0
      %3188 = vmatprep.subr.mxu0 0.0
      %v3189 = vand.u32 %v1105, 4294901760
      %3190 = vmatpush1.msra.mxu0 %v3189
      %3191 = vmatprep.subr.mxu0 0.0
      %v3192 = vand.u32 %v1106, 4294901760
      %3193 = vmatpush1.msra.mxu0 %v3192
      %3194 = vmatprep.subr.mxu0 0.0
      %v3195 = vand.u32 %v1107, 4294901760
      %3196 = vmatpush1.msra.mxu0 %v3195
      %3197 = vmatprep.subr.mxu0 0.0
      %v3198 = vand.u32 %v1108, 4294901760
      %3199 = vmatpush1.msra.mxu0 %v3198
      %3200 = vmatprep.subr.mxu0 0.0
      %v3201 = vand.u32 %v1109, 4294901760
      %3202 = vmatpush1.msra.mxu0 %v3201
      %3203 = vmatprep.subr.mxu0 0.0
      %v3204 = vand.u32 %v1110, 4294901760
      %3205 = vmatpush1.msra.mxu0 %v3204
      %3206 = vmatprep.subr.mxu0 0.0
      %v3207 = vand.u32 %v1111, 4294901760
      %3208 = vmatpush1.msra.mxu0 %v3207
      %3209 = vmatprep.subr.mxu0 0.0
      %v3210 = vand.u32 %v1112, 4294901760
      %3211 = vmatpush1.msra.mxu0 %v3210
      %3212 = vmatprep.subr.mxu0 0.0
      %v3213 = vand.u32 %v1113, 4294901760
      %3214 = vmatpush1.msra.mxu0 %v3213
      %3215 = vmatprep.subr.mxu0 0.0
      %v3216 = vand.u32 %v1114, 4294901760
      %3217 = vmatpush1.msra.mxu0 %v3216
      %3218 = vmatprep.subr.mxu0 0.0
      %v3219 = vand.u32 %v1115, 4294901760
      %3220 = vmatpush1.msra.mxu0 %v3219
      %3221 = vmatprep.subr.mxu0 0.0
      %v3222 = vand.u32 %v1116, 4294901760
      %3223 = vmatpush1.msra.mxu0 %v3222
      %3224 = vmatprep.subr.mxu0 0.0
      %v3225 = vand.u32 %v1117, 4294901760
      %3226 = vmatpush1.msra.mxu0 %v3225
      %3227 = vmatprep.subr.mxu0 0.0
      %v3228 = vand.u32 %v1118, 4294901760
      %3229 = vmatpush1.msra.mxu0 %v3228
      %3230 = vmatprep.subr.mxu0 0.0
      %v3231 = vand.u32 %v1119, 4294901760
      %3232 = vmatpush1.msra.mxu0 %v3231
      %3233 = vmatprep.subr.mxu0 0.0
      %v3234 = vand.u32 %v1120, 4294901760
      %3235 = vmatpush1.msra.mxu0 %v3234
      %3236 = vmatprep.subr.mxu0 0.0
      %v3237 = vand.u32 %v1121, 4294901760
      %3238 = vmatpush1.msra.mxu0 %v3237
      %3239 = vmatprep.subr.mxu0 0.0
      %v3240 = vand.u32 %v1122, 4294901760
      %3241 = vmatpush1.msra.mxu0 %v3240
      %3242 = vmatprep.subr.mxu0 0.0
      %v3243 = vand.u32 %v1123, 4294901760
      %3244 = vmatpush1.msra.mxu0 %v3243
      %3245 = vmatprep.subr.mxu0 0.0
      %v3246 = vand.u32 %v1124, 4294901760
      %3247 = vmatpush1.msra.mxu0 %v3246
      %3248 = vmatprep.subr.mxu0 0.0
      %v3249 = vand.u32 %v1125, 4294901760
      %3250 = vmatpush1.msra.mxu0 %v3249
      %3251 = vmatprep.subr.mxu0 0.0
      %v3252 = vand.u32 %v1126, 4294901760
      %3253 = vmatpush1.msra.mxu0 %v3252
      %3254 = vmatprep.subr.mxu0 0.0
      %v3255 = vand.u32 %v1127, 4294901760
      %3256 = vmatpush1.msra.mxu0 %v3255
      %3257 = vmatprep.subr.mxu0 0.0
      %v3258 = vand.u32 %v1128, 4294901760
      %3259 = vmatpush1.msra.mxu0 %v3258
      %3260 = vmatprep.subr.mxu0 0.0
      %v3261 = vand.u32 %v1129, 4294901760
      %3262 = vmatpush1.msra.mxu0 %v3261
      %3263 = vmatprep.subr.mxu0 0.0
      %v3264 = vand.u32 %v1130, 4294901760
      %3265 = vmatpush1.msra.mxu0 %v3264
      %3266 = vmatprep.subr.mxu0 0.0
      %v3267 = vand.u32 %v1131, 4294901760
      %3268 = vmatpush1.msra.mxu0 %v3267
      %3269 = vmatprep.subr.mxu0 0.0
      %v3270 = vand.u32 %v1132, 4294901760
      %3271 = vmatpush1.msra.mxu0 %v3270
      %3272 = vmatprep.subr.mxu0 0.0
      %v3273 = vand.u32 %v1133, 4294901760
      %3274 = vmatpush1.msra.mxu0 %v3273
      %3275 = vmatprep.subr.mxu0 0.0
      %v3276 = vand.u32 %v1134, 4294901760
      %3277 = vmatpush1.msra.mxu0 %v3276
      %3278 = vmatprep.subr.mxu0 0.0
      %v3279 = vand.u32 %v1135, 4294901760
      %3280 = vmatpush1.msra.mxu0 %v3279
      %3281 = vmatprep.subr.mxu0 0.0
      %v3282 = vand.u32 %v1136, 4294901760
      %3283 = vmatpush1.msra.mxu0 %v3282
      %v3284 = vsub.f32 %v946, %v946
      %v3285 = vand.u32 %v3284, 4294901760
      %3286 = vmatprep.mubr.f32.mxu0 %v3285
      %v3287 = vsub.f32 %v945, %v945
      %v3288 = vand.u32 %v3287, 4294901760
      %3289 = vmatmul.mubr.f32.gmra.mrb[0].mxu0 %v3288
      %v3290 = vpop.f32.mrb[0].mxu0
      %v3291 = vadd.f32 %v2744, %v3290
      %v3292 = vpop.f32.mrb[0].mxu0
      %v3293 = vsub.f32 %v948, %v948
      %v3294 = vand.u32 %v3293, 4294901760
      %3295 = vmatprep.mubr.f32.mxu0 %v3294
      %v3296 = vsub.f32 %v947, %v947
      %v3297 = vand.u32 %v3296, 4294901760
      %3298 = vmatmul.mubr.f32.gmra.mrb[0].mxu0 %v3297
      %v3299 = vpop.f32.mrb[0].mxu0
      %v3300 = vadd.f32 %v2751, %v3299
      %v3301 = vpop.f32.mrb[0].mxu0
      %v3302 = vsub.f32 %v950, %v950
      %v3303 = vand.u32 %v3302, 4294901760
      %3304 = vmatprep.mubr.f32.mxu0 %v3303
      %v3305 = vsub.f32 %v949, %v949
      %v3306 = vand.u32 %v3305, 4294901760
      %3307 = vmatmul.mubr.f32.gmra.mrb[0].mxu0 %v3306
      %v3308 = vpop.f32.mrb[0].mxu0
      %v3309 = vadd.f32 %v2758, %v3308
      %v3310 = vpop.f32.mrb[0].mxu0
      %v3311 = vsub.f32 %v952, %v952
      %v3312 = vand.u32 %v3311, 4294901760
      %3313 = vmatprep.mubr.f32.mxu0 %v3312
      %v3314 = vsub.f32 %v951, %v951
      %v3315 = vand.u32 %v3314, 4294901760
      %3316 = vmatmul.mubr.f32.gmra.mrb[0].mxu0 %v3315
      %v3317 = vpop.f32.mrb[0].mxu0
      %v3318 = vadd.f32 %v2765, %v3317
      %v3319 = vpop.f32.mrb[0].mxu0
      %v3320 = vsub.f32 %v954, %v954
      %v3321 = vand.u32 %v3320, 4294901760
      %3322 = vmatprep.mubr.f32.mxu0 %v3321
      %v3323 = vsub.f32 %v953, %v953
      %v3324 = vand.u32 %v3323, 4294901760
      %3325 = vmatmul.mubr.f32.gmra.mrb[0].mxu0 %v3324
      %v3326 = vpop.f32.mrb[0].mxu0
      %v3327 = vadd.f32 %v2772, %v3326
      %v3328 = vpop.f32.mrb[0].mxu0
      %v3329 = vsub.f32 %v956, %v956
      %v3330 = vand.u32 %v3329, 4294901760
      %3331 = vmatprep.mubr.f32.mxu0 %v3330
      %v3332 = vsub.f32 %v955, %v955
      %v3333 = vand.u32 %v3332, 4294901760
      %3334 = vmatmul.mubr.f32.gmra.mrb[0].mxu0 %v3333
      %v3335 = vpop.f32.mrb[0].mxu0
      %v3336 = vadd.f32 %v2779, %v3335
      %v3337 = vpop.f32.mrb[0].mxu0
      %v3338 = vsub.f32 %v958, %v958
      %v3339 = vand.u32 %v3338, 4294901760
      %3340 = vmatprep.mubr.f32.mxu0 %v3339
      %v3341 = vsub.f32 %v957, %v957
      %v3342 = vand.u32 %v3341, 4294901760
      %3343 = vmatmul.mubr.f32.gmra.mrb[0].mxu0 %v3342
      %v3344 = vpop.f32.mrb[0].mxu0
      %v3345 = vadd.f32 %v2786, %v3344
      %v3346 = vpop.f32.mrb[0].mxu0
      %v3347 = vsub.f32 %v960, %v960
      %v3348 = vand.u32 %v3347, 4294901760
      %3349 = vmatprep.mubr.f32.mxu0 %v3348
      %v3350 = vsub.f32 %v959, %v959
      %v3351 = vand.u32 %v3350, 4294901760
      %3352 = vmatmul.mubr.f32.gmra.mrb[0].mxu0 %v3351
      %v3353 = vpop.f32.mrb[0].mxu0
      %v3354 = vadd.f32 %v2793, %v3353
      %v3355 = vpop.f32.mrb[0].mxu0
      %v3356 = vsub.f32 %v962, %v962
      %v3357 = vand.u32 %v3356, 4294901760
      %3358 = vmatprep.mubr.f32.mxu0 %v3357
      %v3359 = vsub.f32 %v961, %v961
      %v3360 = vand.u32 %v3359, 4294901760
      %3361 = vmatmul.mubr.f32.gmra.mrb[0].mxu0 %v3360
      %v3362 = vpop.f32.mrb[0].mxu0
      %v3363 = vadd.f32 %v2800, %v3362
      %v3364 = vpop.f32.mrb[0].mxu0
      %v3365 = vsub.f32 %v964, %v964
      %v3366 = vand.u32 %v3365, 4294901760
      %3367 = vmatprep.mubr.f32.mxu0 %v3366
      %v3368 = vsub.f32 %v963, %v963
      %v3369 = vand.u32 %v3368, 4294901760
      %3370 = vmatmul.mubr.f32.gmra.mrb[0].mxu0 %v3369
      %v3371 = vpop.f32.mrb[0].mxu0
      %v3372 = vadd.f32 %v2807, %v3371
      %v3373 = vpop.f32.mrb[0].mxu0
      %v3374 = vsub.f32 %v966, %v966
      %v3375 = vand.u32 %v3374, 4294901760
      %3376 = vmatprep.mubr.f32.mxu0 %v3375
      %v3377 = vsub.f32 %v965, %v965
      %v3378 = vand.u32 %v3377, 4294901760
      %3379 = vmatmul.mubr.f32.gmra.mrb[0].mxu0 %v3378
      %v3380 = vpop.f32.mrb[0].mxu0
      %v3381 = vadd.f32 %v2814, %v3380
      %v3382 = vpop.f32.mrb[0].mxu0
      %v3383 = vsub.f32 %v968, %v968
      %v3384 = vand.u32 %v3383, 4294901760
      %3385 = vmatprep.mubr.f32.mxu0 %v3384
      %v3386 = vsub.f32 %v967, %v967
      %v3387 = vand.u32 %v3386, 4294901760
      %3388 = vmatmul.mubr.f32.gmra.mrb[0].mxu0 %v3387
      %v3389 = vpop.f32.mrb[0].mxu0
      %v3390 = vadd.f32 %v2821, %v3389
      %v3391 = vpop.f32.mrb[0].mxu0
      %v3392 = vsub.f32 %v970, %v970
      %v3393 = vand.u32 %v3392, 4294901760
      %3394 = vmatprep.mubr.f32.mxu0 %v3393
      %v3395 = vsub.f32 %v969, %v969
      %v3396 = vand.u32 %v3395, 4294901760
      %3397 = vmatmul.mubr.f32.gmra.mrb[0].mxu0 %v3396
      %v3398 = vpop.f32.mrb[0].mxu0
      %v3399 = vadd.f32 %v2828, %v3398
      %v3400 = vpop.f32.mrb[0].mxu0
      %v3401 = vsub.f32 %v972, %v972
      %v3402 = vand.u32 %v3401, 4294901760
      %3403 = vmatprep.mubr.f32.mxu0 %v3402
      %v3404 = vsub.f32 %v971, %v971
      %v3405 = vand.u32 %v3404, 4294901760
      %3406 = vmatmul.mubr.f32.gmra.mrb[0].mxu0 %v3405
      %v3407 = vpop.f32.mrb[0].mxu0
      %v3408 = vadd.f32 %v2835, %v3407
      %v3409 = vpop.f32.mrb[0].mxu0
      %v3410 = vsub.f32 %v974, %v974
      %v3411 = vand.u32 %v3410, 4294901760
      %3412 = vmatprep.mubr.f32.mxu0 %v3411
      %v3413 = vsub.f32 %v973, %v973
      %v3414 = vand.u32 %v3413, 4294901760
      %3415 = vmatmul.mubr.f32.gmra.mrb[0].mxu0 %v3414
      %v3416 = vpop.f32.mrb[0].mxu0
      %v3417 = vadd.f32 %v2842, %v3416
      %v3418 = vpop.f32.mrb[0].mxu0
      %v3419 = vsub.f32 %v976, %v976
      %v3420 = vand.u32 %v3419, 4294901760
      %3421 = vmatprep.mubr.f32.mxu0 %v3420
      %v3422 = vsub.f32 %v975, %v975
      %v3423 = vand.u32 %v3422, 4294901760
      %3424 = vmatmul.mubr.f32.gmra.mrb[0].mxu0 %v3423
      %v3425 = vpop.f32.mrb[0].mxu0
      %v3426 = vadd.f32 %v2849, %v3425
      %v3427 = vpop.f32.mrb[0].mxu0
      %v3428 = vsub.f32 %v978, %v978
      %v3429 = vand.u32 %v3428, 4294901760
      %3430 = vmatprep.mubr.f32.mxu0 %v3429
      %v3431 = vsub.f32 %v977, %v977
      %v3432 = vand.u32 %v3431, 4294901760
      %3433 = vmatmul.mubr.f32.gmra.mrb[0].mxu0 %v3432
      %v3434 = vpop.f32.mrb[0].mxu0
      %v3435 = vadd.f32 %v2856, %v3434
      %v3436 = vpop.f32.mrb[0].mxu0
      %v3437 = vsub.f32 %v980, %v980
      %v3438 = vand.u32 %v3437, 4294901760
      %3439 = vmatprep.mubr.f32.mxu0 %v3438
      %v3440 = vsub.f32 %v979, %v979
      %v3441 = vand.u32 %v3440, 4294901760
      %3442 = vmatmul.mubr.f32.gmra.mrb[0].mxu0 %v3441
      %v3443 = vpop.f32.mrb[0].mxu0
      %v3444 = vadd.f32 %v2863, %v3443
      %v3445 = vpop.f32.mrb[0].mxu0
      %v3446 = vsub.f32 %v982, %v982
      %v3447 = vand.u32 %v3446, 4294901760
      %3448 = vmatprep.mubr.f32.mxu0 %v3447
      %v3449 = vsub.f32 %v981, %v981
      %v3450 = vand.u32 %v3449, 4294901760
      %3451 = vmatmul.mubr.f32.gmra.mrb[0].mxu0 %v3450
      %v3452 = vpop.f32.mrb[0].mxu0
      %v3453 = vadd.f32 %v2870, %v3452
      %v3454 = vpop.f32.mrb[0].mxu0
      %v3455 = vsub.f32 %v984, %v984
      %v3456 = vand.u32 %v3455, 4294901760
      %3457 = vmatprep.mubr.f32.mxu0 %v3456
      %v3458 = vsub.f32 %v983, %v983
      %v3459 = vand.u32 %v3458, 4294901760
      %3460 = vmatmul.mubr.f32.gmra.mrb[0].mxu0 %v3459
      %v3461 = vpop.f32.mrb[0].mxu0
      %v3462 = vadd.f32 %v2877, %v3461
      %v3463 = vpop.f32.mrb[0].mxu0
      %v3464 = vsub.f32 %v986, %v986
      %v3465 = vand.u32 %v3464, 4294901760
      %3466 = vmatprep.mubr.f32.mxu0 %v3465
      %v3467 = vsub.f32 %v985, %v985
      %v3468 = vand.u32 %v3467, 4294901760
      %3469 = vmatmul.mubr.f32.gmra.mrb[0].mxu0 %v3468
      %v3470 = vpop.f32.mrb[0].mxu0
      %v3471 = vadd.f32 %v2884, %v3470
      %v3472 = vpop.f32.mrb[0].mxu0
      %v3473 = vsub.f32 %v988, %v988
      %v3474 = vand.u32 %v3473, 4294901760
      %3475 = vmatprep.mubr.f32.mxu0 %v3474
      %v3476 = vsub.f32 %v987, %v987
      %v3477 = vand.u32 %v3476, 4294901760
      %3478 = vmatmul.mubr.f32.gmra.mrb[0].mxu0 %v3477
      %v3479 = vpop.f32.mrb[0].mxu0
      %v3480 = vadd.f32 %v2891, %v3479
      %v3481 = vpop.f32.mrb[0].mxu0
      %v3482 = vsub.f32 %v990, %v990
      %v3483 = vand.u32 %v3482, 4294901760
      %3484 = vmatprep.mubr.f32.mxu0 %v3483
      %v3485 = vsub.f32 %v989, %v989
      %v3486 = vand.u32 %v3485, 4294901760
      %3487 = vmatmul.mubr.f32.gmra.mrb[0].mxu0 %v3486
      %v3488 = vpop.f32.mrb[0].mxu0
      %v3489 = vadd.f32 %v2898, %v3488
      %v3490 = vpop.f32.mrb[0].mxu0
      %v3491 = vsub.f32 %v992, %v992
      %v3492 = vand.u32 %v3491, 4294901760
      %3493 = vmatprep.mubr.f32.mxu0 %v3492
      %v3494 = vsub.f32 %v991, %v991
      %v3495 = vand.u32 %v3494, 4294901760
      %3496 = vmatmul.mubr.f32.gmra.mrb[0].mxu0 %v3495
      %v3497 = vpop.f32.mrb[0].mxu0
      %v3498 = vadd.f32 %v2905, %v3497
      %v3499 = vpop.f32.mrb[0].mxu0
      %v3500 = vsub.f32 %v994, %v994
      %v3501 = vand.u32 %v3500, 4294901760
      %3502 = vmatprep.mubr.f32.mxu0 %v3501
      %v3503 = vsub.f32 %v993, %v993
      %v3504 = vand.u32 %v3503, 4294901760
      %3505 = vmatmul.mubr.f32.gmra.mrb[0].mxu0 %v3504
      %v3506 = vpop.f32.mrb[0].mxu0
      %v3507 = vadd.f32 %v2912, %v3506
      %v3508 = vpop.f32.mrb[0].mxu0
      %v3509 = vsub.f32 %v996, %v996
      %v3510 = vand.u32 %v3509, 4294901760
      %3511 = vmatprep.mubr.f32.mxu0 %v3510
      %v3512 = vsub.f32 %v995, %v995
      %v3513 = vand.u32 %v3512, 4294901760
      %3514 = vmatmul.mubr.f32.gmra.mrb[0].mxu0 %v3513
      %v3515 = vpop.f32.mrb[0].mxu0
      %v3516 = vadd.f32 %v2919, %v3515
      %v3517 = vpop.f32.mrb[0].mxu0
      %v3518 = vsub.f32 %v998, %v998
      %v3519 = vand.u32 %v3518, 4294901760
      %3520 = vmatprep.mubr.f32.mxu0 %v3519
      %v3521 = vsub.f32 %v997, %v997
      %v3522 = vand.u32 %v3521, 4294901760
      %3523 = vmatmul.mubr.f32.gmra.mrb[0].mxu0 %v3522
      %v3524 = vpop.f32.mrb[0].mxu0
      %v3525 = vadd.f32 %v2926, %v3524
      %v3526 = vpop.f32.mrb[0].mxu0
      %v3527 = vsub.f32 %v1000, %v1000
      %v3528 = vand.u32 %v3527, 4294901760
      %3529 = vmatprep.mubr.f32.mxu0 %v3528
      %v3530 = vsub.f32 %v999, %v999
      %v3531 = vand.u32 %v3530, 4294901760
      %3532 = vmatmul.mubr.f32.gmra.mrb[0].mxu0 %v3531
      %v3533 = vpop.f32.mrb[0].mxu0
      %v3534 = vadd.f32 %v2933, %v3533
      %v3535 = vpop.f32.mrb[0].mxu0
      %v3536 = vsub.f32 %v1002, %v1002
      %v3537 = vand.u32 %v3536, 4294901760
      %3538 = vmatprep.mubr.f32.mxu0 %v3537
      %v3539 = vsub.f32 %v1001, %v1001
      %v3540 = vand.u32 %v3539, 4294901760
      %3541 = vmatmul.mubr.f32.gmra.mrb[0].mxu0 %v3540
      %v3542 = vpop.f32.mrb[0].mxu0
      %v3543 = vadd.f32 %v2940, %v3542
      %v3544 = vpop.f32.mrb[0].mxu0
      %v3545 = vsub.f32 %v1004, %v1004
      %v3546 = vand.u32 %v3545, 4294901760
      %3547 = vmatprep.mubr.f32.mxu0 %v3546
      %v3548 = vsub.f32 %v1003, %v1003
      %v3549 = vand.u32 %v3548, 4294901760
      %3550 = vmatmul.mubr.f32.gmra.mrb[0].mxu0 %v3549
      %v3551 = vpop.f32.mrb[0].mxu0
      %v3552 = vadd.f32 %v2947, %v3551
      %v3553 = vpop.f32.mrb[0].mxu0
      %v3554 = vsub.f32 %v1006, %v1006
      %v3555 = vand.u32 %v3554, 4294901760
      %3556 = vmatprep.mubr.f32.mxu0 %v3555
      %v3557 = vsub.f32 %v1005, %v1005
      %v3558 = vand.u32 %v3557, 4294901760
      %3559 = vmatmul.mubr.f32.gmra.mrb[0].mxu0 %v3558
      %v3560 = vpop.f32.mrb[0].mxu0
      %v3561 = vadd.f32 %v2954, %v3560
      %v3562 = vpop.f32.mrb[0].mxu0
      %v3563 = vsub.f32 %v1008, %v1008
      %v3564 = vand.u32 %v3563, 4294901760
      %3565 = vmatprep.mubr.f32.mxu0 %v3564
      %v3566 = vsub.f32 %v1007, %v1007
      %v3567 = vand.u32 %v3566, 4294901760
      %3568 = vmatmul.mubr.f32.gmra.mrb[0].mxu0 %v3567
      %v3569 = vpop.f32.mrb[0].mxu0
      %v3570 = vadd.f32 %v2961, %v3569
      %v3571 = vpop.f32.mrb[0].mxu0
      %v3572 = vsub.f32 %v1010, %v1010
      %v3573 = vand.u32 %v3572, 4294901760
      %3574 = vmatprep.mubr.f32.mxu0 %v3573
      %v3575 = vsub.f32 %v1009, %v1009
      %v3576 = vand.u32 %v3575, 4294901760
      %3577 = vmatmul.mubr.f32.gmra.mrb[0].mxu0 %v3576
      %v3578 = vpop.f32.mrb[0].mxu0
      %v3579 = vadd.f32 %v2968, %v3578
      %v3580 = vpop.f32.mrb[0].mxu0
      %v3581 = vsub.f32 %v1012, %v1012
      %v3582 = vand.u32 %v3581, 4294901760
      %3583 = vmatprep.mubr.f32.mxu0 %v3582
      %v3584 = vsub.f32 %v1011, %v1011
      %v3585 = vand.u32 %v3584, 4294901760
      %3586 = vmatmul.mubr.f32.gmra.mrb[0].mxu0 %v3585
      %v3587 = vpop.f32.mrb[0].mxu0
      %v3588 = vadd.f32 %v2975, %v3587
      %v3589 = vpop.f32.mrb[0].mxu0
      %v3590 = vsub.f32 %v1014, %v1014
      %v3591 = vand.u32 %v3590, 4294901760
      %3592 = vmatprep.mubr.f32.mxu0 %v3591
      %v3593 = vsub.f32 %v1013, %v1013
      %v3594 = vand.u32 %v3593, 4294901760
      %3595 = vmatmul.mubr.f32.gmra.mrb[0].mxu0 %v3594
      %v3596 = vpop.f32.mrb[0].mxu0
      %v3597 = vadd.f32 %v2982, %v3596
      %v3598 = vpop.f32.mrb[0].mxu0
      %v3599 = vsub.f32 %v1016, %v1016
      %v3600 = vand.u32 %v3599, 4294901760
      %3601 = vmatprep.mubr.f32.mxu0 %v3600
      %v3602 = vsub.f32 %v1015, %v1015
      %v3603 = vand.u32 %v3602, 4294901760
      %3604 = vmatmul.mubr.f32.gmra.mrb[0].mxu0 %v3603
      %v3605 = vpop.f32.mrb[0].mxu0
      %v3606 = vadd.f32 %v2989, %v3605
      %v3607 = vpop.f32.mrb[0].mxu0
      %v3608 = vsub.f32 %v1018, %v1018
      %v3609 = vand.u32 %v3608, 4294901760
      %3610 = vmatprep.mubr.f32.mxu0 %v3609
      %v3611 = vsub.f32 %v1017, %v1017
      %v3612 = vand.u32 %v3611, 4294901760
      %3613 = vmatmul.mubr.f32.gmra.mrb[0].mxu0 %v3612
      %v3614 = vpop.f32.mrb[0].mxu0
      %v3615 = vadd.f32 %v2996, %v3614
      %v3616 = vpop.f32.mrb[0].mxu0
      %v3617 = vsub.f32 %v1020, %v1020
      %v3618 = vand.u32 %v3617, 4294901760
      %3619 = vmatprep.mubr.f32.mxu0 %v3618
      %v3620 = vsub.f32 %v1019, %v1019
      %v3621 = vand.u32 %v3620, 4294901760
      %3622 = vmatmul.mubr.f32.gmra.mrb[0].mxu0 %v3621
      %v3623 = vpop.f32.mrb[0].mxu0
      %v3624 = vadd.f32 %v3003, %v3623
      %v3625 = vpop.f32.mrb[0].mxu0
      %v3626 = vsub.f32 %v1022, %v1022
      %v3627 = vand.u32 %v3626, 4294901760
      %3628 = vmatprep.mubr.f32.mxu0 %v3627
      %v3629 = vsub.f32 %v1021, %v1021
      %v3630 = vand.u32 %v3629, 4294901760
      %3631 = vmatmul.mubr.f32.gmra.mrb[0].mxu0 %v3630
      %v3632 = vpop.f32.mrb[0].mxu0
      %v3633 = vadd.f32 %v3010, %v3632
      %v3634 = vpop.f32.mrb[0].mxu0
      %v3635 = vsub.f32 %v1024, %v1024
      %v3636 = vand.u32 %v3635, 4294901760
      %3637 = vmatprep.mubr.f32.mxu0 %v3636
      %v3638 = vsub.f32 %v1023, %v1023
      %v3639 = vand.u32 %v3638, 4294901760
      %3640 = vmatmul.mubr.f32.gmra.mrb[0].mxu0 %v3639
      %v3641 = vpop.f32.mrb[0].mxu0
      %v3642 = vadd.f32 %v3017, %v3641
      %v3643 = vpop.f32.mrb[0].mxu0
      %v3644 = vsub.f32 %v1026, %v1026
      %v3645 = vand.u32 %v3644, 4294901760
      %3646 = vmatprep.mubr.f32.mxu0 %v3645
      %v3647 = vsub.f32 %v1025, %v1025
      %v3648 = vand.u32 %v3647, 4294901760
      %3649 = vmatmul.mubr.f32.gmra.mrb[0].mxu0 %v3648
      %v3650 = vpop.f32.mrb[0].mxu0
      %v3651 = vadd.f32 %v3024, %v3650
      %v3652 = vpop.f32.mrb[0].mxu0
      %v3653 = vsub.f32 %v1028, %v1028
      %v3654 = vand.u32 %v3653, 4294901760
      %3655 = vmatprep.mubr.f32.mxu0 %v3654
      %v3656 = vsub.f32 %v1027, %v1027
      %v3657 = vand.u32 %v3656, 4294901760
      %3658 = vmatmul.mubr.f32.gmra.mrb[0].mxu0 %v3657
      %v3659 = vpop.f32.mrb[0].mxu0
      %v3660 = vadd.f32 %v3031, %v3659
      %v3661 = vpop.f32.mrb[0].mxu0
      %v3662 = vsub.f32 %v1030, %v1030
      %v3663 = vand.u32 %v3662, 4294901760
      %3664 = vmatprep.mubr.f32.mxu0 %v3663
      %v3665 = vsub.f32 %v1029, %v1029
      %v3666 = vand.u32 %v3665, 4294901760
      %3667 = vmatmul.mubr.f32.gmra.mrb[0].mxu0 %v3666
      %v3668 = vpop.f32.mrb[0].mxu0
      %v3669 = vadd.f32 %v3038, %v3668
      %v3670 = vpop.f32.mrb[0].mxu0
      %v3671 = vsub.f32 %v1032, %v1032
      %v3672 = vand.u32 %v3671, 4294901760
      %3673 = vmatprep.mubr.f32.mxu0 %v3672
      %v3674 = vsub.f32 %v1031, %v1031
      %v3675 = vand.u32 %v3674, 4294901760
      %3676 = vmatmul.mubr.f32.gmra.mrb[0].mxu0 %v3675
      %v3677 = vpop.f32.mrb[0].mxu0
      %v3678 = vadd.f32 %v3045, %v3677
      %v3679 = vpop.f32.mrb[0].mxu0
      %v3680 = vsub.f32 %v1034, %v1034
      %v3681 = vand.u32 %v3680, 4294901760
      %3682 = vmatprep.mubr.f32.mxu0 %v3681
      %v3683 = vsub.f32 %v1033, %v1033
      %v3684 = vand.u32 %v3683, 4294901760
      %3685 = vmatmul.mubr.f32.gmra.mrb[0].mxu0 %v3684
      %v3686 = vpop.f32.mrb[0].mxu0
      %v3687 = vadd.f32 %v3052, %v3686
      %v3688 = vpop.f32.mrb[0].mxu0
      %v3689 = vsub.f32 %v1036, %v1036
      %v3690 = vand.u32 %v3689, 4294901760
      %3691 = vmatprep.mubr.f32.mxu0 %v3690
      %v3692 = vsub.f32 %v1035, %v1035
      %v3693 = vand.u32 %v3692, 4294901760
      %3694 = vmatmul.mubr.f32.gmra.mrb[0].mxu0 %v3693
      %v3695 = vpop.f32.mrb[0].mxu0
      %v3696 = vadd.f32 %v3059, %v3695
      %v3697 = vpop.f32.mrb[0].mxu0
      %v3698 = vsub.f32 %v1038, %v1038
      %v3699 = vand.u32 %v3698, 4294901760
      %3700 = vmatprep.mubr.f32.mxu0 %v3699
      %v3701 = vsub.f32 %v1037, %v1037
      %v3702 = vand.u32 %v3701, 4294901760
      %3703 = vmatmul.mubr.f32.gmra.mrb[0].mxu0 %v3702
      %v3704 = vpop.f32.mrb[0].mxu0
      %v3705 = vadd.f32 %v3066, %v3704
      %v3706 = vpop.f32.mrb[0].mxu0
      %v3707 = vsub.f32 %v1040, %v1040
      %v3708 = vand.u32 %v3707, 4294901760
      %3709 = vmatprep.mubr.f32.mxu0 %v3708
      %v3710 = vsub.f32 %v1039, %v1039
      %v3711 = vand.u32 %v3710, 4294901760
      %3712 = vmatmul.mubr.f32.gmra.mrb[0].mxu0 %v3711
      %v3713 = vpop.f32.mrb[0].mxu0
      %v3714 = vadd.f32 %v3073, %v3713
      %v3715 = vpop.f32.mrb[0].mxu0
      %v3716 = vsub.f32 %v1042, %v1042
      %v3717 = vand.u32 %v3716, 4294901760
      %3718 = vmatprep.mubr.f32.mxu0 %v3717
      %v3719 = vsub.f32 %v1041, %v1041
      %v3720 = vand.u32 %v3719, 4294901760
      %3721 = vmatmul.mubr.f32.gmra.mrb[0].mxu0 %v3720
      %v3722 = vpop.f32.mrb[0].mxu0
      %v3723 = vadd.f32 %v3080, %v3722
      %v3724 = vpop.f32.mrb[0].mxu0
      %v3725 = vsub.f32 %v1044, %v1044
      %v3726 = vand.u32 %v3725, 4294901760
      %3727 = vmatprep.mubr.f32.mxu0 %v3726
      %v3728 = vsub.f32 %v1043, %v1043
      %v3729 = vand.u32 %v3728, 4294901760
      %3730 = vmatmul.mubr.f32.gmra.mrb[0].mxu0 %v3729
      %v3731 = vpop.f32.mrb[0].mxu0
      %v3732 = vadd.f32 %v3087, %v3731
      %v3733 = vpop.f32.mrb[0].mxu0
      %v3734 = vsub.f32 %v1046, %v1046
      %v3735 = vand.u32 %v3734, 4294901760
      %3736 = vmatprep.mubr.f32.mxu0 %v3735
      %v3737 = vsub.f32 %v1045, %v1045
      %v3738 = vand.u32 %v3737, 4294901760
      %3739 = vmatmul.mubr.f32.gmra.mrb[0].mxu0 %v3738
      %v3740 = vpop.f32.mrb[0].mxu0
      %v3741 = vadd.f32 %v3094, %v3740
      %v3742 = vpop.f32.mrb[0].mxu0
      %v3743 = vsub.f32 %v1048, %v1048
      %v3744 = vand.u32 %v3743, 4294901760
      %3745 = vmatprep.mubr.f32.mxu0 %v3744
      %v3746 = vsub.f32 %v1047, %v1047
      %v3747 = vand.u32 %v3746, 4294901760
      %3748 = vmatmul.mubr.f32.gmra.mrb[0].mxu0 %v3747
      %v3749 = vpop.f32.mrb[0].mxu0
      %v3750 = vadd.f32 %v3101, %v3749
      %v3751 = vpop.f32.mrb[0].mxu0
      %v3752 = vsub.f32 %v1050, %v1050
      %v3753 = vand.u32 %v3752, 4294901760
      %3754 = vmatprep.mubr.f32.mxu0 %v3753
      %v3755 = vsub.f32 %v1049, %v1049
      %v3756 = vand.u32 %v3755, 4294901760
      %3757 = vmatmul.mubr.f32.gmra.mrb[0].mxu0 %v3756
      %v3758 = vpop.f32.mrb[0].mxu0
      %v3759 = vadd.f32 %v3108, %v3758
      %v3760 = vpop.f32.mrb[0].mxu0
      %v3761 = vsub.f32 %v1052, %v1052
      %v3762 = vand.u32 %v3761, 4294901760
      %3763 = vmatprep.mubr.f32.mxu0 %v3762
      %v3764 = vsub.f32 %v1051, %v1051
      %v3765 = vand.u32 %v3764, 4294901760
      %3766 = vmatmul.mubr.f32.gmra.mrb[0].mxu0 %v3765
      %v3767 = vpop.f32.mrb[0].mxu0
      %v3768 = vadd.f32 %v3115, %v3767
      %v3769 = vpop.f32.mrb[0].mxu0
      %v3770 = vsub.f32 %v1054, %v1054
      %v3771 = vand.u32 %v3770, 4294901760
      %3772 = vmatprep.mubr.f32.mxu0 %v3771
      %v3773 = vsub.f32 %v1053, %v1053
      %v3774 = vand.u32 %v3773, 4294901760
      %3775 = vmatmul.mubr.f32.gmra.mrb[0].mxu0 %v3774
      %v3776 = vpop.f32.mrb[0].mxu0
      %v3777 = vadd.f32 %v3122, %v3776
      %v3778 = vpop.f32.mrb[0].mxu0
      %v3779 = vsub.f32 %v1056, %v1056
      %v3780 = vand.u32 %v3779, 4294901760
      %3781 = vmatprep.mubr.f32.mxu0 %v3780
      %v3782 = vsub.f32 %v1055, %v1055
      %v3783 = vand.u32 %v3782, 4294901760
      %3784 = vmatmul.mubr.f32.gmra.mrb[0].mxu0 %v3783
      %v3785 = vpop.f32.mrb[0].mxu0
      %v3786 = vadd.f32 %v3129, %v3785
      %v3787 = vpop.f32.mrb[0].mxu0
      %v3788 = vsub.f32 %v1058, %v1058
      %v3789 = vand.u32 %v3788, 4294901760
      %3790 = vmatprep.mubr.f32.mxu0 %v3789
      %v3791 = vsub.f32 %v1057, %v1057
      %v3792 = vand.u32 %v3791, 4294901760
      %3793 = vmatmul.mubr.f32.gmra.mrb[0].mxu0 %v3792
      %v3794 = vpop.f32.mrb[0].mxu0
      %v3795 = vadd.f32 %v3136, %v3794
      %v3796 = vpop.f32.mrb[0].mxu0
      %v3797 = vsub.f32 %v1060, %v1060
      %v3798 = vand.u32 %v3797, 4294901760
      %3799 = vmatprep.mubr.f32.mxu0 %v3798
      %v3800 = vsub.f32 %v1059, %v1059
      %v3801 = vand.u32 %v3800, 4294901760
      %3802 = vmatmul.mubr.f32.gmra.mrb[0].mxu0 %v3801
      %v3803 = vpop.f32.mrb[0].mxu0
      %v3804 = vadd.f32 %v3143, %v3803
      %v3805 = vpop.f32.mrb[0].mxu0
      %v3806 = vsub.f32 %v1062, %v1062
      %v3807 = vand.u32 %v3806, 4294901760
      %3808 = vmatprep.mubr.f32.mxu0 %v3807
      %v3809 = vsub.f32 %v1061, %v1061
      %v3810 = vand.u32 %v3809, 4294901760
      %3811 = vmatmul.mubr.f32.gmra.mrb[0].mxu0 %v3810
      %v3812 = vpop.f32.mrb[0].mxu0
      %v3813 = vadd.f32 %v3150, %v3812
      %v3814 = vpop.f32.mrb[0].mxu0
      %v3815 = vsub.f32 %v1064, %v1064
      %v3816 = vand.u32 %v3815, 4294901760
      %3817 = vmatprep.mubr.f32.mxu0 %v3816
      %v3818 = vsub.f32 %v1063, %v1063
      %v3819 = vand.u32 %v3818, 4294901760
      %3820 = vmatmul.mubr.f32.gmra.mrb[0].mxu0 %v3819
      %v3821 = vpop.f32.mrb[0].mxu0
      %v3822 = vadd.f32 %v3157, %v3821
      %v3823 = vpop.f32.mrb[0].mxu0
      %v3824 = vsub.f32 %v1066, %v1066
      %v3825 = vand.u32 %v3824, 4294901760
      %3826 = vmatprep.mubr.f32.mxu0 %v3825
      %v3827 = vsub.f32 %v1065, %v1065
      %v3828 = vand.u32 %v3827, 4294901760
      %3829 = vmatmul.mubr.f32.gmra.mrb[0].mxu0 %v3828
      %v3830 = vpop.f32.mrb[0].mxu0
      %v3831 = vadd.f32 %v3164, %v3830
      %v3832 = vpop.f32.mrb[0].mxu0
      %v3833 = vsub.f32 %v1068, %v1068
      %v3834 = vand.u32 %v3833, 4294901760
      %3835 = vmatprep.mubr.f32.mxu0 %v3834
      %v3836 = vsub.f32 %v1067, %v1067
      %v3837 = vand.u32 %v3836, 4294901760
      %3838 = vmatmul.mubr.f32.gmra.mrb[0].mxu0 %v3837
      %v3839 = vpop.f32.mrb[0].mxu0
      %v3840 = vadd.f32 %v3171, %v3839
      %v3841 = vpop.f32.mrb[0].mxu0
      %v3842 = vsub.f32 %v1070, %v1070
      %v3843 = vand.u32 %v3842, 4294901760
      %3844 = vmatprep.mubr.f32.mxu0 %v3843
      %v3845 = vsub.f32 %v1069, %v1069
      %v3846 = vand.u32 %v3845, 4294901760
      %3847 = vmatmul.mubr.f32.gmra.mrb[0].mxu0 %v3846
      %v3848 = vpop.f32.mrb[0].mxu0
      %v3849 = vadd.f32 %v3178, %v3848
      %v3850 = vpop.f32.mrb[0].mxu0
      %v3851 = vsub.f32 %v1072, %v1072
      %v3852 = vand.u32 %v3851, 4294901760
      %3853 = vmatprep.mubr.f32.mxu0 %v3852
      %v3854 = vsub.f32 %v1071, %v1071
      %v3855 = vand.u32 %v3854, 4294901760
      %3856 = vmatmul.mubr.f32.gmra.mrb[0].mxu0 %v3855
      %v3857 = vpop.f32.mrb[0].mxu0
      %v3858 = vadd.f32 %v3185, %v3857
      %v3859 = vpop.f32.mrb[0].mxu0
      %3860 = vdwg.mxu0
      %3861 = vmatprep.subr.mxu0 0.0
      %v3862 = vand.u32 %v1105, 4294901760
      %v3863 = vsub.f32 %v1105, %v3862
      %v3864 = vand.u32 %v3863, 4294901760
      %3865 = vmatpush1.msra.mxu0 %v3864
      %3866 = vmatprep.subr.mxu0 0.0
      %v3867 = vand.u32 %v1106, 4294901760
      %v3868 = vsub.f32 %v1106, %v3867
      %v3869 = vand.u32 %v3868, 4294901760
      %3870 = vmatpush1.msra.mxu0 %v3869
      %3871 = vmatprep.subr.mxu0 0.0
      %v3872 = vand.u32 %v1107, 4294901760
      %v3873 = vsub.f32 %v1107, %v3872
      %v3874 = vand.u32 %v3873, 4294901760
      %3875 = vmatpush1.msra.mxu0 %v3874
      %3876 = vmatprep.subr.mxu0 0.0
      %v3877 = vand.u32 %v1108, 4294901760
      %v3878 = vsub.f32 %v1108, %v3877
      %v3879 = vand.u32 %v3878, 4294901760
      %3880 = vmatpush1.msra.mxu0 %v3879
      %3881 = vmatprep.subr.mxu0 0.0
      %v3882 = vand.u32 %v1109, 4294901760
      %v3883 = vsub.f32 %v1109, %v3882
      %v3884 = vand.u32 %v3883, 4294901760
      %3885 = vmatpush1.msra.mxu0 %v3884
      %3886 = vmatprep.subr.mxu0 0.0
      %v3887 = vand.u32 %v1110, 4294901760
      %v3888 = vsub.f32 %v1110, %v3887
      %v3889 = vand.u32 %v3888, 4294901760
      %3890 = vmatpush1.msra.mxu0 %v3889
      %3891 = vmatprep.subr.mxu0 0.0
      %v3892 = vand.u32 %v1111, 4294901760
      %v3893 = vsub.f32 %v1111, %v3892
      %v3894 = vand.u32 %v3893, 4294901760
      %3895 = vmatpush1.msra.mxu0 %v3894
      %3896 = vmatprep.subr.mxu0 0.0
      %v3897 = vand.u32 %v1112, 4294901760
      %v3898 = vsub.f32 %v1112, %v3897
      %v3899 = vand.u32 %v3898, 4294901760
      %3900 = vmatpush1.msra.mxu0 %v3899
      %3901 = vmatprep.subr.mxu0 0.0
      %v3902 = vand.u32 %v1113, 4294901760
      %v3903 = vsub.f32 %v1113, %v3902
      %v3904 = vand.u32 %v3903, 4294901760
      %3905 = vmatpush1.msra.mxu0 %v3904
      %3906 = vmatprep.subr.mxu0 0.0
      %v3907 = vand.u32 %v1114, 4294901760
      %v3908 = vsub.f32 %v1114, %v3907
      %v3909 = vand.u32 %v3908, 4294901760
      %3910 = vmatpush1.msra.mxu0 %v3909
      %3911 = vmatprep.subr.mxu0 0.0
      %v3912 = vand.u32 %v1115, 4294901760
      %v3913 = vsub.f32 %v1115, %v3912
      %v3914 = vand.u32 %v3913, 4294901760
      %3915 = vmatpush1.msra.mxu0 %v3914
      %3916 = vmatprep.subr.mxu0 0.0
      %v3917 = vand.u32 %v1116, 4294901760
      %v3918 = vsub.f32 %v1116, %v3917
      %v3919 = vand.u32 %v3918, 4294901760
      %3920 = vmatpush1.msra.mxu0 %v3919
      %3921 = vmatprep.subr.mxu0 0.0
      %v3922 = vand.u32 %v1117, 4294901760
      %v3923 = vsub.f32 %v1117, %v3922
      %v3924 = vand.u32 %v3923, 4294901760
      %3925 = vmatpush1.msra.mxu0 %v3924
      %3926 = vmatprep.subr.mxu0 0.0
      %v3927 = vand.u32 %v1118, 4294901760
      %v3928 = vsub.f32 %v1118, %v3927
      %v3929 = vand.u32 %v3928, 4294901760
      %3930 = vmatpush1.msra.mxu0 %v3929
      %3931 = vmatprep.subr.mxu0 0.0
      %v3932 = vand.u32 %v1119, 4294901760
      %v3933 = vsub.f32 %v1119, %v3932
      %v3934 = vand.u32 %v3933, 4294901760
      %3935 = vmatpush1.msra.mxu0 %v3934
      %3936 = vmatprep.subr.mxu0 0.0
      %v3937 = vand.u32 %v1120, 4294901760
      %v3938 = vsub.f32 %v1120, %v3937
      %v3939 = vand.u32 %v3938, 4294901760
      %3940 = vmatpush1.msra.mxu0 %v3939
      %3941 = vmatprep.subr.mxu0 0.0
      %v3942 = vand.u32 %v1121, 4294901760
      %v3943 = vsub.f32 %v1121, %v3942
      %v3944 = vand.u32 %v3943, 4294901760
      %3945 = vmatpush1.msra.mxu0 %v3944
      %3946 = vmatprep.subr.mxu0 0.0
      %v3947 = vand.u32 %v1122, 4294901760
      %v3948 = vsub.f32 %v1122, %v3947
      %v3949 = vand.u32 %v3948, 4294901760
      %3950 = vmatpush1.msra.mxu0 %v3949
      %3951 = vmatprep.subr.mxu0 0.0
      %v3952 = vand.u32 %v1123, 4294901760
      %v3953 = vsub.f32 %v1123, %v3952
      %v3954 = vand.u32 %v3953, 4294901760
      %3955 = vmatpush1.msra.mxu0 %v3954
      %3956 = vmatprep.subr.mxu0 0.0
      %v3957 = vand.u32 %v1124, 4294901760
      %v3958 = vsub.f32 %v1124, %v3957
      %v3959 = vand.u32 %v3958, 4294901760
      %3960 = vmatpush1.msra.mxu0 %v3959
      %3961 = vmatprep.subr.mxu0 0.0
      %v3962 = vand.u32 %v1125, 4294901760
      %v3963 = vsub.f32 %v1125, %v3962
      %v3964 = vand.u32 %v3963, 4294901760
      %3965 = vmatpush1.msra.mxu0 %v3964
      %3966 = vmatprep.subr.mxu0 0.0
      %v3967 = vand.u32 %v1126, 4294901760
      %v3968 = vsub.f32 %v1126, %v3967
      %v3969 = vand.u32 %v3968, 4294901760
      %3970 = vmatpush1.msra.mxu0 %v3969
      %3971 = vmatprep.subr.mxu0 0.0
      %v3972 = vand.u32 %v1127, 4294901760
      %v3973 = vsub.f32 %v1127, %v3972
      %v3974 = vand.u32 %v3973, 4294901760
      %3975 = vmatpush1.msra.mxu0 %v3974
      %3976 = vmatprep.subr.mxu0 0.0
      %v3977 = vand.u32 %v1128, 4294901760
      %v3978 = vsub.f32 %v1128, %v3977
      %v3979 = vand.u32 %v3978, 4294901760
      %3980 = vmatpush1.msra.mxu0 %v3979
      %3981 = vmatprep.subr.mxu0 0.0
      %v3982 = vand.u32 %v1129, 4294901760
      %v3983 = vsub.f32 %v1129, %v3982
      %v3984 = vand.u32 %v3983, 4294901760
      %3985 = vmatpush1.msra.mxu0 %v3984
      %3986 = vmatprep.subr.mxu0 0.0
      %v3987 = vand.u32 %v1130, 4294901760
      %v3988 = vsub.f32 %v1130, %v3987
      %v3989 = vand.u32 %v3988, 4294901760
      %3990 = vmatpush1.msra.mxu0 %v3989
      %3991 = vmatprep.subr.mxu0 0.0
      %v3992 = vand.u32 %v1131, 4294901760
      %v3993 = vsub.f32 %v1131, %v3992
      %v3994 = vand.u32 %v3993, 4294901760
      %3995 = vmatpush1.msra.mxu0 %v3994
      %3996 = vmatprep.subr.mxu0 0.0
      %v3997 = vand.u32 %v1132, 4294901760
      %v3998 = vsub.f32 %v1132, %v3997
      %v3999 = vand.u32 %v3998, 4294901760
      %4000 = vmatpush1.msra.mxu0 %v3999
      %4001 = vmatprep.subr.mxu0 0.0
      %v4002 = vand.u32 %v1133, 4294901760
      %v4003 = vsub.f32 %v1133, %v4002
      %v4004 = vand.u32 %v4003, 4294901760
      %4005 = vmatpush1.msra.mxu0 %v4004
      %4006 = vmatprep.subr.mxu0 0.0
      %v4007 = vand.u32 %v1134, 4294901760
      %v4008 = vsub.f32 %v1134, %v4007
      %v4009 = vand.u32 %v4008, 4294901760
      %4010 = vmatpush1.msra.mxu0 %v4009
      %4011 = vmatprep.subr.mxu0 0.0
      %v4012 = vand.u32 %v1135, 4294901760
      %v4013 = vsub.f32 %v1135, %v4012
      %v4014 = vand.u32 %v4013, 4294901760
      %4015 = vmatpush1.msra.mxu0 %v4014
      %4016 = vmatprep.subr.mxu0 0.0
      %v4017 = vand.u32 %v1136, 4294901760
      %v4018 = vsub.f32 %v1136, %v4017
      %v4019 = vand.u32 %v4018, 4294901760
      %4020 = vmatpush1.msra.mxu0 %v4019
      %4021 = vmatprep.mubr.f32.mxu0 %v946
      %4022 = vmatmul.mubr.f32.gmra.mrb[0].mxu0 %v945
      %v4023 = vpop.f32.mrb[0].mxu0
      %v4024 = vadd.f32 %v3291, %v4023
      %v4025 = vpop.f32.mrb[0].mxu0
      %4026 = vmatprep.mubr.f32.mxu0 %v948
      %4027 = vmatmul.mubr.f32.gmra.mrb[0].mxu0 %v947
      %v4028 = vpop.f32.mrb[0].mxu0
      %v4029 = vadd.f32 %v3300, %v4028
      %v4030 = vpop.f32.mrb[0].mxu0
      %4031 = vmatprep.mubr.f32.mxu0 %v950
      %4032 = vmatmul.mubr.f32.gmra.mrb[0].mxu0 %v949
      %v4033 = vpop.f32.mrb[0].mxu0
      %v4034 = vadd.f32 %v3309, %v4033
      %v4035 = vpop.f32.mrb[0].mxu0
      %4036 = vmatprep.mubr.f32.mxu0 %v952
      %4037 = vmatmul.mubr.f32.gmra.mrb[0].mxu0 %v951
      %v4038 = vpop.f32.mrb[0].mxu0
      %v4039 = vadd.f32 %v3318, %v4038
      %v4040 = vpop.f32.mrb[0].mxu0
      %4041 = vmatprep.mubr.f32.mxu0 %v954
      %4042 = vmatmul.mubr.f32.gmra.mrb[0].mxu0 %v953
      %v4043 = vpop.f32.mrb[0].mxu0
      %v4044 = vadd.f32 %v3327, %v4043
      %v4045 = vpop.f32.mrb[0].mxu0
      %4046 = vmatprep.mubr.f32.mxu0 %v956
      %4047 = vmatmul.mubr.f32.gmra.mrb[0].mxu0 %v955
      %v4048 = vpop.f32.mrb[0].mxu0
      %v4049 = vadd.f32 %v3336, %v4048
      %v4050 = vpop.f32.mrb[0].mxu0
      %4051 = vmatprep.mubr.f32.mxu0 %v958
      %4052 = vmatmul.mubr.f32.gmra.mrb[0].mxu0 %v957
      %v4053 = vpop.f32.mrb[0].mxu0
      %v4054 = vadd.f32 %v3345, %v4053
      %v4055 = vpop.f32.mrb[0].mxu0
      %4056 = vmatprep.mubr.f32.mxu0 %v960
      %4057 = vmatmul.mubr.f32.gmra.mrb[0].mxu0 %v959
      %v4058 = vpop.f32.mrb[0].mxu0
      %v4059 = vadd.f32 %v3354, %v4058
      %v4060 = vpop.f32.mrb[0].mxu0
      %4061 = vmatprep.mubr.f32.mxu0 %v962
      %4062 = vmatmul.mubr.f32.gmra.mrb[0].mxu0 %v961
      %v4063 = vpop.f32.mrb[0].mxu0
      %v4064 = vadd.f32 %v3363, %v4063
      %v4065 = vpop.f32.mrb[0].mxu0
      %4066 = vmatprep.mubr.f32.mxu0 %v964
      %4067 = vmatmul.mubr.f32.gmra.mrb[0].mxu0 %v963
      %v4068 = vpop.f32.mrb[0].mxu0
      %v4069 = vadd.f32 %v3372, %v4068
      %v4070 = vpop.f32.mrb[0].mxu0
      %4071 = vmatprep.mubr.f32.mxu0 %v966
      %4072 = vmatmul.mubr.f32.gmra.mrb[0].mxu0 %v965
      %v4073 = vpop.f32.mrb[0].mxu0
      %v4074 = vadd.f32 %v3381, %v4073
      %v4075 = vpop.f32.mrb[0].mxu0
      %4076 = vmatprep.mubr.f32.mxu0 %v968
      %4077 = vmatmul.mubr.f32.gmra.mrb[0].mxu0 %v967
      %v4078 = vpop.f32.mrb[0].mxu0
      %v4079 = vadd.f32 %v3390, %v4078
      %v4080 = vpop.f32.mrb[0].mxu0
      %4081 = vmatprep.mubr.f32.mxu0 %v970
      %4082 = vmatmul.mubr.f32.gmra.mrb[0].mxu0 %v969
      %v4083 = vpop.f32.mrb[0].mxu0
      %v4084 = vadd.f32 %v3399, %v4083
      %v4085 = vpop.f32.mrb[0].mxu0
      %4086 = vmatprep.mubr.f32.mxu0 %v972
      %4087 = vmatmul.mubr.f32.gmra.mrb[0].mxu0 %v971
      %v4088 = vpop.f32.mrb[0].mxu0
      %v4089 = vadd.f32 %v3408, %v4088
      %v4090 = vpop.f32.mrb[0].mxu0
      %4091 = vmatprep.mubr.f32.mxu0 %v974
      %4092 = vmatmul.mubr.f32.gmra.mrb[0].mxu0 %v973
      %v4093 = vpop.f32.mrb[0].mxu0
      %v4094 = vadd.f32 %v3417, %v4093
      %v4095 = vpop.f32.mrb[0].mxu0
      %4096 = vmatprep.mubr.f32.mxu0 %v976
      %4097 = vmatmul.mubr.f32.gmra.mrb[0].mxu0 %v975
      %v4098 = vpop.f32.mrb[0].mxu0
      %v4099 = vadd.f32 %v3426, %v4098
      %v4100 = vpop.f32.mrb[0].mxu0
      %4101 = vmatprep.mubr.f32.mxu0 %v978
      %4102 = vmatmul.mubr.f32.gmra.mrb[0].mxu0 %v977
      %v4103 = vpop.f32.mrb[0].mxu0
      %v4104 = vadd.f32 %v3435, %v4103
      %v4105 = vpop.f32.mrb[0].mxu0
      %4106 = vmatprep.mubr.f32.mxu0 %v980
      %4107 = vmatmul.mubr.f32.gmra.mrb[0].mxu0 %v979
      %v4108 = vpop.f32.mrb[0].mxu0
      %v4109 = vadd.f32 %v3444, %v4108
      %v4110 = vpop.f32.mrb[0].mxu0
      %4111 = vmatprep.mubr.f32.mxu0 %v982
      %4112 = vmatmul.mubr.f32.gmra.mrb[0].mxu0 %v981
      %v4113 = vpop.f32.mrb[0].mxu0
      %v4114 = vadd.f32 %v3453, %v4113
      %v4115 = vpop.f32.mrb[0].mxu0
      %4116 = vmatprep.mubr.f32.mxu0 %v984
      %4117 = vmatmul.mubr.f32.gmra.mrb[0].mxu0 %v983
      %v4118 = vpop.f32.mrb[0].mxu0
      %v4119 = vadd.f32 %v3462, %v4118
      %v4120 = vpop.f32.mrb[0].mxu0
      %4121 = vmatprep.mubr.f32.mxu0 %v986
      %4122 = vmatmul.mubr.f32.gmra.mrb[0].mxu0 %v985
      %v4123 = vpop.f32.mrb[0].mxu0
      %v4124 = vadd.f32 %v3471, %v4123
      %v4125 = vpop.f32.mrb[0].mxu0
      %4126 = vmatprep.mubr.f32.mxu0 %v988
      %4127 = vmatmul.mubr.f32.gmra.mrb[0].mxu0 %v987
      %v4128 = vpop.f32.mrb[0].mxu0
      %v4129 = vadd.f32 %v3480, %v4128
      %v4130 = vpop.f32.mrb[0].mxu0
      %4131 = vmatprep.mubr.f32.mxu0 %v990
      %4132 = vmatmul.mubr.f32.gmra.mrb[0].mxu0 %v989
      %v4133 = vpop.f32.mrb[0].mxu0
      %v4134 = vadd.f32 %v3489, %v4133
      %v4135 = vpop.f32.mrb[0].mxu0
      %4136 = vmatprep.mubr.f32.mxu0 %v992
      %4137 = vmatmul.mubr.f32.gmra.mrb[0].mxu0 %v991
      %v4138 = vpop.f32.mrb[0].mxu0
      %v4139 = vadd.f32 %v3498, %v4138
      %v4140 = vpop.f32.mrb[0].mxu0
      %4141 = vmatprep.mubr.f32.mxu0 %v994
      %4142 = vmatmul.mubr.f32.gmra.mrb[0].mxu0 %v993
      %v4143 = vpop.f32.mrb[0].mxu0
      %v4144 = vadd.f32 %v3507, %v4143
      %v4145 = vpop.f32.mrb[0].mxu0
      %4146 = vmatprep.mubr.f32.mxu0 %v996
      %4147 = vmatmul.mubr.f32.gmra.mrb[0].mxu0 %v995
      %v4148 = vpop.f32.mrb[0].mxu0
      %v4149 = vadd.f32 %v3516, %v4148
      %v4150 = vpop.f32.mrb[0].mxu0
      %4151 = vmatprep.mubr.f32.mxu0 %v998
      %4152 = vmatmul.mubr.f32.gmra.mrb[0].mxu0 %v997
      %v4153 = vpop.f32.mrb[0].mxu0
      %v4154 = vadd.f32 %v3525, %v4153
      %v4155 = vpop.f32.mrb[0].mxu0
      %4156 = vmatprep.mubr.f32.mxu0 %v1000
      %4157 = vmatmul.mubr.f32.gmra.mrb[0].mxu0 %v999
      %v4158 = vpop.f32.mrb[0].mxu0
      %v4159 = vadd.f32 %v3534, %v4158
      %v4160 = vpop.f32.mrb[0].mxu0
      %4161 = vmatprep.mubr.f32.mxu0 %v1002
      %4162 = vmatmul.mubr.f32.gmra.mrb[0].mxu0 %v1001
      %v4163 = vpop.f32.mrb[0].mxu0
      %v4164 = vadd.f32 %v3543, %v4163
      %v4165 = vpop.f32.mrb[0].mxu0
      %4166 = vmatprep.mubr.f32.mxu0 %v1004
      %4167 = vmatmul.mubr.f32.gmra.mrb[0].mxu0 %v1003
      %v4168 = vpop.f32.mrb[0].mxu0
      %v4169 = vadd.f32 %v3552, %v4168
      %v4170 = vpop.f32.mrb[0].mxu0
      %4171 = vmatprep.mubr.f32.mxu0 %v1006
      %4172 = vmatmul.mubr.f32.gmra.mrb[0].mxu0 %v1005
      %v4173 = vpop.f32.mrb[0].mxu0
      %v4174 = vadd.f32 %v3561, %v4173
      %v4175 = vpop.f32.mrb[0].mxu0
      %4176 = vmatprep.mubr.f32.mxu0 %v1008
      %4177 = vmatmul.mubr.f32.gmra.mrb[0].mxu0 %v1007
      %v4178 = vpop.f32.mrb[0].mxu0
      %v4179 = vadd.f32 %v3570, %v4178
      %v4180 = vpop.f32.mrb[0].mxu0
      %4181 = vmatprep.mubr.f32.mxu0 %v1010
      %4182 = vmatmul.mubr.f32.gmra.mrb[0].mxu0 %v1009
      %v4183 = vpop.f32.mrb[0].mxu0
      %v4184 = vadd.f32 %v3579, %v4183
      %v4185 = vpop.f32.mrb[0].mxu0
      %4186 = vmatprep.mubr.f32.mxu0 %v1012
      %4187 = vmatmul.mubr.f32.gmra.mrb[0].mxu0 %v1011
      %v4188 = vpop.f32.mrb[0].mxu0
      %v4189 = vadd.f32 %v3588, %v4188
      %v4190 = vpop.f32.mrb[0].mxu0
      %4191 = vmatprep.mubr.f32.mxu0 %v1014
      %4192 = vmatmul.mubr.f32.gmra.mrb[0].mxu0 %v1013
      %v4193 = vpop.f32.mrb[0].mxu0
      %v4194 = vadd.f32 %v3597, %v4193
      %v4195 = vpop.f32.mrb[0].mxu0
      %4196 = vmatprep.mubr.f32.mxu0 %v1016
      %4197 = vmatmul.mubr.f32.gmra.mrb[0].mxu0 %v1015
      %v4198 = vpop.f32.mrb[0].mxu0
      %v4199 = vadd.f32 %v3606, %v4198
      %v4200 = vpop.f32.mrb[0].mxu0
      %4201 = vmatprep.mubr.f32.mxu0 %v1018
      %4202 = vmatmul.mubr.f32.gmra.mrb[0].mxu0 %v1017
      %v4203 = vpop.f32.mrb[0].mxu0
      %v4204 = vadd.f32 %v3615, %v4203
      %v4205 = vpop.f32.mrb[0].mxu0
      %4206 = vmatprep.mubr.f32.mxu0 %v1020
      %4207 = vmatmul.mubr.f32.gmra.mrb[0].mxu0 %v1019
      %v4208 = vpop.f32.mrb[0].mxu0
      %v4209 = vadd.f32 %v3624, %v4208
      %v4210 = vpop.f32.mrb[0].mxu0
      %4211 = vmatprep.mubr.f32.mxu0 %v1022
      %4212 = vmatmul.mubr.f32.gmra.mrb[0].mxu0 %v1021
      %v4213 = vpop.f32.mrb[0].mxu0
      %v4214 = vadd.f32 %v3633, %v4213
      %v4215 = vpop.f32.mrb[0].mxu0
      %4216 = vmatprep.mubr.f32.mxu0 %v1024
      %4217 = vmatmul.mubr.f32.gmra.mrb[0].mxu0 %v1023
      %v4218 = vpop.f32.mrb[0].mxu0
      %v4219 = vadd.f32 %v3642, %v4218
      %v4220 = vpop.f32.mrb[0].mxu0
      %4221 = vmatprep.mubr.f32.mxu0 %v1026
      %4222 = vmatmul.mubr.f32.gmra.mrb[0].mxu0 %v1025
      %v4223 = vpop.f32.mrb[0].mxu0
      %v4224 = vadd.f32 %v3651, %v4223
      %v4225 = vpop.f32.mrb[0].mxu0
      %4226 = vmatprep.mubr.f32.mxu0 %v1028
      %4227 = vmatmul.mubr.f32.gmra.mrb[0].mxu0 %v1027
      %v4228 = vpop.f32.mrb[0].mxu0
      %v4229 = vadd.f32 %v3660, %v4228
      %v4230 = vpop.f32.mrb[0].mxu0
      %4231 = vmatprep.mubr.f32.mxu0 %v1030
      %4232 = vmatmul.mubr.f32.gmra.mrb[0].mxu0 %v1029
      %v4233 = vpop.f32.mrb[0].mxu0
      %v4234 = vadd.f32 %v3669, %v4233
      %v4235 = vpop.f32.mrb[0].mxu0
      %4236 = vmatprep.mubr.f32.mxu0 %v1032
      %4237 = vmatmul.mubr.f32.gmra.mrb[0].mxu0 %v1031
      %v4238 = vpop.f32.mrb[0].mxu0
      %v4239 = vadd.f32 %v3678, %v4238
      %v4240 = vpop.f32.mrb[0].mxu0
      %4241 = vmatprep.mubr.f32.mxu0 %v1034
      %4242 = vmatmul.mubr.f32.gmra.mrb[0].mxu0 %v1033
      %v4243 = vpop.f32.mrb[0].mxu0
      %v4244 = vadd.f32 %v3687, %v4243
      %v4245 = vpop.f32.mrb[0].mxu0
      %4246 = vmatprep.mubr.f32.mxu0 %v1036
      %4247 = vmatmul.mubr.f32.gmra.mrb[0].mxu0 %v1035
      %v4248 = vpop.f32.mrb[0].mxu0
      %v4249 = vadd.f32 %v3696, %v4248
      %v4250 = vpop.f32.mrb[0].mxu0
      %4251 = vmatprep.mubr.f32.mxu0 %v1038
      %4252 = vmatmul.mubr.f32.gmra.mrb[0].mxu0 %v1037
      %v4253 = vpop.f32.mrb[0].mxu0
      %v4254 = vadd.f32 %v3705, %v4253
      %v4255 = vpop.f32.mrb[0].mxu0
      %4256 = vmatprep.mubr.f32.mxu0 %v1040
      %4257 = vmatmul.mubr.f32.gmra.mrb[0].mxu0 %v1039
      %v4258 = vpop.f32.mrb[0].mxu0
      %v4259 = vadd.f32 %v3714, %v4258
      %v4260 = vpop.f32.mrb[0].mxu0
      %4261 = vmatprep.mubr.f32.mxu0 %v1042
      %4262 = vmatmul.mubr.f32.gmra.mrb[0].mxu0 %v1041
      %v4263 = vpop.f32.mrb[0].mxu0
      %v4264 = vadd.f32 %v3723, %v4263
      %v4265 = vpop.f32.mrb[0].mxu0
      %4266 = vmatprep.mubr.f32.mxu0 %v1044
      %4267 = vmatmul.mubr.f32.gmra.mrb[0].mxu0 %v1043
      %v4268 = vpop.f32.mrb[0].mxu0
      %v4269 = vadd.f32 %v3732, %v4268
      %v4270 = vpop.f32.mrb[0].mxu0
      %4271 = vmatprep.mubr.f32.mxu0 %v1046
      %4272 = vmatmul.mubr.f32.gmra.mrb[0].mxu0 %v1045
      %v4273 = vpop.f32.mrb[0].mxu0
      %v4274 = vadd.f32 %v3741, %v4273
      %v4275 = vpop.f32.mrb[0].mxu0
      %4276 = vmatprep.mubr.f32.mxu0 %v1048
      %4277 = vmatmul.mubr.f32.gmra.mrb[0].mxu0 %v1047
      %v4278 = vpop.f32.mrb[0].mxu0
      %v4279 = vadd.f32 %v3750, %v4278
      %v4280 = vpop.f32.mrb[0].mxu0
      %4281 = vmatprep.mubr.f32.mxu0 %v1050
      %4282 = vmatmul.mubr.f32.gmra.mrb[0].mxu0 %v1049
      %v4283 = vpop.f32.mrb[0].mxu0
      %v4284 = vadd.f32 %v3759, %v4283
      %v4285 = vpop.f32.mrb[0].mxu0
      %4286 = vmatprep.mubr.f32.mxu0 %v1052
      %4287 = vmatmul.mubr.f32.gmra.mrb[0].mxu0 %v1051
      %v4288 = vpop.f32.mrb[0].mxu0
      %v4289 = vadd.f32 %v3768, %v4288
      %v4290 = vpop.f32.mrb[0].mxu0
      %4291 = vmatprep.mubr.f32.mxu0 %v1054
      %4292 = vmatmul.mubr.f32.gmra.mrb[0].mxu0 %v1053
      %v4293 = vpop.f32.mrb[0].mxu0
      %v4294 = vadd.f32 %v3777, %v4293
      %v4295 = vpop.f32.mrb[0].mxu0
      %4296 = vmatprep.mubr.f32.mxu0 %v1056
      %4297 = vmatmul.mubr.f32.gmra.mrb[0].mxu0 %v1055
      %v4298 = vpop.f32.mrb[0].mxu0
      %v4299 = vadd.f32 %v3786, %v4298
      %v4300 = vpop.f32.mrb[0].mxu0
      %4301 = vmatprep.mubr.f32.mxu0 %v1058
      %4302 = vmatmul.mubr.f32.gmra.mrb[0].mxu0 %v1057
      %v4303 = vpop.f32.mrb[0].mxu0
      %v4304 = vadd.f32 %v3795, %v4303
      %v4305 = vpop.f32.mrb[0].mxu0
      %4306 = vmatprep.mubr.f32.mxu0 %v1060
      %4307 = vmatmul.mubr.f32.gmra.mrb[0].mxu0 %v1059
      %v4308 = vpop.f32.mrb[0].mxu0
      %v4309 = vadd.f32 %v3804, %v4308
      %v4310 = vpop.f32.mrb[0].mxu0
      %4311 = vmatprep.mubr.f32.mxu0 %v1062
      %4312 = vmatmul.mubr.f32.gmra.mrb[0].mxu0 %v1061
      %v4313 = vpop.f32.mrb[0].mxu0
      %v4314 = vadd.f32 %v3813, %v4313
      %v4315 = vpop.f32.mrb[0].mxu0
      %4316 = vmatprep.mubr.f32.mxu0 %v1064
      %4317 = vmatmul.mubr.f32.gmra.mrb[0].mxu0 %v1063
      %v4318 = vpop.f32.mrb[0].mxu0
      %v4319 = vadd.f32 %v3822, %v4318
      %v4320 = vpop.f32.mrb[0].mxu0
      %4321 = vmatprep.mubr.f32.mxu0 %v1066
      %4322 = vmatmul.mubr.f32.gmra.mrb[0].mxu0 %v1065
      %v4323 = vpop.f32.mrb[0].mxu0
      %v4324 = vadd.f32 %v3831, %v4323
      %v4325 = vpop.f32.mrb[0].mxu0
      %4326 = vmatprep.mubr.f32.mxu0 %v1068
      %4327 = vmatmul.mubr.f32.gmra.mrb[0].mxu0 %v1067
      %v4328 = vpop.f32.mrb[0].mxu0
      %v4329 = vadd.f32 %v3840, %v4328
      %v4330 = vpop.f32.mrb[0].mxu0
      %4331 = vmatprep.mubr.f32.mxu0 %v1070
      %4332 = vmatmul.mubr.f32.gmra.mrb[0].mxu0 %v1069
      %v4333 = vpop.f32.mrb[0].mxu0
      %v4334 = vadd.f32 %v3849, %v4333
      %v4335 = vpop.f32.mrb[0].mxu0
      %4336 = vmatprep.mubr.f32.mxu0 %v1072
      %4337 = vmatmul.mubr.f32.gmra.mrb[0].mxu0 %v1071
      %v4338 = vpop.f32.mrb[0].mxu0
      %v4339 = vadd.f32 %v3858, %v4338
      %v4340 = vpop.f32.mrb[0].mxu0
      %4341 = vdwg.mxu0
      %4342 = vmatprep.subr.mxu0 0.0
      %v4343 = vand.u32 %v1105, 4294901760
      %4344 = vmatpush1.msra.mxu0 %v4343
      %4345 = vmatprep.subr.mxu0 0.0
      %v4346 = vand.u32 %v1106, 4294901760
      %4347 = vmatpush1.msra.mxu0 %v4346
      %4348 = vmatprep.subr.mxu0 0.0
      %v4349 = vand.u32 %v1107, 4294901760
      %4350 = vmatpush1.msra.mxu0 %v4349
      %4351 = vmatprep.subr.mxu0 0.0
      %v4352 = vand.u32 %v1108, 4294901760
      %4353 = vmatpush1.msra.mxu0 %v4352
      %4354 = vmatprep.subr.mxu0 0.0
      %v4355 = vand.u32 %v1109, 4294901760
      %4356 = vmatpush1.msra.mxu0 %v4355
      %4357 = vmatprep.subr.mxu0 0.0
      %v4358 = vand.u32 %v1110, 4294901760
      %4359 = vmatpush1.msra.mxu0 %v4358
      %4360 = vmatprep.subr.mxu0 0.0
      %v4361 = vand.u32 %v1111, 4294901760
      %4362 = vmatpush1.msra.mxu0 %v4361
      %4363 = vmatprep.subr.mxu0 0.0
      %v4364 = vand.u32 %v1112, 4294901760
      %4365 = vmatpush1.msra.mxu0 %v4364
      %4366 = vmatprep.subr.mxu0 0.0
      %v4367 = vand.u32 %v1113, 4294901760
      %4368 = vmatpush1.msra.mxu0 %v4367
      %4369 = vmatprep.subr.mxu0 0.0
      %v4370 = vand.u32 %v1114, 4294901760
      %4371 = vmatpush1.msra.mxu0 %v4370
      %4372 = vmatprep.subr.mxu0 0.0
      %v4373 = vand.u32 %v1115, 4294901760
      %4374 = vmatpush1.msra.mxu0 %v4373
      %4375 = vmatprep.subr.mxu0 0.0
      %v4376 = vand.u32 %v1116, 4294901760
      %4377 = vmatpush1.msra.mxu0 %v4376
      %4378 = vmatprep.subr.mxu0 0.0
      %v4379 = vand.u32 %v1117, 4294901760
      %4380 = vmatpush1.msra.mxu0 %v4379
      %4381 = vmatprep.subr.mxu0 0.0
      %v4382 = vand.u32 %v1118, 4294901760
      %4383 = vmatpush1.msra.mxu0 %v4382
      %4384 = vmatprep.subr.mxu0 0.0
      %v4385 = vand.u32 %v1119, 4294901760
      %4386 = vmatpush1.msra.mxu0 %v4385
      %4387 = vmatprep.subr.mxu0 0.0
      %v4388 = vand.u32 %v1120, 4294901760
      %4389 = vmatpush1.msra.mxu0 %v4388
      %4390 = vmatprep.subr.mxu0 0.0
      %v4391 = vand.u32 %v1121, 4294901760
      %4392 = vmatpush1.msra.mxu0 %v4391
      %4393 = vmatprep.subr.mxu0 0.0
      %v4394 = vand.u32 %v1122, 4294901760
      %4395 = vmatpush1.msra.mxu0 %v4394
      %4396 = vmatprep.subr.mxu0 0.0
      %v4397 = vand.u32 %v1123, 4294901760
      %4398 = vmatpush1.msra.mxu0 %v4397
      %4399 = vmatprep.subr.mxu0 0.0
      %v4400 = vand.u32 %v1124, 4294901760
      %4401 = vmatpush1.msra.mxu0 %v4400
      %4402 = vmatprep.subr.mxu0 0.0
      %v4403 = vand.u32 %v1125, 4294901760
      %4404 = vmatpush1.msra.mxu0 %v4403
      %4405 = vmatprep.subr.mxu0 0.0
      %v4406 = vand.u32 %v1126, 4294901760
      %4407 = vmatpush1.msra.mxu0 %v4406
      %4408 = vmatprep.subr.mxu0 0.0
      %v4409 = vand.u32 %v1127, 4294901760
      %4410 = vmatpush1.msra.mxu0 %v4409
      %4411 = vmatprep.subr.mxu0 0.0
      %v4412 = vand.u32 %v1128, 4294901760
      %4413 = vmatpush1.msra.mxu0 %v4412
      %4414 = vmatprep.subr.mxu0 0.0
      %v4415 = vand.u32 %v1129, 4294901760
      %4416 = vmatpush1.msra.mxu0 %v4415
      %4417 = vmatprep.subr.mxu0 0.0
      %v4418 = vand.u32 %v1130, 4294901760
      %4419 = vmatpush1.msra.mxu0 %v4418
      %4420 = vmatprep.subr.mxu0 0.0
      %v4421 = vand.u32 %v1131, 4294901760
      %4422 = vmatpush1.msra.mxu0 %v4421
      %4423 = vmatprep.subr.mxu0 0.0
      %v4424 = vand.u32 %v1132, 4294901760
      %4425 = vmatpush1.msra.mxu0 %v4424
      %4426 = vmatprep.subr.mxu0 0.0
      %v4427 = vand.u32 %v1133, 4294901760
      %4428 = vmatpush1.msra.mxu0 %v4427
      %4429 = vmatprep.subr.mxu0 0.0
      %v4430 = vand.u32 %v1134, 4294901760
      %4431 = vmatpush1.msra.mxu0 %v4430
      %4432 = vmatprep.subr.mxu0 0.0
      %v4433 = vand.u32 %v1135, 4294901760
      %4434 = vmatpush1.msra.mxu0 %v4433
      %4435 = vmatprep.subr.mxu0 0.0
      %v4436 = vand.u32 %v1136, 4294901760
      %4437 = vmatpush1.msra.mxu0 %v4436
      %4438 = vmatprep.mubr.f32.mxu0 %v946
      %4439 = vmatmul.mubr.f32.gmra.mrb[0].mxu0 %v945
      %v4440 = vpop.f32.mrb[0].mxu0
      %v4441 = vadd.f32 %v4024, %v4440
      %v4442 = vpop.f32.mrb[0].mxu0
      %4443 = vmatprep.mubr.f32.mxu0 %v948
      %4444 = vmatmul.mubr.f32.gmra.mrb[0].mxu0 %v947
      %v4445 = vpop.f32.mrb[0].mxu0
      %v4446 = vadd.f32 %v4029, %v4445
      %v4447 = vpop.f32.mrb[0].mxu0
      %4448 = vmatprep.mubr.f32.mxu0 %v950
      %4449 = vmatmul.mubr.f32.gmra.mrb[0].mxu0 %v949
      %v4450 = vpop.f32.mrb[0].mxu0
      %v4451 = vadd.f32 %v4034, %v4450
      %v4452 = vpop.f32.mrb[0].mxu0
      %4453 = vmatprep.mubr.f32.mxu0 %v952
      %4454 = vmatmul.mubr.f32.gmra.mrb[0].mxu0 %v951
      %v4455 = vpop.f32.mrb[0].mxu0
      %v4456 = vadd.f32 %v4039, %v4455
      %v4457 = vpop.f32.mrb[0].mxu0
      %4458 = vmatprep.mubr.f32.mxu0 %v954
      %4459 = vmatmul.mubr.f32.gmra.mrb[0].mxu0 %v953
      %v4460 = vpop.f32.mrb[0].mxu0
      %v4461 = vadd.f32 %v4044, %v4460
      %v4462 = vpop.f32.mrb[0].mxu0
      %4463 = vmatprep.mubr.f32.mxu0 %v956
      %4464 = vmatmul.mubr.f32.gmra.mrb[0].mxu0 %v955
      %v4465 = vpop.f32.mrb[0].mxu0
      %v4466 = vadd.f32 %v4049, %v4465
      %v4467 = vpop.f32.mrb[0].mxu0
      %4468 = vmatprep.mubr.f32.mxu0 %v958
      %4469 = vmatmul.mubr.f32.gmra.mrb[0].mxu0 %v957
      %v4470 = vpop.f32.mrb[0].mxu0
      %v4471 = vadd.f32 %v4054, %v4470
      %v4472 = vpop.f32.mrb[0].mxu0
      %4473 = vmatprep.mubr.f32.mxu0 %v960
      %4474 = vmatmul.mubr.f32.gmra.mrb[0].mxu0 %v959
      %v4475 = vpop.f32.mrb[0].mxu0
      %v4476 = vadd.f32 %v4059, %v4475
      %v4477 = vpop.f32.mrb[0].mxu0
      %4478 = vmatprep.mubr.f32.mxu0 %v962
      %4479 = vmatmul.mubr.f32.gmra.mrb[0].mxu0 %v961
      %v4480 = vpop.f32.mrb[0].mxu0
      %v4481 = vadd.f32 %v4064, %v4480
      %v4482 = vpop.f32.mrb[0].mxu0
      %4483 = vmatprep.mubr.f32.mxu0 %v964
      %4484 = vmatmul.mubr.f32.gmra.mrb[0].mxu0 %v963
      %v4485 = vpop.f32.mrb[0].mxu0
      %v4486 = vadd.f32 %v4069, %v4485
      %v4487 = vpop.f32.mrb[0].mxu0
      %4488 = vmatprep.mubr.f32.mxu0 %v966
      %4489 = vmatmul.mubr.f32.gmra.mrb[0].mxu0 %v965
      %v4490 = vpop.f32.mrb[0].mxu0
      %v4491 = vadd.f32 %v4074, %v4490
      %v4492 = vpop.f32.mrb[0].mxu0
      %4493 = vmatprep.mubr.f32.mxu0 %v968
      %4494 = vmatmul.mubr.f32.gmra.mrb[0].mxu0 %v967
      %v4495 = vpop.f32.mrb[0].mxu0
      %v4496 = vadd.f32 %v4079, %v4495
      %v4497 = vpop.f32.mrb[0].mxu0
      %4498 = vmatprep.mubr.f32.mxu0 %v970
      %4499 = vmatmul.mubr.f32.gmra.mrb[0].mxu0 %v969
      %v4500 = vpop.f32.mrb[0].mxu0
      %v4501 = vadd.f32 %v4084, %v4500
      %v4502 = vpop.f32.mrb[0].mxu0
      %4503 = vmatprep.mubr.f32.mxu0 %v972
      %4504 = vmatmul.mubr.f32.gmra.mrb[0].mxu0 %v971
      %v4505 = vpop.f32.mrb[0].mxu0
      %v4506 = vadd.f32 %v4089, %v4505
      %v4507 = vpop.f32.mrb[0].mxu0
      %4508 = vmatprep.mubr.f32.mxu0 %v974
      %4509 = vmatmul.mubr.f32.gmra.mrb[0].mxu0 %v973
      %v4510 = vpop.f32.mrb[0].mxu0
      %v4511 = vadd.f32 %v4094, %v4510
      %v4512 = vpop.f32.mrb[0].mxu0
      %4513 = vmatprep.mubr.f32.mxu0 %v976
      %4514 = vmatmul.mubr.f32.gmra.mrb[0].mxu0 %v975
      %v4515 = vpop.f32.mrb[0].mxu0
      %v4516 = vadd.f32 %v4099, %v4515
      %v4517 = vpop.f32.mrb[0].mxu0
      %4518 = vmatprep.mubr.f32.mxu0 %v978
      %4519 = vmatmul.mubr.f32.gmra.mrb[0].mxu0 %v977
      %v4520 = vpop.f32.mrb[0].mxu0
      %v4521 = vadd.f32 %v4104, %v4520
      %v4522 = vpop.f32.mrb[0].mxu0
      %4523 = vmatprep.mubr.f32.mxu0 %v980
      %4524 = vmatmul.mubr.f32.gmra.mrb[0].mxu0 %v979
      %v4525 = vpop.f32.mrb[0].mxu0
      %v4526 = vadd.f32 %v4109, %v4525
      %v4527 = vpop.f32.mrb[0].mxu0
      %4528 = vmatprep.mubr.f32.mxu0 %v982
      %4529 = vmatmul.mubr.f32.gmra.mrb[0].mxu0 %v981
      %v4530 = vpop.f32.mrb[0].mxu0
      %v4531 = vadd.f32 %v4114, %v4530
      %v4532 = vpop.f32.mrb[0].mxu0
      %4533 = vmatprep.mubr.f32.mxu0 %v984
      %4534 = vmatmul.mubr.f32.gmra.mrb[0].mxu0 %v983
      %v4535 = vpop.f32.mrb[0].mxu0
      %v4536 = vadd.f32 %v4119, %v4535
      %v4537 = vpop.f32.mrb[0].mxu0
      %4538 = vmatprep.mubr.f32.mxu0 %v986
      %4539 = vmatmul.mubr.f32.gmra.mrb[0].mxu0 %v985
      %v4540 = vpop.f32.mrb[0].mxu0
      %v4541 = vadd.f32 %v4124, %v4540
      %v4542 = vpop.f32.mrb[0].mxu0
      %4543 = vmatprep.mubr.f32.mxu0 %v988
      %4544 = vmatmul.mubr.f32.gmra.mrb[0].mxu0 %v987
      %v4545 = vpop.f32.mrb[0].mxu0
      %v4546 = vadd.f32 %v4129, %v4545
      %v4547 = vpop.f32.mrb[0].mxu0
      %4548 = vmatprep.mubr.f32.mxu0 %v990
      %4549 = vmatmul.mubr.f32.gmra.mrb[0].mxu0 %v989
      %v4550 = vpop.f32.mrb[0].mxu0
      %v4551 = vadd.f32 %v4134, %v4550
      %v4552 = vpop.f32.mrb[0].mxu0
      %4553 = vmatprep.mubr.f32.mxu0 %v992
      %4554 = vmatmul.mubr.f32.gmra.mrb[0].mxu0 %v991
      %v4555 = vpop.f32.mrb[0].mxu0
      %v4556 = vadd.f32 %v4139, %v4555
      %v4557 = vpop.f32.mrb[0].mxu0
      %4558 = vmatprep.mubr.f32.mxu0 %v994
      %4559 = vmatmul.mubr.f32.gmra.mrb[0].mxu0 %v993
      %v4560 = vpop.f32.mrb[0].mxu0
      %v4561 = vadd.f32 %v4144, %v4560
      %v4562 = vpop.f32.mrb[0].mxu0
      %4563 = vmatprep.mubr.f32.mxu0 %v996
      %4564 = vmatmul.mubr.f32.gmra.mrb[0].mxu0 %v995
      %v4565 = vpop.f32.mrb[0].mxu0
      %v4566 = vadd.f32 %v4149, %v4565
      %v4567 = vpop.f32.mrb[0].mxu0
      %4568 = vmatprep.mubr.f32.mxu0 %v998
      %4569 = vmatmul.mubr.f32.gmra.mrb[0].mxu0 %v997
      %v4570 = vpop.f32.mrb[0].mxu0
      %v4571 = vadd.f32 %v4154, %v4570
      %v4572 = vpop.f32.mrb[0].mxu0
      %4573 = vmatprep.mubr.f32.mxu0 %v1000
      %4574 = vmatmul.mubr.f32.gmra.mrb[0].mxu0 %v999
      %v4575 = vpop.f32.mrb[0].mxu0
      %v4576 = vadd.f32 %v4159, %v4575
      %v4577 = vpop.f32.mrb[0].mxu0
      %4578 = vmatprep.mubr.f32.mxu0 %v1002
      %4579 = vmatmul.mubr.f32.gmra.mrb[0].mxu0 %v1001
      %v4580 = vpop.f32.mrb[0].mxu0
      %v4581 = vadd.f32 %v4164, %v4580
      %v4582 = vpop.f32.mrb[0].mxu0
      %4583 = vmatprep.mubr.f32.mxu0 %v1004
      %4584 = vmatmul.mubr.f32.gmra.mrb[0].mxu0 %v1003
      %v4585 = vpop.f32.mrb[0].mxu0
      %v4586 = vadd.f32 %v4169, %v4585
      %v4587 = vpop.f32.mrb[0].mxu0
      %4588 = vmatprep.mubr.f32.mxu0 %v1006
      %4589 = vmatmul.mubr.f32.gmra.mrb[0].mxu0 %v1005
      %v4590 = vpop.f32.mrb[0].mxu0
      %v4591 = vadd.f32 %v4174, %v4590
      %v4592 = vpop.f32.mrb[0].mxu0
      %4593 = vmatprep.mubr.f32.mxu0 %v1008
      %4594 = vmatmul.mubr.f32.gmra.mrb[0].mxu0 %v1007
      %v4595 = vpop.f32.mrb[0].mxu0
      %v4596 = vadd.f32 %v4179, %v4595
      %v4597 = vpop.f32.mrb[0].mxu0
      %4598 = vmatprep.mubr.f32.mxu0 %v1010
      %4599 = vmatmul.mubr.f32.gmra.mrb[0].mxu0 %v1009
      %v4600 = vpop.f32.mrb[0].mxu0
      %v4601 = vadd.f32 %v4184, %v4600
      %v4602 = vpop.f32.mrb[0].mxu0
      %4603 = vmatprep.mubr.f32.mxu0 %v1012
      %4604 = vmatmul.mubr.f32.gmra.mrb[0].mxu0 %v1011
      %v4605 = vpop.f32.mrb[0].mxu0
      %v4606 = vadd.f32 %v4189, %v4605
      %v4607 = vpop.f32.mrb[0].mxu0
      %4608 = vmatprep.mubr.f32.mxu0 %v1014
      %4609 = vmatmul.mubr.f32.gmra.mrb[0].mxu0 %v1013
      %v4610 = vpop.f32.mrb[0].mxu0
      %v4611 = vadd.f32 %v4194, %v4610
      %v4612 = vpop.f32.mrb[0].mxu0
      %4613 = vmatprep.mubr.f32.mxu0 %v1016
      %4614 = vmatmul.mubr.f32.gmra.mrb[0].mxu0 %v1015
      %v4615 = vpop.f32.mrb[0].mxu0
      %v4616 = vadd.f32 %v4199, %v4615
      %v4617 = vpop.f32.mrb[0].mxu0
      %4618 = vmatprep.mubr.f32.mxu0 %v1018
      %4619 = vmatmul.mubr.f32.gmra.mrb[0].mxu0 %v1017
      %v4620 = vpop.f32.mrb[0].mxu0
      %v4621 = vadd.f32 %v4204, %v4620
      %v4622 = vpop.f32.mrb[0].mxu0
      %4623 = vmatprep.mubr.f32.mxu0 %v1020
      %4624 = vmatmul.mubr.f32.gmra.mrb[0].mxu0 %v1019
      %v4625 = vpop.f32.mrb[0].mxu0
      %v4626 = vadd.f32 %v4209, %v4625
      %v4627 = vpop.f32.mrb[0].mxu0
      %4628 = vmatprep.mubr.f32.mxu0 %v1022
      %4629 = vmatmul.mubr.f32.gmra.mrb[0].mxu0 %v1021
      %v4630 = vpop.f32.mrb[0].mxu0
      %v4631 = vadd.f32 %v4214, %v4630
      %v4632 = vpop.f32.mrb[0].mxu0
      %4633 = vmatprep.mubr.f32.mxu0 %v1024
      %4634 = vmatmul.mubr.f32.gmra.mrb[0].mxu0 %v1023
      %v4635 = vpop.f32.mrb[0].mxu0
      %v4636 = vadd.f32 %v4219, %v4635
      %v4637 = vpop.f32.mrb[0].mxu0
      %4638 = vmatprep.mubr.f32.mxu0 %v1026
      %4639 = vmatmul.mubr.f32.gmra.mrb[0].mxu0 %v1025
      %v4640 = vpop.f32.mrb[0].mxu0
      %v4641 = vadd.f32 %v4224, %v4640
      %v4642 = vpop.f32.mrb[0].mxu0
      %4643 = vmatprep.mubr.f32.mxu0 %v1028
      %4644 = vmatmul.mubr.f32.gmra.mrb[0].mxu0 %v1027
      %v4645 = vpop.f32.mrb[0].mxu0
      %v4646 = vadd.f32 %v4229, %v4645
      %v4647 = vpop.f32.mrb[0].mxu0
      %4648 = vmatprep.mubr.f32.mxu0 %v1030
      %4649 = vmatmul.mubr.f32.gmra.mrb[0].mxu0 %v1029
      %v4650 = vpop.f32.mrb[0].mxu0
      %v4651 = vadd.f32 %v4234, %v4650
      %v4652 = vpop.f32.mrb[0].mxu0
      %4653 = vmatprep.mubr.f32.mxu0 %v1032
      %4654 = vmatmul.mubr.f32.gmra.mrb[0].mxu0 %v1031
      %v4655 = vpop.f32.mrb[0].mxu0
      %v4656 = vadd.f32 %v4239, %v4655
      %v4657 = vpop.f32.mrb[0].mxu0
      %4658 = vmatprep.mubr.f32.mxu0 %v1034
      %4659 = vmatmul.mubr.f32.gmra.mrb[0].mxu0 %v1033
      %v4660 = vpop.f32.mrb[0].mxu0
      %v4661 = vadd.f32 %v4244, %v4660
      %v4662 = vpop.f32.mrb[0].mxu0
      %4663 = vmatprep.mubr.f32.mxu0 %v1036
      %4664 = vmatmul.mubr.f32.gmra.mrb[0].mxu0 %v1035
      %v4665 = vpop.f32.mrb[0].mxu0
      %v4666 = vadd.f32 %v4249, %v4665
      %v4667 = vpop.f32.mrb[0].mxu0
      %4668 = vmatprep.mubr.f32.mxu0 %v1038
      %4669 = vmatmul.mubr.f32.gmra.mrb[0].mxu0 %v1037
      %v4670 = vpop.f32.mrb[0].mxu0
      %v4671 = vadd.f32 %v4254, %v4670
      %v4672 = vpop.f32.mrb[0].mxu0
      %4673 = vmatprep.mubr.f32.mxu0 %v1040
      %4674 = vmatmul.mubr.f32.gmra.mrb[0].mxu0 %v1039
      %v4675 = vpop.f32.mrb[0].mxu0
      %v4676 = vadd.f32 %v4259, %v4675
      %v4677 = vpop.f32.mrb[0].mxu0
      %4678 = vmatprep.mubr.f32.mxu0 %v1042
      %4679 = vmatmul.mubr.f32.gmra.mrb[0].mxu0 %v1041
      %v4680 = vpop.f32.mrb[0].mxu0
      %v4681 = vadd.f32 %v4264, %v4680
      %v4682 = vpop.f32.mrb[0].mxu0
      %4683 = vmatprep.mubr.f32.mxu0 %v1044
      %4684 = vmatmul.mubr.f32.gmra.mrb[0].mxu0 %v1043
      %v4685 = vpop.f32.mrb[0].mxu0
      %v4686 = vadd.f32 %v4269, %v4685
      %v4687 = vpop.f32.mrb[0].mxu0
      %4688 = vmatprep.mubr.f32.mxu0 %v1046
      %4689 = vmatmul.mubr.f32.gmra.mrb[0].mxu0 %v1045
      %v4690 = vpop.f32.mrb[0].mxu0
      %v4691 = vadd.f32 %v4274, %v4690
      %v4692 = vpop.f32.mrb[0].mxu0
      %4693 = vmatprep.mubr.f32.mxu0 %v1048
      %4694 = vmatmul.mubr.f32.gmra.mrb[0].mxu0 %v1047
      %v4695 = vpop.f32.mrb[0].mxu0
      %v4696 = vadd.f32 %v4279, %v4695
      %v4697 = vpop.f32.mrb[0].mxu0
      %4698 = vmatprep.mubr.f32.mxu0 %v1050
      %4699 = vmatmul.mubr.f32.gmra.mrb[0].mxu0 %v1049
      %v4700 = vpop.f32.mrb[0].mxu0
      %v4701 = vadd.f32 %v4284, %v4700
      %v4702 = vpop.f32.mrb[0].mxu0
      %4703 = vmatprep.mubr.f32.mxu0 %v1052
      %4704 = vmatmul.mubr.f32.gmra.mrb[0].mxu0 %v1051
      %v4705 = vpop.f32.mrb[0].mxu0
      %v4706 = vadd.f32 %v4289, %v4705
      %v4707 = vpop.f32.mrb[0].mxu0
      %4708 = vmatprep.mubr.f32.mxu0 %v1054
      %4709 = vmatmul.mubr.f32.gmra.mrb[0].mxu0 %v1053
      %v4710 = vpop.f32.mrb[0].mxu0
      %v4711 = vadd.f32 %v4294, %v4710
      %v4712 = vpop.f32.mrb[0].mxu0
      %4713 = vmatprep.mubr.f32.mxu0 %v1056
      %4714 = vmatmul.mubr.f32.gmra.mrb[0].mxu0 %v1055
      %v4715 = vpop.f32.mrb[0].mxu0
      %v4716 = vadd.f32 %v4299, %v4715
      %v4717 = vpop.f32.mrb[0].mxu0
      %4718 = vmatprep.mubr.f32.mxu0 %v1058
      %4719 = vmatmul.mubr.f32.gmra.mrb[0].mxu0 %v1057
      %v4720 = vpop.f32.mrb[0].mxu0
      %v4721 = vadd.f32 %v4304, %v4720
      %v4722 = vpop.f32.mrb[0].mxu0
      %4723 = vmatprep.mubr.f32.mxu0 %v1060
      %4724 = vmatmul.mubr.f32.gmra.mrb[0].mxu0 %v1059
      %v4725 = vpop.f32.mrb[0].mxu0
      %v4726 = vadd.f32 %v4309, %v4725
      %v4727 = vpop.f32.mrb[0].mxu0
      %4728 = vmatprep.mubr.f32.mxu0 %v1062
      %4729 = vmatmul.mubr.f32.gmra.mrb[0].mxu0 %v1061
      %v4730 = vpop.f32.mrb[0].mxu0
      %v4731 = vadd.f32 %v4314, %v4730
      %v4732 = vpop.f32.mrb[0].mxu0
      %4733 = vmatprep.mubr.f32.mxu0 %v1064
      %4734 = vmatmul.mubr.f32.gmra.mrb[0].mxu0 %v1063
      %v4735 = vpop.f32.mrb[0].mxu0
      %v4736 = vadd.f32 %v4319, %v4735
      %v4737 = vpop.f32.mrb[0].mxu0
      %4738 = vmatprep.mubr.f32.mxu0 %v1066
      %4739 = vmatmul.mubr.f32.gmra.mrb[0].mxu0 %v1065
      %v4740 = vpop.f32.mrb[0].mxu0
      %v4741 = vadd.f32 %v4324, %v4740
      %v4742 = vpop.f32.mrb[0].mxu0
      %4743 = vmatprep.mubr.f32.mxu0 %v1068
      %4744 = vmatmul.mubr.f32.gmra.mrb[0].mxu0 %v1067
      %v4745 = vpop.f32.mrb[0].mxu0
      %v4746 = vadd.f32 %v4329, %v4745
      %v4747 = vpop.f32.mrb[0].mxu0
      %4748 = vmatprep.mubr.f32.mxu0 %v1070
      %4749 = vmatmul.mubr.f32.gmra.mrb[0].mxu0 %v1069
      %v4750 = vpop.f32.mrb[0].mxu0
      %v4751 = vadd.f32 %v4334, %v4750
      %v4752 = vpop.f32.mrb[0].mxu0
      %4753 = vmatprep.mubr.f32.mxu0 %v1072
      %4754 = vmatmul.mubr.f32.gmra.mrb[0].mxu0 %v1071
      %v4755 = vpop.f32.mrb[0].mxu0
      %v4756 = vadd.f32 %v4339, %v4755
      %v4757 = vpop.f32.mrb[0].mxu0
      %4758 = vdwg.mxu0
      %4760 = vset.pattern.permute.xlu0 0
      %4761 = vperm.xlu0 %4760, %v494
      %v4762 = vpop.permute.xlu0 %4761
      %4765 = vset.pattern.permute.xlu0 0
      %4766 = vperm.xlu0 %4765, %v495
      %v4767 = vpop.permute.xlu0 %4766
      %4770 = vset.pattern.permute.xlu0 0
      %4771 = vperm.xlu0 %4770, %v496
      %v4772 = vpop.permute.xlu0 %4771
      %4775 = vset.pattern.permute.xlu0 0
      %4776 = vperm.xlu0 %4775, %v497
      %v4777 = vpop.permute.xlu0 %4776
      %4780 = vset.pattern.permute.xlu0 0
      %4781 = vperm.xlu0 %4780, %v498
      %v4782 = vpop.permute.xlu0 %4781
      %4785 = vset.pattern.permute.xlu0 0
      %4786 = vperm.xlu0 %4785, %v499
      %v4787 = vpop.permute.xlu0 %4786
      %4790 = vset.pattern.permute.xlu0 0
      %4791 = vperm.xlu0 %4790, %v500
      %v4792 = vpop.permute.xlu0 %4791
      %4795 = vset.pattern.permute.xlu0 0
      %4796 = vperm.xlu0 %4795, %v501
      %v4797 = vpop.permute.xlu0 %4796
      %4800 = vset.pattern.permute.xlu0 0
      %4801 = vperm.xlu0 %4800, %v502
      %v4802 = vpop.permute.xlu0 %4801
      %4805 = vset.pattern.permute.xlu0 0
      %4806 = vperm.xlu0 %4805, %v503
      %v4807 = vpop.permute.xlu0 %4806
      %4810 = vset.pattern.permute.xlu0 0
      %4811 = vperm.xlu0 %4810, %v504
      %v4812 = vpop.permute.xlu0 %4811
      %4815 = vset.pattern.permute.xlu0 0
      %4816 = vperm.xlu0 %4815, %v505
      %v4817 = vpop.permute.xlu0 %4816
      %4820 = vset.pattern.permute.xlu0 0
      %4821 = vperm.xlu0 %4820, %v506
      %v4822 = vpop.permute.xlu0 %4821
      %4825 = vset.pattern.permute.xlu0 0
      %4826 = vperm.xlu0 %4825, %v507
      %v4827 = vpop.permute.xlu0 %4826
      %4830 = vset.pattern.permute.xlu0 0
      %4831 = vperm.xlu0 %4830, %v508
      %v4832 = vpop.permute.xlu0 %4831
      %4835 = vset.pattern.permute.xlu0 0
      %4836 = vperm.xlu0 %4835, %v509
      %v4837 = vpop.permute.xlu0 %4836
      %4840 = vset.pattern.permute.xlu0 0
      %4841 = vperm.xlu0 %4840, %v510
      %v4842 = vpop.permute.xlu0 %4841
      %4845 = vset.pattern.permute.xlu0 0
      %4846 = vperm.xlu0 %4845, %v511
      %v4847 = vpop.permute.xlu0 %4846
      %4850 = vset.pattern.permute.xlu0 0
      %4851 = vperm.xlu0 %4850, %v512
      %v4852 = vpop.permute.xlu0 %4851
      %4855 = vset.pattern.permute.xlu0 0
      %4856 = vperm.xlu0 %4855, %v513
      %v4857 = vpop.permute.xlu0 %4856
      %4860 = vset.pattern.permute.xlu0 0
      %4861 = vperm.xlu0 %4860, %v514
      %v4862 = vpop.permute.xlu0 %4861
      %4865 = vset.pattern.permute.xlu0 0
      %4866 = vperm.xlu0 %4865, %v515
      %v4867 = vpop.permute.xlu0 %4866
      %4870 = vset.pattern.permute.xlu0 0
      %4871 = vperm.xlu0 %4870, %v516
      %v4872 = vpop.permute.xlu0 %4871
      %4875 = vset.pattern.permute.xlu0 0
      %4876 = vperm.xlu0 %4875, %v517
      %v4877 = vpop.permute.xlu0 %4876
      %4880 = vset.pattern.permute.xlu0 0
      %4881 = vperm.xlu0 %4880, %v518
      %v4882 = vpop.permute.xlu0 %4881
      %4885 = vset.pattern.permute.xlu0 0
      %4886 = vperm.xlu0 %4885, %v519
      %v4887 = vpop.permute.xlu0 %4886
      %4890 = vset.pattern.permute.xlu0 0
      %4891 = vperm.xlu0 %4890, %v520
      %v4892 = vpop.permute.xlu0 %4891
      %4895 = vset.pattern.permute.xlu0 0
      %4896 = vperm.xlu0 %4895, %v521
      %v4897 = vpop.permute.xlu0 %4896
      %4900 = vset.pattern.permute.xlu0 0
      %4901 = vperm.xlu0 %4900, %v522
      %v4902 = vpop.permute.xlu0 %4901
      %4905 = vset.pattern.permute.xlu0 0
      %4906 = vperm.xlu0 %4905, %v523
      %v4907 = vpop.permute.xlu0 %4906
      %4910 = vset.pattern.permute.xlu0 0
      %4911 = vperm.xlu0 %4910, %v524
      %v4912 = vpop.permute.xlu0 %4911
      %4915 = vset.pattern.permute.xlu0 0
      %4916 = vperm.xlu0 %4915, %v525
      %v4917 = vpop.permute.xlu0 %4916
      %4920 = vset.pattern.permute.xlu0 0
      %4921 = vperm.xlu0 %4920, %v526
      %v4922 = vpop.permute.xlu0 %4921
      %4925 = vset.pattern.permute.xlu0 0
      %4926 = vperm.xlu0 %4925, %v527
      %v4927 = vpop.permute.xlu0 %4926
      %4930 = vset.pattern.permute.xlu0 0
      %4931 = vperm.xlu0 %4930, %v528
      %v4932 = vpop.permute.xlu0 %4931
      %4935 = vset.pattern.permute.xlu0 0
      %4936 = vperm.xlu0 %4935, %v529
      %v4937 = vpop.permute.xlu0 %4936
      %4940 = vset.pattern.permute.xlu0 0
      %4941 = vperm.xlu0 %4940, %v530
      %v4942 = vpop.permute.xlu0 %4941
      %4945 = vset.pattern.permute.xlu0 0
      %4946 = vperm.xlu0 %4945, %v531
      %v4947 = vpop.permute.xlu0 %4946
      %4950 = vset.pattern.permute.xlu0 0
      %4951 = vperm.xlu0 %4950, %v532
      %v4952 = vpop.permute.xlu0 %4951
      %4955 = vset.pattern.permute.xlu0 0
      %4956 = vperm.xlu0 %4955, %v533
      %v4957 = vpop.permute.xlu0 %4956
      %4960 = vset.pattern.permute.xlu0 0
      %4961 = vperm.xlu0 %4960, %v534
      %v4962 = vpop.permute.xlu0 %4961
      %4965 = vset.pattern.permute.xlu0 0
      %4966 = vperm.xlu0 %4965, %v535
      %v4967 = vpop.permute.xlu0 %4966
      %4970 = vset.pattern.permute.xlu0 0
      %4971 = vperm.xlu0 %4970, %v536
      %v4972 = vpop.permute.xlu0 %4971
      %4975 = vset.pattern.permute.xlu0 0
      %4976 = vperm.xlu0 %4975, %v537
      %v4977 = vpop.permute.xlu0 %4976
      %4980 = vset.pattern.permute.xlu0 0
      %4981 = vperm.xlu0 %4980, %v538
      %v4982 = vpop.permute.xlu0 %4981
      %4985 = vset.pattern.permute.xlu0 0
      %4986 = vperm.xlu0 %4985, %v539
      %v4987 = vpop.permute.xlu0 %4986
      %4990 = vset.pattern.permute.xlu0 0
      %4991 = vperm.xlu0 %4990, %v540
      %v4992 = vpop.permute.xlu0 %4991
      %4995 = vset.pattern.permute.xlu0 0
      %4996 = vperm.xlu0 %4995, %v541
      %v4997 = vpop.permute.xlu0 %4996
      %5000 = vset.pattern.permute.xlu0 0
      %5001 = vperm.xlu0 %5000, %v542
      %v5002 = vpop.permute.xlu0 %5001
      %5005 = vset.pattern.permute.xlu0 0
      %5006 = vperm.xlu0 %5005, %v543
      %v5007 = vpop.permute.xlu0 %5006
      %5010 = vset.pattern.permute.xlu0 0
      %5011 = vperm.xlu0 %5010, %v544
      %v5012 = vpop.permute.xlu0 %5011
      %5015 = vset.pattern.permute.xlu0 0
      %5016 = vperm.xlu0 %5015, %v545
      %v5017 = vpop.permute.xlu0 %5016
      %5020 = vset.pattern.permute.xlu0 0
      %5021 = vperm.xlu0 %5020, %v546
      %v5022 = vpop.permute.xlu0 %5021
      %5025 = vset.pattern.permute.xlu0 0
      %5026 = vperm.xlu0 %5025, %v547
      %v5027 = vpop.permute.xlu0 %5026
      %5030 = vset.pattern.permute.xlu0 0
      %5031 = vperm.xlu0 %5030, %v548
      %v5032 = vpop.permute.xlu0 %5031
      %5035 = vset.pattern.permute.xlu0 0
      %5036 = vperm.xlu0 %5035, %v549
      %v5037 = vpop.permute.xlu0 %5036
      %5040 = vset.pattern.permute.xlu0 0
      %5041 = vperm.xlu0 %5040, %v550
      %v5042 = vpop.permute.xlu0 %5041
      %5045 = vset.pattern.permute.xlu0 0
      %5046 = vperm.xlu0 %5045, %v551
      %v5047 = vpop.permute.xlu0 %5046
      %5050 = vset.pattern.permute.xlu0 0
      %5051 = vperm.xlu0 %5050, %v552
      %v5052 = vpop.permute.xlu0 %5051
      %5055 = vset.pattern.permute.xlu0 0
      %5056 = vperm.xlu0 %5055, %v553
      %v5057 = vpop.permute.xlu0 %5056
      %5060 = vset.pattern.permute.xlu0 0
      %5061 = vperm.xlu0 %5060, %v554
      %v5062 = vpop.permute.xlu0 %5061
      %5065 = vset.pattern.permute.xlu0 0
      %5066 = vperm.xlu0 %5065, %v555
      %v5067 = vpop.permute.xlu0 %5066
      %5070 = vset.pattern.permute.xlu0 0
      %5071 = vperm.xlu0 %5070, %v556
      %v5072 = vpop.permute.xlu0 %5071
      %5075 = vset.pattern.permute.xlu0 0
      %5076 = vperm.xlu0 %5075, %v557
      %v5077 = vpop.permute.xlu0 %5076
      %v5079 = vmul.f32 %v4762, %v4441
      %v5080 = vmul.f32 %v4767, %v4446
      %v5081 = vmul.f32 %v4772, %v4451
      %v5082 = vmul.f32 %v4777, %v4456
      %v5083 = vmul.f32 %v4782, %v4461
      %v5084 = vmul.f32 %v4787, %v4466
      %v5085 = vmul.f32 %v4792, %v4471
      %v5086 = vmul.f32 %v4797, %v4476
      %v5087 = vmul.f32 %v4802, %v4481
      %v5088 = vmul.f32 %v4807, %v4486
      %v5089 = vmul.f32 %v4812, %v4491
      %v5090 = vmul.f32 %v4817, %v4496
      %v5091 = vmul.f32 %v4822, %v4501
      %v5092 = vmul.f32 %v4827, %v4506
      %v5093 = vmul.f32 %v4832, %v4511
      %v5094 = vmul.f32 %v4837, %v4516
      %v5095 = vmul.f32 %v4842, %v4521
      %v5096 = vmul.f32 %v4847, %v4526
      %v5097 = vmul.f32 %v4852, %v4531
      %v5098 = vmul.f32 %v4857, %v4536
      %v5099 = vmul.f32 %v4862, %v4541
      %v5100 = vmul.f32 %v4867, %v4546
      %v5101 = vmul.f32 %v4872, %v4551
      %v5102 = vmul.f32 %v4877, %v4556
      %v5103 = vmul.f32 %v4882, %v4561
      %v5104 = vmul.f32 %v4887, %v4566
      %v5105 = vmul.f32 %v4892, %v4571
      %v5106 = vmul.f32 %v4897, %v4576
      %v5107 = vmul.f32 %v4902, %v4581
      %v5108 = vmul.f32 %v4907, %v4586
      %v5109 = vmul.f32 %v4912, %v4591
      %v5110 = vmul.f32 %v4917, %v4596
      %v5111 = vmul.f32 %v4922, %v4601
      %v5112 = vmul.f32 %v4927, %v4606
      %v5113 = vmul.f32 %v4932, %v4611
      %v5114 = vmul.f32 %v4937, %v4616
      %v5115 = vmul.f32 %v4942, %v4621
      %v5116 = vmul.f32 %v4947, %v4626
      %v5117 = vmul.f32 %v4952, %v4631
      %v5118 = vmul.f32 %v4957, %v4636
      %v5119 = vmul.f32 %v4962, %v4641
      %v5120 = vmul.f32 %v4967, %v4646
      %v5121 = vmul.f32 %v4972, %v4651
      %v5122 = vmul.f32 %v4977, %v4656
      %v5123 = vmul.f32 %v4982, %v4661
      %v5124 = vmul.f32 %v4987, %v4666
      %v5125 = vmul.f32 %v4992, %v4671
      %v5126 = vmul.f32 %v4997, %v4676
      %v5127 = vmul.f32 %v5002, %v4681
      %v5128 = vmul.f32 %v5007, %v4686
      %v5129 = vmul.f32 %v5012, %v4691
      %v5130 = vmul.f32 %v5017, %v4696
      %v5131 = vmul.f32 %v5022, %v4701
      %v5132 = vmul.f32 %v5027, %v4706
      %v5133 = vmul.f32 %v5032, %v4711
      %v5134 = vmul.f32 %v5037, %v4716
      %v5135 = vmul.f32 %v5042, %v4721
      %v5136 = vmul.f32 %v5047, %v4726
      %v5137 = vmul.f32 %v5052, %v4731
      %v5138 = vmul.f32 %v5057, %v4736
      %v5139 = vmul.f32 %v5062, %v4741
      %v5140 = vmul.f32 %v5067, %v4746
      %v5141 = vmul.f32 %v5072, %v4751
      %v5142 = vmul.f32 %v5077, %v4756
      %5143 = vmatprep.subr.mxu0 0.0
      %v5144 = vand.u32 %v1073, 4294901760
      %5145 = vmatpush1.msra.mxu0 %v5144
      %5146 = vmatprep.subr.mxu0 0.0
      %v5147 = vand.u32 %v1074, 4294901760
      %5148 = vmatpush1.msra.mxu0 %v5147
      %5149 = vmatprep.subr.mxu0 0.0
      %v5150 = vand.u32 %v1075, 4294901760
      %5151 = vmatpush1.msra.mxu0 %v5150
      %5152 = vmatprep.subr.mxu0 0.0
      %v5153 = vand.u32 %v1076, 4294901760
      %5154 = vmatpush1.msra.mxu0 %v5153
      %5155 = vmatprep.subr.mxu0 0.0
      %v5156 = vand.u32 %v1077, 4294901760
      %5157 = vmatpush1.msra.mxu0 %v5156
      %5158 = vmatprep.subr.mxu0 0.0
      %v5159 = vand.u32 %v1078, 4294901760
      %5160 = vmatpush1.msra.mxu0 %v5159
      %5161 = vmatprep.subr.mxu0 0.0
      %v5162 = vand.u32 %v1079, 4294901760
      %5163 = vmatpush1.msra.mxu0 %v5162
      %5164 = vmatprep.subr.mxu0 0.0
      %v5165 = vand.u32 %v1080, 4294901760
      %5166 = vmatpush1.msra.mxu0 %v5165
      %5167 = vmatprep.subr.mxu0 0.0
      %v5168 = vand.u32 %v1081, 4294901760
      %5169 = vmatpush1.msra.mxu0 %v5168
      %5170 = vmatprep.subr.mxu0 0.0
      %v5171 = vand.u32 %v1082, 4294901760
      %5172 = vmatpush1.msra.mxu0 %v5171
      %5173 = vmatprep.subr.mxu0 0.0
      %v5174 = vand.u32 %v1083, 4294901760
      %5175 = vmatpush1.msra.mxu0 %v5174
      %5176 = vmatprep.subr.mxu0 0.0
      %v5177 = vand.u32 %v1084, 4294901760
      %5178 = vmatpush1.msra.mxu0 %v5177
      %5179 = vmatprep.subr.mxu0 0.0
      %v5180 = vand.u32 %v1085, 4294901760
      %5181 = vmatpush1.msra.mxu0 %v5180
      %5182 = vmatprep.subr.mxu0 0.0
      %v5183 = vand.u32 %v1086, 4294901760
      %5184 = vmatpush1.msra.mxu0 %v5183
      %5185 = vmatprep.subr.mxu0 0.0
      %v5186 = vand.u32 %v1087, 4294901760
      %5187 = vmatpush1.msra.mxu0 %v5186
      %5188 = vmatprep.subr.mxu0 0.0
      %v5189 = vand.u32 %v1088, 4294901760
      %5190 = vmatpush1.msra.mxu0 %v5189
      %5191 = vmatprep.subr.mxu0 0.0
      %v5192 = vand.u32 %v1089, 4294901760
      %5193 = vmatpush1.msra.mxu0 %v5192
      %5194 = vmatprep.subr.mxu0 0.0
      %v5195 = vand.u32 %v1090, 4294901760
      %5196 = vmatpush1.msra.mxu0 %v5195
      %5197 = vmatprep.subr.mxu0 0.0
      %v5198 = vand.u32 %v1091, 4294901760
      %5199 = vmatpush1.msra.mxu0 %v5198
      %5200 = vmatprep.subr.mxu0 0.0
      %v5201 = vand.u32 %v1092, 4294901760
      %5202 = vmatpush1.msra.mxu0 %v5201
      %5203 = vmatprep.subr.mxu0 0.0
      %v5204 = vand.u32 %v1093, 4294901760
      %5205 = vmatpush1.msra.mxu0 %v5204
      %5206 = vmatprep.subr.mxu0 0.0
      %v5207 = vand.u32 %v1094, 4294901760
      %5208 = vmatpush1.msra.mxu0 %v5207
      %5209 = vmatprep.subr.mxu0 0.0
      %v5210 = vand.u32 %v1095, 4294901760
      %5211 = vmatpush1.msra.mxu0 %v5210
      %5212 = vmatprep.subr.mxu0 0.0
      %v5213 = vand.u32 %v1096, 4294901760
      %5214 = vmatpush1.msra.mxu0 %v5213
      %5215 = vmatprep.subr.mxu0 0.0
      %v5216 = vand.u32 %v1097, 4294901760
      %5217 = vmatpush1.msra.mxu0 %v5216
      %5218 = vmatprep.subr.mxu0 0.0
      %v5219 = vand.u32 %v1098, 4294901760
      %5220 = vmatpush1.msra.mxu0 %v5219
      %5221 = vmatprep.subr.mxu0 0.0
      %v5222 = vand.u32 %v1099, 4294901760
      %5223 = vmatpush1.msra.mxu0 %v5222
      %5224 = vmatprep.subr.mxu0 0.0
      %v5225 = vand.u32 %v1100, 4294901760
      %5226 = vmatpush1.msra.mxu0 %v5225
      %5227 = vmatprep.subr.mxu0 0.0
      %v5228 = vand.u32 %v1101, 4294901760
      %5229 = vmatpush1.msra.mxu0 %v5228
      %5230 = vmatprep.subr.mxu0 0.0
      %v5231 = vand.u32 %v1102, 4294901760
      %5232 = vmatpush1.msra.mxu0 %v5231
      %5233 = vmatprep.subr.mxu0 0.0
      %v5234 = vand.u32 %v1103, 4294901760
      %5235 = vmatpush1.msra.mxu0 %v5234
      %5236 = vmatprep.subr.mxu0 0.0
      %v5237 = vand.u32 %v1104, 4294901760
      %5238 = vmatpush1.msra.mxu0 %v5237
      %v5239 = vsub.f32 %v946, %v946
      %v5240 = vand.u32 %v5239, 4294901760
      %v5241 = vsub.f32 %v5239, %v5240
      %v5242 = vand.u32 %v5241, 4294901760
      %5243 = vmatprep.mubr.f32.mxu0 %v5242
      %v5244 = vsub.f32 %v945, %v945
      %v5245 = vand.u32 %v5244, 4294901760
      %v5246 = vsub.f32 %v5244, %v5245
      %v5247 = vand.u32 %v5246, 4294901760
      %5248 = vmatmul.mubr.f32.gmra.mrb[0].mxu0 %v5247
      %v5249 = vpop.f32.mrb[0].mxu0
      %v5250 = vadd.f32 %v5079, %v5249
      %v5251 = vpop.f32.mrb[0].mxu0
      %v5252 = vsub.f32 %v948, %v948
      %v5253 = vand.u32 %v5252, 4294901760
      %v5254 = vsub.f32 %v5252, %v5253
      %v5255 = vand.u32 %v5254, 4294901760
      %5256 = vmatprep.mubr.f32.mxu0 %v5255
      %v5257 = vsub.f32 %v947, %v947
      %v5258 = vand.u32 %v5257, 4294901760
      %v5259 = vsub.f32 %v5257, %v5258
      %v5260 = vand.u32 %v5259, 4294901760
      %5261 = vmatmul.mubr.f32.gmra.mrb[0].mxu0 %v5260
      %v5262 = vpop.f32.mrb[0].mxu0
      %v5263 = vadd.f32 %v5080, %v5262
      %v5264 = vpop.f32.mrb[0].mxu0
      %v5265 = vsub.f32 %v950, %v950
      %v5266 = vand.u32 %v5265, 4294901760
      %v5267 = vsub.f32 %v5265, %v5266
      %v5268 = vand.u32 %v5267, 4294901760
      %5269 = vmatprep.mubr.f32.mxu0 %v5268
      %v5270 = vsub.f32 %v949, %v949
      %v5271 = vand.u32 %v5270, 4294901760
      %v5272 = vsub.f32 %v5270, %v5271
      %v5273 = vand.u32 %v5272, 4294901760
      %5274 = vmatmul.mubr.f32.gmra.mrb[0].mxu0 %v5273
      %v5275 = vpop.f32.mrb[0].mxu0
      %v5276 = vadd.f32 %v5081, %v5275
      %v5277 = vpop.f32.mrb[0].mxu0
      %v5278 = vsub.f32 %v952, %v952
      %v5279 = vand.u32 %v5278, 4294901760
      %v5280 = vsub.f32 %v5278, %v5279
      %v5281 = vand.u32 %v5280, 4294901760
      %5282 = vmatprep.mubr.f32.mxu0 %v5281
      %v5283 = vsub.f32 %v951, %v951
      %v5284 = vand.u32 %v5283, 4294901760
      %v5285 = vsub.f32 %v5283, %v5284
      %v5286 = vand.u32 %v5285, 4294901760
      %5287 = vmatmul.mubr.f32.gmra.mrb[0].mxu0 %v5286
      %v5288 = vpop.f32.mrb[0].mxu0
      %v5289 = vadd.f32 %v5082, %v5288
      %v5290 = vpop.f32.mrb[0].mxu0
      %v5291 = vsub.f32 %v954, %v954
      %v5292 = vand.u32 %v5291, 4294901760
      %v5293 = vsub.f32 %v5291, %v5292
      %v5294 = vand.u32 %v5293, 4294901760
      %5295 = vmatprep.mubr.f32.mxu0 %v5294
      %v5296 = vsub.f32 %v953, %v953
      %v5297 = vand.u32 %v5296, 4294901760
      %v5298 = vsub.f32 %v5296, %v5297
      %v5299 = vand.u32 %v5298, 4294901760
      %5300 = vmatmul.mubr.f32.gmra.mrb[0].mxu0 %v5299
      %v5301 = vpop.f32.mrb[0].mxu0
      %v5302 = vadd.f32 %v5083, %v5301
      %v5303 = vpop.f32.mrb[0].mxu0
      %v5304 = vsub.f32 %v956, %v956
      %v5305 = vand.u32 %v5304, 4294901760
      %v5306 = vsub.f32 %v5304, %v5305
      %v5307 = vand.u32 %v5306, 4294901760
      %5308 = vmatprep.mubr.f32.mxu0 %v5307
      %v5309 = vsub.f32 %v955, %v955
      %v5310 = vand.u32 %v5309, 4294901760
      %v5311 = vsub.f32 %v5309, %v5310
      %v5312 = vand.u32 %v5311, 4294901760
      %5313 = vmatmul.mubr.f32.gmra.mrb[0].mxu0 %v5312
      %v5314 = vpop.f32.mrb[0].mxu0
      %v5315 = vadd.f32 %v5084, %v5314
      %v5316 = vpop.f32.mrb[0].mxu0
      %v5317 = vsub.f32 %v958, %v958
      %v5318 = vand.u32 %v5317, 4294901760
      %v5319 = vsub.f32 %v5317, %v5318
      %v5320 = vand.u32 %v5319, 4294901760
      %5321 = vmatprep.mubr.f32.mxu0 %v5320
      %v5322 = vsub.f32 %v957, %v957
      %v5323 = vand.u32 %v5322, 4294901760
      %v5324 = vsub.f32 %v5322, %v5323
      %v5325 = vand.u32 %v5324, 4294901760
      %5326 = vmatmul.mubr.f32.gmra.mrb[0].mxu0 %v5325
      %v5327 = vpop.f32.mrb[0].mxu0
      %v5328 = vadd.f32 %v5085, %v5327
      %v5329 = vpop.f32.mrb[0].mxu0
      %v5330 = vsub.f32 %v960, %v960
      %v5331 = vand.u32 %v5330, 4294901760
      %v5332 = vsub.f32 %v5330, %v5331
      %v5333 = vand.u32 %v5332, 4294901760
      %5334 = vmatprep.mubr.f32.mxu0 %v5333
      %v5335 = vsub.f32 %v959, %v959
      %v5336 = vand.u32 %v5335, 4294901760
      %v5337 = vsub.f32 %v5335, %v5336
      %v5338 = vand.u32 %v5337, 4294901760
      %5339 = vmatmul.mubr.f32.gmra.mrb[0].mxu0 %v5338
      %v5340 = vpop.f32.mrb[0].mxu0
      %v5341 = vadd.f32 %v5086, %v5340
      %v5342 = vpop.f32.mrb[0].mxu0
      %v5343 = vsub.f32 %v962, %v962
      %v5344 = vand.u32 %v5343, 4294901760
      %v5345 = vsub.f32 %v5343, %v5344
      %v5346 = vand.u32 %v5345, 4294901760
      %5347 = vmatprep.mubr.f32.mxu0 %v5346
      %v5348 = vsub.f32 %v961, %v961
      %v5349 = vand.u32 %v5348, 4294901760
      %v5350 = vsub.f32 %v5348, %v5349
      %v5351 = vand.u32 %v5350, 4294901760
      %5352 = vmatmul.mubr.f32.gmra.mrb[0].mxu0 %v5351
      %v5353 = vpop.f32.mrb[0].mxu0
      %v5354 = vadd.f32 %v5087, %v5353
      %v5355 = vpop.f32.mrb[0].mxu0
      %v5356 = vsub.f32 %v964, %v964
      %v5357 = vand.u32 %v5356, 4294901760
      %v5358 = vsub.f32 %v5356, %v5357
      %v5359 = vand.u32 %v5358, 4294901760
      %5360 = vmatprep.mubr.f32.mxu0 %v5359
      %v5361 = vsub.f32 %v963, %v963
      %v5362 = vand.u32 %v5361, 4294901760
      %v5363 = vsub.f32 %v5361, %v5362
      %v5364 = vand.u32 %v5363, 4294901760
      %5365 = vmatmul.mubr.f32.gmra.mrb[0].mxu0 %v5364
      %v5366 = vpop.f32.mrb[0].mxu0
      %v5367 = vadd.f32 %v5088, %v5366
      %v5368 = vpop.f32.mrb[0].mxu0
      %v5369 = vsub.f32 %v966, %v966
      %v5370 = vand.u32 %v5369, 4294901760
      %v5371 = vsub.f32 %v5369, %v5370
      %v5372 = vand.u32 %v5371, 4294901760
      %5373 = vmatprep.mubr.f32.mxu0 %v5372
      %v5374 = vsub.f32 %v965, %v965
      %v5375 = vand.u32 %v5374, 4294901760
      %v5376 = vsub.f32 %v5374, %v5375
      %v5377 = vand.u32 %v5376, 4294901760
      %5378 = vmatmul.mubr.f32.gmra.mrb[0].mxu0 %v5377
      %v5379 = vpop.f32.mrb[0].mxu0
      %v5380 = vadd.f32 %v5089, %v5379
      %v5381 = vpop.f32.mrb[0].mxu0
      %v5382 = vsub.f32 %v968, %v968
      %v5383 = vand.u32 %v5382, 4294901760
      %v5384 = vsub.f32 %v5382, %v5383
      %v5385 = vand.u32 %v5384, 4294901760
      %5386 = vmatprep.mubr.f32.mxu0 %v5385
      %v5387 = vsub.f32 %v967, %v967
      %v5388 = vand.u32 %v5387, 4294901760
      %v5389 = vsub.f32 %v5387, %v5388
      %v5390 = vand.u32 %v5389, 4294901760
      %5391 = vmatmul.mubr.f32.gmra.mrb[0].mxu0 %v5390
      %v5392 = vpop.f32.mrb[0].mxu0
      %v5393 = vadd.f32 %v5090, %v5392
      %v5394 = vpop.f32.mrb[0].mxu0
      %v5395 = vsub.f32 %v970, %v970
      %v5396 = vand.u32 %v5395, 4294901760
      %v5397 = vsub.f32 %v5395, %v5396
      %v5398 = vand.u32 %v5397, 4294901760
      %5399 = vmatprep.mubr.f32.mxu0 %v5398
      %v5400 = vsub.f32 %v969, %v969
      %v5401 = vand.u32 %v5400, 4294901760
      %v5402 = vsub.f32 %v5400, %v5401
      %v5403 = vand.u32 %v5402, 4294901760
      %5404 = vmatmul.mubr.f32.gmra.mrb[0].mxu0 %v5403
      %v5405 = vpop.f32.mrb[0].mxu0
      %v5406 = vadd.f32 %v5091, %v5405
      %v5407 = vpop.f32.mrb[0].mxu0
      %v5408 = vsub.f32 %v972, %v972
      %v5409 = vand.u32 %v5408, 4294901760
      %v5410 = vsub.f32 %v5408, %v5409
      %v5411 = vand.u32 %v5410, 4294901760
      %5412 = vmatprep.mubr.f32.mxu0 %v5411
      %v5413 = vsub.f32 %v971, %v971
      %v5414 = vand.u32 %v5413, 4294901760
      %v5415 = vsub.f32 %v5413, %v5414
      %v5416 = vand.u32 %v5415, 4294901760
      %5417 = vmatmul.mubr.f32.gmra.mrb[0].mxu0 %v5416
      %v5418 = vpop.f32.mrb[0].mxu0
      %v5419 = vadd.f32 %v5092, %v5418
      %v5420 = vpop.f32.mrb[0].mxu0
      %v5421 = vsub.f32 %v974, %v974
      %v5422 = vand.u32 %v5421, 4294901760
      %v5423 = vsub.f32 %v5421, %v5422
      %v5424 = vand.u32 %v5423, 4294901760
      %5425 = vmatprep.mubr.f32.mxu0 %v5424
      %v5426 = vsub.f32 %v973, %v973
      %v5427 = vand.u32 %v5426, 4294901760
      %v5428 = vsub.f32 %v5426, %v5427
      %v5429 = vand.u32 %v5428, 4294901760
      %5430 = vmatmul.mubr.f32.gmra.mrb[0].mxu0 %v5429
      %v5431 = vpop.f32.mrb[0].mxu0
      %v5432 = vadd.f32 %v5093, %v5431
      %v5433 = vpop.f32.mrb[0].mxu0
      %v5434 = vsub.f32 %v976, %v976
      %v5435 = vand.u32 %v5434, 4294901760
      %v5436 = vsub.f32 %v5434, %v5435
      %v5437 = vand.u32 %v5436, 4294901760
      %5438 = vmatprep.mubr.f32.mxu0 %v5437
      %v5439 = vsub.f32 %v975, %v975
      %v5440 = vand.u32 %v5439, 4294901760
      %v5441 = vsub.f32 %v5439, %v5440
      %v5442 = vand.u32 %v5441, 4294901760
      %5443 = vmatmul.mubr.f32.gmra.mrb[0].mxu0 %v5442
      %v5444 = vpop.f32.mrb[0].mxu0
      %v5445 = vadd.f32 %v5094, %v5444
      %v5446 = vpop.f32.mrb[0].mxu0
      %v5447 = vsub.f32 %v978, %v978
      %v5448 = vand.u32 %v5447, 4294901760
      %v5449 = vsub.f32 %v5447, %v5448
      %v5450 = vand.u32 %v5449, 4294901760
      %5451 = vmatprep.mubr.f32.mxu0 %v5450
      %v5452 = vsub.f32 %v977, %v977
      %v5453 = vand.u32 %v5452, 4294901760
      %v5454 = vsub.f32 %v5452, %v5453
      %v5455 = vand.u32 %v5454, 4294901760
      %5456 = vmatmul.mubr.f32.gmra.mrb[0].mxu0 %v5455
      %v5457 = vpop.f32.mrb[0].mxu0
      %v5458 = vadd.f32 %v5095, %v5457
      %v5459 = vpop.f32.mrb[0].mxu0
      %v5460 = vsub.f32 %v980, %v980
      %v5461 = vand.u32 %v5460, 4294901760
      %v5462 = vsub.f32 %v5460, %v5461
      %v5463 = vand.u32 %v5462, 4294901760
      %5464 = vmatprep.mubr.f32.mxu0 %v5463
      %v5465 = vsub.f32 %v979, %v979
      %v5466 = vand.u32 %v5465, 4294901760
      %v5467 = vsub.f32 %v5465, %v5466
      %v5468 = vand.u32 %v5467, 4294901760
      %5469 = vmatmul.mubr.f32.gmra.mrb[0].mxu0 %v5468
      %v5470 = vpop.f32.mrb[0].mxu0
      %v5471 = vadd.f32 %v5096, %v5470
      %v5472 = vpop.f32.mrb[0].mxu0
      %v5473 = vsub.f32 %v982, %v982
      %v5474 = vand.u32 %v5473, 4294901760
      %v5475 = vsub.f32 %v5473, %v5474
      %v5476 = vand.u32 %v5475, 4294901760
      %5477 = vmatprep.mubr.f32.mxu0 %v5476
      %v5478 = vsub.f32 %v981, %v981
      %v5479 = vand.u32 %v5478, 4294901760
      %v5480 = vsub.f32 %v5478, %v5479
      %v5481 = vand.u32 %v5480, 4294901760
      %5482 = vmatmul.mubr.f32.gmra.mrb[0].mxu0 %v5481
      %v5483 = vpop.f32.mrb[0].mxu0
      %v5484 = vadd.f32 %v5097, %v5483
      %v5485 = vpop.f32.mrb[0].mxu0
      %v5486 = vsub.f32 %v984, %v984
      %v5487 = vand.u32 %v5486, 4294901760
      %v5488 = vsub.f32 %v5486, %v5487
      %v5489 = vand.u32 %v5488, 4294901760
      %5490 = vmatprep.mubr.f32.mxu0 %v5489
      %v5491 = vsub.f32 %v983, %v983
      %v5492 = vand.u32 %v5491, 4294901760
      %v5493 = vsub.f32 %v5491, %v5492
      %v5494 = vand.u32 %v5493, 4294901760
      %5495 = vmatmul.mubr.f32.gmra.mrb[0].mxu0 %v5494
      %v5496 = vpop.f32.mrb[0].mxu0
      %v5497 = vadd.f32 %v5098, %v5496
      %v5498 = vpop.f32.mrb[0].mxu0
      %v5499 = vsub.f32 %v986, %v986
      %v5500 = vand.u32 %v5499, 4294901760
      %v5501 = vsub.f32 %v5499, %v5500
      %v5502 = vand.u32 %v5501, 4294901760
      %5503 = vmatprep.mubr.f32.mxu0 %v5502
      %v5504 = vsub.f32 %v985, %v985
      %v5505 = vand.u32 %v5504, 4294901760
      %v5506 = vsub.f32 %v5504, %v5505
      %v5507 = vand.u32 %v5506, 4294901760
      %5508 = vmatmul.mubr.f32.gmra.mrb[0].mxu0 %v5507
      %v5509 = vpop.f32.mrb[0].mxu0
      %v5510 = vadd.f32 %v5099, %v5509
      %v5511 = vpop.f32.mrb[0].mxu0
      %v5512 = vsub.f32 %v988, %v988
      %v5513 = vand.u32 %v5512, 4294901760
      %v5514 = vsub.f32 %v5512, %v5513
      %v5515 = vand.u32 %v5514, 4294901760
      %5516 = vmatprep.mubr.f32.mxu0 %v5515
      %v5517 = vsub.f32 %v987, %v987
      %v5518 = vand.u32 %v5517, 4294901760
      %v5519 = vsub.f32 %v5517, %v5518
      %v5520 = vand.u32 %v5519, 4294901760
      %5521 = vmatmul.mubr.f32.gmra.mrb[0].mxu0 %v5520
      %v5522 = vpop.f32.mrb[0].mxu0
      %v5523 = vadd.f32 %v5100, %v5522
      %v5524 = vpop.f32.mrb[0].mxu0
      %v5525 = vsub.f32 %v990, %v990
      %v5526 = vand.u32 %v5525, 4294901760
      %v5527 = vsub.f32 %v5525, %v5526
      %v5528 = vand.u32 %v5527, 4294901760
      %5529 = vmatprep.mubr.f32.mxu0 %v5528
      %v5530 = vsub.f32 %v989, %v989
      %v5531 = vand.u32 %v5530, 4294901760
      %v5532 = vsub.f32 %v5530, %v5531
      %v5533 = vand.u32 %v5532, 4294901760
      %5534 = vmatmul.mubr.f32.gmra.mrb[0].mxu0 %v5533
      %v5535 = vpop.f32.mrb[0].mxu0
      %v5536 = vadd.f32 %v5101, %v5535
      %v5537 = vpop.f32.mrb[0].mxu0
      %v5538 = vsub.f32 %v992, %v992
      %v5539 = vand.u32 %v5538, 4294901760
      %v5540 = vsub.f32 %v5538, %v5539
      %v5541 = vand.u32 %v5540, 4294901760
      %5542 = vmatprep.mubr.f32.mxu0 %v5541
      %v5543 = vsub.f32 %v991, %v991
      %v5544 = vand.u32 %v5543, 4294901760
      %v5545 = vsub.f32 %v5543, %v5544
      %v5546 = vand.u32 %v5545, 4294901760
      %5547 = vmatmul.mubr.f32.gmra.mrb[0].mxu0 %v5546
      %v5548 = vpop.f32.mrb[0].mxu0
      %v5549 = vadd.f32 %v5102, %v5548
      %v5550 = vpop.f32.mrb[0].mxu0
      %v5551 = vsub.f32 %v994, %v994
      %v5552 = vand.u32 %v5551, 4294901760
      %v5553 = vsub.f32 %v5551, %v5552
      %v5554 = vand.u32 %v5553, 4294901760
      %5555 = vmatprep.mubr.f32.mxu0 %v5554
      %v5556 = vsub.f32 %v993, %v993
      %v5557 = vand.u32 %v5556, 4294901760
      %v5558 = vsub.f32 %v5556, %v5557
      %v5559 = vand.u32 %v5558, 4294901760
      %5560 = vmatmul.mubr.f32.gmra.mrb[0].mxu0 %v5559
      %v5561 = vpop.f32.mrb[0].mxu0
      %v5562 = vadd.f32 %v5103, %v5561
      %v5563 = vpop.f32.mrb[0].mxu0
      %v5564 = vsub.f32 %v996, %v996
      %v5565 = vand.u32 %v5564, 4294901760
      %v5566 = vsub.f32 %v5564, %v5565
      %v5567 = vand.u32 %v5566, 4294901760
      %5568 = vmatprep.mubr.f32.mxu0 %v5567
      %v5569 = vsub.f32 %v995, %v995
      %v5570 = vand.u32 %v5569, 4294901760
      %v5571 = vsub.f32 %v5569, %v5570
      %v5572 = vand.u32 %v5571, 4294901760
      %5573 = vmatmul.mubr.f32.gmra.mrb[0].mxu0 %v5572
      %v5574 = vpop.f32.mrb[0].mxu0
      %v5575 = vadd.f32 %v5104, %v5574
      %v5576 = vpop.f32.mrb[0].mxu0
      %v5577 = vsub.f32 %v998, %v998
      %v5578 = vand.u32 %v5577, 4294901760
      %v5579 = vsub.f32 %v5577, %v5578
      %v5580 = vand.u32 %v5579, 4294901760
      %5581 = vmatprep.mubr.f32.mxu0 %v5580
      %v5582 = vsub.f32 %v997, %v997
      %v5583 = vand.u32 %v5582, 4294901760
      %v5584 = vsub.f32 %v5582, %v5583
      %v5585 = vand.u32 %v5584, 4294901760
      %5586 = vmatmul.mubr.f32.gmra.mrb[0].mxu0 %v5585
      %v5587 = vpop.f32.mrb[0].mxu0
      %v5588 = vadd.f32 %v5105, %v5587
      %v5589 = vpop.f32.mrb[0].mxu0
      %v5590 = vsub.f32 %v1000, %v1000
      %v5591 = vand.u32 %v5590, 4294901760
      %v5592 = vsub.f32 %v5590, %v5591
      %v5593 = vand.u32 %v5592, 4294901760
      %5594 = vmatprep.mubr.f32.mxu0 %v5593
      %v5595 = vsub.f32 %v999, %v999
      %v5596 = vand.u32 %v5595, 4294901760
      %v5597 = vsub.f32 %v5595, %v5596
      %v5598 = vand.u32 %v5597, 4294901760
      %5599 = vmatmul.mubr.f32.gmra.mrb[0].mxu0 %v5598
      %v5600 = vpop.f32.mrb[0].mxu0
      %v5601 = vadd.f32 %v5106, %v5600
      %v5602 = vpop.f32.mrb[0].mxu0
      %v5603 = vsub.f32 %v1002, %v1002
      %v5604 = vand.u32 %v5603, 4294901760
      %v5605 = vsub.f32 %v5603, %v5604
      %v5606 = vand.u32 %v5605, 4294901760
      %5607 = vmatprep.mubr.f32.mxu0 %v5606
      %v5608 = vsub.f32 %v1001, %v1001
      %v5609 = vand.u32 %v5608, 4294901760
      %v5610 = vsub.f32 %v5608, %v5609
      %v5611 = vand.u32 %v5610, 4294901760
      %5612 = vmatmul.mubr.f32.gmra.mrb[0].mxu0 %v5611
      %v5613 = vpop.f32.mrb[0].mxu0
      %v5614 = vadd.f32 %v5107, %v5613
      %v5615 = vpop.f32.mrb[0].mxu0
      %v5616 = vsub.f32 %v1004, %v1004
      %v5617 = vand.u32 %v5616, 4294901760
      %v5618 = vsub.f32 %v5616, %v5617
      %v5619 = vand.u32 %v5618, 4294901760
      %5620 = vmatprep.mubr.f32.mxu0 %v5619
      %v5621 = vsub.f32 %v1003, %v1003
      %v5622 = vand.u32 %v5621, 4294901760
      %v5623 = vsub.f32 %v5621, %v5622
      %v5624 = vand.u32 %v5623, 4294901760
      %5625 = vmatmul.mubr.f32.gmra.mrb[0].mxu0 %v5624
      %v5626 = vpop.f32.mrb[0].mxu0
      %v5627 = vadd.f32 %v5108, %v5626
      %v5628 = vpop.f32.mrb[0].mxu0
      %v5629 = vsub.f32 %v1006, %v1006
      %v5630 = vand.u32 %v5629, 4294901760
      %v5631 = vsub.f32 %v5629, %v5630
      %v5632 = vand.u32 %v5631, 4294901760
      %5633 = vmatprep.mubr.f32.mxu0 %v5632
      %v5634 = vsub.f32 %v1005, %v1005
      %v5635 = vand.u32 %v5634, 4294901760
      %v5636 = vsub.f32 %v5634, %v5635
      %v5637 = vand.u32 %v5636, 4294901760
      %5638 = vmatmul.mubr.f32.gmra.mrb[0].mxu0 %v5637
      %v5639 = vpop.f32.mrb[0].mxu0
      %v5640 = vadd.f32 %v5109, %v5639
      %v5641 = vpop.f32.mrb[0].mxu0
      %v5642 = vsub.f32 %v1008, %v1008
      %v5643 = vand.u32 %v5642, 4294901760
      %v5644 = vsub.f32 %v5642, %v5643
      %v5645 = vand.u32 %v5644, 4294901760
      %5646 = vmatprep.mubr.f32.mxu0 %v5645
      %v5647 = vsub.f32 %v1007, %v1007
      %v5648 = vand.u32 %v5647, 4294901760
      %v5649 = vsub.f32 %v5647, %v5648
      %v5650 = vand.u32 %v5649, 4294901760
      %5651 = vmatmul.mubr.f32.gmra.mrb[0].mxu0 %v5650
      %v5652 = vpop.f32.mrb[0].mxu0
      %v5653 = vadd.f32 %v5110, %v5652
      %v5654 = vpop.f32.mrb[0].mxu0
      %v5655 = vsub.f32 %v1010, %v1010
      %v5656 = vand.u32 %v5655, 4294901760
      %v5657 = vsub.f32 %v5655, %v5656
      %v5658 = vand.u32 %v5657, 4294901760
      %5659 = vmatprep.mubr.f32.mxu0 %v5658
      %v5660 = vsub.f32 %v1009, %v1009
      %v5661 = vand.u32 %v5660, 4294901760
      %v5662 = vsub.f32 %v5660, %v5661
      %v5663 = vand.u32 %v5662, 4294901760
      %5664 = vmatmul.mubr.f32.gmra.mrb[0].mxu0 %v5663
      %v5665 = vpop.f32.mrb[0].mxu0
      %v5666 = vadd.f32 %v5111, %v5665
      %v5667 = vpop.f32.mrb[0].mxu0
      %v5668 = vsub.f32 %v1012, %v1012
      %v5669 = vand.u32 %v5668, 4294901760
      %v5670 = vsub.f32 %v5668, %v5669
      %v5671 = vand.u32 %v5670, 4294901760
      %5672 = vmatprep.mubr.f32.mxu0 %v5671
      %v5673 = vsub.f32 %v1011, %v1011
      %v5674 = vand.u32 %v5673, 4294901760
      %v5675 = vsub.f32 %v5673, %v5674
      %v5676 = vand.u32 %v5675, 4294901760
      %5677 = vmatmul.mubr.f32.gmra.mrb[0].mxu0 %v5676
      %v5678 = vpop.f32.mrb[0].mxu0
      %v5679 = vadd.f32 %v5112, %v5678
      %v5680 = vpop.f32.mrb[0].mxu0
      %v5681 = vsub.f32 %v1014, %v1014
      %v5682 = vand.u32 %v5681, 4294901760
      %v5683 = vsub.f32 %v5681, %v5682
      %v5684 = vand.u32 %v5683, 4294901760
      %5685 = vmatprep.mubr.f32.mxu0 %v5684
      %v5686 = vsub.f32 %v1013, %v1013
      %v5687 = vand.u32 %v5686, 4294901760
      %v5688 = vsub.f32 %v5686, %v5687
      %v5689 = vand.u32 %v5688, 4294901760
      %5690 = vmatmul.mubr.f32.gmra.mrb[0].mxu0 %v5689
      %v5691 = vpop.f32.mrb[0].mxu0
      %v5692 = vadd.f32 %v5113, %v5691
      %v5693 = vpop.f32.mrb[0].mxu0
      %v5694 = vsub.f32 %v1016, %v1016
      %v5695 = vand.u32 %v5694, 4294901760
      %v5696 = vsub.f32 %v5694, %v5695
      %v5697 = vand.u32 %v5696, 4294901760
      %5698 = vmatprep.mubr.f32.mxu0 %v5697
      %v5699 = vsub.f32 %v1015, %v1015
      %v5700 = vand.u32 %v5699, 4294901760
      %v5701 = vsub.f32 %v5699, %v5700
      %v5702 = vand.u32 %v5701, 4294901760
      %5703 = vmatmul.mubr.f32.gmra.mrb[0].mxu0 %v5702
      %v5704 = vpop.f32.mrb[0].mxu0
      %v5705 = vadd.f32 %v5114, %v5704
      %v5706 = vpop.f32.mrb[0].mxu0
      %v5707 = vsub.f32 %v1018, %v1018
      %v5708 = vand.u32 %v5707, 4294901760
      %v5709 = vsub.f32 %v5707, %v5708
      %v5710 = vand.u32 %v5709, 4294901760
      %5711 = vmatprep.mubr.f32.mxu0 %v5710
      %v5712 = vsub.f32 %v1017, %v1017
      %v5713 = vand.u32 %v5712, 4294901760
      %v5714 = vsub.f32 %v5712, %v5713
      %v5715 = vand.u32 %v5714, 4294901760
      %5716 = vmatmul.mubr.f32.gmra.mrb[0].mxu0 %v5715
      %v5717 = vpop.f32.mrb[0].mxu0
      %v5718 = vadd.f32 %v5115, %v5717
      %v5719 = vpop.f32.mrb[0].mxu0
      %v5720 = vsub.f32 %v1020, %v1020
      %v5721 = vand.u32 %v5720, 4294901760
      %v5722 = vsub.f32 %v5720, %v5721
      %v5723 = vand.u32 %v5722, 4294901760
      %5724 = vmatprep.mubr.f32.mxu0 %v5723
      %v5725 = vsub.f32 %v1019, %v1019
      %v5726 = vand.u32 %v5725, 4294901760
      %v5727 = vsub.f32 %v5725, %v5726
      %v5728 = vand.u32 %v5727, 4294901760
      %5729 = vmatmul.mubr.f32.gmra.mrb[0].mxu0 %v5728
      %v5730 = vpop.f32.mrb[0].mxu0
      %v5731 = vadd.f32 %v5116, %v5730
      %v5732 = vpop.f32.mrb[0].mxu0
      %v5733 = vsub.f32 %v1022, %v1022
      %v5734 = vand.u32 %v5733, 4294901760
      %v5735 = vsub.f32 %v5733, %v5734
      %v5736 = vand.u32 %v5735, 4294901760
      %5737 = vmatprep.mubr.f32.mxu0 %v5736
      %v5738 = vsub.f32 %v1021, %v1021
      %v5739 = vand.u32 %v5738, 4294901760
      %v5740 = vsub.f32 %v5738, %v5739
      %v5741 = vand.u32 %v5740, 4294901760
      %5742 = vmatmul.mubr.f32.gmra.mrb[0].mxu0 %v5741
      %v5743 = vpop.f32.mrb[0].mxu0
      %v5744 = vadd.f32 %v5117, %v5743
      %v5745 = vpop.f32.mrb[0].mxu0
      %v5746 = vsub.f32 %v1024, %v1024
      %v5747 = vand.u32 %v5746, 4294901760
      %v5748 = vsub.f32 %v5746, %v5747
      %v5749 = vand.u32 %v5748, 4294901760
      %5750 = vmatprep.mubr.f32.mxu0 %v5749
      %v5751 = vsub.f32 %v1023, %v1023
      %v5752 = vand.u32 %v5751, 4294901760
      %v5753 = vsub.f32 %v5751, %v5752
      %v5754 = vand.u32 %v5753, 4294901760
      %5755 = vmatmul.mubr.f32.gmra.mrb[0].mxu0 %v5754
      %v5756 = vpop.f32.mrb[0].mxu0
      %v5757 = vadd.f32 %v5118, %v5756
      %v5758 = vpop.f32.mrb[0].mxu0
      %v5759 = vsub.f32 %v1026, %v1026
      %v5760 = vand.u32 %v5759, 4294901760
      %v5761 = vsub.f32 %v5759, %v5760
      %v5762 = vand.u32 %v5761, 4294901760
      %5763 = vmatprep.mubr.f32.mxu0 %v5762
      %v5764 = vsub.f32 %v1025, %v1025
      %v5765 = vand.u32 %v5764, 4294901760
      %v5766 = vsub.f32 %v5764, %v5765
      %v5767 = vand.u32 %v5766, 4294901760
      %5768 = vmatmul.mubr.f32.gmra.mrb[0].mxu0 %v5767
      %v5769 = vpop.f32.mrb[0].mxu0
      %v5770 = vadd.f32 %v5119, %v5769
      %v5771 = vpop.f32.mrb[0].mxu0
      %v5772 = vsub.f32 %v1028, %v1028
      %v5773 = vand.u32 %v5772, 4294901760
      %v5774 = vsub.f32 %v5772, %v5773
      %v5775 = vand.u32 %v5774, 4294901760
      %5776 = vmatprep.mubr.f32.mxu0 %v5775
      %v5777 = vsub.f32 %v1027, %v1027
      %v5778 = vand.u32 %v5777, 4294901760
      %v5779 = vsub.f32 %v5777, %v5778
      %v5780 = vand.u32 %v5779, 4294901760
      %5781 = vmatmul.mubr.f32.gmra.mrb[0].mxu0 %v5780
      %v5782 = vpop.f32.mrb[0].mxu0
      %v5783 = vadd.f32 %v5120, %v5782
      %v5784 = vpop.f32.mrb[0].mxu0
      %v5785 = vsub.f32 %v1030, %v1030
      %v5786 = vand.u32 %v5785, 4294901760
      %v5787 = vsub.f32 %v5785, %v5786
      %v5788 = vand.u32 %v5787, 4294901760
      %5789 = vmatprep.mubr.f32.mxu0 %v5788
      %v5790 = vsub.f32 %v1029, %v1029
      %v5791 = vand.u32 %v5790, 4294901760
      %v5792 = vsub.f32 %v5790, %v5791
      %v5793 = vand.u32 %v5792, 4294901760
      %5794 = vmatmul.mubr.f32.gmra.mrb[0].mxu0 %v5793
      %v5795 = vpop.f32.mrb[0].mxu0
      %v5796 = vadd.f32 %v5121, %v5795
      %v5797 = vpop.f32.mrb[0].mxu0
      %v5798 = vsub.f32 %v1032, %v1032
      %v5799 = vand.u32 %v5798, 4294901760
      %v5800 = vsub.f32 %v5798, %v5799
      %v5801 = vand.u32 %v5800, 4294901760
      %5802 = vmatprep.mubr.f32.mxu0 %v5801
      %v5803 = vsub.f32 %v1031, %v1031
      %v5804 = vand.u32 %v5803, 4294901760
      %v5805 = vsub.f32 %v5803, %v5804
      %v5806 = vand.u32 %v5805, 4294901760
      %5807 = vmatmul.mubr.f32.gmra.mrb[0].mxu0 %v5806
      %v5808 = vpop.f32.mrb[0].mxu0
      %v5809 = vadd.f32 %v5122, %v5808
      %v5810 = vpop.f32.mrb[0].mxu0
      %v5811 = vsub.f32 %v1034, %v1034
      %v5812 = vand.u32 %v5811, 4294901760
      %v5813 = vsub.f32 %v5811, %v5812
      %v5814 = vand.u32 %v5813, 4294901760
      %5815 = vmatprep.mubr.f32.mxu0 %v5814
      %v5816 = vsub.f32 %v1033, %v1033
      %v5817 = vand.u32 %v5816, 4294901760
      %v5818 = vsub.f32 %v5816, %v5817
      %v5819 = vand.u32 %v5818, 4294901760
      %5820 = vmatmul.mubr.f32.gmra.mrb[0].mxu0 %v5819
      %v5821 = vpop.f32.mrb[0].mxu0
      %v5822 = vadd.f32 %v5123, %v5821
      %v5823 = vpop.f32.mrb[0].mxu0
      %v5824 = vsub.f32 %v1036, %v1036
      %v5825 = vand.u32 %v5824, 4294901760
      %v5826 = vsub.f32 %v5824, %v5825
      %v5827 = vand.u32 %v5826, 4294901760
      %5828 = vmatprep.mubr.f32.mxu0 %v5827
      %v5829 = vsub.f32 %v1035, %v1035
      %v5830 = vand.u32 %v5829, 4294901760
      %v5831 = vsub.f32 %v5829, %v5830
      %v5832 = vand.u32 %v5831, 4294901760
      %5833 = vmatmul.mubr.f32.gmra.mrb[0].mxu0 %v5832
      %v5834 = vpop.f32.mrb[0].mxu0
      %v5835 = vadd.f32 %v5124, %v5834
      %v5836 = vpop.f32.mrb[0].mxu0
      %v5837 = vsub.f32 %v1038, %v1038
      %v5838 = vand.u32 %v5837, 4294901760
      %v5839 = vsub.f32 %v5837, %v5838
      %v5840 = vand.u32 %v5839, 4294901760
      %5841 = vmatprep.mubr.f32.mxu0 %v5840
      %v5842 = vsub.f32 %v1037, %v1037
      %v5843 = vand.u32 %v5842, 4294901760
      %v5844 = vsub.f32 %v5842, %v5843
      %v5845 = vand.u32 %v5844, 4294901760
      %5846 = vmatmul.mubr.f32.gmra.mrb[0].mxu0 %v5845
      %v5847 = vpop.f32.mrb[0].mxu0
      %v5848 = vadd.f32 %v5125, %v5847
      %v5849 = vpop.f32.mrb[0].mxu0
      %v5850 = vsub.f32 %v1040, %v1040
      %v5851 = vand.u32 %v5850, 4294901760
      %v5852 = vsub.f32 %v5850, %v5851
      %v5853 = vand.u32 %v5852, 4294901760
      %5854 = vmatprep.mubr.f32.mxu0 %v5853
      %v5855 = vsub.f32 %v1039, %v1039
      %v5856 = vand.u32 %v5855, 4294901760
      %v5857 = vsub.f32 %v5855, %v5856
      %v5858 = vand.u32 %v5857, 4294901760
      %5859 = vmatmul.mubr.f32.gmra.mrb[0].mxu0 %v5858
      %v5860 = vpop.f32.mrb[0].mxu0
      %v5861 = vadd.f32 %v5126, %v5860
      %v5862 = vpop.f32.mrb[0].mxu0
      %v5863 = vsub.f32 %v1042, %v1042
      %v5864 = vand.u32 %v5863, 4294901760
      %v5865 = vsub.f32 %v5863, %v5864
      %v5866 = vand.u32 %v5865, 4294901760
      %5867 = vmatprep.mubr.f32.mxu0 %v5866
      %v5868 = vsub.f32 %v1041, %v1041
      %v5869 = vand.u32 %v5868, 4294901760
      %v5870 = vsub.f32 %v5868, %v5869
      %v5871 = vand.u32 %v5870, 4294901760
      %5872 = vmatmul.mubr.f32.gmra.mrb[0].mxu0 %v5871
      %v5873 = vpop.f32.mrb[0].mxu0
      %v5874 = vadd.f32 %v5127, %v5873
      %v5875 = vpop.f32.mrb[0].mxu0
      %v5876 = vsub.f32 %v1044, %v1044
      %v5877 = vand.u32 %v5876, 4294901760
      %v5878 = vsub.f32 %v5876, %v5877
      %v5879 = vand.u32 %v5878, 4294901760
      %5880 = vmatprep.mubr.f32.mxu0 %v5879
      %v5881 = vsub.f32 %v1043, %v1043
      %v5882 = vand.u32 %v5881, 4294901760
      %v5883 = vsub.f32 %v5881, %v5882
      %v5884 = vand.u32 %v5883, 4294901760
      %5885 = vmatmul.mubr.f32.gmra.mrb[0].mxu0 %v5884
      %v5886 = vpop.f32.mrb[0].mxu0
      %v5887 = vadd.f32 %v5128, %v5886
      %v5888 = vpop.f32.mrb[0].mxu0
      %v5889 = vsub.f32 %v1046, %v1046
      %v5890 = vand.u32 %v5889, 4294901760
      %v5891 = vsub.f32 %v5889, %v5890
      %v5892 = vand.u32 %v5891, 4294901760
      %5893 = vmatprep.mubr.f32.mxu0 %v5892
      %v5894 = vsub.f32 %v1045, %v1045
      %v5895 = vand.u32 %v5894, 4294901760
      %v5896 = vsub.f32 %v5894, %v5895
      %v5897 = vand.u32 %v5896, 4294901760
      %5898 = vmatmul.mubr.f32.gmra.mrb[0].mxu0 %v5897
      %v5899 = vpop.f32.mrb[0].mxu0
      %v5900 = vadd.f32 %v5129, %v5899
      %v5901 = vpop.f32.mrb[0].mxu0
      %v5902 = vsub.f32 %v1048, %v1048
      %v5903 = vand.u32 %v5902, 4294901760
      %v5904 = vsub.f32 %v5902, %v5903
      %v5905 = vand.u32 %v5904, 4294901760
      %5906 = vmatprep.mubr.f32.mxu0 %v5905
      %v5907 = vsub.f32 %v1047, %v1047
      %v5908 = vand.u32 %v5907, 4294901760
      %v5909 = vsub.f32 %v5907, %v5908
      %v5910 = vand.u32 %v5909, 4294901760
      %5911 = vmatmul.mubr.f32.gmra.mrb[0].mxu0 %v5910
      %v5912 = vpop.f32.mrb[0].mxu0
      %v5913 = vadd.f32 %v5130, %v5912
      %v5914 = vpop.f32.mrb[0].mxu0
      %v5915 = vsub.f32 %v1050, %v1050
      %v5916 = vand.u32 %v5915, 4294901760
      %v5917 = vsub.f32 %v5915, %v5916
      %v5918 = vand.u32 %v5917, 4294901760
      %5919 = vmatprep.mubr.f32.mxu0 %v5918
      %v5920 = vsub.f32 %v1049, %v1049
      %v5921 = vand.u32 %v5920, 4294901760
      %v5922 = vsub.f32 %v5920, %v5921
      %v5923 = vand.u32 %v5922, 4294901760
      %5924 = vmatmul.mubr.f32.gmra.mrb[0].mxu0 %v5923
      %v5925 = vpop.f32.mrb[0].mxu0
      %v5926 = vadd.f32 %v5131, %v5925
      %v5927 = vpop.f32.mrb[0].mxu0
      %v5928 = vsub.f32 %v1052, %v1052
      %v5929 = vand.u32 %v5928, 4294901760
      %v5930 = vsub.f32 %v5928, %v5929
      %v5931 = vand.u32 %v5930, 4294901760
      %5932 = vmatprep.mubr.f32.mxu0 %v5931
      %v5933 = vsub.f32 %v1051, %v1051
      %v5934 = vand.u32 %v5933, 4294901760
      %v5935 = vsub.f32 %v5933, %v5934
      %v5936 = vand.u32 %v5935, 4294901760
      %5937 = vmatmul.mubr.f32.gmra.mrb[0].mxu0 %v5936
      %v5938 = vpop.f32.mrb[0].mxu0
      %v5939 = vadd.f32 %v5132, %v5938
      %v5940 = vpop.f32.mrb[0].mxu0
      %v5941 = vsub.f32 %v1054, %v1054
      %v5942 = vand.u32 %v5941, 4294901760
      %v5943 = vsub.f32 %v5941, %v5942
      %v5944 = vand.u32 %v5943, 4294901760
      %5945 = vmatprep.mubr.f32.mxu0 %v5944
      %v5946 = vsub.f32 %v1053, %v1053
      %v5947 = vand.u32 %v5946, 4294901760
      %v5948 = vsub.f32 %v5946, %v5947
      %v5949 = vand.u32 %v5948, 4294901760
      %5950 = vmatmul.mubr.f32.gmra.mrb[0].mxu0 %v5949
      %v5951 = vpop.f32.mrb[0].mxu0
      %v5952 = vadd.f32 %v5133, %v5951
      %v5953 = vpop.f32.mrb[0].mxu0
      %v5954 = vsub.f32 %v1056, %v1056
      %v5955 = vand.u32 %v5954, 4294901760
      %v5956 = vsub.f32 %v5954, %v5955
      %v5957 = vand.u32 %v5956, 4294901760
      %5958 = vmatprep.mubr.f32.mxu0 %v5957
      %v5959 = vsub.f32 %v1055, %v1055
      %v5960 = vand.u32 %v5959, 4294901760
      %v5961 = vsub.f32 %v5959, %v5960
      %v5962 = vand.u32 %v5961, 4294901760
      %5963 = vmatmul.mubr.f32.gmra.mrb[0].mxu0 %v5962
      %v5964 = vpop.f32.mrb[0].mxu0
      %v5965 = vadd.f32 %v5134, %v5964
      %v5966 = vpop.f32.mrb[0].mxu0
      %v5967 = vsub.f32 %v1058, %v1058
      %v5968 = vand.u32 %v5967, 4294901760
      %v5969 = vsub.f32 %v5967, %v5968
      %v5970 = vand.u32 %v5969, 4294901760
      %5971 = vmatprep.mubr.f32.mxu0 %v5970
      %v5972 = vsub.f32 %v1057, %v1057
      %v5973 = vand.u32 %v5972, 4294901760
      %v5974 = vsub.f32 %v5972, %v5973
      %v5975 = vand.u32 %v5974, 4294901760
      %5976 = vmatmul.mubr.f32.gmra.mrb[0].mxu0 %v5975
      %v5977 = vpop.f32.mrb[0].mxu0
      %v5978 = vadd.f32 %v5135, %v5977
      %v5979 = vpop.f32.mrb[0].mxu0
      %v5980 = vsub.f32 %v1060, %v1060
      %v5981 = vand.u32 %v5980, 4294901760
      %v5982 = vsub.f32 %v5980, %v5981
      %v5983 = vand.u32 %v5982, 4294901760
      %5984 = vmatprep.mubr.f32.mxu0 %v5983
      %v5985 = vsub.f32 %v1059, %v1059
      %v5986 = vand.u32 %v5985, 4294901760
      %v5987 = vsub.f32 %v5985, %v5986
      %v5988 = vand.u32 %v5987, 4294901760
      %5989 = vmatmul.mubr.f32.gmra.mrb[0].mxu0 %v5988
      %v5990 = vpop.f32.mrb[0].mxu0
      %v5991 = vadd.f32 %v5136, %v5990
      %v5992 = vpop.f32.mrb[0].mxu0
      %v5993 = vsub.f32 %v1062, %v1062
      %v5994 = vand.u32 %v5993, 4294901760
      %v5995 = vsub.f32 %v5993, %v5994
      %v5996 = vand.u32 %v5995, 4294901760
      %5997 = vmatprep.mubr.f32.mxu0 %v5996
      %v5998 = vsub.f32 %v1061, %v1061
      %v5999 = vand.u32 %v5998, 4294901760
      %v6000 = vsub.f32 %v5998, %v5999
      %v6001 = vand.u32 %v6000, 4294901760
      %6002 = vmatmul.mubr.f32.gmra.mrb[0].mxu0 %v6001
      %v6003 = vpop.f32.mrb[0].mxu0
      %v6004 = vadd.f32 %v5137, %v6003
      %v6005 = vpop.f32.mrb[0].mxu0
      %v6006 = vsub.f32 %v1064, %v1064
      %v6007 = vand.u32 %v6006, 4294901760
      %v6008 = vsub.f32 %v6006, %v6007
      %v6009 = vand.u32 %v6008, 4294901760
      %6010 = vmatprep.mubr.f32.mxu0 %v6009
      %v6011 = vsub.f32 %v1063, %v1063
      %v6012 = vand.u32 %v6011, 4294901760
      %v6013 = vsub.f32 %v6011, %v6012
      %v6014 = vand.u32 %v6013, 4294901760
      %6015 = vmatmul.mubr.f32.gmra.mrb[0].mxu0 %v6014
      %v6016 = vpop.f32.mrb[0].mxu0
      %v6017 = vadd.f32 %v5138, %v6016
      %v6018 = vpop.f32.mrb[0].mxu0
      %v6019 = vsub.f32 %v1066, %v1066
      %v6020 = vand.u32 %v6019, 4294901760
      %v6021 = vsub.f32 %v6019, %v6020
      %v6022 = vand.u32 %v6021, 4294901760
      %6023 = vmatprep.mubr.f32.mxu0 %v6022
      %v6024 = vsub.f32 %v1065, %v1065
      %v6025 = vand.u32 %v6024, 4294901760
      %v6026 = vsub.f32 %v6024, %v6025
      %v6027 = vand.u32 %v6026, 4294901760
      %6028 = vmatmul.mubr.f32.gmra.mrb[0].mxu0 %v6027
      %v6029 = vpop.f32.mrb[0].mxu0
      %v6030 = vadd.f32 %v5139, %v6029
      %v6031 = vpop.f32.mrb[0].mxu0
      %v6032 = vsub.f32 %v1068, %v1068
      %v6033 = vand.u32 %v6032, 4294901760
      %v6034 = vsub.f32 %v6032, %v6033
      %v6035 = vand.u32 %v6034, 4294901760
      %6036 = vmatprep.mubr.f32.mxu0 %v6035
      %v6037 = vsub.f32 %v1067, %v1067
      %v6038 = vand.u32 %v6037, 4294901760
      %v6039 = vsub.f32 %v6037, %v6038
      %v6040 = vand.u32 %v6039, 4294901760
      %6041 = vmatmul.mubr.f32.gmra.mrb[0].mxu0 %v6040
      %v6042 = vpop.f32.mrb[0].mxu0
      %v6043 = vadd.f32 %v5140, %v6042
      %v6044 = vpop.f32.mrb[0].mxu0
      %v6045 = vsub.f32 %v1070, %v1070
      %v6046 = vand.u32 %v6045, 4294901760
      %v6047 = vsub.f32 %v6045, %v6046
      %v6048 = vand.u32 %v6047, 4294901760
      %6049 = vmatprep.mubr.f32.mxu0 %v6048
      %v6050 = vsub.f32 %v1069, %v1069
      %v6051 = vand.u32 %v6050, 4294901760
      %v6052 = vsub.f32 %v6050, %v6051
      %v6053 = vand.u32 %v6052, 4294901760
      %6054 = vmatmul.mubr.f32.gmra.mrb[0].mxu0 %v6053
      %v6055 = vpop.f32.mrb[0].mxu0
      %v6056 = vadd.f32 %v5141, %v6055
      %v6057 = vpop.f32.mrb[0].mxu0
      %v6058 = vsub.f32 %v1072, %v1072
      %v6059 = vand.u32 %v6058, 4294901760
      %v6060 = vsub.f32 %v6058, %v6059
      %v6061 = vand.u32 %v6060, 4294901760
      %6062 = vmatprep.mubr.f32.mxu0 %v6061
      %v6063 = vsub.f32 %v1071, %v1071
      %v6064 = vand.u32 %v6063, 4294901760
      %v6065 = vsub.f32 %v6063, %v6064
      %v6066 = vand.u32 %v6065, 4294901760
      %6067 = vmatmul.mubr.f32.gmra.mrb[0].mxu0 %v6066
      %v6068 = vpop.f32.mrb[0].mxu0
      %v6069 = vadd.f32 %v5142, %v6068
      %v6070 = vpop.f32.mrb[0].mxu0
      %6071 = vdwg.mxu0
      %6072 = vmatprep.subr.mxu0 0.0
      %v6073 = vand.u32 %v1073, 4294901760
      %v6074 = vsub.f32 %v1073, %v6073
      %v6075 = vand.u32 %v6074, 4294901760
      %v6076 = vsub.f32 %v6074, %v6075
      %v6077 = vand.u32 %v6076, 4294901760
      %6078 = vmatpush1.msra.mxu0 %v6077
      %6079 = vmatprep.subr.mxu0 0.0
      %v6080 = vand.u32 %v1074, 4294901760
      %v6081 = vsub.f32 %v1074, %v6080
      %v6082 = vand.u32 %v6081, 4294901760
      %v6083 = vsub.f32 %v6081, %v6082
      %v6084 = vand.u32 %v6083, 4294901760
      %6085 = vmatpush1.msra.mxu0 %v6084
      %6086 = vmatprep.subr.mxu0 0.0
      %v6087 = vand.u32 %v1075, 4294901760
      %v6088 = vsub.f32 %v1075, %v6087
      %v6089 = vand.u32 %v6088, 4294901760
      %v6090 = vsub.f32 %v6088, %v6089
      %v6091 = vand.u32 %v6090, 4294901760
      %6092 = vmatpush1.msra.mxu0 %v6091
      %6093 = vmatprep.subr.mxu0 0.0
      %v6094 = vand.u32 %v1076, 4294901760
      %v6095 = vsub.f32 %v1076, %v6094
      %v6096 = vand.u32 %v6095, 4294901760
      %v6097 = vsub.f32 %v6095, %v6096
      %v6098 = vand.u32 %v6097, 4294901760
      %6099 = vmatpush1.msra.mxu0 %v6098
      %6100 = vmatprep.subr.mxu0 0.0
      %v6101 = vand.u32 %v1077, 4294901760
      %v6102 = vsub.f32 %v1077, %v6101
      %v6103 = vand.u32 %v6102, 4294901760
      %v6104 = vsub.f32 %v6102, %v6103
      %v6105 = vand.u32 %v6104, 4294901760
      %6106 = vmatpush1.msra.mxu0 %v6105
      %6107 = vmatprep.subr.mxu0 0.0
      %v6108 = vand.u32 %v1078, 4294901760
      %v6109 = vsub.f32 %v1078, %v6108
      %v6110 = vand.u32 %v6109, 4294901760
      %v6111 = vsub.f32 %v6109, %v6110
      %v6112 = vand.u32 %v6111, 4294901760
      %6113 = vmatpush1.msra.mxu0 %v6112
      %6114 = vmatprep.subr.mxu0 0.0
      %v6115 = vand.u32 %v1079, 4294901760
      %v6116 = vsub.f32 %v1079, %v6115
      %v6117 = vand.u32 %v6116, 4294901760
      %v6118 = vsub.f32 %v6116, %v6117
      %v6119 = vand.u32 %v6118, 4294901760
      %6120 = vmatpush1.msra.mxu0 %v6119
      %6121 = vmatprep.subr.mxu0 0.0
      %v6122 = vand.u32 %v1080, 4294901760
      %v6123 = vsub.f32 %v1080, %v6122
      %v6124 = vand.u32 %v6123, 4294901760
      %v6125 = vsub.f32 %v6123, %v6124
      %v6126 = vand.u32 %v6125, 4294901760
      %6127 = vmatpush1.msra.mxu0 %v6126
      %6128 = vmatprep.subr.mxu0 0.0
      %v6129 = vand.u32 %v1081, 4294901760
      %v6130 = vsub.f32 %v1081, %v6129
      %v6131 = vand.u32 %v6130, 4294901760
      %v6132 = vsub.f32 %v6130, %v6131
      %v6133 = vand.u32 %v6132, 4294901760
      %6134 = vmatpush1.msra.mxu0 %v6133
      %6135 = vmatprep.subr.mxu0 0.0
      %v6136 = vand.u32 %v1082, 4294901760
      %v6137 = vsub.f32 %v1082, %v6136
      %v6138 = vand.u32 %v6137, 4294901760
      %v6139 = vsub.f32 %v6137, %v6138
      %v6140 = vand.u32 %v6139, 4294901760
      %6141 = vmatpush1.msra.mxu0 %v6140
      %6142 = vmatprep.subr.mxu0 0.0
      %v6143 = vand.u32 %v1083, 4294901760
      %v6144 = vsub.f32 %v1083, %v6143
      %v6145 = vand.u32 %v6144, 4294901760
      %v6146 = vsub.f32 %v6144, %v6145
      %v6147 = vand.u32 %v6146, 4294901760
      %6148 = vmatpush1.msra.mxu0 %v6147
      %6149 = vmatprep.subr.mxu0 0.0
      %v6150 = vand.u32 %v1084, 4294901760
      %v6151 = vsub.f32 %v1084, %v6150
      %v6152 = vand.u32 %v6151, 4294901760
      %v6153 = vsub.f32 %v6151, %v6152
      %v6154 = vand.u32 %v6153, 4294901760
      %6155 = vmatpush1.msra.mxu0 %v6154
      %6156 = vmatprep.subr.mxu0 0.0
      %v6157 = vand.u32 %v1085, 4294901760
      %v6158 = vsub.f32 %v1085, %v6157
      %v6159 = vand.u32 %v6158, 4294901760
      %v6160 = vsub.f32 %v6158, %v6159
      %v6161 = vand.u32 %v6160, 4294901760
      %6162 = vmatpush1.msra.mxu0 %v6161
      %6163 = vmatprep.subr.mxu0 0.0
      %v6164 = vand.u32 %v1086, 4294901760
      %v6165 = vsub.f32 %v1086, %v6164
      %v6166 = vand.u32 %v6165, 4294901760
      %v6167 = vsub.f32 %v6165, %v6166
      %v6168 = vand.u32 %v6167, 4294901760
      %6169 = vmatpush1.msra.mxu0 %v6168
      %6170 = vmatprep.subr.mxu0 0.0
      %v6171 = vand.u32 %v1087, 4294901760
      %v6172 = vsub.f32 %v1087, %v6171
      %v6173 = vand.u32 %v6172, 4294901760
      %v6174 = vsub.f32 %v6172, %v6173
      %v6175 = vand.u32 %v6174, 4294901760
      %6176 = vmatpush1.msra.mxu0 %v6175
      %6177 = vmatprep.subr.mxu0 0.0
      %v6178 = vand.u32 %v1088, 4294901760
      %v6179 = vsub.f32 %v1088, %v6178
      %v6180 = vand.u32 %v6179, 4294901760
      %v6181 = vsub.f32 %v6179, %v6180
      %v6182 = vand.u32 %v6181, 4294901760
      %6183 = vmatpush1.msra.mxu0 %v6182
      %6184 = vmatprep.subr.mxu0 0.0
      %v6185 = vand.u32 %v1089, 4294901760
      %v6186 = vsub.f32 %v1089, %v6185
      %v6187 = vand.u32 %v6186, 4294901760
      %v6188 = vsub.f32 %v6186, %v6187
      %v6189 = vand.u32 %v6188, 4294901760
      %6190 = vmatpush1.msra.mxu0 %v6189
      %6191 = vmatprep.subr.mxu0 0.0
      %v6192 = vand.u32 %v1090, 4294901760
      %v6193 = vsub.f32 %v1090, %v6192
      %v6194 = vand.u32 %v6193, 4294901760
      %v6195 = vsub.f32 %v6193, %v6194
      %v6196 = vand.u32 %v6195, 4294901760
      %6197 = vmatpush1.msra.mxu0 %v6196
      %6198 = vmatprep.subr.mxu0 0.0
      %v6199 = vand.u32 %v1091, 4294901760
      %v6200 = vsub.f32 %v1091, %v6199
      %v6201 = vand.u32 %v6200, 4294901760
      %v6202 = vsub.f32 %v6200, %v6201
      %v6203 = vand.u32 %v6202, 4294901760
      %6204 = vmatpush1.msra.mxu0 %v6203
      %6205 = vmatprep.subr.mxu0 0.0
      %v6206 = vand.u32 %v1092, 4294901760
      %v6207 = vsub.f32 %v1092, %v6206
      %v6208 = vand.u32 %v6207, 4294901760
      %v6209 = vsub.f32 %v6207, %v6208
      %v6210 = vand.u32 %v6209, 4294901760
      %6211 = vmatpush1.msra.mxu0 %v6210
      %6212 = vmatprep.subr.mxu0 0.0
      %v6213 = vand.u32 %v1093, 4294901760
      %v6214 = vsub.f32 %v1093, %v6213
      %v6215 = vand.u32 %v6214, 4294901760
      %v6216 = vsub.f32 %v6214, %v6215
      %v6217 = vand.u32 %v6216, 4294901760
      %6218 = vmatpush1.msra.mxu0 %v6217
      %6219 = vmatprep.subr.mxu0 0.0
      %v6220 = vand.u32 %v1094, 4294901760
      %v6221 = vsub.f32 %v1094, %v6220
      %v6222 = vand.u32 %v6221, 4294901760
      %v6223 = vsub.f32 %v6221, %v6222
      %v6224 = vand.u32 %v6223, 4294901760
      %6225 = vmatpush1.msra.mxu0 %v6224
      %6226 = vmatprep.subr.mxu0 0.0
      %v6227 = vand.u32 %v1095, 4294901760
      %v6228 = vsub.f32 %v1095, %v6227
      %v6229 = vand.u32 %v6228, 4294901760
      %v6230 = vsub.f32 %v6228, %v6229
      %v6231 = vand.u32 %v6230, 4294901760
      %6232 = vmatpush1.msra.mxu0 %v6231
      %6233 = vmatprep.subr.mxu0 0.0
      %v6234 = vand.u32 %v1096, 4294901760
      %v6235 = vsub.f32 %v1096, %v6234
      %v6236 = vand.u32 %v6235, 4294901760
      %v6237 = vsub.f32 %v6235, %v6236
      %v6238 = vand.u32 %v6237, 4294901760
      %6239 = vmatpush1.msra.mxu0 %v6238
      %6240 = vmatprep.subr.mxu0 0.0
      %v6241 = vand.u32 %v1097, 4294901760
      %v6242 = vsub.f32 %v1097, %v6241
      %v6243 = vand.u32 %v6242, 4294901760
      %v6244 = vsub.f32 %v6242, %v6243
      %v6245 = vand.u32 %v6244, 4294901760
      %6246 = vmatpush1.msra.mxu0 %v6245
      %6247 = vmatprep.subr.mxu0 0.0
      %v6248 = vand.u32 %v1098, 4294901760
      %v6249 = vsub.f32 %v1098, %v6248
      %v6250 = vand.u32 %v6249, 4294901760
      %v6251 = vsub.f32 %v6249, %v6250
      %v6252 = vand.u32 %v6251, 4294901760
      %6253 = vmatpush1.msra.mxu0 %v6252
      %6254 = vmatprep.subr.mxu0 0.0
      %v6255 = vand.u32 %v1099, 4294901760
      %v6256 = vsub.f32 %v1099, %v6255
      %v6257 = vand.u32 %v6256, 4294901760
      %v6258 = vsub.f32 %v6256, %v6257
      %v6259 = vand.u32 %v6258, 4294901760
      %6260 = vmatpush1.msra.mxu0 %v6259
      %6261 = vmatprep.subr.mxu0 0.0
      %v6262 = vand.u32 %v1100, 4294901760
      %v6263 = vsub.f32 %v1100, %v6262
      %v6264 = vand.u32 %v6263, 4294901760
      %v6265 = vsub.f32 %v6263, %v6264
      %v6266 = vand.u32 %v6265, 4294901760
      %6267 = vmatpush1.msra.mxu0 %v6266
      %6268 = vmatprep.subr.mxu0 0.0
      %v6269 = vand.u32 %v1101, 4294901760
      %v6270 = vsub.f32 %v1101, %v6269
      %v6271 = vand.u32 %v6270, 4294901760
      %v6272 = vsub.f32 %v6270, %v6271
      %v6273 = vand.u32 %v6272, 4294901760
      %6274 = vmatpush1.msra.mxu0 %v6273
      %6275 = vmatprep.subr.mxu0 0.0
      %v6276 = vand.u32 %v1102, 4294901760
      %v6277 = vsub.f32 %v1102, %v6276
      %v6278 = vand.u32 %v6277, 4294901760
      %v6279 = vsub.f32 %v6277, %v6278
      %v6280 = vand.u32 %v6279, 4294901760
      %6281 = vmatpush1.msra.mxu0 %v6280
      %6282 = vmatprep.subr.mxu0 0.0
      %v6283 = vand.u32 %v1103, 4294901760
      %v6284 = vsub.f32 %v1103, %v6283
      %v6285 = vand.u32 %v6284, 4294901760
      %v6286 = vsub.f32 %v6284, %v6285
      %v6287 = vand.u32 %v6286, 4294901760
      %6288 = vmatpush1.msra.mxu0 %v6287
      %6289 = vmatprep.subr.mxu0 0.0
      %v6290 = vand.u32 %v1104, 4294901760
      %v6291 = vsub.f32 %v1104, %v6290
      %v6292 = vand.u32 %v6291, 4294901760
      %v6293 = vsub.f32 %v6291, %v6292
      %v6294 = vand.u32 %v6293, 4294901760
      %6295 = vmatpush1.msra.mxu0 %v6294
      %6296 = vmatprep.mubr.f32.mxu0 %v946
      %6297 = vmatmul.mubr.f32.gmra.mrb[0].mxu0 %v945
      %v6298 = vpop.f32.mrb[0].mxu0
      %v6299 = vadd.f32 %v5250, %v6298
      %v6300 = vpop.f32.mrb[0].mxu0
      %6301 = vmatprep.mubr.f32.mxu0 %v948
      %6302 = vmatmul.mubr.f32.gmra.mrb[0].mxu0 %v947
      %v6303 = vpop.f32.mrb[0].mxu0
      %v6304 = vadd.f32 %v5263, %v6303
      %v6305 = vpop.f32.mrb[0].mxu0
      %6306 = vmatprep.mubr.f32.mxu0 %v950
      %6307 = vmatmul.mubr.f32.gmra.mrb[0].mxu0 %v949
      %v6308 = vpop.f32.mrb[0].mxu0
      %v6309 = vadd.f32 %v5276, %v6308
      %v6310 = vpop.f32.mrb[0].mxu0
      %6311 = vmatprep.mubr.f32.mxu0 %v952
      %6312 = vmatmul.mubr.f32.gmra.mrb[0].mxu0 %v951
      %v6313 = vpop.f32.mrb[0].mxu0
      %v6314 = vadd.f32 %v5289, %v6313
      %v6315 = vpop.f32.mrb[0].mxu0
      %6316 = vmatprep.mubr.f32.mxu0 %v954
      %6317 = vmatmul.mubr.f32.gmra.mrb[0].mxu0 %v953
      %v6318 = vpop.f32.mrb[0].mxu0
      %v6319 = vadd.f32 %v5302, %v6318
      %v6320 = vpop.f32.mrb[0].mxu0
      %6321 = vmatprep.mubr.f32.mxu0 %v956
      %6322 = vmatmul.mubr.f32.gmra.mrb[0].mxu0 %v955
      %v6323 = vpop.f32.mrb[0].mxu0
      %v6324 = vadd.f32 %v5315, %v6323
      %v6325 = vpop.f32.mrb[0].mxu0
      %6326 = vmatprep.mubr.f32.mxu0 %v958
      %6327 = vmatmul.mubr.f32.gmra.mrb[0].mxu0 %v957
      %v6328 = vpop.f32.mrb[0].mxu0
      %v6329 = vadd.f32 %v5328, %v6328
      %v6330 = vpop.f32.mrb[0].mxu0
      %6331 = vmatprep.mubr.f32.mxu0 %v960
      %6332 = vmatmul.mubr.f32.gmra.mrb[0].mxu0 %v959
      %v6333 = vpop.f32.mrb[0].mxu0
      %v6334 = vadd.f32 %v5341, %v6333
      %v6335 = vpop.f32.mrb[0].mxu0
      %6336 = vmatprep.mubr.f32.mxu0 %v962
      %6337 = vmatmul.mubr.f32.gmra.mrb[0].mxu0 %v961
      %v6338 = vpop.f32.mrb[0].mxu0
      %v6339 = vadd.f32 %v5354, %v6338
      %v6340 = vpop.f32.mrb[0].mxu0
      %6341 = vmatprep.mubr.f32.mxu0 %v964
      %6342 = vmatmul.mubr.f32.gmra.mrb[0].mxu0 %v963
      %v6343 = vpop.f32.mrb[0].mxu0
      %v6344 = vadd.f32 %v5367, %v6343
      %v6345 = vpop.f32.mrb[0].mxu0
      %6346 = vmatprep.mubr.f32.mxu0 %v966
      %6347 = vmatmul.mubr.f32.gmra.mrb[0].mxu0 %v965
      %v6348 = vpop.f32.mrb[0].mxu0
      %v6349 = vadd.f32 %v5380, %v6348
      %v6350 = vpop.f32.mrb[0].mxu0
      %6351 = vmatprep.mubr.f32.mxu0 %v968
      %6352 = vmatmul.mubr.f32.gmra.mrb[0].mxu0 %v967
      %v6353 = vpop.f32.mrb[0].mxu0
      %v6354 = vadd.f32 %v5393, %v6353
      %v6355 = vpop.f32.mrb[0].mxu0
      %6356 = vmatprep.mubr.f32.mxu0 %v970
      %6357 = vmatmul.mubr.f32.gmra.mrb[0].mxu0 %v969
      %v6358 = vpop.f32.mrb[0].mxu0
      %v6359 = vadd.f32 %v5406, %v6358
      %v6360 = vpop.f32.mrb[0].mxu0
      %6361 = vmatprep.mubr.f32.mxu0 %v972
      %6362 = vmatmul.mubr.f32.gmra.mrb[0].mxu0 %v971
      %v6363 = vpop.f32.mrb[0].mxu0
      %v6364 = vadd.f32 %v5419, %v6363
      %v6365 = vpop.f32.mrb[0].mxu0
      %6366 = vmatprep.mubr.f32.mxu0 %v974
      %6367 = vmatmul.mubr.f32.gmra.mrb[0].mxu0 %v973
      %v6368 = vpop.f32.mrb[0].mxu0
      %v6369 = vadd.f32 %v5432, %v6368
      %v6370 = vpop.f32.mrb[0].mxu0
      %6371 = vmatprep.mubr.f32.mxu0 %v976
      %6372 = vmatmul.mubr.f32.gmra.mrb[0].mxu0 %v975
      %v6373 = vpop.f32.mrb[0].mxu0
      %v6374 = vadd.f32 %v5445, %v6373
      %v6375 = vpop.f32.mrb[0].mxu0
      %6376 = vmatprep.mubr.f32.mxu0 %v978
      %6377 = vmatmul.mubr.f32.gmra.mrb[0].mxu0 %v977
      %v6378 = vpop.f32.mrb[0].mxu0
      %v6379 = vadd.f32 %v5458, %v6378
      %v6380 = vpop.f32.mrb[0].mxu0
      %6381 = vmatprep.mubr.f32.mxu0 %v980
      %6382 = vmatmul.mubr.f32.gmra.mrb[0].mxu0 %v979
      %v6383 = vpop.f32.mrb[0].mxu0
      %v6384 = vadd.f32 %v5471, %v6383
      %v6385 = vpop.f32.mrb[0].mxu0
      %6386 = vmatprep.mubr.f32.mxu0 %v982
      %6387 = vmatmul.mubr.f32.gmra.mrb[0].mxu0 %v981
      %v6388 = vpop.f32.mrb[0].mxu0
      %v6389 = vadd.f32 %v5484, %v6388
      %v6390 = vpop.f32.mrb[0].mxu0
      %6391 = vmatprep.mubr.f32.mxu0 %v984
      %6392 = vmatmul.mubr.f32.gmra.mrb[0].mxu0 %v983
      %v6393 = vpop.f32.mrb[0].mxu0
      %v6394 = vadd.f32 %v5497, %v6393
      %v6395 = vpop.f32.mrb[0].mxu0
      %6396 = vmatprep.mubr.f32.mxu0 %v986
      %6397 = vmatmul.mubr.f32.gmra.mrb[0].mxu0 %v985
      %v6398 = vpop.f32.mrb[0].mxu0
      %v6399 = vadd.f32 %v5510, %v6398
      %v6400 = vpop.f32.mrb[0].mxu0
      %6401 = vmatprep.mubr.f32.mxu0 %v988
      %6402 = vmatmul.mubr.f32.gmra.mrb[0].mxu0 %v987
      %v6403 = vpop.f32.mrb[0].mxu0
      %v6404 = vadd.f32 %v5523, %v6403
      %v6405 = vpop.f32.mrb[0].mxu0
      %6406 = vmatprep.mubr.f32.mxu0 %v990
      %6407 = vmatmul.mubr.f32.gmra.mrb[0].mxu0 %v989
      %v6408 = vpop.f32.mrb[0].mxu0
      %v6409 = vadd.f32 %v5536, %v6408
      %v6410 = vpop.f32.mrb[0].mxu0
      %6411 = vmatprep.mubr.f32.mxu0 %v992
      %6412 = vmatmul.mubr.f32.gmra.mrb[0].mxu0 %v991
      %v6413 = vpop.f32.mrb[0].mxu0
      %v6414 = vadd.f32 %v5549, %v6413
      %v6415 = vpop.f32.mrb[0].mxu0
      %6416 = vmatprep.mubr.f32.mxu0 %v994
      %6417 = vmatmul.mubr.f32.gmra.mrb[0].mxu0 %v993
      %v6418 = vpop.f32.mrb[0].mxu0
      %v6419 = vadd.f32 %v5562, %v6418
      %v6420 = vpop.f32.mrb[0].mxu0
      %6421 = vmatprep.mubr.f32.mxu0 %v996
      %6422 = vmatmul.mubr.f32.gmra.mrb[0].mxu0 %v995
      %v6423 = vpop.f32.mrb[0].mxu0
      %v6424 = vadd.f32 %v5575, %v6423
      %v6425 = vpop.f32.mrb[0].mxu0
      %6426 = vmatprep.mubr.f32.mxu0 %v998
      %6427 = vmatmul.mubr.f32.gmra.mrb[0].mxu0 %v997
      %v6428 = vpop.f32.mrb[0].mxu0
      %v6429 = vadd.f32 %v5588, %v6428
      %v6430 = vpop.f32.mrb[0].mxu0
      %6431 = vmatprep.mubr.f32.mxu0 %v1000
      %6432 = vmatmul.mubr.f32.gmra.mrb[0].mxu0 %v999
      %v6433 = vpop.f32.mrb[0].mxu0
      %v6434 = vadd.f32 %v5601, %v6433
      %v6435 = vpop.f32.mrb[0].mxu0
      %6436 = vmatprep.mubr.f32.mxu0 %v1002
      %6437 = vmatmul.mubr.f32.gmra.mrb[0].mxu0 %v1001
      %v6438 = vpop.f32.mrb[0].mxu0
      %v6439 = vadd.f32 %v5614, %v6438
      %v6440 = vpop.f32.mrb[0].mxu0
      %6441 = vmatprep.mubr.f32.mxu0 %v1004
      %6442 = vmatmul.mubr.f32.gmra.mrb[0].mxu0 %v1003
      %v6443 = vpop.f32.mrb[0].mxu0
      %v6444 = vadd.f32 %v5627, %v6443
      %v6445 = vpop.f32.mrb[0].mxu0
      %6446 = vmatprep.mubr.f32.mxu0 %v1006
      %6447 = vmatmul.mubr.f32.gmra.mrb[0].mxu0 %v1005
      %v6448 = vpop.f32.mrb[0].mxu0
      %v6449 = vadd.f32 %v5640, %v6448
      %v6450 = vpop.f32.mrb[0].mxu0
      %6451 = vmatprep.mubr.f32.mxu0 %v1008
      %6452 = vmatmul.mubr.f32.gmra.mrb[0].mxu0 %v1007
      %v6453 = vpop.f32.mrb[0].mxu0
      %v6454 = vadd.f32 %v5653, %v6453
      %v6455 = vpop.f32.mrb[0].mxu0
      %6456 = vmatprep.mubr.f32.mxu0 %v1010
      %6457 = vmatmul.mubr.f32.gmra.mrb[0].mxu0 %v1009
      %v6458 = vpop.f32.mrb[0].mxu0
      %v6459 = vadd.f32 %v5666, %v6458
      %v6460 = vpop.f32.mrb[0].mxu0
      %6461 = vmatprep.mubr.f32.mxu0 %v1012
      %6462 = vmatmul.mubr.f32.gmra.mrb[0].mxu0 %v1011
      %v6463 = vpop.f32.mrb[0].mxu0
      %v6464 = vadd.f32 %v5679, %v6463
      %v6465 = vpop.f32.mrb[0].mxu0
      %6466 = vmatprep.mubr.f32.mxu0 %v1014
      %6467 = vmatmul.mubr.f32.gmra.mrb[0].mxu0 %v1013
      %v6468 = vpop.f32.mrb[0].mxu0
      %v6469 = vadd.f32 %v5692, %v6468
      %v6470 = vpop.f32.mrb[0].mxu0
      %6471 = vmatprep.mubr.f32.mxu0 %v1016
      %6472 = vmatmul.mubr.f32.gmra.mrb[0].mxu0 %v1015
      %v6473 = vpop.f32.mrb[0].mxu0
      %v6474 = vadd.f32 %v5705, %v6473
      %v6475 = vpop.f32.mrb[0].mxu0
      %6476 = vmatprep.mubr.f32.mxu0 %v1018
      %6477 = vmatmul.mubr.f32.gmra.mrb[0].mxu0 %v1017
      %v6478 = vpop.f32.mrb[0].mxu0
      %v6479 = vadd.f32 %v5718, %v6478
      %v6480 = vpop.f32.mrb[0].mxu0
      %6481 = vmatprep.mubr.f32.mxu0 %v1020
      %6482 = vmatmul.mubr.f32.gmra.mrb[0].mxu0 %v1019
      %v6483 = vpop.f32.mrb[0].mxu0
      %v6484 = vadd.f32 %v5731, %v6483
      %v6485 = vpop.f32.mrb[0].mxu0
      %6486 = vmatprep.mubr.f32.mxu0 %v1022
      %6487 = vmatmul.mubr.f32.gmra.mrb[0].mxu0 %v1021
      %v6488 = vpop.f32.mrb[0].mxu0
      %v6489 = vadd.f32 %v5744, %v6488
      %v6490 = vpop.f32.mrb[0].mxu0
      %6491 = vmatprep.mubr.f32.mxu0 %v1024
      %6492 = vmatmul.mubr.f32.gmra.mrb[0].mxu0 %v1023
      %v6493 = vpop.f32.mrb[0].mxu0
      %v6494 = vadd.f32 %v5757, %v6493
      %v6495 = vpop.f32.mrb[0].mxu0
      %6496 = vmatprep.mubr.f32.mxu0 %v1026
      %6497 = vmatmul.mubr.f32.gmra.mrb[0].mxu0 %v1025
      %v6498 = vpop.f32.mrb[0].mxu0
      %v6499 = vadd.f32 %v5770, %v6498
      %v6500 = vpop.f32.mrb[0].mxu0
      %6501 = vmatprep.mubr.f32.mxu0 %v1028
      %6502 = vmatmul.mubr.f32.gmra.mrb[0].mxu0 %v1027
      %v6503 = vpop.f32.mrb[0].mxu0
      %v6504 = vadd.f32 %v5783, %v6503
      %v6505 = vpop.f32.mrb[0].mxu0
      %6506 = vmatprep.mubr.f32.mxu0 %v1030
      %6507 = vmatmul.mubr.f32.gmra.mrb[0].mxu0 %v1029
      %v6508 = vpop.f32.mrb[0].mxu0
      %v6509 = vadd.f32 %v5796, %v6508
      %v6510 = vpop.f32.mrb[0].mxu0
      %6511 = vmatprep.mubr.f32.mxu0 %v1032
      %6512 = vmatmul.mubr.f32.gmra.mrb[0].mxu0 %v1031
      %v6513 = vpop.f32.mrb[0].mxu0
      %v6514 = vadd.f32 %v5809, %v6513
      %v6515 = vpop.f32.mrb[0].mxu0
      %6516 = vmatprep.mubr.f32.mxu0 %v1034
      %6517 = vmatmul.mubr.f32.gmra.mrb[0].mxu0 %v1033
      %v6518 = vpop.f32.mrb[0].mxu0
      %v6519 = vadd.f32 %v5822, %v6518
      %v6520 = vpop.f32.mrb[0].mxu0
      %6521 = vmatprep.mubr.f32.mxu0 %v1036
      %6522 = vmatmul.mubr.f32.gmra.mrb[0].mxu0 %v1035
      %v6523 = vpop.f32.mrb[0].mxu0
      %v6524 = vadd.f32 %v5835, %v6523
      %v6525 = vpop.f32.mrb[0].mxu0
      %6526 = vmatprep.mubr.f32.mxu0 %v1038
      %6527 = vmatmul.mubr.f32.gmra.mrb[0].mxu0 %v1037
      %v6528 = vpop.f32.mrb[0].mxu0
      %v6529 = vadd.f32 %v5848, %v6528
      %v6530 = vpop.f32.mrb[0].mxu0
      %6531 = vmatprep.mubr.f32.mxu0 %v1040
      %6532 = vmatmul.mubr.f32.gmra.mrb[0].mxu0 %v1039
      %v6533 = vpop.f32.mrb[0].mxu0
      %v6534 = vadd.f32 %v5861, %v6533
      %v6535 = vpop.f32.mrb[0].mxu0
      %6536 = vmatprep.mubr.f32.mxu0 %v1042
      %6537 = vmatmul.mubr.f32.gmra.mrb[0].mxu0 %v1041
      %v6538 = vpop.f32.mrb[0].mxu0
      %v6539 = vadd.f32 %v5874, %v6538
      %v6540 = vpop.f32.mrb[0].mxu0
      %6541 = vmatprep.mubr.f32.mxu0 %v1044
      %6542 = vmatmul.mubr.f32.gmra.mrb[0].mxu0 %v1043
      %v6543 = vpop.f32.mrb[0].mxu0
      %v6544 = vadd.f32 %v5887, %v6543
      %v6545 = vpop.f32.mrb[0].mxu0
      %6546 = vmatprep.mubr.f32.mxu0 %v1046
      %6547 = vmatmul.mubr.f32.gmra.mrb[0].mxu0 %v1045
      %v6548 = vpop.f32.mrb[0].mxu0
      %v6549 = vadd.f32 %v5900, %v6548
      %v6550 = vpop.f32.mrb[0].mxu0
      %6551 = vmatprep.mubr.f32.mxu0 %v1048
      %6552 = vmatmul.mubr.f32.gmra.mrb[0].mxu0 %v1047
      %v6553 = vpop.f32.mrb[0].mxu0
      %v6554 = vadd.f32 %v5913, %v6553
      %v6555 = vpop.f32.mrb[0].mxu0
      %6556 = vmatprep.mubr.f32.mxu0 %v1050
      %6557 = vmatmul.mubr.f32.gmra.mrb[0].mxu0 %v1049
      %v6558 = vpop.f32.mrb[0].mxu0
      %v6559 = vadd.f32 %v5926, %v6558
      %v6560 = vpop.f32.mrb[0].mxu0
      %6561 = vmatprep.mubr.f32.mxu0 %v1052
      %6562 = vmatmul.mubr.f32.gmra.mrb[0].mxu0 %v1051
      %v6563 = vpop.f32.mrb[0].mxu0
      %v6564 = vadd.f32 %v5939, %v6563
      %v6565 = vpop.f32.mrb[0].mxu0
      %6566 = vmatprep.mubr.f32.mxu0 %v1054
      %6567 = vmatmul.mubr.f32.gmra.mrb[0].mxu0 %v1053
      %v6568 = vpop.f32.mrb[0].mxu0
      %v6569 = vadd.f32 %v5952, %v6568
      %v6570 = vpop.f32.mrb[0].mxu0
      %6571 = vmatprep.mubr.f32.mxu0 %v1056
      %6572 = vmatmul.mubr.f32.gmra.mrb[0].mxu0 %v1055
      %v6573 = vpop.f32.mrb[0].mxu0
      %v6574 = vadd.f32 %v5965, %v6573
      %v6575 = vpop.f32.mrb[0].mxu0
      %6576 = vmatprep.mubr.f32.mxu0 %v1058
      %6577 = vmatmul.mubr.f32.gmra.mrb[0].mxu0 %v1057
      %v6578 = vpop.f32.mrb[0].mxu0
      %v6579 = vadd.f32 %v5978, %v6578
      %v6580 = vpop.f32.mrb[0].mxu0
      %6581 = vmatprep.mubr.f32.mxu0 %v1060
      %6582 = vmatmul.mubr.f32.gmra.mrb[0].mxu0 %v1059
      %v6583 = vpop.f32.mrb[0].mxu0
      %v6584 = vadd.f32 %v5991, %v6583
      %v6585 = vpop.f32.mrb[0].mxu0
      %6586 = vmatprep.mubr.f32.mxu0 %v1062
      %6587 = vmatmul.mubr.f32.gmra.mrb[0].mxu0 %v1061
      %v6588 = vpop.f32.mrb[0].mxu0
      %v6589 = vadd.f32 %v6004, %v6588
      %v6590 = vpop.f32.mrb[0].mxu0
      %6591 = vmatprep.mubr.f32.mxu0 %v1064
      %6592 = vmatmul.mubr.f32.gmra.mrb[0].mxu0 %v1063
      %v6593 = vpop.f32.mrb[0].mxu0
      %v6594 = vadd.f32 %v6017, %v6593
      %v6595 = vpop.f32.mrb[0].mxu0
      %6596 = vmatprep.mubr.f32.mxu0 %v1066
      %6597 = vmatmul.mubr.f32.gmra.mrb[0].mxu0 %v1065
      %v6598 = vpop.f32.mrb[0].mxu0
      %v6599 = vadd.f32 %v6030, %v6598
      %v6600 = vpop.f32.mrb[0].mxu0
      %6601 = vmatprep.mubr.f32.mxu0 %v1068
      %6602 = vmatmul.mubr.f32.gmra.mrb[0].mxu0 %v1067
      %v6603 = vpop.f32.mrb[0].mxu0
      %v6604 = vadd.f32 %v6043, %v6603
      %v6605 = vpop.f32.mrb[0].mxu0
      %6606 = vmatprep.mubr.f32.mxu0 %v1070
      %6607 = vmatmul.mubr.f32.gmra.mrb[0].mxu0 %v1069
      %v6608 = vpop.f32.mrb[0].mxu0
      %v6609 = vadd.f32 %v6056, %v6608
      %v6610 = vpop.f32.mrb[0].mxu0
      %6611 = vmatprep.mubr.f32.mxu0 %v1072
      %6612 = vmatmul.mubr.f32.gmra.mrb[0].mxu0 %v1071
      %v6613 = vpop.f32.mrb[0].mxu0
      %v6614 = vadd.f32 %v6069, %v6613
      %v6615 = vpop.f32.mrb[0].mxu0
      %6616 = vdwg.mxu0
      %6617 = vmatprep.subr.mxu0 0.0
      %v6618 = vand.u32 %v1073, 4294901760
      %v6619 = vsub.f32 %v1073, %v6618
      %6620 = vmatpush1.msra.mxu0 %v6619
      %6621 = vmatprep.subr.mxu0 0.0
      %v6622 = vand.u32 %v1074, 4294901760
      %v6623 = vsub.f32 %v1074, %v6622
      %6624 = vmatpush1.msra.mxu0 %v6623
      %6625 = vmatprep.subr.mxu0 0.0
      %v6626 = vand.u32 %v1075, 4294901760
      %v6627 = vsub.f32 %v1075, %v6626
      %6628 = vmatpush1.msra.mxu0 %v6627
      %6629 = vmatprep.subr.mxu0 0.0
      %v6630 = vand.u32 %v1076, 4294901760
      %v6631 = vsub.f32 %v1076, %v6630
      %6632 = vmatpush1.msra.mxu0 %v6631
      %6633 = vmatprep.subr.mxu0 0.0
      %v6634 = vand.u32 %v1077, 4294901760
      %v6635 = vsub.f32 %v1077, %v6634
      %6636 = vmatpush1.msra.mxu0 %v6635
      %6637 = vmatprep.subr.mxu0 0.0
      %v6638 = vand.u32 %v1078, 4294901760
      %v6639 = vsub.f32 %v1078, %v6638
      %6640 = vmatpush1.msra.mxu0 %v6639
      %6641 = vmatprep.subr.mxu0 0.0
      %v6642 = vand.u32 %v1079, 4294901760
      %v6643 = vsub.f32 %v1079, %v6642
      %6644 = vmatpush1.msra.mxu0 %v6643
      %6645 = vmatprep.subr.mxu0 0.0
      %v6646 = vand.u32 %v1080, 4294901760
      %v6647 = vsub.f32 %v1080, %v6646
      %6648 = vmatpush1.msra.mxu0 %v6647
      %6649 = vmatprep.subr.mxu0 0.0
      %v6650 = vand.u32 %v1081, 4294901760
      %v6651 = vsub.f32 %v1081, %v6650
      %6652 = vmatpush1.msra.mxu0 %v6651
      %6653 = vmatprep.subr.mxu0 0.0
      %v6654 = vand.u32 %v1082, 4294901760
      %v6655 = vsub.f32 %v1082, %v6654
      %6656 = vmatpush1.msra.mxu0 %v6655
      %6657 = vmatprep.subr.mxu0 0.0
      %v6658 = vand.u32 %v1083, 4294901760
      %v6659 = vsub.f32 %v1083, %v6658
      %6660 = vmatpush1.msra.mxu0 %v6659
      %6661 = vmatprep.subr.mxu0 0.0
      %v6662 = vand.u32 %v1084, 4294901760
      %v6663 = vsub.f32 %v1084, %v6662
      %6664 = vmatpush1.msra.mxu0 %v6663
      %6665 = vmatprep.subr.mxu0 0.0
      %v6666 = vand.u32 %v1085, 4294901760
      %v6667 = vsub.f32 %v1085, %v6666
      %6668 = vmatpush1.msra.mxu0 %v6667
      %6669 = vmatprep.subr.mxu0 0.0
      %v6670 = vand.u32 %v1086, 4294901760
      %v6671 = vsub.f32 %v1086, %v6670
      %6672 = vmatpush1.msra.mxu0 %v6671
      %6673 = vmatprep.subr.mxu0 0.0
      %v6674 = vand.u32 %v1087, 4294901760
      %v6675 = vsub.f32 %v1087, %v6674
      %6676 = vmatpush1.msra.mxu0 %v6675
      %6677 = vmatprep.subr.mxu0 0.0
      %v6678 = vand.u32 %v1088, 4294901760
      %v6679 = vsub.f32 %v1088, %v6678
      %6680 = vmatpush1.msra.mxu0 %v6679
      %6681 = vmatprep.subr.mxu0 0.0
      %v6682 = vand.u32 %v1089, 4294901760
      %v6683 = vsub.f32 %v1089, %v6682
      %6684 = vmatpush1.msra.mxu0 %v6683
      %6685 = vmatprep.subr.mxu0 0.0
      %v6686 = vand.u32 %v1090, 4294901760
      %v6687 = vsub.f32 %v1090, %v6686
      %6688 = vmatpush1.msra.mxu0 %v6687
      %6689 = vmatprep.subr.mxu0 0.0
      %v6690 = vand.u32 %v1091, 4294901760
      %v6691 = vsub.f32 %v1091, %v6690
      %6692 = vmatpush1.msra.mxu0 %v6691
      %6693 = vmatprep.subr.mxu0 0.0
      %v6694 = vand.u32 %v1092, 4294901760
      %v6695 = vsub.f32 %v1092, %v6694
      %6696 = vmatpush1.msra.mxu0 %v6695
      %6697 = vmatprep.subr.mxu0 0.0
      %v6698 = vand.u32 %v1093, 4294901760
      %v6699 = vsub.f32 %v1093, %v6698
      %6700 = vmatpush1.msra.mxu0 %v6699
      %6701 = vmatprep.subr.mxu0 0.0
      %v6702 = vand.u32 %v1094, 4294901760
      %v6703 = vsub.f32 %v1094, %v6702
      %6704 = vmatpush1.msra.mxu0 %v6703
      %6705 = vmatprep.subr.mxu0 0.0
      %v6706 = vand.u32 %v1095, 4294901760
      %v6707 = vsub.f32 %v1095, %v6706
      %6708 = vmatpush1.msra.mxu0 %v6707
      %6709 = vmatprep.subr.mxu0 0.0
      %v6710 = vand.u32 %v1096, 4294901760
      %v6711 = vsub.f32 %v1096, %v6710
      %6712 = vmatpush1.msra.mxu0 %v6711
      %6713 = vmatprep.subr.mxu0 0.0
      %v6714 = vand.u32 %v1097, 4294901760
      %v6715 = vsub.f32 %v1097, %v6714
      %6716 = vmatpush1.msra.mxu0 %v6715
      %6717 = vmatprep.subr.mxu0 0.0
      %v6718 = vand.u32 %v1098, 4294901760
      %v6719 = vsub.f32 %v1098, %v6718
      %6720 = vmatpush1.msra.mxu0 %v6719
      %6721 = vmatprep.subr.mxu0 0.0
      %v6722 = vand.u32 %v1099, 4294901760
      %v6723 = vsub.f32 %v1099, %v6722
      %6724 = vmatpush1.msra.mxu0 %v6723
      %6725 = vmatprep.subr.mxu0 0.0
      %v6726 = vand.u32 %v1100, 4294901760
      %v6727 = vsub.f32 %v1100, %v6726
      %6728 = vmatpush1.msra.mxu0 %v6727
      %6729 = vmatprep.subr.mxu0 0.0
      %v6730 = vand.u32 %v1101, 4294901760
      %v6731 = vsub.f32 %v1101, %v6730
      %6732 = vmatpush1.msra.mxu0 %v6731
      %6733 = vmatprep.subr.mxu0 0.0
      %v6734 = vand.u32 %v1102, 4294901760
      %v6735 = vsub.f32 %v1102, %v6734
      %6736 = vmatpush1.msra.mxu0 %v6735
      %6737 = vmatprep.subr.mxu0 0.0
      %v6738 = vand.u32 %v1103, 4294901760
      %v6739 = vsub.f32 %v1103, %v6738
      %6740 = vmatpush1.msra.mxu0 %v6739
      %6741 = vmatprep.subr.mxu0 0.0
      %v6742 = vand.u32 %v1104, 4294901760
      %v6743 = vsub.f32 %v1104, %v6742
      %6744 = vmatpush1.msra.mxu0 %v6743
      %v6745 = vsub.f32 %v946, %v946
      %6746 = vmatprep.mubr.f32.mxu0 %v6745
      %v6747 = vsub.f32 %v945, %v945
      %6748 = vmatmul.mubr.f32.gmra.mrb[0].mxu0 %v6747
      %v6749 = vpop.f32.mrb[0].mxu0
      %v6750 = vadd.f32 %v6299, %v6749
      %v6751 = vpop.f32.mrb[0].mxu0
      %v6752 = vsub.f32 %v948, %v948
      %6753 = vmatprep.mubr.f32.mxu0 %v6752
      %v6754 = vsub.f32 %v947, %v947
      %6755 = vmatmul.mubr.f32.gmra.mrb[0].mxu0 %v6754
      %v6756 = vpop.f32.mrb[0].mxu0
      %v6757 = vadd.f32 %v6304, %v6756
      %v6758 = vpop.f32.mrb[0].mxu0
      %v6759 = vsub.f32 %v950, %v950
      %6760 = vmatprep.mubr.f32.mxu0 %v6759
      %v6761 = vsub.f32 %v949, %v949
      %6762 = vmatmul.mubr.f32.gmra.mrb[0].mxu0 %v6761
      %v6763 = vpop.f32.mrb[0].mxu0
      %v6764 = vadd.f32 %v6309, %v6763
      %v6765 = vpop.f32.mrb[0].mxu0
      %v6766 = vsub.f32 %v952, %v952
      %6767 = vmatprep.mubr.f32.mxu0 %v6766
      %v6768 = vsub.f32 %v951, %v951
      %6769 = vmatmul.mubr.f32.gmra.mrb[0].mxu0 %v6768
      %v6770 = vpop.f32.mrb[0].mxu0
      %v6771 = vadd.f32 %v6314, %v6770
      %v6772 = vpop.f32.mrb[0].mxu0
      %v6773 = vsub.f32 %v954, %v954
      %6774 = vmatprep.mubr.f32.mxu0 %v6773
      %v6775 = vsub.f32 %v953, %v953
      %6776 = vmatmul.mubr.f32.gmra.mrb[0].mxu0 %v6775
      %v6777 = vpop.f32.mrb[0].mxu0
      %v6778 = vadd.f32 %v6319, %v6777
      %v6779 = vpop.f32.mrb[0].mxu0
      %v6780 = vsub.f32 %v956, %v956
      %6781 = vmatprep.mubr.f32.mxu0 %v6780
      %v6782 = vsub.f32 %v955, %v955
      %6783 = vmatmul.mubr.f32.gmra.mrb[0].mxu0 %v6782
      %v6784 = vpop.f32.mrb[0].mxu0
      %v6785 = vadd.f32 %v6324, %v6784
      %v6786 = vpop.f32.mrb[0].mxu0
      %v6787 = vsub.f32 %v958, %v958
      %6788 = vmatprep.mubr.f32.mxu0 %v6787
      %v6789 = vsub.f32 %v957, %v957
      %6790 = vmatmul.mubr.f32.gmra.mrb[0].mxu0 %v6789
      %v6791 = vpop.f32.mrb[0].mxu0
      %v6792 = vadd.f32 %v6329, %v6791
      %v6793 = vpop.f32.mrb[0].mxu0
      %v6794 = vsub.f32 %v960, %v960
      %6795 = vmatprep.mubr.f32.mxu0 %v6794
      %v6796 = vsub.f32 %v959, %v959
      %6797 = vmatmul.mubr.f32.gmra.mrb[0].mxu0 %v6796
      %v6798 = vpop.f32.mrb[0].mxu0
      %v6799 = vadd.f32 %v6334, %v6798
      %v6800 = vpop.f32.mrb[0].mxu0
      %v6801 = vsub.f32 %v962, %v962
      %6802 = vmatprep.mubr.f32.mxu0 %v6801
      %v6803 = vsub.f32 %v961, %v961
      %6804 = vmatmul.mubr.f32.gmra.mrb[0].mxu0 %v6803
      %v6805 = vpop.f32.mrb[0].mxu0
      %v6806 = vadd.f32 %v6339, %v6805
      %v6807 = vpop.f32.mrb[0].mxu0
      %v6808 = vsub.f32 %v964, %v964
      %6809 = vmatprep.mubr.f32.mxu0 %v6808
      %v6810 = vsub.f32 %v963, %v963
      %6811 = vmatmul.mubr.f32.gmra.mrb[0].mxu0 %v6810
      %v6812 = vpop.f32.mrb[0].mxu0
      %v6813 = vadd.f32 %v6344, %v6812
      %v6814 = vpop.f32.mrb[0].mxu0
      %v6815 = vsub.f32 %v966, %v966
      %6816 = vmatprep.mubr.f32.mxu0 %v6815
      %v6817 = vsub.f32 %v965, %v965
      %6818 = vmatmul.mubr.f32.gmra.mrb[0].mxu0 %v6817
      %v6819 = vpop.f32.mrb[0].mxu0
      %v6820 = vadd.f32 %v6349, %v6819
      %v6821 = vpop.f32.mrb[0].mxu0
      %v6822 = vsub.f32 %v968, %v968
      %6823 = vmatprep.mubr.f32.mxu0 %v6822
      %v6824 = vsub.f32 %v967, %v967
      %6825 = vmatmul.mubr.f32.gmra.mrb[0].mxu0 %v6824
      %v6826 = vpop.f32.mrb[0].mxu0
      %v6827 = vadd.f32 %v6354, %v6826
      %v6828 = vpop.f32.mrb[0].mxu0
      %v6829 = vsub.f32 %v970, %v970
      %6830 = vmatprep.mubr.f32.mxu0 %v6829
      %v6831 = vsub.f32 %v969, %v969
      %6832 = vmatmul.mubr.f32.gmra.mrb[0].mxu0 %v6831
      %v6833 = vpop.f32.mrb[0].mxu0
      %v6834 = vadd.f32 %v6359, %v6833
      %v6835 = vpop.f32.mrb[0].mxu0
      %v6836 = vsub.f32 %v972, %v972
      %6837 = vmatprep.mubr.f32.mxu0 %v6836
      %v6838 = vsub.f32 %v971, %v971
      %6839 = vmatmul.mubr.f32.gmra.mrb[0].mxu0 %v6838
      %v6840 = vpop.f32.mrb[0].mxu0
      %v6841 = vadd.f32 %v6364, %v6840
      %v6842 = vpop.f32.mrb[0].mxu0
      %v6843 = vsub.f32 %v974, %v974
      %6844 = vmatprep.mubr.f32.mxu0 %v6843
      %v6845 = vsub.f32 %v973, %v973
      %6846 = vmatmul.mubr.f32.gmra.mrb[0].mxu0 %v6845
      %v6847 = vpop.f32.mrb[0].mxu0
      %v6848 = vadd.f32 %v6369, %v6847
      %v6849 = vpop.f32.mrb[0].mxu0
      %v6850 = vsub.f32 %v976, %v976
      %6851 = vmatprep.mubr.f32.mxu0 %v6850
      %v6852 = vsub.f32 %v975, %v975
      %6853 = vmatmul.mubr.f32.gmra.mrb[0].mxu0 %v6852
      %v6854 = vpop.f32.mrb[0].mxu0
      %v6855 = vadd.f32 %v6374, %v6854
      %v6856 = vpop.f32.mrb[0].mxu0
      %v6857 = vsub.f32 %v978, %v978
      %6858 = vmatprep.mubr.f32.mxu0 %v6857
      %v6859 = vsub.f32 %v977, %v977
      %6860 = vmatmul.mubr.f32.gmra.mrb[0].mxu0 %v6859
      %v6861 = vpop.f32.mrb[0].mxu0
      %v6862 = vadd.f32 %v6379, %v6861
      %v6863 = vpop.f32.mrb[0].mxu0
      %v6864 = vsub.f32 %v980, %v980
      %6865 = vmatprep.mubr.f32.mxu0 %v6864
      %v6866 = vsub.f32 %v979, %v979
      %6867 = vmatmul.mubr.f32.gmra.mrb[0].mxu0 %v6866
      %v6868 = vpop.f32.mrb[0].mxu0
      %v6869 = vadd.f32 %v6384, %v6868
      %v6870 = vpop.f32.mrb[0].mxu0
      %v6871 = vsub.f32 %v982, %v982
      %6872 = vmatprep.mubr.f32.mxu0 %v6871
      %v6873 = vsub.f32 %v981, %v981
      %6874 = vmatmul.mubr.f32.gmra.mrb[0].mxu0 %v6873
      %v6875 = vpop.f32.mrb[0].mxu0
      %v6876 = vadd.f32 %v6389, %v6875
      %v6877 = vpop.f32.mrb[0].mxu0
      %v6878 = vsub.f32 %v984, %v984
      %6879 = vmatprep.mubr.f32.mxu0 %v6878
      %v6880 = vsub.f32 %v983, %v983
      %6881 = vmatmul.mubr.f32.gmra.mrb[0].mxu0 %v6880
      %v6882 = vpop.f32.mrb[0].mxu0
      %v6883 = vadd.f32 %v6394, %v6882
      %v6884 = vpop.f32.mrb[0].mxu0
      %v6885 = vsub.f32 %v986, %v986
      %6886 = vmatprep.mubr.f32.mxu0 %v6885
      %v6887 = vsub.f32 %v985, %v985
      %6888 = vmatmul.mubr.f32.gmra.mrb[0].mxu0 %v6887
      %v6889 = vpop.f32.mrb[0].mxu0
      %v6890 = vadd.f32 %v6399, %v6889
      %v6891 = vpop.f32.mrb[0].mxu0
      %v6892 = vsub.f32 %v988, %v988
      %6893 = vmatprep.mubr.f32.mxu0 %v6892
      %v6894 = vsub.f32 %v987, %v987
      %6895 = vmatmul.mubr.f32.gmra.mrb[0].mxu0 %v6894
      %v6896 = vpop.f32.mrb[0].mxu0
      %v6897 = vadd.f32 %v6404, %v6896
      %v6898 = vpop.f32.mrb[0].mxu0
      %v6899 = vsub.f32 %v990, %v990
      %6900 = vmatprep.mubr.f32.mxu0 %v6899
      %v6901 = vsub.f32 %v989, %v989
      %6902 = vmatmul.mubr.f32.gmra.mrb[0].mxu0 %v6901
      %v6903 = vpop.f32.mrb[0].mxu0
      %v6904 = vadd.f32 %v6409, %v6903
      %v6905 = vpop.f32.mrb[0].mxu0
      %v6906 = vsub.f32 %v992, %v992
      %6907 = vmatprep.mubr.f32.mxu0 %v6906
      %v6908 = vsub.f32 %v991, %v991
      %6909 = vmatmul.mubr.f32.gmra.mrb[0].mxu0 %v6908
      %v6910 = vpop.f32.mrb[0].mxu0
      %v6911 = vadd.f32 %v6414, %v6910
      %v6912 = vpop.f32.mrb[0].mxu0
      %v6913 = vsub.f32 %v994, %v994
      %6914 = vmatprep.mubr.f32.mxu0 %v6913
      %v6915 = vsub.f32 %v993, %v993
      %6916 = vmatmul.mubr.f32.gmra.mrb[0].mxu0 %v6915
      %v6917 = vpop.f32.mrb[0].mxu0
      %v6918 = vadd.f32 %v6419, %v6917
      %v6919 = vpop.f32.mrb[0].mxu0
      %v6920 = vsub.f32 %v996, %v996
      %6921 = vmatprep.mubr.f32.mxu0 %v6920
      %v6922 = vsub.f32 %v995, %v995
      %6923 = vmatmul.mubr.f32.gmra.mrb[0].mxu0 %v6922
      %v6924 = vpop.f32.mrb[0].mxu0
      %v6925 = vadd.f32 %v6424, %v6924
      %v6926 = vpop.f32.mrb[0].mxu0
      %v6927 = vsub.f32 %v998, %v998
      %6928 = vmatprep.mubr.f32.mxu0 %v6927
      %v6929 = vsub.f32 %v997, %v997
      %6930 = vmatmul.mubr.f32.gmra.mrb[0].mxu0 %v6929
      %v6931 = vpop.f32.mrb[0].mxu0
      %v6932 = vadd.f32 %v6429, %v6931
      %v6933 = vpop.f32.mrb[0].mxu0
      %v6934 = vsub.f32 %v1000, %v1000
      %6935 = vmatprep.mubr.f32.mxu0 %v6934
      %v6936 = vsub.f32 %v999, %v999
      %6937 = vmatmul.mubr.f32.gmra.mrb[0].mxu0 %v6936
      %v6938 = vpop.f32.mrb[0].mxu0
      %v6939 = vadd.f32 %v6434, %v6938
      %v6940 = vpop.f32.mrb[0].mxu0
      %v6941 = vsub.f32 %v1002, %v1002
      %6942 = vmatprep.mubr.f32.mxu0 %v6941
      %v6943 = vsub.f32 %v1001, %v1001
      %6944 = vmatmul.mubr.f32.gmra.mrb[0].mxu0 %v6943
      %v6945 = vpop.f32.mrb[0].mxu0
      %v6946 = vadd.f32 %v6439, %v6945
      %v6947 = vpop.f32.mrb[0].mxu0
      %v6948 = vsub.f32 %v1004, %v1004
      %6949 = vmatprep.mubr.f32.mxu0 %v6948
      %v6950 = vsub.f32 %v1003, %v1003
      %6951 = vmatmul.mubr.f32.gmra.mrb[0].mxu0 %v6950
      %v6952 = vpop.f32.mrb[0].mxu0
      %v6953 = vadd.f32 %v6444, %v6952
      %v6954 = vpop.f32.mrb[0].mxu0
      %v6955 = vsub.f32 %v1006, %v1006
      %6956 = vmatprep.mubr.f32.mxu0 %v6955
      %v6957 = vsub.f32 %v1005, %v1005
      %6958 = vmatmul.mubr.f32.gmra.mrb[0].mxu0 %v6957
      %v6959 = vpop.f32.mrb[0].mxu0
      %v6960 = vadd.f32 %v6449, %v6959
      %v6961 = vpop.f32.mrb[0].mxu0
      %v6962 = vsub.f32 %v1008, %v1008
      %6963 = vmatprep.mubr.f32.mxu0 %v6962
      %v6964 = vsub.f32 %v1007, %v1007
      %6965 = vmatmul.mubr.f32.gmra.mrb[0].mxu0 %v6964
      %v6966 = vpop.f32.mrb[0].mxu0
      %v6967 = vadd.f32 %v6454, %v6966
      %v6968 = vpop.f32.mrb[0].mxu0
      %v6969 = vsub.f32 %v1010, %v1010
      %6970 = vmatprep.mubr.f32.mxu0 %v6969
      %v6971 = vsub.f32 %v1009, %v1009
      %6972 = vmatmul.mubr.f32.gmra.mrb[0].mxu0 %v6971
      %v6973 = vpop.f32.mrb[0].mxu0
      %v6974 = vadd.f32 %v6459, %v6973
      %v6975 = vpop.f32.mrb[0].mxu0
      %v6976 = vsub.f32 %v1012, %v1012
      %6977 = vmatprep.mubr.f32.mxu0 %v6976
      %v6978 = vsub.f32 %v1011, %v1011
      %6979 = vmatmul.mubr.f32.gmra.mrb[0].mxu0 %v6978
      %v6980 = vpop.f32.mrb[0].mxu0
      %v6981 = vadd.f32 %v6464, %v6980
      %v6982 = vpop.f32.mrb[0].mxu0
      %v6983 = vsub.f32 %v1014, %v1014
      %6984 = vmatprep.mubr.f32.mxu0 %v6983
      %v6985 = vsub.f32 %v1013, %v1013
      %6986 = vmatmul.mubr.f32.gmra.mrb[0].mxu0 %v6985
      %v6987 = vpop.f32.mrb[0].mxu0
      %v6988 = vadd.f32 %v6469, %v6987
      %v6989 = vpop.f32.mrb[0].mxu0
      %v6990 = vsub.f32 %v1016, %v1016
      %6991 = vmatprep.mubr.f32.mxu0 %v6990
      %v6992 = vsub.f32 %v1015, %v1015
      %6993 = vmatmul.mubr.f32.gmra.mrb[0].mxu0 %v6992
      %v6994 = vpop.f32.mrb[0].mxu0
      %v6995 = vadd.f32 %v6474, %v6994
      %v6996 = vpop.f32.mrb[0].mxu0
      %v6997 = vsub.f32 %v1018, %v1018
      %6998 = vmatprep.mubr.f32.mxu0 %v6997
      %v6999 = vsub.f32 %v1017, %v1017
      %7000 = vmatmul.mubr.f32.gmra.mrb[0].mxu0 %v6999
      %v7001 = vpop.f32.mrb[0].mxu0
      %v7002 = vadd.f32 %v6479, %v7001
      %v7003 = vpop.f32.mrb[0].mxu0
      %v7004 = vsub.f32 %v1020, %v1020
      %7005 = vmatprep.mubr.f32.mxu0 %v7004
      %v7006 = vsub.f32 %v1019, %v1019
      %7007 = vmatmul.mubr.f32.gmra.mrb[0].mxu0 %v7006
      %v7008 = vpop.f32.mrb[0].mxu0
      %v7009 = vadd.f32 %v6484, %v7008
      %v7010 = vpop.f32.mrb[0].mxu0
      %v7011 = vsub.f32 %v1022, %v1022
      %7012 = vmatprep.mubr.f32.mxu0 %v7011
      %v7013 = vsub.f32 %v1021, %v1021
      %7014 = vmatmul.mubr.f32.gmra.mrb[0].mxu0 %v7013
      %v7015 = vpop.f32.mrb[0].mxu0
      %v7016 = vadd.f32 %v6489, %v7015
      %v7017 = vpop.f32.mrb[0].mxu0
      %v7018 = vsub.f32 %v1024, %v1024
      %7019 = vmatprep.mubr.f32.mxu0 %v7018
      %v7020 = vsub.f32 %v1023, %v1023
      %7021 = vmatmul.mubr.f32.gmra.mrb[0].mxu0 %v7020
      %v7022 = vpop.f32.mrb[0].mxu0
      %v7023 = vadd.f32 %v6494, %v7022
      %v7024 = vpop.f32.mrb[0].mxu0
      %v7025 = vsub.f32 %v1026, %v1026
      %7026 = vmatprep.mubr.f32.mxu0 %v7025
      %v7027 = vsub.f32 %v1025, %v1025
      %7028 = vmatmul.mubr.f32.gmra.mrb[0].mxu0 %v7027
      %v7029 = vpop.f32.mrb[0].mxu0
      %v7030 = vadd.f32 %v6499, %v7029
      %v7031 = vpop.f32.mrb[0].mxu0
      %v7032 = vsub.f32 %v1028, %v1028
      %7033 = vmatprep.mubr.f32.mxu0 %v7032
      %v7034 = vsub.f32 %v1027, %v1027
      %7035 = vmatmul.mubr.f32.gmra.mrb[0].mxu0 %v7034
      %v7036 = vpop.f32.mrb[0].mxu0
      %v7037 = vadd.f32 %v6504, %v7036
      %v7038 = vpop.f32.mrb[0].mxu0
      %v7039 = vsub.f32 %v1030, %v1030
      %7040 = vmatprep.mubr.f32.mxu0 %v7039
      %v7041 = vsub.f32 %v1029, %v1029
      %7042 = vmatmul.mubr.f32.gmra.mrb[0].mxu0 %v7041
      %v7043 = vpop.f32.mrb[0].mxu0
      %v7044 = vadd.f32 %v6509, %v7043
      %v7045 = vpop.f32.mrb[0].mxu0
      %v7046 = vsub.f32 %v1032, %v1032
      %7047 = vmatprep.mubr.f32.mxu0 %v7046
      %v7048 = vsub.f32 %v1031, %v1031
      %7049 = vmatmul.mubr.f32.gmra.mrb[0].mxu0 %v7048
      %v7050 = vpop.f32.mrb[0].mxu0
      %v7051 = vadd.f32 %v6514, %v7050
      %v7052 = vpop.f32.mrb[0].mxu0
      %v7053 = vsub.f32 %v1034, %v1034
      %7054 = vmatprep.mubr.f32.mxu0 %v7053
      %v7055 = vsub.f32 %v1033, %v1033
      %7056 = vmatmul.mubr.f32.gmra.mrb[0].mxu0 %v7055
      %v7057 = vpop.f32.mrb[0].mxu0
      %v7058 = vadd.f32 %v6519, %v7057
      %v7059 = vpop.f32.mrb[0].mxu0
      %v7060 = vsub.f32 %v1036, %v1036
      %7061 = vmatprep.mubr.f32.mxu0 %v7060
      %v7062 = vsub.f32 %v1035, %v1035
      %7063 = vmatmul.mubr.f32.gmra.mrb[0].mxu0 %v7062
      %v7064 = vpop.f32.mrb[0].mxu0
      %v7065 = vadd.f32 %v6524, %v7064
      %v7066 = vpop.f32.mrb[0].mxu0
      %v7067 = vsub.f32 %v1038, %v1038
      %7068 = vmatprep.mubr.f32.mxu0 %v7067
      %v7069 = vsub.f32 %v1037, %v1037
      %7070 = vmatmul.mubr.f32.gmra.mrb[0].mxu0 %v7069
      %v7071 = vpop.f32.mrb[0].mxu0
      %v7072 = vadd.f32 %v6529, %v7071
      %v7073 = vpop.f32.mrb[0].mxu0
      %v7074 = vsub.f32 %v1040, %v1040
      %7075 = vmatprep.mubr.f32.mxu0 %v7074
      %v7076 = vsub.f32 %v1039, %v1039
      %7077 = vmatmul.mubr.f32.gmra.mrb[0].mxu0 %v7076
      %v7078 = vpop.f32.mrb[0].mxu0
      %v7079 = vadd.f32 %v6534, %v7078
      %v7080 = vpop.f32.mrb[0].mxu0
      %v7081 = vsub.f32 %v1042, %v1042
      %7082 = vmatprep.mubr.f32.mxu0 %v7081
      %v7083 = vsub.f32 %v1041, %v1041
      %7084 = vmatmul.mubr.f32.gmra.mrb[0].mxu0 %v7083
      %v7085 = vpop.f32.mrb[0].mxu0
      %v7086 = vadd.f32 %v6539, %v7085
      %v7087 = vpop.f32.mrb[0].mxu0
      %v7088 = vsub.f32 %v1044, %v1044
      %7089 = vmatprep.mubr.f32.mxu0 %v7088
      %v7090 = vsub.f32 %v1043, %v1043
      %7091 = vmatmul.mubr.f32.gmra.mrb[0].mxu0 %v7090
      %v7092 = vpop.f32.mrb[0].mxu0
      %v7093 = vadd.f32 %v6544, %v7092
      %v7094 = vpop.f32.mrb[0].mxu0
      %v7095 = vsub.f32 %v1046, %v1046
      %7096 = vmatprep.mubr.f32.mxu0 %v7095
      %v7097 = vsub.f32 %v1045, %v1045
      %7098 = vmatmul.mubr.f32.gmra.mrb[0].mxu0 %v7097
      %v7099 = vpop.f32.mrb[0].mxu0
      %v7100 = vadd.f32 %v6549, %v7099
      %v7101 = vpop.f32.mrb[0].mxu0
      %v7102 = vsub.f32 %v1048, %v1048
      %7103 = vmatprep.mubr.f32.mxu0 %v7102
      %v7104 = vsub.f32 %v1047, %v1047
      %7105 = vmatmul.mubr.f32.gmra.mrb[0].mxu0 %v7104
      %v7106 = vpop.f32.mrb[0].mxu0
      %v7107 = vadd.f32 %v6554, %v7106
      %v7108 = vpop.f32.mrb[0].mxu0
      %v7109 = vsub.f32 %v1050, %v1050
      %7110 = vmatprep.mubr.f32.mxu0 %v7109
      %v7111 = vsub.f32 %v1049, %v1049
      %7112 = vmatmul.mubr.f32.gmra.mrb[0].mxu0 %v7111
      %v7113 = vpop.f32.mrb[0].mxu0
      %v7114 = vadd.f32 %v6559, %v7113
      %v7115 = vpop.f32.mrb[0].mxu0
      %v7116 = vsub.f32 %v1052, %v1052
      %7117 = vmatprep.mubr.f32.mxu0 %v7116
      %v7118 = vsub.f32 %v1051, %v1051
      %7119 = vmatmul.mubr.f32.gmra.mrb[0].mxu0 %v7118
      %v7120 = vpop.f32.mrb[0].mxu0
      %v7121 = vadd.f32 %v6564, %v7120
      %v7122 = vpop.f32.mrb[0].mxu0
      %v7123 = vsub.f32 %v1054, %v1054
      %7124 = vmatprep.mubr.f32.mxu0 %v7123
      %v7125 = vsub.f32 %v1053, %v1053
      %7126 = vmatmul.mubr.f32.gmra.mrb[0].mxu0 %v7125
      %v7127 = vpop.f32.mrb[0].mxu0
      %v7128 = vadd.f32 %v6569, %v7127
      %v7129 = vpop.f32.mrb[0].mxu0
      %v7130 = vsub.f32 %v1056, %v1056
      %7131 = vmatprep.mubr.f32.mxu0 %v7130
      %v7132 = vsub.f32 %v1055, %v1055
      %7133 = vmatmul.mubr.f32.gmra.mrb[0].mxu0 %v7132
      %v7134 = vpop.f32.mrb[0].mxu0
      %v7135 = vadd.f32 %v6574, %v7134
      %v7136 = vpop.f32.mrb[0].mxu0
      %v7137 = vsub.f32 %v1058, %v1058
      %7138 = vmatprep.mubr.f32.mxu0 %v7137
      %v7139 = vsub.f32 %v1057, %v1057
      %7140 = vmatmul.mubr.f32.gmra.mrb[0].mxu0 %v7139
      %v7141 = vpop.f32.mrb[0].mxu0
      %v7142 = vadd.f32 %v6579, %v7141
      %v7143 = vpop.f32.mrb[0].mxu0
      %v7144 = vsub.f32 %v1060, %v1060
      %7145 = vmatprep.mubr.f32.mxu0 %v7144
      %v7146 = vsub.f32 %v1059, %v1059
      %7147 = vmatmul.mubr.f32.gmra.mrb[0].mxu0 %v7146
      %v7148 = vpop.f32.mrb[0].mxu0
      %v7149 = vadd.f32 %v6584, %v7148
      %v7150 = vpop.f32.mrb[0].mxu0
      %v7151 = vsub.f32 %v1062, %v1062
      %7152 = vmatprep.mubr.f32.mxu0 %v7151
      %v7153 = vsub.f32 %v1061, %v1061
      %7154 = vmatmul.mubr.f32.gmra.mrb[0].mxu0 %v7153
      %v7155 = vpop.f32.mrb[0].mxu0
      %v7156 = vadd.f32 %v6589, %v7155
      %v7157 = vpop.f32.mrb[0].mxu0
      %v7158 = vsub.f32 %v1064, %v1064
      %7159 = vmatprep.mubr.f32.mxu0 %v7158
      %v7160 = vsub.f32 %v1063, %v1063
      %7161 = vmatmul.mubr.f32.gmra.mrb[0].mxu0 %v7160
      %v7162 = vpop.f32.mrb[0].mxu0
      %v7163 = vadd.f32 %v6594, %v7162
      %v7164 = vpop.f32.mrb[0].mxu0
      %v7165 = vsub.f32 %v1066, %v1066
      %7166 = vmatprep.mubr.f32.mxu0 %v7165
      %v7167 = vsub.f32 %v1065, %v1065
      %7168 = vmatmul.mubr.f32.gmra.mrb[0].mxu0 %v7167
      %v7169 = vpop.f32.mrb[0].mxu0
      %v7170 = vadd.f32 %v6599, %v7169
      %v7171 = vpop.f32.mrb[0].mxu0
      %v7172 = vsub.f32 %v1068, %v1068
      %7173 = vmatprep.mubr.f32.mxu0 %v7172
      %v7174 = vsub.f32 %v1067, %v1067
      %7175 = vmatmul.mubr.f32.gmra.mrb[0].mxu0 %v7174
      %v7176 = vpop.f32.mrb[0].mxu0
      %v7177 = vadd.f32 %v6604, %v7176
      %v7178 = vpop.f32.mrb[0].mxu0
      %v7179 = vsub.f32 %v1070, %v1070
      %7180 = vmatprep.mubr.f32.mxu0 %v7179
      %v7181 = vsub.f32 %v1069, %v1069
      %7182 = vmatmul.mubr.f32.gmra.mrb[0].mxu0 %v7181
      %v7183 = vpop.f32.mrb[0].mxu0
      %v7184 = vadd.f32 %v6609, %v7183
      %v7185 = vpop.f32.mrb[0].mxu0
      %v7186 = vsub.f32 %v1072, %v1072
      %7187 = vmatprep.mubr.f32.mxu0 %v7186
      %v7188 = vsub.f32 %v1071, %v1071
      %7189 = vmatmul.mubr.f32.gmra.mrb[0].mxu0 %v7188
      %v7190 = vpop.f32.mrb[0].mxu0
      %v7191 = vadd.f32 %v6614, %v7190
      %v7192 = vpop.f32.mrb[0].mxu0
      %7193 = vdwg.mxu0
      %7194 = vmatprep.subr.mxu0 0.0
      %v7195 = vand.u32 %v1073, 4294901760
      %7196 = vmatpush1.msra.mxu0 %v7195
      %7197 = vmatprep.subr.mxu0 0.0
      %v7198 = vand.u32 %v1074, 4294901760
      %7199 = vmatpush1.msra.mxu0 %v7198
      %7200 = vmatprep.subr.mxu0 0.0
      %v7201 = vand.u32 %v1075, 4294901760
      %7202 = vmatpush1.msra.mxu0 %v7201
      %7203 = vmatprep.subr.mxu0 0.0
      %v7204 = vand.u32 %v1076, 4294901760
      %7205 = vmatpush1.msra.mxu0 %v7204
      %7206 = vmatprep.subr.mxu0 0.0
      %v7207 = vand.u32 %v1077, 4294901760
      %7208 = vmatpush1.msra.mxu0 %v7207
      %7209 = vmatprep.subr.mxu0 0.0
      %v7210 = vand.u32 %v1078, 4294901760
      %7211 = vmatpush1.msra.mxu0 %v7210
      %7212 = vmatprep.subr.mxu0 0.0
      %v7213 = vand.u32 %v1079, 4294901760
      %7214 = vmatpush1.msra.mxu0 %v7213
      %7215 = vmatprep.subr.mxu0 0.0
      %v7216 = vand.u32 %v1080, 4294901760
      %7217 = vmatpush1.msra.mxu0 %v7216
      %7218 = vmatprep.subr.mxu0 0.0
      %v7219 = vand.u32 %v1081, 4294901760
      %7220 = vmatpush1.msra.mxu0 %v7219
      %7221 = vmatprep.subr.mxu0 0.0
      %v7222 = vand.u32 %v1082, 4294901760
      %7223 = vmatpush1.msra.mxu0 %v7222
      %7224 = vmatprep.subr.mxu0 0.0
      %v7225 = vand.u32 %v1083, 4294901760
      %7226 = vmatpush1.msra.mxu0 %v7225
      %7227 = vmatprep.subr.mxu0 0.0
      %v7228 = vand.u32 %v1084, 4294901760
      %7229 = vmatpush1.msra.mxu0 %v7228
      %7230 = vmatprep.subr.mxu0 0.0
      %v7231 = vand.u32 %v1085, 4294901760
      %7232 = vmatpush1.msra.mxu0 %v7231
      %7233 = vmatprep.subr.mxu0 0.0
      %v7234 = vand.u32 %v1086, 4294901760
      %7235 = vmatpush1.msra.mxu0 %v7234
      %7236 = vmatprep.subr.mxu0 0.0
      %v7237 = vand.u32 %v1087, 4294901760
      %7238 = vmatpush1.msra.mxu0 %v7237
      %7239 = vmatprep.subr.mxu0 0.0
      %v7240 = vand.u32 %v1088, 4294901760
      %7241 = vmatpush1.msra.mxu0 %v7240
      %7242 = vmatprep.subr.mxu0 0.0
      %v7243 = vand.u32 %v1089, 4294901760
      %7244 = vmatpush1.msra.mxu0 %v7243
      %7245 = vmatprep.subr.mxu0 0.0
      %v7246 = vand.u32 %v1090, 4294901760
      %7247 = vmatpush1.msra.mxu0 %v7246
      %7248 = vmatprep.subr.mxu0 0.0
      %v7249 = vand.u32 %v1091, 4294901760
      %7250 = vmatpush1.msra.mxu0 %v7249
      %7251 = vmatprep.subr.mxu0 0.0
      %v7252 = vand.u32 %v1092, 4294901760
      %7253 = vmatpush1.msra.mxu0 %v7252
      %7254 = vmatprep.subr.mxu0 0.0
      %v7255 = vand.u32 %v1093, 4294901760
      %7256 = vmatpush1.msra.mxu0 %v7255
      %7257 = vmatprep.subr.mxu0 0.0
      %v7258 = vand.u32 %v1094, 4294901760
      %7259 = vmatpush1.msra.mxu0 %v7258
      %7260 = vmatprep.subr.mxu0 0.0
      %v7261 = vand.u32 %v1095, 4294901760
      %7262 = vmatpush1.msra.mxu0 %v7261
      %7263 = vmatprep.subr.mxu0 0.0
      %v7264 = vand.u32 %v1096, 4294901760
      %7265 = vmatpush1.msra.mxu0 %v7264
      %7266 = vmatprep.subr.mxu0 0.0
      %v7267 = vand.u32 %v1097, 4294901760
      %7268 = vmatpush1.msra.mxu0 %v7267
      %7269 = vmatprep.subr.mxu0 0.0
      %v7270 = vand.u32 %v1098, 4294901760
      %7271 = vmatpush1.msra.mxu0 %v7270
      %7272 = vmatprep.subr.mxu0 0.0
      %v7273 = vand.u32 %v1099, 4294901760
      %7274 = vmatpush1.msra.mxu0 %v7273
      %7275 = vmatprep.subr.mxu0 0.0
      %v7276 = vand.u32 %v1100, 4294901760
      %7277 = vmatpush1.msra.mxu0 %v7276
      %7278 = vmatprep.subr.mxu0 0.0
      %v7279 = vand.u32 %v1101, 4294901760
      %7280 = vmatpush1.msra.mxu0 %v7279
      %7281 = vmatprep.subr.mxu0 0.0
      %v7282 = vand.u32 %v1102, 4294901760
      %7283 = vmatpush1.msra.mxu0 %v7282
      %7284 = vmatprep.subr.mxu0 0.0
      %v7285 = vand.u32 %v1103, 4294901760
      %7286 = vmatpush1.msra.mxu0 %v7285
      %7287 = vmatprep.subr.mxu0 0.0
      %v7288 = vand.u32 %v1104, 4294901760
      %7289 = vmatpush1.msra.mxu0 %v7288
      %v7290 = vsub.f32 %v946, %v946
      %v7291 = vand.u32 %v7290, 4294901760
      %7292 = vmatprep.mubr.f32.mxu0 %v7291
      %v7293 = vsub.f32 %v945, %v945
      %v7294 = vand.u32 %v7293, 4294901760
      %7295 = vmatmul.mubr.f32.gmra.mrb[0].mxu0 %v7294
      %v7296 = vpop.f32.mrb[0].mxu0
      %v7297 = vadd.f32 %v6750, %v7296
      %v7298 = vpop.f32.mrb[0].mxu0
      %v7299 = vsub.f32 %v948, %v948
      %v7300 = vand.u32 %v7299, 4294901760
      %7301 = vmatprep.mubr.f32.mxu0 %v7300
      %v7302 = vsub.f32 %v947, %v947
      %v7303 = vand.u32 %v7302, 4294901760
      %7304 = vmatmul.mubr.f32.gmra.mrb[0].mxu0 %v7303
      %v7305 = vpop.f32.mrb[0].mxu0
      %v7306 = vadd.f32 %v6757, %v7305
      %v7307 = vpop.f32.mrb[0].mxu0
      %v7308 = vsub.f32 %v950, %v950
      %v7309 = vand.u32 %v7308, 4294901760
      %7310 = vmatprep.mubr.f32.mxu0 %v7309
      %v7311 = vsub.f32 %v949, %v949
      %v7312 = vand.u32 %v7311, 4294901760
      %7313 = vmatmul.mubr.f32.gmra.mrb[0].mxu0 %v7312
      %v7314 = vpop.f32.mrb[0].mxu0
      %v7315 = vadd.f32 %v6764, %v7314
      %v7316 = vpop.f32.mrb[0].mxu0
      %v7317 = vsub.f32 %v952, %v952
      %v7318 = vand.u32 %v7317, 4294901760
      %7319 = vmatprep.mubr.f32.mxu0 %v7318
      %v7320 = vsub.f32 %v951, %v951
      %v7321 = vand.u32 %v7320, 4294901760
      %7322 = vmatmul.mubr.f32.gmra.mrb[0].mxu0 %v7321
      %v7323 = vpop.f32.mrb[0].mxu0
      %v7324 = vadd.f32 %v6771, %v7323
      %v7325 = vpop.f32.mrb[0].mxu0
      %v7326 = vsub.f32 %v954, %v954
      %v7327 = vand.u32 %v7326, 4294901760
      %7328 = vmatprep.mubr.f32.mxu0 %v7327
      %v7329 = vsub.f32 %v953, %v953
      %v7330 = vand.u32 %v7329, 4294901760
      %7331 = vmatmul.mubr.f32.gmra.mrb[0].mxu0 %v7330
      %v7332 = vpop.f32.mrb[0].mxu0
      %v7333 = vadd.f32 %v6778, %v7332
      %v7334 = vpop.f32.mrb[0].mxu0
      %v7335 = vsub.f32 %v956, %v956
      %v7336 = vand.u32 %v7335, 4294901760
      %7337 = vmatprep.mubr.f32.mxu0 %v7336
      %v7338 = vsub.f32 %v955, %v955
      %v7339 = vand.u32 %v7338, 4294901760
      %7340 = vmatmul.mubr.f32.gmra.mrb[0].mxu0 %v7339
      %v7341 = vpop.f32.mrb[0].mxu0
      %v7342 = vadd.f32 %v6785, %v7341
      %v7343 = vpop.f32.mrb[0].mxu0
      %v7344 = vsub.f32 %v958, %v958
      %v7345 = vand.u32 %v7344, 4294901760
      %7346 = vmatprep.mubr.f32.mxu0 %v7345
      %v7347 = vsub.f32 %v957, %v957
      %v7348 = vand.u32 %v7347, 4294901760
      %7349 = vmatmul.mubr.f32.gmra.mrb[0].mxu0 %v7348
      %v7350 = vpop.f32.mrb[0].mxu0
      %v7351 = vadd.f32 %v6792, %v7350
      %v7352 = vpop.f32.mrb[0].mxu0
      %v7353 = vsub.f32 %v960, %v960
      %v7354 = vand.u32 %v7353, 4294901760
      %7355 = vmatprep.mubr.f32.mxu0 %v7354
      %v7356 = vsub.f32 %v959, %v959
      %v7357 = vand.u32 %v7356, 4294901760
      %7358 = vmatmul.mubr.f32.gmra.mrb[0].mxu0 %v7357
      %v7359 = vpop.f32.mrb[0].mxu0
      %v7360 = vadd.f32 %v6799, %v7359
      %v7361 = vpop.f32.mrb[0].mxu0
      %v7362 = vsub.f32 %v962, %v962
      %v7363 = vand.u32 %v7362, 4294901760
      %7364 = vmatprep.mubr.f32.mxu0 %v7363
      %v7365 = vsub.f32 %v961, %v961
      %v7366 = vand.u32 %v7365, 4294901760
      %7367 = vmatmul.mubr.f32.gmra.mrb[0].mxu0 %v7366
      %v7368 = vpop.f32.mrb[0].mxu0
      %v7369 = vadd.f32 %v6806, %v7368
      %v7370 = vpop.f32.mrb[0].mxu0
      %v7371 = vsub.f32 %v964, %v964
      %v7372 = vand.u32 %v7371, 4294901760
      %7373 = vmatprep.mubr.f32.mxu0 %v7372
      %v7374 = vsub.f32 %v963, %v963
      %v7375 = vand.u32 %v7374, 4294901760
      %7376 = vmatmul.mubr.f32.gmra.mrb[0].mxu0 %v7375
      %v7377 = vpop.f32.mrb[0].mxu0
      %v7378 = vadd.f32 %v6813, %v7377
      %v7379 = vpop.f32.mrb[0].mxu0
      %v7380 = vsub.f32 %v966, %v966
      %v7381 = vand.u32 %v7380, 4294901760
      %7382 = vmatprep.mubr.f32.mxu0 %v7381
      %v7383 = vsub.f32 %v965, %v965
      %v7384 = vand.u32 %v7383, 4294901760
      %7385 = vmatmul.mubr.f32.gmra.mrb[0].mxu0 %v7384
      %v7386 = vpop.f32.mrb[0].mxu0
      %v7387 = vadd.f32 %v6820, %v7386
      %v7388 = vpop.f32.mrb[0].mxu0
      %v7389 = vsub.f32 %v968, %v968
      %v7390 = vand.u32 %v7389, 4294901760
      %7391 = vmatprep.mubr.f32.mxu0 %v7390
      %v7392 = vsub.f32 %v967, %v967
      %v7393 = vand.u32 %v7392, 4294901760
      %7394 = vmatmul.mubr.f32.gmra.mrb[0].mxu0 %v7393
      %v7395 = vpop.f32.mrb[0].mxu0
      %v7396 = vadd.f32 %v6827, %v7395
      %v7397 = vpop.f32.mrb[0].mxu0
      %v7398 = vsub.f32 %v970, %v970
      %v7399 = vand.u32 %v7398, 4294901760
      %7400 = vmatprep.mubr.f32.mxu0 %v7399
      %v7401 = vsub.f32 %v969, %v969
      %v7402 = vand.u32 %v7401, 4294901760
      %7403 = vmatmul.mubr.f32.gmra.mrb[0].mxu0 %v7402
      %v7404 = vpop.f32.mrb[0].mxu0
      %v7405 = vadd.f32 %v6834, %v7404
      %v7406 = vpop.f32.mrb[0].mxu0
      %v7407 = vsub.f32 %v972, %v972
      %v7408 = vand.u32 %v7407, 4294901760
      %7409 = vmatprep.mubr.f32.mxu0 %v7408
      %v7410 = vsub.f32 %v971, %v971
      %v7411 = vand.u32 %v7410, 4294901760
      %7412 = vmatmul.mubr.f32.gmra.mrb[0].mxu0 %v7411
      %v7413 = vpop.f32.mrb[0].mxu0
      %v7414 = vadd.f32 %v6841, %v7413
      %v7415 = vpop.f32.mrb[0].mxu0
      %v7416 = vsub.f32 %v974, %v974
      %v7417 = vand.u32 %v7416, 4294901760
      %7418 = vmatprep.mubr.f32.mxu0 %v7417
      %v7419 = vsub.f32 %v973, %v973
      %v7420 = vand.u32 %v7419, 4294901760
      %7421 = vmatmul.mubr.f32.gmra.mrb[0].mxu0 %v7420
      %v7422 = vpop.f32.mrb[0].mxu0
      %v7423 = vadd.f32 %v6848, %v7422
      %v7424 = vpop.f32.mrb[0].mxu0
      %v7425 = vsub.f32 %v976, %v976
      %v7426 = vand.u32 %v7425, 4294901760
      %7427 = vmatprep.mubr.f32.mxu0 %v7426
      %v7428 = vsub.f32 %v975, %v975
      %v7429 = vand.u32 %v7428, 4294901760
      %7430 = vmatmul.mubr.f32.gmra.mrb[0].mxu0 %v7429
      %v7431 = vpop.f32.mrb[0].mxu0
      %v7432 = vadd.f32 %v6855, %v7431
      %v7433 = vpop.f32.mrb[0].mxu0
      %v7434 = vsub.f32 %v978, %v978
      %v7435 = vand.u32 %v7434, 4294901760
      %7436 = vmatprep.mubr.f32.mxu0 %v7435
      %v7437 = vsub.f32 %v977, %v977
      %v7438 = vand.u32 %v7437, 4294901760
      %7439 = vmatmul.mubr.f32.gmra.mrb[0].mxu0 %v7438
      %v7440 = vpop.f32.mrb[0].mxu0
      %v7441 = vadd.f32 %v6862, %v7440
      %v7442 = vpop.f32.mrb[0].mxu0
      %v7443 = vsub.f32 %v980, %v980
      %v7444 = vand.u32 %v7443, 4294901760
      %7445 = vmatprep.mubr.f32.mxu0 %v7444
      %v7446 = vsub.f32 %v979, %v979
      %v7447 = vand.u32 %v7446, 4294901760
      %7448 = vmatmul.mubr.f32.gmra.mrb[0].mxu0 %v7447
      %v7449 = vpop.f32.mrb[0].mxu0
      %v7450 = vadd.f32 %v6869, %v7449
      %v7451 = vpop.f32.mrb[0].mxu0
      %v7452 = vsub.f32 %v982, %v982
      %v7453 = vand.u32 %v7452, 4294901760
      %7454 = vmatprep.mubr.f32.mxu0 %v7453
      %v7455 = vsub.f32 %v981, %v981
      %v7456 = vand.u32 %v7455, 4294901760
      %7457 = vmatmul.mubr.f32.gmra.mrb[0].mxu0 %v7456
      %v7458 = vpop.f32.mrb[0].mxu0
      %v7459 = vadd.f32 %v6876, %v7458
      %v7460 = vpop.f32.mrb[0].mxu0
      %v7461 = vsub.f32 %v984, %v984
      %v7462 = vand.u32 %v7461, 4294901760
      %7463 = vmatprep.mubr.f32.mxu0 %v7462
      %v7464 = vsub.f32 %v983, %v983
      %v7465 = vand.u32 %v7464, 4294901760
      %7466 = vmatmul.mubr.f32.gmra.mrb[0].mxu0 %v7465
      %v7467 = vpop.f32.mrb[0].mxu0
      %v7468 = vadd.f32 %v6883, %v7467
      %v7469 = vpop.f32.mrb[0].mxu0
      %v7470 = vsub.f32 %v986, %v986
      %v7471 = vand.u32 %v7470, 4294901760
      %7472 = vmatprep.mubr.f32.mxu0 %v7471
      %v7473 = vsub.f32 %v985, %v985
      %v7474 = vand.u32 %v7473, 4294901760
      %7475 = vmatmul.mubr.f32.gmra.mrb[0].mxu0 %v7474
      %v7476 = vpop.f32.mrb[0].mxu0
      %v7477 = vadd.f32 %v6890, %v7476
      %v7478 = vpop.f32.mrb[0].mxu0
      %v7479 = vsub.f32 %v988, %v988
      %v7480 = vand.u32 %v7479, 4294901760
      %7481 = vmatprep.mubr.f32.mxu0 %v7480
      %v7482 = vsub.f32 %v987, %v987
      %v7483 = vand.u32 %v7482, 4294901760
      %7484 = vmatmul.mubr.f32.gmra.mrb[0].mxu0 %v7483
      %v7485 = vpop.f32.mrb[0].mxu0
      %v7486 = vadd.f32 %v6897, %v7485
      %v7487 = vpop.f32.mrb[0].mxu0
      %v7488 = vsub.f32 %v990, %v990
      %v7489 = vand.u32 %v7488, 4294901760
      %7490 = vmatprep.mubr.f32.mxu0 %v7489
      %v7491 = vsub.f32 %v989, %v989
      %v7492 = vand.u32 %v7491, 4294901760
      %7493 = vmatmul.mubr.f32.gmra.mrb[0].mxu0 %v7492
      %v7494 = vpop.f32.mrb[0].mxu0
      %v7495 = vadd.f32 %v6904, %v7494
      %v7496 = vpop.f32.mrb[0].mxu0
      %v7497 = vsub.f32 %v992, %v992
      %v7498 = vand.u32 %v7497, 4294901760
      %7499 = vmatprep.mubr.f32.mxu0 %v7498
      %v7500 = vsub.f32 %v991, %v991
      %v7501 = vand.u32 %v7500, 4294901760
      %7502 = vmatmul.mubr.f32.gmra.mrb[0].mxu0 %v7501
      %v7503 = vpop.f32.mrb[0].mxu0
      %v7504 = vadd.f32 %v6911, %v7503
      %v7505 = vpop.f32.mrb[0].mxu0
      %v7506 = vsub.f32 %v994, %v994
      %v7507 = vand.u32 %v7506, 4294901760
      %7508 = vmatprep.mubr.f32.mxu0 %v7507
      %v7509 = vsub.f32 %v993, %v993
      %v7510 = vand.u32 %v7509, 4294901760
      %7511 = vmatmul.mubr.f32.gmra.mrb[0].mxu0 %v7510
      %v7512 = vpop.f32.mrb[0].mxu0
      %v7513 = vadd.f32 %v6918, %v7512
      %v7514 = vpop.f32.mrb[0].mxu0
      %v7515 = vsub.f32 %v996, %v996
      %v7516 = vand.u32 %v7515, 4294901760
      %7517 = vmatprep.mubr.f32.mxu0 %v7516
      %v7518 = vsub.f32 %v995, %v995
      %v7519 = vand.u32 %v7518, 4294901760
      %7520 = vmatmul.mubr.f32.gmra.mrb[0].mxu0 %v7519
      %v7521 = vpop.f32.mrb[0].mxu0
      %v7522 = vadd.f32 %v6925, %v7521
      %v7523 = vpop.f32.mrb[0].mxu0
      %v7524 = vsub.f32 %v998, %v998
      %v7525 = vand.u32 %v7524, 4294901760
      %7526 = vmatprep.mubr.f32.mxu0 %v7525
      %v7527 = vsub.f32 %v997, %v997
      %v7528 = vand.u32 %v7527, 4294901760
      %7529 = vmatmul.mubr.f32.gmra.mrb[0].mxu0 %v7528
      %v7530 = vpop.f32.mrb[0].mxu0
      %v7531 = vadd.f32 %v6932, %v7530
      %v7532 = vpop.f32.mrb[0].mxu0
      %v7533 = vsub.f32 %v1000, %v1000
      %v7534 = vand.u32 %v7533, 4294901760
      %7535 = vmatprep.mubr.f32.mxu0 %v7534
      %v7536 = vsub.f32 %v999, %v999
      %v7537 = vand.u32 %v7536, 4294901760
      %7538 = vmatmul.mubr.f32.gmra.mrb[0].mxu0 %v7537
      %v7539 = vpop.f32.mrb[0].mxu0
      %v7540 = vadd.f32 %v6939, %v7539
      %v7541 = vpop.f32.mrb[0].mxu0
      %v7542 = vsub.f32 %v1002, %v1002
      %v7543 = vand.u32 %v7542, 4294901760
      %7544 = vmatprep.mubr.f32.mxu0 %v7543
      %v7545 = vsub.f32 %v1001, %v1001
      %v7546 = vand.u32 %v7545, 4294901760
      %7547 = vmatmul.mubr.f32.gmra.mrb[0].mxu0 %v7546
      %v7548 = vpop.f32.mrb[0].mxu0
      %v7549 = vadd.f32 %v6946, %v7548
      %v7550 = vpop.f32.mrb[0].mxu0
      %v7551 = vsub.f32 %v1004, %v1004
      %v7552 = vand.u32 %v7551, 4294901760
      %7553 = vmatprep.mubr.f32.mxu0 %v7552
      %v7554 = vsub.f32 %v1003, %v1003
      %v7555 = vand.u32 %v7554, 4294901760
      %7556 = vmatmul.mubr.f32.gmra.mrb[0].mxu0 %v7555
      %v7557 = vpop.f32.mrb[0].mxu0
      %v7558 = vadd.f32 %v6953, %v7557
      %v7559 = vpop.f32.mrb[0].mxu0
      %v7560 = vsub.f32 %v1006, %v1006
      %v7561 = vand.u32 %v7560, 4294901760
      %7562 = vmatprep.mubr.f32.mxu0 %v7561
      %v7563 = vsub.f32 %v1005, %v1005
      %v7564 = vand.u32 %v7563, 4294901760
      %7565 = vmatmul.mubr.f32.gmra.mrb[0].mxu0 %v7564
      %v7566 = vpop.f32.mrb[0].mxu0
      %v7567 = vadd.f32 %v6960, %v7566
      %v7568 = vpop.f32.mrb[0].mxu0
      %v7569 = vsub.f32 %v1008, %v1008
      %v7570 = vand.u32 %v7569, 4294901760
      %7571 = vmatprep.mubr.f32.mxu0 %v7570
      %v7572 = vsub.f32 %v1007, %v1007
      %v7573 = vand.u32 %v7572, 4294901760
      %7574 = vmatmul.mubr.f32.gmra.mrb[0].mxu0 %v7573
      %v7575 = vpop.f32.mrb[0].mxu0
      %v7576 = vadd.f32 %v6967, %v7575
      %v7577 = vpop.f32.mrb[0].mxu0
      %v7578 = vsub.f32 %v1010, %v1010
      %v7579 = vand.u32 %v7578, 4294901760
      %7580 = vmatprep.mubr.f32.mxu0 %v7579
      %v7581 = vsub.f32 %v1009, %v1009
      %v7582 = vand.u32 %v7581, 4294901760
      %7583 = vmatmul.mubr.f32.gmra.mrb[0].mxu0 %v7582
      %v7584 = vpop.f32.mrb[0].mxu0
      %v7585 = vadd.f32 %v6974, %v7584
      %v7586 = vpop.f32.mrb[0].mxu0
      %v7587 = vsub.f32 %v1012, %v1012
      %v7588 = vand.u32 %v7587, 4294901760
      %7589 = vmatprep.mubr.f32.mxu0 %v7588
      %v7590 = vsub.f32 %v1011, %v1011
      %v7591 = vand.u32 %v7590, 4294901760
      %7592 = vmatmul.mubr.f32.gmra.mrb[0].mxu0 %v7591
      %v7593 = vpop.f32.mrb[0].mxu0
      %v7594 = vadd.f32 %v6981, %v7593
      %v7595 = vpop.f32.mrb[0].mxu0
      %v7596 = vsub.f32 %v1014, %v1014
      %v7597 = vand.u32 %v7596, 4294901760
      %7598 = vmatprep.mubr.f32.mxu0 %v7597
      %v7599 = vsub.f32 %v1013, %v1013
      %v7600 = vand.u32 %v7599, 4294901760
      %7601 = vmatmul.mubr.f32.gmra.mrb[0].mxu0 %v7600
      %v7602 = vpop.f32.mrb[0].mxu0
      %v7603 = vadd.f32 %v6988, %v7602
      %v7604 = vpop.f32.mrb[0].mxu0
      %v7605 = vsub.f32 %v1016, %v1016
      %v7606 = vand.u32 %v7605, 4294901760
      %7607 = vmatprep.mubr.f32.mxu0 %v7606
      %v7608 = vsub.f32 %v1015, %v1015
      %v7609 = vand.u32 %v7608, 4294901760
      %7610 = vmatmul.mubr.f32.gmra.mrb[0].mxu0 %v7609
      %v7611 = vpop.f32.mrb[0].mxu0
      %v7612 = vadd.f32 %v6995, %v7611
      %v7613 = vpop.f32.mrb[0].mxu0
      %v7614 = vsub.f32 %v1018, %v1018
      %v7615 = vand.u32 %v7614, 4294901760
      %7616 = vmatprep.mubr.f32.mxu0 %v7615
      %v7617 = vsub.f32 %v1017, %v1017
      %v7618 = vand.u32 %v7617, 4294901760
      %7619 = vmatmul.mubr.f32.gmra.mrb[0].mxu0 %v7618
      %v7620 = vpop.f32.mrb[0].mxu0
      %v7621 = vadd.f32 %v7002, %v7620
      %v7622 = vpop.f32.mrb[0].mxu0
      %v7623 = vsub.f32 %v1020, %v1020
      %v7624 = vand.u32 %v7623, 4294901760
      %7625 = vmatprep.mubr.f32.mxu0 %v7624
      %v7626 = vsub.f32 %v1019, %v1019
      %v7627 = vand.u32 %v7626, 4294901760
      %7628 = vmatmul.mubr.f32.gmra.mrb[0].mxu0 %v7627
      %v7629 = vpop.f32.mrb[0].mxu0
      %v7630 = vadd.f32 %v7009, %v7629
      %v7631 = vpop.f32.mrb[0].mxu0
      %v7632 = vsub.f32 %v1022, %v1022
      %v7633 = vand.u32 %v7632, 4294901760
      %7634 = vmatprep.mubr.f32.mxu0 %v7633
      %v7635 = vsub.f32 %v1021, %v1021
      %v7636 = vand.u32 %v7635, 4294901760
      %7637 = vmatmul.mubr.f32.gmra.mrb[0].mxu0 %v7636
      %v7638 = vpop.f32.mrb[0].mxu0
      %v7639 = vadd.f32 %v7016, %v7638
      %v7640 = vpop.f32.mrb[0].mxu0
      %v7641 = vsub.f32 %v1024, %v1024
      %v7642 = vand.u32 %v7641, 4294901760
      %7643 = vmatprep.mubr.f32.mxu0 %v7642
      %v7644 = vsub.f32 %v1023, %v1023
      %v7645 = vand.u32 %v7644, 4294901760
      %7646 = vmatmul.mubr.f32.gmra.mrb[0].mxu0 %v7645
      %v7647 = vpop.f32.mrb[0].mxu0
      %v7648 = vadd.f32 %v7023, %v7647
      %v7649 = vpop.f32.mrb[0].mxu0
      %v7650 = vsub.f32 %v1026, %v1026
      %v7651 = vand.u32 %v7650, 4294901760
      %7652 = vmatprep.mubr.f32.mxu0 %v7651
      %v7653 = vsub.f32 %v1025, %v1025
      %v7654 = vand.u32 %v7653, 4294901760
      %7655 = vmatmul.mubr.f32.gmra.mrb[0].mxu0 %v7654
      %v7656 = vpop.f32.mrb[0].mxu0
      %v7657 = vadd.f32 %v7030, %v7656
      %v7658 = vpop.f32.mrb[0].mxu0
      %v7659 = vsub.f32 %v1028, %v1028
      %v7660 = vand.u32 %v7659, 4294901760
      %7661 = vmatprep.mubr.f32.mxu0 %v7660
      %v7662 = vsub.f32 %v1027, %v1027
      %v7663 = vand.u32 %v7662, 4294901760
      %7664 = vmatmul.mubr.f32.gmra.mrb[0].mxu0 %v7663
      %v7665 = vpop.f32.mrb[0].mxu0
      %v7666 = vadd.f32 %v7037, %v7665
      %v7667 = vpop.f32.mrb[0].mxu0
      %v7668 = vsub.f32 %v1030, %v1030
      %v7669 = vand.u32 %v7668, 4294901760
      %7670 = vmatprep.mubr.f32.mxu0 %v7669
      %v7671 = vsub.f32 %v1029, %v1029
      %v7672 = vand.u32 %v7671, 4294901760
      %7673 = vmatmul.mubr.f32.gmra.mrb[0].mxu0 %v7672
      %v7674 = vpop.f32.mrb[0].mxu0
      %v7675 = vadd.f32 %v7044, %v7674
      %v7676 = vpop.f32.mrb[0].mxu0
      %v7677 = vsub.f32 %v1032, %v1032
      %v7678 = vand.u32 %v7677, 4294901760
      %7679 = vmatprep.mubr.f32.mxu0 %v7678
      %v7680 = vsub.f32 %v1031, %v1031
      %v7681 = vand.u32 %v7680, 4294901760
      %7682 = vmatmul.mubr.f32.gmra.mrb[0].mxu0 %v7681
      %v7683 = vpop.f32.mrb[0].mxu0
      %v7684 = vadd.f32 %v7051, %v7683
      %v7685 = vpop.f32.mrb[0].mxu0
      %v7686 = vsub.f32 %v1034, %v1034
      %v7687 = vand.u32 %v7686, 4294901760
      %7688 = vmatprep.mubr.f32.mxu0 %v7687
      %v7689 = vsub.f32 %v1033, %v1033
      %v7690 = vand.u32 %v7689, 4294901760
      %7691 = vmatmul.mubr.f32.gmra.mrb[0].mxu0 %v7690
      %v7692 = vpop.f32.mrb[0].mxu0
      %v7693 = vadd.f32 %v7058, %v7692
      %v7694 = vpop.f32.mrb[0].mxu0
      %v7695 = vsub.f32 %v1036, %v1036
      %v7696 = vand.u32 %v7695, 4294901760
      %7697 = vmatprep.mubr.f32.mxu0 %v7696
      %v7698 = vsub.f32 %v1035, %v1035
      %v7699 = vand.u32 %v7698, 4294901760
      %7700 = vmatmul.mubr.f32.gmra.mrb[0].mxu0 %v7699
      %v7701 = vpop.f32.mrb[0].mxu0
      %v7702 = vadd.f32 %v7065, %v7701
      %v7703 = vpop.f32.mrb[0].mxu0
      %v7704 = vsub.f32 %v1038, %v1038
      %v7705 = vand.u32 %v7704, 4294901760
      %7706 = vmatprep.mubr.f32.mxu0 %v7705
      %v7707 = vsub.f32 %v1037, %v1037
      %v7708 = vand.u32 %v7707, 4294901760
      %7709 = vmatmul.mubr.f32.gmra.mrb[0].mxu0 %v7708
      %v7710 = vpop.f32.mrb[0].mxu0
      %v7711 = vadd.f32 %v7072, %v7710
      %v7712 = vpop.f32.mrb[0].mxu0
      %v7713 = vsub.f32 %v1040, %v1040
      %v7714 = vand.u32 %v7713, 4294901760
      %7715 = vmatprep.mubr.f32.mxu0 %v7714
      %v7716 = vsub.f32 %v1039, %v1039
      %v7717 = vand.u32 %v7716, 4294901760
      %7718 = vmatmul.mubr.f32.gmra.mrb[0].mxu0 %v7717
      %v7719 = vpop.f32.mrb[0].mxu0
      %v7720 = vadd.f32 %v7079, %v7719
      %v7721 = vpop.f32.mrb[0].mxu0
      %v7722 = vsub.f32 %v1042, %v1042
      %v7723 = vand.u32 %v7722, 4294901760
      %7724 = vmatprep.mubr.f32.mxu0 %v7723
      %v7725 = vsub.f32 %v1041, %v1041
      %v7726 = vand.u32 %v7725, 4294901760
      %7727 = vmatmul.mubr.f32.gmra.mrb[0].mxu0 %v7726
      %v7728 = vpop.f32.mrb[0].mxu0
      %v7729 = vadd.f32 %v7086, %v7728
      %v7730 = vpop.f32.mrb[0].mxu0
      %v7731 = vsub.f32 %v1044, %v1044
      %v7732 = vand.u32 %v7731, 4294901760
      %7733 = vmatprep.mubr.f32.mxu0 %v7732
      %v7734 = vsub.f32 %v1043, %v1043
      %v7735 = vand.u32 %v7734, 4294901760
      %7736 = vmatmul.mubr.f32.gmra.mrb[0].mxu0 %v7735
      %v7737 = vpop.f32.mrb[0].mxu0
      %v7738 = vadd.f32 %v7093, %v7737
      %v7739 = vpop.f32.mrb[0].mxu0
      %v7740 = vsub.f32 %v1046, %v1046
      %v7741 = vand.u32 %v7740, 4294901760
      %7742 = vmatprep.mubr.f32.mxu0 %v7741
      %v7743 = vsub.f32 %v1045, %v1045
      %v7744 = vand.u32 %v7743, 4294901760
      %7745 = vmatmul.mubr.f32.gmra.mrb[0].mxu0 %v7744
      %v7746 = vpop.f32.mrb[0].mxu0
      %v7747 = vadd.f32 %v7100, %v7746
      %v7748 = vpop.f32.mrb[0].mxu0
      %v7749 = vsub.f32 %v1048, %v1048
      %v7750 = vand.u32 %v7749, 4294901760
      %7751 = vmatprep.mubr.f32.mxu0 %v7750
      %v7752 = vsub.f32 %v1047, %v1047
      %v7753 = vand.u32 %v7752, 4294901760
      %7754 = vmatmul.mubr.f32.gmra.mrb[0].mxu0 %v7753
      %v7755 = vpop.f32.mrb[0].mxu0
      %v7756 = vadd.f32 %v7107, %v7755
      %v7757 = vpop.f32.mrb[0].mxu0
      %v7758 = vsub.f32 %v1050, %v1050
      %v7759 = vand.u32 %v7758, 4294901760
      %7760 = vmatprep.mubr.f32.mxu0 %v7759
      %v7761 = vsub.f32 %v1049, %v1049
      %v7762 = vand.u32 %v7761, 4294901760
      %7763 = vmatmul.mubr.f32.gmra.mrb[0].mxu0 %v7762
      %v7764 = vpop.f32.mrb[0].mxu0
      %v7765 = vadd.f32 %v7114, %v7764
      %v7766 = vpop.f32.mrb[0].mxu0
      %v7767 = vsub.f32 %v1052, %v1052
      %v7768 = vand.u32 %v7767, 4294901760
      %7769 = vmatprep.mubr.f32.mxu0 %v7768
      %v7770 = vsub.f32 %v1051, %v1051
      %v7771 = vand.u32 %v7770, 4294901760
      %7772 = vmatmul.mubr.f32.gmra.mrb[0].mxu0 %v7771
      %v7773 = vpop.f32.mrb[0].mxu0
      %v7774 = vadd.f32 %v7121, %v7773
      %v7775 = vpop.f32.mrb[0].mxu0
      %v7776 = vsub.f32 %v1054, %v1054
      %v7777 = vand.u32 %v7776, 4294901760
      %7778 = vmatprep.mubr.f32.mxu0 %v7777
      %v7779 = vsub.f32 %v1053, %v1053
      %v7780 = vand.u32 %v7779, 4294901760
      %7781 = vmatmul.mubr.f32.gmra.mrb[0].mxu0 %v7780
      %v7782 = vpop.f32.mrb[0].mxu0
      %v7783 = vadd.f32 %v7128, %v7782
      %v7784 = vpop.f32.mrb[0].mxu0
      %v7785 = vsub.f32 %v1056, %v1056
      %v7786 = vand.u32 %v7785, 4294901760
      %7787 = vmatprep.mubr.f32.mxu0 %v7786
      %v7788 = vsub.f32 %v1055, %v1055
      %v7789 = vand.u32 %v7788, 4294901760
      %7790 = vmatmul.mubr.f32.gmra.mrb[0].mxu0 %v7789
      %v7791 = vpop.f32.mrb[0].mxu0
      %v7792 = vadd.f32 %v7135, %v7791
      %v7793 = vpop.f32.mrb[0].mxu0
      %v7794 = vsub.f32 %v1058, %v1058
      %v7795 = vand.u32 %v7794, 4294901760
      %7796 = vmatprep.mubr.f32.mxu0 %v7795
      %v7797 = vsub.f32 %v1057, %v1057
      %v7798 = vand.u32 %v7797, 4294901760
      %7799 = vmatmul.mubr.f32.gmra.mrb[0].mxu0 %v7798
      %v7800 = vpop.f32.mrb[0].mxu0
      %v7801 = vadd.f32 %v7142, %v7800
      %v7802 = vpop.f32.mrb[0].mxu0
      %v7803 = vsub.f32 %v1060, %v1060
      %v7804 = vand.u32 %v7803, 4294901760
      %7805 = vmatprep.mubr.f32.mxu0 %v7804
      %v7806 = vsub.f32 %v1059, %v1059
      %v7807 = vand.u32 %v7806, 4294901760
      %7808 = vmatmul.mubr.f32.gmra.mrb[0].mxu0 %v7807
      %v7809 = vpop.f32.mrb[0].mxu0
      %v7810 = vadd.f32 %v7149, %v7809
      %v7811 = vpop.f32.mrb[0].mxu0
      %v7812 = vsub.f32 %v1062, %v1062
      %v7813 = vand.u32 %v7812, 4294901760
      %7814 = vmatprep.mubr.f32.mxu0 %v7813
      %v7815 = vsub.f32 %v1061, %v1061
      %v7816 = vand.u32 %v7815, 4294901760
      %7817 = vmatmul.mubr.f32.gmra.mrb[0].mxu0 %v7816
      %v7818 = vpop.f32.mrb[0].mxu0
      %v7819 = vadd.f32 %v7156, %v7818
      %v7820 = vpop.f32.mrb[0].mxu0
      %v7821 = vsub.f32 %v1064, %v1064
      %v7822 = vand.u32 %v7821, 4294901760
      %7823 = vmatprep.mubr.f32.mxu0 %v7822
      %v7824 = vsub.f32 %v1063, %v1063
      %v7825 = vand.u32 %v7824, 4294901760
      %7826 = vmatmul.mubr.f32.gmra.mrb[0].mxu0 %v7825
      %v7827 = vpop.f32.mrb[0].mxu0
      %v7828 = vadd.f32 %v7163, %v7827
      %v7829 = vpop.f32.mrb[0].mxu0
      %v7830 = vsub.f32 %v1066, %v1066
      %v7831 = vand.u32 %v7830, 4294901760
      %7832 = vmatprep.mubr.f32.mxu0 %v7831
      %v7833 = vsub.f32 %v1065, %v1065
      %v7834 = vand.u32 %v7833, 4294901760
      %7835 = vmatmul.mubr.f32.gmra.mrb[0].mxu0 %v7834
      %v7836 = vpop.f32.mrb[0].mxu0
      %v7837 = vadd.f32 %v7170, %v7836
      %v7838 = vpop.f32.mrb[0].mxu0
      %v7839 = vsub.f32 %v1068, %v1068
      %v7840 = vand.u32 %v7839, 4294901760
      %7841 = vmatprep.mubr.f32.mxu0 %v7840
      %v7842 = vsub.f32 %v1067, %v1067
      %v7843 = vand.u32 %v7842, 4294901760
      %7844 = vmatmul.mubr.f32.gmra.mrb[0].mxu0 %v7843
      %v7845 = vpop.f32.mrb[0].mxu0
      %v7846 = vadd.f32 %v7177, %v7845
      %v7847 = vpop.f32.mrb[0].mxu0
      %v7848 = vsub.f32 %v1070, %v1070
      %v7849 = vand.u32 %v7848, 4294901760
      %7850 = vmatprep.mubr.f32.mxu0 %v7849
      %v7851 = vsub.f32 %v1069, %v1069
      %v7852 = vand.u32 %v7851, 4294901760
      %7853 = vmatmul.mubr.f32.gmra.mrb[0].mxu0 %v7852
      %v7854 = vpop.f32.mrb[0].mxu0
      %v7855 = vadd.f32 %v7184, %v7854
      %v7856 = vpop.f32.mrb[0].mxu0
      %v7857 = vsub.f32 %v1072, %v1072
      %v7858 = vand.u32 %v7857, 4294901760
      %7859 = vmatprep.mubr.f32.mxu0 %v7858
      %v7860 = vsub.f32 %v1071, %v1071
      %v7861 = vand.u32 %v7860, 4294901760
      %7862 = vmatmul.mubr.f32.gmra.mrb[0].mxu0 %v7861
      %v7863 = vpop.f32.mrb[0].mxu0
      %v7864 = vadd.f32 %v7191, %v7863
      %v7865 = vpop.f32.mrb[0].mxu0
      %7866 = vdwg.mxu0
      %7867 = vmatprep.subr.mxu0 0.0
      %v7868 = vand.u32 %v1073, 4294901760
      %v7869 = vsub.f32 %v1073, %v7868
      %v7870 = vand.u32 %v7869, 4294901760
      %7871 = vmatpush1.msra.mxu0 %v7870
      %7872 = vmatprep.subr.mxu0 0.0
      %v7873 = vand.u32 %v1074, 4294901760
      %v7874 = vsub.f32 %v1074, %v7873
      %v7875 = vand.u32 %v7874, 4294901760
      %7876 = vmatpush1.msra.mxu0 %v7875
      %7877 = vmatprep.subr.mxu0 0.0
      %v7878 = vand.u32 %v1075, 4294901760
      %v7879 = vsub.f32 %v1075, %v7878
      %v7880 = vand.u32 %v7879, 4294901760
      %7881 = vmatpush1.msra.mxu0 %v7880
      %7882 = vmatprep.subr.mxu0 0.0
      %v7883 = vand.u32 %v1076, 4294901760
      %v7884 = vsub.f32 %v1076, %v7883
      %v7885 = vand.u32 %v7884, 4294901760
      %7886 = vmatpush1.msra.mxu0 %v7885
      %7887 = vmatprep.subr.mxu0 0.0
      %v7888 = vand.u32 %v1077, 4294901760
      %v7889 = vsub.f32 %v1077, %v7888
      %v7890 = vand.u32 %v7889, 4294901760
      %7891 = vmatpush1.msra.mxu0 %v7890
      %7892 = vmatprep.subr.mxu0 0.0
      %v7893 = vand.u32 %v1078, 4294901760
      %v7894 = vsub.f32 %v1078, %v7893
      %v7895 = vand.u32 %v7894, 4294901760
      %7896 = vmatpush1.msra.mxu0 %v7895
      %7897 = vmatprep.subr.mxu0 0.0
      %v7898 = vand.u32 %v1079, 4294901760
      %v7899 = vsub.f32 %v1079, %v7898
      %v7900 = vand.u32 %v7899, 4294901760
      %7901 = vmatpush1.msra.mxu0 %v7900
      %7902 = vmatprep.subr.mxu0 0.0
      %v7903 = vand.u32 %v1080, 4294901760
      %v7904 = vsub.f32 %v1080, %v7903
      %v7905 = vand.u32 %v7904, 4294901760
      %7906 = vmatpush1.msra.mxu0 %v7905
      %7907 = vmatprep.subr.mxu0 0.0
      %v7908 = vand.u32 %v1081, 4294901760
      %v7909 = vsub.f32 %v1081, %v7908
      %v7910 = vand.u32 %v7909, 4294901760
      %7911 = vmatpush1.msra.mxu0 %v7910
      %7912 = vmatprep.subr.mxu0 0.0
      %v7913 = vand.u32 %v1082, 4294901760
      %v7914 = vsub.f32 %v1082, %v7913
      %v7915 = vand.u32 %v7914, 4294901760
      %7916 = vmatpush1.msra.mxu0 %v7915
      %7917 = vmatprep.subr.mxu0 0.0
      %v7918 = vand.u32 %v1083, 4294901760
      %v7919 = vsub.f32 %v1083, %v7918
      %v7920 = vand.u32 %v7919, 4294901760
      %7921 = vmatpush1.msra.mxu0 %v7920
      %7922 = vmatprep.subr.mxu0 0.0
      %v7923 = vand.u32 %v1084, 4294901760
      %v7924 = vsub.f32 %v1084, %v7923
      %v7925 = vand.u32 %v7924, 4294901760
      %7926 = vmatpush1.msra.mxu0 %v7925
      %7927 = vmatprep.subr.mxu0 0.0
      %v7928 = vand.u32 %v1085, 4294901760
      %v7929 = vsub.f32 %v1085, %v7928
      %v7930 = vand.u32 %v7929, 4294901760
      %7931 = vmatpush1.msra.mxu0 %v7930
      %7932 = vmatprep.subr.mxu0 0.0
      %v7933 = vand.u32 %v1086, 4294901760
      %v7934 = vsub.f32 %v1086, %v7933
      %v7935 = vand.u32 %v7934, 4294901760
      %7936 = vmatpush1.msra.mxu0 %v7935
      %7937 = vmatprep.subr.mxu0 0.0
      %v7938 = vand.u32 %v1087, 4294901760
      %v7939 = vsub.f32 %v1087, %v7938
      %v7940 = vand.u32 %v7939, 4294901760
      %7941 = vmatpush1.msra.mxu0 %v7940
      %7942 = vmatprep.subr.mxu0 0.0
      %v7943 = vand.u32 %v1088, 4294901760
      %v7944 = vsub.f32 %v1088, %v7943
      %v7945 = vand.u32 %v7944, 4294901760
      %7946 = vmatpush1.msra.mxu0 %v7945
      %7947 = vmatprep.subr.mxu0 0.0
      %v7948 = vand.u32 %v1089, 4294901760
      %v7949 = vsub.f32 %v1089, %v7948
      %v7950 = vand.u32 %v7949, 4294901760
      %7951 = vmatpush1.msra.mxu0 %v7950
      %7952 = vmatprep.subr.mxu0 0.0
      %v7953 = vand.u32 %v1090, 4294901760
      %v7954 = vsub.f32 %v1090, %v7953
      %v7955 = vand.u32 %v7954, 4294901760
      %7956 = vmatpush1.msra.mxu0 %v7955
      %7957 = vmatprep.subr.mxu0 0.0
      %v7958 = vand.u32 %v1091, 4294901760
      %v7959 = vsub.f32 %v1091, %v7958
      %v7960 = vand.u32 %v7959, 4294901760
      %7961 = vmatpush1.msra.mxu0 %v7960
      %7962 = vmatprep.subr.mxu0 0.0
      %v7963 = vand.u32 %v1092, 4294901760
      %v7964 = vsub.f32 %v1092, %v7963
      %v7965 = vand.u32 %v7964, 4294901760
      %7966 = vmatpush1.msra.mxu0 %v7965
      %7967 = vmatprep.subr.mxu0 0.0
      %v7968 = vand.u32 %v1093, 4294901760
      %v7969 = vsub.f32 %v1093, %v7968
      %v7970 = vand.u32 %v7969, 4294901760
      %7971 = vmatpush1.msra.mxu0 %v7970
      %7972 = vmatprep.subr.mxu0 0.0
      %v7973 = vand.u32 %v1094, 4294901760
      %v7974 = vsub.f32 %v1094, %v7973
      %v7975 = vand.u32 %v7974, 4294901760
      %7976 = vmatpush1.msra.mxu0 %v7975
      %7977 = vmatprep.subr.mxu0 0.0
      %v7978 = vand.u32 %v1095, 4294901760
      %v7979 = vsub.f32 %v1095, %v7978
      %v7980 = vand.u32 %v7979, 4294901760
      %7981 = vmatpush1.msra.mxu0 %v7980
      %7982 = vmatprep.subr.mxu0 0.0
      %v7983 = vand.u32 %v1096, 4294901760
      %v7984 = vsub.f32 %v1096, %v7983
      %v7985 = vand.u32 %v7984, 4294901760
      %7986 = vmatpush1.msra.mxu0 %v7985
      %7987 = vmatprep.subr.mxu0 0.0
      %v7988 = vand.u32 %v1097, 4294901760
      %v7989 = vsub.f32 %v1097, %v7988
      %v7990 = vand.u32 %v7989, 4294901760
      %7991 = vmatpush1.msra.mxu0 %v7990
      %7992 = vmatprep.subr.mxu0 0.0
      %v7993 = vand.u32 %v1098, 4294901760
      %v7994 = vsub.f32 %v1098, %v7993
      %v7995 = vand.u32 %v7994, 4294901760
      %7996 = vmatpush1.msra.mxu0 %v7995
      %7997 = vmatprep.subr.mxu0 0.0
      %v7998 = vand.u32 %v1099, 4294901760
      %v7999 = vsub.f32 %v1099, %v7998
      %v8000 = vand.u32 %v7999, 4294901760
      %8001 = vmatpush1.msra.mxu0 %v8000
      %8002 = vmatprep.subr.mxu0 0.0
      %v8003 = vand.u32 %v1100, 4294901760
      %v8004 = vsub.f32 %v1100, %v8003
      %v8005 = vand.u32 %v8004, 4294901760
      %8006 = vmatpush1.msra.mxu0 %v8005
      %8007 = vmatprep.subr.mxu0 0.0
      %v8008 = vand.u32 %v1101, 4294901760
      %v8009 = vsub.f32 %v1101, %v8008
      %v8010 = vand.u32 %v8009, 4294901760
      %8011 = vmatpush1.msra.mxu0 %v8010
      %8012 = vmatprep.subr.mxu0 0.0
      %v8013 = vand.u32 %v1102, 4294901760
      %v8014 = vsub.f32 %v1102, %v8013
      %v8015 = vand.u32 %v8014, 4294901760
      %8016 = vmatpush1.msra.mxu0 %v8015
      %8017 = vmatprep.subr.mxu0 0.0
      %v8018 = vand.u32 %v1103, 4294901760
      %v8019 = vsub.f32 %v1103, %v8018
      %v8020 = vand.u32 %v8019, 4294901760
      %8021 = vmatpush1.msra.mxu0 %v8020
      %8022 = vmatprep.subr.mxu0 0.0
      %v8023 = vand.u32 %v1104, 4294901760
      %v8024 = vsub.f32 %v1104, %v8023
      %v8025 = vand.u32 %v8024, 4294901760
      %8026 = vmatpush1.msra.mxu0 %v8025
      %8027 = vmatprep.mubr.f32.mxu0 %v946
      %8028 = vmatmul.mubr.f32.gmra.mrb[0].mxu0 %v945
      %v8029 = vpop.f32.mrb[0].mxu0
      %v8030 = vadd.f32 %v7297, %v8029
      %v8031 = vpop.f32.mrb[0].mxu0
      %8032 = vmatprep.mubr.f32.mxu0 %v948
      %8033 = vmatmul.mubr.f32.gmra.mrb[0].mxu0 %v947
      %v8034 = vpop.f32.mrb[0].mxu0
      %v8035 = vadd.f32 %v7306, %v8034
      %v8036 = vpop.f32.mrb[0].mxu0
      %8037 = vmatprep.mubr.f32.mxu0 %v950
      %8038 = vmatmul.mubr.f32.gmra.mrb[0].mxu0 %v949
      %v8039 = vpop.f32.mrb[0].mxu0
      %v8040 = vadd.f32 %v7315, %v8039
      %v8041 = vpop.f32.mrb[0].mxu0
      %8042 = vmatprep.mubr.f32.mxu0 %v952
      %8043 = vmatmul.mubr.f32.gmra.mrb[0].mxu0 %v951
      %v8044 = vpop.f32.mrb[0].mxu0
      %v8045 = vadd.f32 %v7324, %v8044
      %v8046 = vpop.f32.mrb[0].mxu0
      %8047 = vmatprep.mubr.f32.mxu0 %v954
      %8048 = vmatmul.mubr.f32.gmra.mrb[0].mxu0 %v953
      %v8049 = vpop.f32.mrb[0].mxu0
      %v8050 = vadd.f32 %v7333, %v8049
      %v8051 = vpop.f32.mrb[0].mxu0
      %8052 = vmatprep.mubr.f32.mxu0 %v956
      %8053 = vmatmul.mubr.f32.gmra.mrb[0].mxu0 %v955
      %v8054 = vpop.f32.mrb[0].mxu0
      %v8055 = vadd.f32 %v7342, %v8054
      %v8056 = vpop.f32.mrb[0].mxu0
      %8057 = vmatprep.mubr.f32.mxu0 %v958
      %8058 = vmatmul.mubr.f32.gmra.mrb[0].mxu0 %v957
      %v8059 = vpop.f32.mrb[0].mxu0
      %v8060 = vadd.f32 %v7351, %v8059
      %v8061 = vpop.f32.mrb[0].mxu0
      %8062 = vmatprep.mubr.f32.mxu0 %v960
      %8063 = vmatmul.mubr.f32.gmra.mrb[0].mxu0 %v959
      %v8064 = vpop.f32.mrb[0].mxu0
      %v8065 = vadd.f32 %v7360, %v8064
      %v8066 = vpop.f32.mrb[0].mxu0
      %8067 = vmatprep.mubr.f32.mxu0 %v962
      %8068 = vmatmul.mubr.f32.gmra.mrb[0].mxu0 %v961
      %v8069 = vpop.f32.mrb[0].mxu0
      %v8070 = vadd.f32 %v7369, %v8069
      %v8071 = vpop.f32.mrb[0].mxu0
      %8072 = vmatprep.mubr.f32.mxu0 %v964
      %8073 = vmatmul.mubr.f32.gmra.mrb[0].mxu0 %v963
      %v8074 = vpop.f32.mrb[0].mxu0
      %v8075 = vadd.f32 %v7378, %v8074
      %v8076 = vpop.f32.mrb[0].mxu0
      %8077 = vmatprep.mubr.f32.mxu0 %v966
      %8078 = vmatmul.mubr.f32.gmra.mrb[0].mxu0 %v965
      %v8079 = vpop.f32.mrb[0].mxu0
      %v8080 = vadd.f32 %v7387, %v8079
      %v8081 = vpop.f32.mrb[0].mxu0
      %8082 = vmatprep.mubr.f32.mxu0 %v968
      %8083 = vmatmul.mubr.f32.gmra.mrb[0].mxu0 %v967
      %v8084 = vpop.f32.mrb[0].mxu0
      %v8085 = vadd.f32 %v7396, %v8084
      %v8086 = vpop.f32.mrb[0].mxu0
      %8087 = vmatprep.mubr.f32.mxu0 %v970
      %8088 = vmatmul.mubr.f32.gmra.mrb[0].mxu0 %v969
      %v8089 = vpop.f32.mrb[0].mxu0
      %v8090 = vadd.f32 %v7405, %v8089
      %v8091 = vpop.f32.mrb[0].mxu0
      %8092 = vmatprep.mubr.f32.mxu0 %v972
      %8093 = vmatmul.mubr.f32.gmra.mrb[0].mxu0 %v971
      %v8094 = vpop.f32.mrb[0].mxu0
      %v8095 = vadd.f32 %v7414, %v8094
      %v8096 = vpop.f32.mrb[0].mxu0
      %8097 = vmatprep.mubr.f32.mxu0 %v974
      %8098 = vmatmul.mubr.f32.gmra.mrb[0].mxu0 %v973
      %v8099 = vpop.f32.mrb[0].mxu0
      %v8100 = vadd.f32 %v7423, %v8099
      %v8101 = vpop.f32.mrb[0].mxu0
      %8102 = vmatprep.mubr.f32.mxu0 %v976
      %8103 = vmatmul.mubr.f32.gmra.mrb[0].mxu0 %v975
      %v8104 = vpop.f32.mrb[0].mxu0
      %v8105 = vadd.f32 %v7432, %v8104
      %v8106 = vpop.f32.mrb[0].mxu0
      %8107 = vmatprep.mubr.f32.mxu0 %v978
      %8108 = vmatmul.mubr.f32.gmra.mrb[0].mxu0 %v977
      %v8109 = vpop.f32.mrb[0].mxu0
      %v8110 = vadd.f32 %v7441, %v8109
      %v8111 = vpop.f32.mrb[0].mxu0
      %8112 = vmatprep.mubr.f32.mxu0 %v980
      %8113 = vmatmul.mubr.f32.gmra.mrb[0].mxu0 %v979
      %v8114 = vpop.f32.mrb[0].mxu0
      %v8115 = vadd.f32 %v7450, %v8114
      %v8116 = vpop.f32.mrb[0].mxu0
      %8117 = vmatprep.mubr.f32.mxu0 %v982
      %8118 = vmatmul.mubr.f32.gmra.mrb[0].mxu0 %v981
      %v8119 = vpop.f32.mrb[0].mxu0
      %v8120 = vadd.f32 %v7459, %v8119
      %v8121 = vpop.f32.mrb[0].mxu0
      %8122 = vmatprep.mubr.f32.mxu0 %v984
      %8123 = vmatmul.mubr.f32.gmra.mrb[0].mxu0 %v983
      %v8124 = vpop.f32.mrb[0].mxu0
      %v8125 = vadd.f32 %v7468, %v8124
      %v8126 = vpop.f32.mrb[0].mxu0
      %8127 = vmatprep.mubr.f32.mxu0 %v986
      %8128 = vmatmul.mubr.f32.gmra.mrb[0].mxu0 %v985
      %v8129 = vpop.f32.mrb[0].mxu0
      %v8130 = vadd.f32 %v7477, %v8129
      %v8131 = vpop.f32.mrb[0].mxu0
      %8132 = vmatprep.mubr.f32.mxu0 %v988
      %8133 = vmatmul.mubr.f32.gmra.mrb[0].mxu0 %v987
      %v8134 = vpop.f32.mrb[0].mxu0
      %v8135 = vadd.f32 %v7486, %v8134
      %v8136 = vpop.f32.mrb[0].mxu0
      %8137 = vmatprep.mubr.f32.mxu0 %v990
      %8138 = vmatmul.mubr.f32.gmra.mrb[0].mxu0 %v989
      %v8139 = vpop.f32.mrb[0].mxu0
      %v8140 = vadd.f32 %v7495, %v8139
      %v8141 = vpop.f32.mrb[0].mxu0
      %8142 = vmatprep.mubr.f32.mxu0 %v992
      %8143 = vmatmul.mubr.f32.gmra.mrb[0].mxu0 %v991
      %v8144 = vpop.f32.mrb[0].mxu0
      %v8145 = vadd.f32 %v7504, %v8144
      %v8146 = vpop.f32.mrb[0].mxu0
      %8147 = vmatprep.mubr.f32.mxu0 %v994
      %8148 = vmatmul.mubr.f32.gmra.mrb[0].mxu0 %v993
      %v8149 = vpop.f32.mrb[0].mxu0
      %v8150 = vadd.f32 %v7513, %v8149
      %v8151 = vpop.f32.mrb[0].mxu0
      %8152 = vmatprep.mubr.f32.mxu0 %v996
      %8153 = vmatmul.mubr.f32.gmra.mrb[0].mxu0 %v995
      %v8154 = vpop.f32.mrb[0].mxu0
      %v8155 = vadd.f32 %v7522, %v8154
      %v8156 = vpop.f32.mrb[0].mxu0
      %8157 = vmatprep.mubr.f32.mxu0 %v998
      %8158 = vmatmul.mubr.f32.gmra.mrb[0].mxu0 %v997
      %v8159 = vpop.f32.mrb[0].mxu0
      %v8160 = vadd.f32 %v7531, %v8159
      %v8161 = vpop.f32.mrb[0].mxu0
      %8162 = vmatprep.mubr.f32.mxu0 %v1000
      %8163 = vmatmul.mubr.f32.gmra.mrb[0].mxu0 %v999
      %v8164 = vpop.f32.mrb[0].mxu0
      %v8165 = vadd.f32 %v7540, %v8164
      %v8166 = vpop.f32.mrb[0].mxu0
      %8167 = vmatprep.mubr.f32.mxu0 %v1002
      %8168 = vmatmul.mubr.f32.gmra.mrb[0].mxu0 %v1001
      %v8169 = vpop.f32.mrb[0].mxu0
      %v8170 = vadd.f32 %v7549, %v8169
      %v8171 = vpop.f32.mrb[0].mxu0
      %8172 = vmatprep.mubr.f32.mxu0 %v1004
      %8173 = vmatmul.mubr.f32.gmra.mrb[0].mxu0 %v1003
      %v8174 = vpop.f32.mrb[0].mxu0
      %v8175 = vadd.f32 %v7558, %v8174
      %v8176 = vpop.f32.mrb[0].mxu0
      %8177 = vmatprep.mubr.f32.mxu0 %v1006
      %8178 = vmatmul.mubr.f32.gmra.mrb[0].mxu0 %v1005
      %v8179 = vpop.f32.mrb[0].mxu0
      %v8180 = vadd.f32 %v7567, %v8179
      %v8181 = vpop.f32.mrb[0].mxu0
      %8182 = vmatprep.mubr.f32.mxu0 %v1008
      %8183 = vmatmul.mubr.f32.gmra.mrb[0].mxu0 %v1007
      %v8184 = vpop.f32.mrb[0].mxu0
      %v8185 = vadd.f32 %v7576, %v8184
      %v8186 = vpop.f32.mrb[0].mxu0
      %8187 = vmatprep.mubr.f32.mxu0 %v1010
      %8188 = vmatmul.mubr.f32.gmra.mrb[0].mxu0 %v1009
      %v8189 = vpop.f32.mrb[0].mxu0
      %v8190 = vadd.f32 %v7585, %v8189
      %v8191 = vpop.f32.mrb[0].mxu0
      %8192 = vmatprep.mubr.f32.mxu0 %v1012
      %8193 = vmatmul.mubr.f32.gmra.mrb[0].mxu0 %v1011
      %v8194 = vpop.f32.mrb[0].mxu0
      %v8195 = vadd.f32 %v7594, %v8194
      %v8196 = vpop.f32.mrb[0].mxu0
      %8197 = vmatprep.mubr.f32.mxu0 %v1014
      %8198 = vmatmul.mubr.f32.gmra.mrb[0].mxu0 %v1013
      %v8199 = vpop.f32.mrb[0].mxu0
      %v8200 = vadd.f32 %v7603, %v8199
      %v8201 = vpop.f32.mrb[0].mxu0
      %8202 = vmatprep.mubr.f32.mxu0 %v1016
      %8203 = vmatmul.mubr.f32.gmra.mrb[0].mxu0 %v1015
      %v8204 = vpop.f32.mrb[0].mxu0
      %v8205 = vadd.f32 %v7612, %v8204
      %v8206 = vpop.f32.mrb[0].mxu0
      %8207 = vmatprep.mubr.f32.mxu0 %v1018
      %8208 = vmatmul.mubr.f32.gmra.mrb[0].mxu0 %v1017
      %v8209 = vpop.f32.mrb[0].mxu0
      %v8210 = vadd.f32 %v7621, %v8209
      %v8211 = vpop.f32.mrb[0].mxu0
      %8212 = vmatprep.mubr.f32.mxu0 %v1020
      %8213 = vmatmul.mubr.f32.gmra.mrb[0].mxu0 %v1019
      %v8214 = vpop.f32.mrb[0].mxu0
      %v8215 = vadd.f32 %v7630, %v8214
      %v8216 = vpop.f32.mrb[0].mxu0
      %8217 = vmatprep.mubr.f32.mxu0 %v1022
      %8218 = vmatmul.mubr.f32.gmra.mrb[0].mxu0 %v1021
      %v8219 = vpop.f32.mrb[0].mxu0
      %v8220 = vadd.f32 %v7639, %v8219
      %v8221 = vpop.f32.mrb[0].mxu0
      %8222 = vmatprep.mubr.f32.mxu0 %v1024
      %8223 = vmatmul.mubr.f32.gmra.mrb[0].mxu0 %v1023
      %v8224 = vpop.f32.mrb[0].mxu0
      %v8225 = vadd.f32 %v7648, %v8224
      %v8226 = vpop.f32.mrb[0].mxu0
      %8227 = vmatprep.mubr.f32.mxu0 %v1026
      %8228 = vmatmul.mubr.f32.gmra.mrb[0].mxu0 %v1025
      %v8229 = vpop.f32.mrb[0].mxu0
      %v8230 = vadd.f32 %v7657, %v8229
      %v8231 = vpop.f32.mrb[0].mxu0
      %8232 = vmatprep.mubr.f32.mxu0 %v1028
      %8233 = vmatmul.mubr.f32.gmra.mrb[0].mxu0 %v1027
      %v8234 = vpop.f32.mrb[0].mxu0
      %v8235 = vadd.f32 %v7666, %v8234
      %v8236 = vpop.f32.mrb[0].mxu0
      %8237 = vmatprep.mubr.f32.mxu0 %v1030
      %8238 = vmatmul.mubr.f32.gmra.mrb[0].mxu0 %v1029
      %v8239 = vpop.f32.mrb[0].mxu0
      %v8240 = vadd.f32 %v7675, %v8239
      %v8241 = vpop.f32.mrb[0].mxu0
      %8242 = vmatprep.mubr.f32.mxu0 %v1032
      %8243 = vmatmul.mubr.f32.gmra.mrb[0].mxu0 %v1031
      %v8244 = vpop.f32.mrb[0].mxu0
      %v8245 = vadd.f32 %v7684, %v8244
      %v8246 = vpop.f32.mrb[0].mxu0
      %8247 = vmatprep.mubr.f32.mxu0 %v1034
      %8248 = vmatmul.mubr.f32.gmra.mrb[0].mxu0 %v1033
      %v8249 = vpop.f32.mrb[0].mxu0
      %v8250 = vadd.f32 %v7693, %v8249
      %v8251 = vpop.f32.mrb[0].mxu0
      %8252 = vmatprep.mubr.f32.mxu0 %v1036
      %8253 = vmatmul.mubr.f32.gmra.mrb[0].mxu0 %v1035
      %v8254 = vpop.f32.mrb[0].mxu0
      %v8255 = vadd.f32 %v7702, %v8254
      %v8256 = vpop.f32.mrb[0].mxu0
      %8257 = vmatprep.mubr.f32.mxu0 %v1038
      %8258 = vmatmul.mubr.f32.gmra.mrb[0].mxu0 %v1037
      %v8259 = vpop.f32.mrb[0].mxu0
      %v8260 = vadd.f32 %v7711, %v8259
      %v8261 = vpop.f32.mrb[0].mxu0
      %8262 = vmatprep.mubr.f32.mxu0 %v1040
      %8263 = vmatmul.mubr.f32.gmra.mrb[0].mxu0 %v1039
      %v8264 = vpop.f32.mrb[0].mxu0
      %v8265 = vadd.f32 %v7720, %v8264
      %v8266 = vpop.f32.mrb[0].mxu0
      %8267 = vmatprep.mubr.f32.mxu0 %v1042
      %8268 = vmatmul.mubr.f32.gmra.mrb[0].mxu0 %v1041
      %v8269 = vpop.f32.mrb[0].mxu0
      %v8270 = vadd.f32 %v7729, %v8269
      %v8271 = vpop.f32.mrb[0].mxu0
      %8272 = vmatprep.mubr.f32.mxu0 %v1044
      %8273 = vmatmul.mubr.f32.gmra.mrb[0].mxu0 %v1043
      %v8274 = vpop.f32.mrb[0].mxu0
      %v8275 = vadd.f32 %v7738, %v8274
      %v8276 = vpop.f32.mrb[0].mxu0
      %8277 = vmatprep.mubr.f32.mxu0 %v1046
      %8278 = vmatmul.mubr.f32.gmra.mrb[0].mxu0 %v1045
      %v8279 = vpop.f32.mrb[0].mxu0
      %v8280 = vadd.f32 %v7747, %v8279
      %v8281 = vpop.f32.mrb[0].mxu0
      %8282 = vmatprep.mubr.f32.mxu0 %v1048
      %8283 = vmatmul.mubr.f32.gmra.mrb[0].mxu0 %v1047
      %v8284 = vpop.f32.mrb[0].mxu0
      %v8285 = vadd.f32 %v7756, %v8284
      %v8286 = vpop.f32.mrb[0].mxu0
      %8287 = vmatprep.mubr.f32.mxu0 %v1050
      %8288 = vmatmul.mubr.f32.gmra.mrb[0].mxu0 %v1049
      %v8289 = vpop.f32.mrb[0].mxu0
      %v8290 = vadd.f32 %v7765, %v8289
      %v8291 = vpop.f32.mrb[0].mxu0
      %8292 = vmatprep.mubr.f32.mxu0 %v1052
      %8293 = vmatmul.mubr.f32.gmra.mrb[0].mxu0 %v1051
      %v8294 = vpop.f32.mrb[0].mxu0
      %v8295 = vadd.f32 %v7774, %v8294
      %v8296 = vpop.f32.mrb[0].mxu0
      %8297 = vmatprep.mubr.f32.mxu0 %v1054
      %8298 = vmatmul.mubr.f32.gmra.mrb[0].mxu0 %v1053
      %v8299 = vpop.f32.mrb[0].mxu0
      %v8300 = vadd.f32 %v7783, %v8299
      %v8301 = vpop.f32.mrb[0].mxu0
      %8302 = vmatprep.mubr.f32.mxu0 %v1056
      %8303 = vmatmul.mubr.f32.gmra.mrb[0].mxu0 %v1055
      %v8304 = vpop.f32.mrb[0].mxu0
      %v8305 = vadd.f32 %v7792, %v8304
      %v8306 = vpop.f32.mrb[0].mxu0
      %8307 = vmatprep.mubr.f32.mxu0 %v1058
      %8308 = vmatmul.mubr.f32.gmra.mrb[0].mxu0 %v1057
      %v8309 = vpop.f32.mrb[0].mxu0
      %v8310 = vadd.f32 %v7801, %v8309
      %v8311 = vpop.f32.mrb[0].mxu0
      %8312 = vmatprep.mubr.f32.mxu0 %v1060
      %8313 = vmatmul.mubr.f32.gmra.mrb[0].mxu0 %v1059
      %v8314 = vpop.f32.mrb[0].mxu0
      %v8315 = vadd.f32 %v7810, %v8314
      %v8316 = vpop.f32.mrb[0].mxu0
      %8317 = vmatprep.mubr.f32.mxu0 %v1062
      %8318 = vmatmul.mubr.f32.gmra.mrb[0].mxu0 %v1061
      %v8319 = vpop.f32.mrb[0].mxu0
      %v8320 = vadd.f32 %v7819, %v8319
      %v8321 = vpop.f32.mrb[0].mxu0
      %8322 = vmatprep.mubr.f32.mxu0 %v1064
      %8323 = vmatmul.mubr.f32.gmra.mrb[0].mxu0 %v1063
      %v8324 = vpop.f32.mrb[0].mxu0
      %v8325 = vadd.f32 %v7828, %v8324
      %v8326 = vpop.f32.mrb[0].mxu0
      %8327 = vmatprep.mubr.f32.mxu0 %v1066
      %8328 = vmatmul.mubr.f32.gmra.mrb[0].mxu0 %v1065
      %v8329 = vpop.f32.mrb[0].mxu0
      %v8330 = vadd.f32 %v7837, %v8329
      %v8331 = vpop.f32.mrb[0].mxu0
      %8332 = vmatprep.mubr.f32.mxu0 %v1068
      %8333 = vmatmul.mubr.f32.gmra.mrb[0].mxu0 %v1067
      %v8334 = vpop.f32.mrb[0].mxu0
      %v8335 = vadd.f32 %v7846, %v8334
      %v8336 = vpop.f32.mrb[0].mxu0
      %8337 = vmatprep.mubr.f32.mxu0 %v1070
      %8338 = vmatmul.mubr.f32.gmra.mrb[0].mxu0 %v1069
      %v8339 = vpop.f32.mrb[0].mxu0
      %v8340 = vadd.f32 %v7855, %v8339
      %v8341 = vpop.f32.mrb[0].mxu0
      %8342 = vmatprep.mubr.f32.mxu0 %v1072
      %8343 = vmatmul.mubr.f32.gmra.mrb[0].mxu0 %v1071
      %v8344 = vpop.f32.mrb[0].mxu0
      %v8345 = vadd.f32 %v7864, %v8344
      %v8346 = vpop.f32.mrb[0].mxu0
      %8347 = vdwg.mxu0
      %8348 = vmatprep.subr.mxu0 0.0
      %v8349 = vand.u32 %v1073, 4294901760
      %8350 = vmatpush1.msra.mxu0 %v8349
      %8351 = vmatprep.subr.mxu0 0.0
      %v8352 = vand.u32 %v1074, 4294901760
      %8353 = vmatpush1.msra.mxu0 %v8352
      %8354 = vmatprep.subr.mxu0 0.0
      %v8355 = vand.u32 %v1075, 4294901760
      %8356 = vmatpush1.msra.mxu0 %v8355
      %8357 = vmatprep.subr.mxu0 0.0
      %v8358 = vand.u32 %v1076, 4294901760
      %8359 = vmatpush1.msra.mxu0 %v8358
      %8360 = vmatprep.subr.mxu0 0.0
      %v8361 = vand.u32 %v1077, 4294901760
      %8362 = vmatpush1.msra.mxu0 %v8361
      %8363 = vmatprep.subr.mxu0 0.0
      %v8364 = vand.u32 %v1078, 4294901760
      %8365 = vmatpush1.msra.mxu0 %v8364
      %8366 = vmatprep.subr.mxu0 0.0
      %v8367 = vand.u32 %v1079, 4294901760
      %8368 = vmatpush1.msra.mxu0 %v8367
      %8369 = vmatprep.subr.mxu0 0.0
      %v8370 = vand.u32 %v1080, 4294901760
      %8371 = vmatpush1.msra.mxu0 %v8370
      %8372 = vmatprep.subr.mxu0 0.0
      %v8373 = vand.u32 %v1081, 4294901760
      %8374 = vmatpush1.msra.mxu0 %v8373
      %8375 = vmatprep.subr.mxu0 0.0
      %v8376 = vand.u32 %v1082, 4294901760
      %8377 = vmatpush1.msra.mxu0 %v8376
      %8378 = vmatprep.subr.mxu0 0.0
      %v8379 = vand.u32 %v1083, 4294901760
      %8380 = vmatpush1.msra.mxu0 %v8379
      %8381 = vmatprep.subr.mxu0 0.0
      %v8382 = vand.u32 %v1084, 4294901760
      %8383 = vmatpush1.msra.mxu0 %v8382
      %8384 = vmatprep.subr.mxu0 0.0
      %v8385 = vand.u32 %v1085, 4294901760
      %8386 = vmatpush1.msra.mxu0 %v8385
      %8387 = vmatprep.subr.mxu0 0.0
      %v8388 = vand.u32 %v1086, 4294901760
      %8389 = vmatpush1.msra.mxu0 %v8388
      %8390 = vmatprep.subr.mxu0 0.0
      %v8391 = vand.u32 %v1087, 4294901760
      %8392 = vmatpush1.msra.mxu0 %v8391
      %8393 = vmatprep.subr.mxu0 0.0
      %v8394 = vand.u32 %v1088, 4294901760
      %8395 = vmatpush1.msra.mxu0 %v8394
      %8396 = vmatprep.subr.mxu0 0.0
      %v8397 = vand.u32 %v1089, 4294901760
      %8398 = vmatpush1.msra.mxu0 %v8397
      %8399 = vmatprep.subr.mxu0 0.0
      %v8400 = vand.u32 %v1090, 4294901760
      %8401 = vmatpush1.msra.mxu0 %v8400
      %8402 = vmatprep.subr.mxu0 0.0
      %v8403 = vand.u32 %v1091, 4294901760
      %8404 = vmatpush1.msra.mxu0 %v8403
      %8405 = vmatprep.subr.mxu0 0.0
      %v8406 = vand.u32 %v1092, 4294901760
      %8407 = vmatpush1.msra.mxu0 %v8406
      %8408 = vmatprep.subr.mxu0 0.0
      %v8409 = vand.u32 %v1093, 4294901760
      %8410 = vmatpush1.msra.mxu0 %v8409
      %8411 = vmatprep.subr.mxu0 0.0
      %v8412 = vand.u32 %v1094, 4294901760
      %8413 = vmatpush1.msra.mxu0 %v8412
      %8414 = vmatprep.subr.mxu0 0.0
      %v8415 = vand.u32 %v1095, 4294901760
      %8416 = vmatpush1.msra.mxu0 %v8415
      %8417 = vmatprep.subr.mxu0 0.0
      %v8418 = vand.u32 %v1096, 4294901760
      %8419 = vmatpush1.msra.mxu0 %v8418
      %8420 = vmatprep.subr.mxu0 0.0
      %v8421 = vand.u32 %v1097, 4294901760
      %8422 = vmatpush1.msra.mxu0 %v8421
      %8423 = vmatprep.subr.mxu0 0.0
      %v8424 = vand.u32 %v1098, 4294901760
      %8425 = vmatpush1.msra.mxu0 %v8424
      %8426 = vmatprep.subr.mxu0 0.0
      %v8427 = vand.u32 %v1099, 4294901760
      %8428 = vmatpush1.msra.mxu0 %v8427
      %8429 = vmatprep.subr.mxu0 0.0
      %v8430 = vand.u32 %v1100, 4294901760
      %8431 = vmatpush1.msra.mxu0 %v8430
      %8432 = vmatprep.subr.mxu0 0.0
      %v8433 = vand.u32 %v1101, 4294901760
      %8434 = vmatpush1.msra.mxu0 %v8433
      %8435 = vmatprep.subr.mxu0 0.0
      %v8436 = vand.u32 %v1102, 4294901760
      %8437 = vmatpush1.msra.mxu0 %v8436
      %8438 = vmatprep.subr.mxu0 0.0
      %v8439 = vand.u32 %v1103, 4294901760
      %8440 = vmatpush1.msra.mxu0 %v8439
      %8441 = vmatprep.subr.mxu0 0.0
      %v8442 = vand.u32 %v1104, 4294901760
      %8443 = vmatpush1.msra.mxu0 %v8442
      %8444 = vmatprep.mubr.f32.mxu0 %v946
      %8445 = vmatmul.mubr.f32.gmra.mrb[0].mxu0 %v945
      %v8446 = vpop.f32.mrb[0].mxu0
      %v8447 = vadd.f32 %v8030, %v8446
      %v8448 = vpop.f32.mrb[0].mxu0
      %8449 = vmatprep.mubr.f32.mxu0 %v948
      %8450 = vmatmul.mubr.f32.gmra.mrb[0].mxu0 %v947
      %v8451 = vpop.f32.mrb[0].mxu0
      %v8452 = vadd.f32 %v8035, %v8451
      %v8453 = vpop.f32.mrb[0].mxu0
      %8454 = vmatprep.mubr.f32.mxu0 %v950
      %8455 = vmatmul.mubr.f32.gmra.mrb[0].mxu0 %v949
      %v8456 = vpop.f32.mrb[0].mxu0
      %v8457 = vadd.f32 %v8040, %v8456
      %v8458 = vpop.f32.mrb[0].mxu0
      %8459 = vmatprep.mubr.f32.mxu0 %v952
      %8460 = vmatmul.mubr.f32.gmra.mrb[0].mxu0 %v951
      %v8461 = vpop.f32.mrb[0].mxu0
      %v8462 = vadd.f32 %v8045, %v8461
      %v8463 = vpop.f32.mrb[0].mxu0
      %8464 = vmatprep.mubr.f32.mxu0 %v954
      %8465 = vmatmul.mubr.f32.gmra.mrb[0].mxu0 %v953
      %v8466 = vpop.f32.mrb[0].mxu0
      %v8467 = vadd.f32 %v8050, %v8466
      %v8468 = vpop.f32.mrb[0].mxu0
      %8469 = vmatprep.mubr.f32.mxu0 %v956
      %8470 = vmatmul.mubr.f32.gmra.mrb[0].mxu0 %v955
      %v8471 = vpop.f32.mrb[0].mxu0
      %v8472 = vadd.f32 %v8055, %v8471
      %v8473 = vpop.f32.mrb[0].mxu0
      %8474 = vmatprep.mubr.f32.mxu0 %v958
      %8475 = vmatmul.mubr.f32.gmra.mrb[0].mxu0 %v957
      %v8476 = vpop.f32.mrb[0].mxu0
      %v8477 = vadd.f32 %v8060, %v8476
      %v8478 = vpop.f32.mrb[0].mxu0
      %8479 = vmatprep.mubr.f32.mxu0 %v960
      %8480 = vmatmul.mubr.f32.gmra.mrb[0].mxu0 %v959
      %v8481 = vpop.f32.mrb[0].mxu0
      %v8482 = vadd.f32 %v8065, %v8481
      %v8483 = vpop.f32.mrb[0].mxu0
      %8484 = vmatprep.mubr.f32.mxu0 %v962
      %8485 = vmatmul.mubr.f32.gmra.mrb[0].mxu0 %v961
      %v8486 = vpop.f32.mrb[0].mxu0
      %v8487 = vadd.f32 %v8070, %v8486
      %v8488 = vpop.f32.mrb[0].mxu0
      %8489 = vmatprep.mubr.f32.mxu0 %v964
      %8490 = vmatmul.mubr.f32.gmra.mrb[0].mxu0 %v963
      %v8491 = vpop.f32.mrb[0].mxu0
      %v8492 = vadd.f32 %v8075, %v8491
      %v8493 = vpop.f32.mrb[0].mxu0
      %8494 = vmatprep.mubr.f32.mxu0 %v966
      %8495 = vmatmul.mubr.f32.gmra.mrb[0].mxu0 %v965
      %v8496 = vpop.f32.mrb[0].mxu0
      %v8497 = vadd.f32 %v8080, %v8496
      %v8498 = vpop.f32.mrb[0].mxu0
      %8499 = vmatprep.mubr.f32.mxu0 %v968
      %8500 = vmatmul.mubr.f32.gmra.mrb[0].mxu0 %v967
      %v8501 = vpop.f32.mrb[0].mxu0
      %v8502 = vadd.f32 %v8085, %v8501
      %v8503 = vpop.f32.mrb[0].mxu0
      %8504 = vmatprep.mubr.f32.mxu0 %v970
      %8505 = vmatmul.mubr.f32.gmra.mrb[0].mxu0 %v969
      %v8506 = vpop.f32.mrb[0].mxu0
      %v8507 = vadd.f32 %v8090, %v8506
      %v8508 = vpop.f32.mrb[0].mxu0
      %8509 = vmatprep.mubr.f32.mxu0 %v972
      %8510 = vmatmul.mubr.f32.gmra.mrb[0].mxu0 %v971
      %v8511 = vpop.f32.mrb[0].mxu0
      %v8512 = vadd.f32 %v8095, %v8511
      %v8513 = vpop.f32.mrb[0].mxu0
      %8514 = vmatprep.mubr.f32.mxu0 %v974
      %8515 = vmatmul.mubr.f32.gmra.mrb[0].mxu0 %v973
      %v8516 = vpop.f32.mrb[0].mxu0
      %v8517 = vadd.f32 %v8100, %v8516
      %v8518 = vpop.f32.mrb[0].mxu0
      %8519 = vmatprep.mubr.f32.mxu0 %v976
      %8520 = vmatmul.mubr.f32.gmra.mrb[0].mxu0 %v975
      %v8521 = vpop.f32.mrb[0].mxu0
      %v8522 = vadd.f32 %v8105, %v8521
      %v8523 = vpop.f32.mrb[0].mxu0
      %8524 = vmatprep.mubr.f32.mxu0 %v978
      %8525 = vmatmul.mubr.f32.gmra.mrb[0].mxu0 %v977
      %v8526 = vpop.f32.mrb[0].mxu0
      %v8527 = vadd.f32 %v8110, %v8526
      %v8528 = vpop.f32.mrb[0].mxu0
      %8529 = vmatprep.mubr.f32.mxu0 %v980
      %8530 = vmatmul.mubr.f32.gmra.mrb[0].mxu0 %v979
      %v8531 = vpop.f32.mrb[0].mxu0
      %v8532 = vadd.f32 %v8115, %v8531
      %v8533 = vpop.f32.mrb[0].mxu0
      %8534 = vmatprep.mubr.f32.mxu0 %v982
      %8535 = vmatmul.mubr.f32.gmra.mrb[0].mxu0 %v981
      %v8536 = vpop.f32.mrb[0].mxu0
      %v8537 = vadd.f32 %v8120, %v8536
      %v8538 = vpop.f32.mrb[0].mxu0
      %8539 = vmatprep.mubr.f32.mxu0 %v984
      %8540 = vmatmul.mubr.f32.gmra.mrb[0].mxu0 %v983
      %v8541 = vpop.f32.mrb[0].mxu0
      %v8542 = vadd.f32 %v8125, %v8541
      %v8543 = vpop.f32.mrb[0].mxu0
      %8544 = vmatprep.mubr.f32.mxu0 %v986
      %8545 = vmatmul.mubr.f32.gmra.mrb[0].mxu0 %v985
      %v8546 = vpop.f32.mrb[0].mxu0
      %v8547 = vadd.f32 %v8130, %v8546
      %v8548 = vpop.f32.mrb[0].mxu0
      %8549 = vmatprep.mubr.f32.mxu0 %v988
      %8550 = vmatmul.mubr.f32.gmra.mrb[0].mxu0 %v987
      %v8551 = vpop.f32.mrb[0].mxu0
      %v8552 = vadd.f32 %v8135, %v8551
      %v8553 = vpop.f32.mrb[0].mxu0
      %8554 = vmatprep.mubr.f32.mxu0 %v990
      %8555 = vmatmul.mubr.f32.gmra.mrb[0].mxu0 %v989
      %v8556 = vpop.f32.mrb[0].mxu0
      %v8557 = vadd.f32 %v8140, %v8556
      %v8558 = vpop.f32.mrb[0].mxu0
      %8559 = vmatprep.mubr.f32.mxu0 %v992
      %8560 = vmatmul.mubr.f32.gmra.mrb[0].mxu0 %v991
      %v8561 = vpop.f32.mrb[0].mxu0
      %v8562 = vadd.f32 %v8145, %v8561
      %v8563 = vpop.f32.mrb[0].mxu0
      %8564 = vmatprep.mubr.f32.mxu0 %v994
      %8565 = vmatmul.mubr.f32.gmra.mrb[0].mxu0 %v993
      %v8566 = vpop.f32.mrb[0].mxu0
      %v8567 = vadd.f32 %v8150, %v8566
      %v8568 = vpop.f32.mrb[0].mxu0
      %8569 = vmatprep.mubr.f32.mxu0 %v996
      %8570 = vmatmul.mubr.f32.gmra.mrb[0].mxu0 %v995
      %v8571 = vpop.f32.mrb[0].mxu0
      %v8572 = vadd.f32 %v8155, %v8571
      %v8573 = vpop.f32.mrb[0].mxu0
      %8574 = vmatprep.mubr.f32.mxu0 %v998
      %8575 = vmatmul.mubr.f32.gmra.mrb[0].mxu0 %v997
      %v8576 = vpop.f32.mrb[0].mxu0
      %v8577 = vadd.f32 %v8160, %v8576
      %v8578 = vpop.f32.mrb[0].mxu0
      %8579 = vmatprep.mubr.f32.mxu0 %v1000
      %8580 = vmatmul.mubr.f32.gmra.mrb[0].mxu0 %v999
      %v8581 = vpop.f32.mrb[0].mxu0
      %v8582 = vadd.f32 %v8165, %v8581
      %v8583 = vpop.f32.mrb[0].mxu0
      %8584 = vmatprep.mubr.f32.mxu0 %v1002
      %8585 = vmatmul.mubr.f32.gmra.mrb[0].mxu0 %v1001
      %v8586 = vpop.f32.mrb[0].mxu0
      %v8587 = vadd.f32 %v8170, %v8586
      %v8588 = vpop.f32.mrb[0].mxu0
      %8589 = vmatprep.mubr.f32.mxu0 %v1004
      %8590 = vmatmul.mubr.f32.gmra.mrb[0].mxu0 %v1003
      %v8591 = vpop.f32.mrb[0].mxu0
      %v8592 = vadd.f32 %v8175, %v8591
      %v8593 = vpop.f32.mrb[0].mxu0
      %8594 = vmatprep.mubr.f32.mxu0 %v1006
      %8595 = vmatmul.mubr.f32.gmra.mrb[0].mxu0 %v1005
      %v8596 = vpop.f32.mrb[0].mxu0
      %v8597 = vadd.f32 %v8180, %v8596
      %v8598 = vpop.f32.mrb[0].mxu0
      %8599 = vmatprep.mubr.f32.mxu0 %v1008
      %8600 = vmatmul.mubr.f32.gmra.mrb[0].mxu0 %v1007
      %v8601 = vpop.f32.mrb[0].mxu0
      %v8602 = vadd.f32 %v8185, %v8601
      %v8603 = vpop.f32.mrb[0].mxu0
      %8604 = vmatprep.mubr.f32.mxu0 %v1010
      %8605 = vmatmul.mubr.f32.gmra.mrb[0].mxu0 %v1009
      %v8606 = vpop.f32.mrb[0].mxu0
      %v8607 = vadd.f32 %v8190, %v8606
      %v8608 = vpop.f32.mrb[0].mxu0
      %8609 = vmatprep.mubr.f32.mxu0 %v1012
      %8610 = vmatmul.mubr.f32.gmra.mrb[0].mxu0 %v1011
      %v8611 = vpop.f32.mrb[0].mxu0
      %v8612 = vadd.f32 %v8195, %v8611
      %v8613 = vpop.f32.mrb[0].mxu0
      %8614 = vmatprep.mubr.f32.mxu0 %v1014
      %8615 = vmatmul.mubr.f32.gmra.mrb[0].mxu0 %v1013
      %v8616 = vpop.f32.mrb[0].mxu0
      %v8617 = vadd.f32 %v8200, %v8616
      %v8618 = vpop.f32.mrb[0].mxu0
      %8619 = vmatprep.mubr.f32.mxu0 %v1016
      %8620 = vmatmul.mubr.f32.gmra.mrb[0].mxu0 %v1015
      %v8621 = vpop.f32.mrb[0].mxu0
      %v8622 = vadd.f32 %v8205, %v8621
      %v8623 = vpop.f32.mrb[0].mxu0
      %8624 = vmatprep.mubr.f32.mxu0 %v1018
      %8625 = vmatmul.mubr.f32.gmra.mrb[0].mxu0 %v1017
      %v8626 = vpop.f32.mrb[0].mxu0
      %v8627 = vadd.f32 %v8210, %v8626
      %v8628 = vpop.f32.mrb[0].mxu0
      %8629 = vmatprep.mubr.f32.mxu0 %v1020
      %8630 = vmatmul.mubr.f32.gmra.mrb[0].mxu0 %v1019
      %v8631 = vpop.f32.mrb[0].mxu0
      %v8632 = vadd.f32 %v8215, %v8631
      %v8633 = vpop.f32.mrb[0].mxu0
      %8634 = vmatprep.mubr.f32.mxu0 %v1022
      %8635 = vmatmul.mubr.f32.gmra.mrb[0].mxu0 %v1021
      %v8636 = vpop.f32.mrb[0].mxu0
      %v8637 = vadd.f32 %v8220, %v8636
      %v8638 = vpop.f32.mrb[0].mxu0
      %8639 = vmatprep.mubr.f32.mxu0 %v1024
      %8640 = vmatmul.mubr.f32.gmra.mrb[0].mxu0 %v1023
      %v8641 = vpop.f32.mrb[0].mxu0
      %v8642 = vadd.f32 %v8225, %v8641
      %v8643 = vpop.f32.mrb[0].mxu0
      %8644 = vmatprep.mubr.f32.mxu0 %v1026
      %8645 = vmatmul.mubr.f32.gmra.mrb[0].mxu0 %v1025
      %v8646 = vpop.f32.mrb[0].mxu0
      %v8647 = vadd.f32 %v8230, %v8646
      %v8648 = vpop.f32.mrb[0].mxu0
      %8649 = vmatprep.mubr.f32.mxu0 %v1028
      %8650 = vmatmul.mubr.f32.gmra.mrb[0].mxu0 %v1027
      %v8651 = vpop.f32.mrb[0].mxu0
      %v8652 = vadd.f32 %v8235, %v8651
      %v8653 = vpop.f32.mrb[0].mxu0
      %8654 = vmatprep.mubr.f32.mxu0 %v1030
      %8655 = vmatmul.mubr.f32.gmra.mrb[0].mxu0 %v1029
      %v8656 = vpop.f32.mrb[0].mxu0
      %v8657 = vadd.f32 %v8240, %v8656
      %v8658 = vpop.f32.mrb[0].mxu0
      %8659 = vmatprep.mubr.f32.mxu0 %v1032
      %8660 = vmatmul.mubr.f32.gmra.mrb[0].mxu0 %v1031
      %v8661 = vpop.f32.mrb[0].mxu0
      %v8662 = vadd.f32 %v8245, %v8661
      %v8663 = vpop.f32.mrb[0].mxu0
      %8664 = vmatprep.mubr.f32.mxu0 %v1034
      %8665 = vmatmul.mubr.f32.gmra.mrb[0].mxu0 %v1033
      %v8666 = vpop.f32.mrb[0].mxu0
      %v8667 = vadd.f32 %v8250, %v8666
      %v8668 = vpop.f32.mrb[0].mxu0
      %8669 = vmatprep.mubr.f32.mxu0 %v1036
      %8670 = vmatmul.mubr.f32.gmra.mrb[0].mxu0 %v1035
      %v8671 = vpop.f32.mrb[0].mxu0
      %v8672 = vadd.f32 %v8255, %v8671
      %v8673 = vpop.f32.mrb[0].mxu0
      %8674 = vmatprep.mubr.f32.mxu0 %v1038
      %8675 = vmatmul.mubr.f32.gmra.mrb[0].mxu0 %v1037
      %v8676 = vpop.f32.mrb[0].mxu0
      %v8677 = vadd.f32 %v8260, %v8676
      %v8678 = vpop.f32.mrb[0].mxu0
      %8679 = vmatprep.mubr.f32.mxu0 %v1040
      %8680 = vmatmul.mubr.f32.gmra.mrb[0].mxu0 %v1039
      %v8681 = vpop.f32.mrb[0].mxu0
      %v8682 = vadd.f32 %v8265, %v8681
      %v8683 = vpop.f32.mrb[0].mxu0
      %8684 = vmatprep.mubr.f32.mxu0 %v1042
      %8685 = vmatmul.mubr.f32.gmra.mrb[0].mxu0 %v1041
      %v8686 = vpop.f32.mrb[0].mxu0
      %v8687 = vadd.f32 %v8270, %v8686
      %v8688 = vpop.f32.mrb[0].mxu0
      %8689 = vmatprep.mubr.f32.mxu0 %v1044
      %8690 = vmatmul.mubr.f32.gmra.mrb[0].mxu0 %v1043
      %v8691 = vpop.f32.mrb[0].mxu0
      %v8692 = vadd.f32 %v8275, %v8691
      %v8693 = vpop.f32.mrb[0].mxu0
      %8694 = vmatprep.mubr.f32.mxu0 %v1046
      %8695 = vmatmul.mubr.f32.gmra.mrb[0].mxu0 %v1045
      %v8696 = vpop.f32.mrb[0].mxu0
      %v8697 = vadd.f32 %v8280, %v8696
      %v8698 = vpop.f32.mrb[0].mxu0
      %8699 = vmatprep.mubr.f32.mxu0 %v1048
      %8700 = vmatmul.mubr.f32.gmra.mrb[0].mxu0 %v1047
      %v8701 = vpop.f32.mrb[0].mxu0
      %v8702 = vadd.f32 %v8285, %v8701
      %v8703 = vpop.f32.mrb[0].mxu0
      %8704 = vmatprep.mubr.f32.mxu0 %v1050
      %8705 = vmatmul.mubr.f32.gmra.mrb[0].mxu0 %v1049
      %v8706 = vpop.f32.mrb[0].mxu0
      %v8707 = vadd.f32 %v8290, %v8706
      %v8708 = vpop.f32.mrb[0].mxu0
      %8709 = vmatprep.mubr.f32.mxu0 %v1052
      %8710 = vmatmul.mubr.f32.gmra.mrb[0].mxu0 %v1051
      %v8711 = vpop.f32.mrb[0].mxu0
      %v8712 = vadd.f32 %v8295, %v8711
      %v8713 = vpop.f32.mrb[0].mxu0
      %8714 = vmatprep.mubr.f32.mxu0 %v1054
      %8715 = vmatmul.mubr.f32.gmra.mrb[0].mxu0 %v1053
      %v8716 = vpop.f32.mrb[0].mxu0
      %v8717 = vadd.f32 %v8300, %v8716
      %v8718 = vpop.f32.mrb[0].mxu0
      %8719 = vmatprep.mubr.f32.mxu0 %v1056
      %8720 = vmatmul.mubr.f32.gmra.mrb[0].mxu0 %v1055
      %v8721 = vpop.f32.mrb[0].mxu0
      %v8722 = vadd.f32 %v8305, %v8721
      %v8723 = vpop.f32.mrb[0].mxu0
      %8724 = vmatprep.mubr.f32.mxu0 %v1058
      %8725 = vmatmul.mubr.f32.gmra.mrb[0].mxu0 %v1057
      %v8726 = vpop.f32.mrb[0].mxu0
      %v8727 = vadd.f32 %v8310, %v8726
      %v8728 = vpop.f32.mrb[0].mxu0
      %8729 = vmatprep.mubr.f32.mxu0 %v1060
      %8730 = vmatmul.mubr.f32.gmra.mrb[0].mxu0 %v1059
      %v8731 = vpop.f32.mrb[0].mxu0
      %v8732 = vadd.f32 %v8315, %v8731
      %v8733 = vpop.f32.mrb[0].mxu0
      %8734 = vmatprep.mubr.f32.mxu0 %v1062
      %8735 = vmatmul.mubr.f32.gmra.mrb[0].mxu0 %v1061
      %v8736 = vpop.f32.mrb[0].mxu0
      %v8737 = vadd.f32 %v8320, %v8736
      %v8738 = vpop.f32.mrb[0].mxu0
      %8739 = vmatprep.mubr.f32.mxu0 %v1064
      %8740 = vmatmul.mubr.f32.gmra.mrb[0].mxu0 %v1063
      %v8741 = vpop.f32.mrb[0].mxu0
      %v8742 = vadd.f32 %v8325, %v8741
      %v8743 = vpop.f32.mrb[0].mxu0
      %8744 = vmatprep.mubr.f32.mxu0 %v1066
      %8745 = vmatmul.mubr.f32.gmra.mrb[0].mxu0 %v1065
      %v8746 = vpop.f32.mrb[0].mxu0
      %v8747 = vadd.f32 %v8330, %v8746
      %v8748 = vpop.f32.mrb[0].mxu0
      %8749 = vmatprep.mubr.f32.mxu0 %v1068
      %8750 = vmatmul.mubr.f32.gmra.mrb[0].mxu0 %v1067
      %v8751 = vpop.f32.mrb[0].mxu0
      %v8752 = vadd.f32 %v8335, %v8751
      %v8753 = vpop.f32.mrb[0].mxu0
      %8754 = vmatprep.mubr.f32.mxu0 %v1070
      %8755 = vmatmul.mubr.f32.gmra.mrb[0].mxu0 %v1069
      %v8756 = vpop.f32.mrb[0].mxu0
      %v8757 = vadd.f32 %v8340, %v8756
      %v8758 = vpop.f32.mrb[0].mxu0
      %8759 = vmatprep.mubr.f32.mxu0 %v1072
      %8760 = vmatmul.mubr.f32.gmra.mrb[0].mxu0 %v1071
      %v8761 = vpop.f32.mrb[0].mxu0
      %v8762 = vadd.f32 %v8345, %v8761
      %v8763 = vpop.f32.mrb[0].mxu0
      %8764 = vdwg.mxu0
      %vm8765 = vcmask 195584
      %8766 = vst.msk [vmem:[%s172] sm:$0xff] %vm8765, %v8447
      %8767 = vst.msk [vmem:[%s172 + $0x8] sm:$0xff] %vm8765, %v8452
      %8768 = vst.msk [vmem:[%s172 + $0x10] sm:$0xff] %vm8765, %v8457
      %8769 = vst.msk [vmem:[%s172 + $0x18] sm:$0xff] %vm8765, %v8462
      %8770 = vst.msk [vmem:[%s172 + $0x20] sm:$0xff] %vm8765, %v8467
      %8771 = vst.msk [vmem:[%s172 + $0x28] sm:$0xff] %vm8765, %v8472
      %8772 = vst.msk [vmem:[%s172 + $0x30] sm:$0xff] %vm8765, %v8477
      %8773 = vst.msk [vmem:[%s172 + $0x38] sm:$0xff] %vm8765, %v8482
      %8774 = vst.msk [vmem:[%s172 + $0x40] sm:$0xff] %vm8765, %v8487
      %8775 = vst.msk [vmem:[%s172 + $0x48] sm:$0xff] %vm8765, %v8492
      %8776 = vst.msk [vmem:[%s172 + $0x50] sm:$0xff] %vm8765, %v8497
      %8777 = vst.msk [vmem:[%s172 + $0x58] sm:$0xff] %vm8765, %v8502
      %8778 = vst.msk [vmem:[%s172 + $0x60] sm:$0xff] %vm8765, %v8507
      %8779 = vst.msk [vmem:[%s172 + $0x68] sm:$0xff] %vm8765, %v8512
      %8780 = vst.msk [vmem:[%s172 + $0x70] sm:$0xff] %vm8765, %v8517
      %8781 = vst.msk [vmem:[%s172 + $0x78] sm:$0xff] %vm8765, %v8522
      %8782 = vst.msk [vmem:[%s172 + $0x80] sm:$0xff] %vm8765, %v8527
      %8783 = vst.msk [vmem:[%s172 + $0x88] sm:$0xff] %vm8765, %v8532
      %8784 = vst.msk [vmem:[%s172 + $0x90] sm:$0xff] %vm8765, %v8537
      %8785 = vst.msk [vmem:[%s172 + $0x98] sm:$0xff] %vm8765, %v8542
      %8786 = vst.msk [vmem:[%s172 + $0xa0] sm:$0xff] %vm8765, %v8547
      %8787 = vst.msk [vmem:[%s172 + $0xa8] sm:$0xff] %vm8765, %v8552
      %8788 = vst.msk [vmem:[%s172 + $0xb0] sm:$0xff] %vm8765, %v8557
      %8789 = vst.msk [vmem:[%s172 + $0xb8] sm:$0xff] %vm8765, %v8562
      %8790 = vst.msk [vmem:[%s172 + $0xc0] sm:$0xff] %vm8765, %v8567
      %8791 = vst.msk [vmem:[%s172 + $0xc8] sm:$0xff] %vm8765, %v8572
      %8792 = vst.msk [vmem:[%s172 + $0xd0] sm:$0xff] %vm8765, %v8577
      %8793 = vst.msk [vmem:[%s172 + $0xd8] sm:$0xff] %vm8765, %v8582
      %8794 = vst.msk [vmem:[%s172 + $0xe0] sm:$0xff] %vm8765, %v8587
      %8795 = vst.msk [vmem:[%s172 + $0xe8] sm:$0xff] %vm8765, %v8592
      %8796 = vst.msk [vmem:[%s172 + $0xf0] sm:$0xff] %vm8765, %v8597
      %8797 = vst.msk [vmem:[%s172 + $0xf8] sm:$0xff] %vm8765, %v8602
      %8798 = vst.msk [vmem:[%s172 + $0x100] sm:$0xff] %vm8765, %v8607
      %8799 = vst.msk [vmem:[%s172 + $0x108] sm:$0xff] %vm8765, %v8612
      %8800 = vst.msk [vmem:[%s172 + $0x110] sm:$0xff] %vm8765, %v8617
      %8801 = vst.msk [vmem:[%s172 + $0x118] sm:$0xff] %vm8765, %v8622
      %8802 = vst.msk [vmem:[%s172 + $0x120] sm:$0xff] %vm8765, %v8627
      %8803 = vst.msk [vmem:[%s172 + $0x128] sm:$0xff] %vm8765, %v8632
      %8804 = vst.msk [vmem:[%s172 + $0x130] sm:$0xff] %vm8765, %v8637
      %8805 = vst.msk [vmem:[%s172 + $0x138] sm:$0xff] %vm8765, %v8642
      %8806 = vst.msk [vmem:[%s172 + $0x140] sm:$0xff] %vm8765, %v8647
      %8807 = vst.msk [vmem:[%s172 + $0x148] sm:$0xff] %vm8765, %v8652
      %8808 = vst.msk [vmem:[%s172 + $0x150] sm:$0xff] %vm8765, %v8657
      %8809 = vst.msk [vmem:[%s172 + $0x158] sm:$0xff] %vm8765, %v8662
      %8810 = vst.msk [vmem:[%s172 + $0x160] sm:$0xff] %vm8765, %v8667
      %8811 = vst.msk [vmem:[%s172 + $0x168] sm:$0xff] %vm8765, %v8672
      %8812 = vst.msk [vmem:[%s172 + $0x170] sm:$0xff] %vm8765, %v8677
      %8813 = vst.msk [vmem:[%s172 + $0x178] sm:$0xff] %vm8765, %v8682
      %8814 = vst.msk [vmem:[%s172 + $0x180] sm:$0xff] %vm8765, %v8687
      %8815 = vst.msk [vmem:[%s172 + $0x188] sm:$0xff] %vm8765, %v8692
      %8816 = vst.msk [vmem:[%s172 + $0x190] sm:$0xff] %vm8765, %v8697
      %8817 = vst.msk [vmem:[%s172 + $0x198] sm:$0xff] %vm8765, %v8702
      %8818 = vst.msk [vmem:[%s172 + $0x1a0] sm:$0xff] %vm8765, %v8707
      %8819 = vst.msk [vmem:[%s172 + $0x1a8] sm:$0xff] %vm8765, %v8712
      %8820 = vst.msk [vmem:[%s172 + $0x1b0] sm:$0xff] %vm8765, %v8717
      %8821 = vst.msk [vmem:[%s172 + $0x1b8] sm:$0xff] %vm8765, %v8722
      %8822 = vst.msk [vmem:[%s172 + $0x1c0] sm:$0xff] %vm8765, %v8727
      %8823 = vst.msk [vmem:[%s172 + $0x1c8] sm:$0xff] %vm8765, %v8732
      %8824 = vst.msk [vmem:[%s172 + $0x1d0] sm:$0xff] %vm8765, %v8737
      %8825 = vst.msk [vmem:[%s172 + $0x1d8] sm:$0xff] %vm8765, %v8742
      %8826 = vst.msk [vmem:[%s172 + $0x1e0] sm:$0xff] %vm8765, %v8747
      %8827 = vst.msk [vmem:[%s172 + $0x1e8] sm:$0xff] %vm8765, %v8752
      %8828 = vst.msk [vmem:[%s172 + $0x1f0] sm:$0xff] %vm8765, %v8757
      %8829 = vst.msk [vmem:[%s172 + $0x1f8] sm:$0xff] %vm8765, %v8762
      %s8830 = smul.u32 64, %s14
      %p8831 = scmp.lt.s32.totalorder %s8830, 255
      %s8832 = scalar_select %p8831, %s8830, 255
      %s8833 = smul.addr %s8832, 8
      %s8834 = scalar_lea.vmem %s3, %s8833
      // Predicated region
      $region33: #{tpu_custom_call.1} parent=31 // pred_check
        %p8835 = pneg %p100
      $region34: #{tpu_custom_call.1} parent=31 // pred_check_branch
        %8837 = sbr.rel (%p8835) target = $region36
      $region35: #{tpu_custom_call.1} parent=31 // pred_region
        %s8838 = smul.u32 64, %s14
      $region36: #{tpu_custom_call.1} parent=31 // pred_fallthru
        _
    $region32: #{tpu_custom_call.1} parent=5 // pred_fallthru
      _
    %p8839 = scmp.le.s32.totalorder 2, %s9
    // Predicated region
    $region37: #{tpu_custom_call.1} parent=5 // pred_check
      %p8840 = pneg %p8839
    $region38: #{tpu_custom_call.1} parent=5 // pred_check_branch
      %8842 = sbr.rel (%p8840) target = $region40
    $region39: #{tpu_custom_call.1} parent=5 // pred_region
      %s8843 = ssub.s32 %s9, 2
      // Predicated region
      $region41: #{tpu_custom_call.1} parent=39 // pred_check
        %p8844 = pneg %p106
      $region42: #{tpu_custom_call.1} parent=39 // pred_check_branch
        %8846 = sbr.rel (%p8844) target = $region44
      $region43: #{tpu_custom_call.1} parent=39 // pred_region
        %s8847 = smul.u32 64, %s15
        %p8848 = scmp.lt.s32.totalorder %s8847, 255
        %s8849 = scalar_select %p8848, %s8847, 255
        %s8850 = smul.addr %s8849, 8
        %s8851 = scalar_lea.vmem %s3, %s8850
      $region44: #{tpu_custom_call.1} parent=39 // pred_fallthru
        _
    $region40: #{tpu_custom_call.1} parent=5 // pred_fallthru
      _
  $region6: #{tpu_custom_call.1} parent=0 // loop_footer
    %s13 = sadd.s32 1, %s9
  $region7: #{tpu_custom_call.1} parent=0 // loop_footer_branch
    %8 = sbr.rel target = $region3
  $region8: #{tpu_custom_call.1} parent=0 // loop_exit
    _

</llo_original>
